<compile_context>
chip_gen: v6e
topology: v6e:2x2x1
jax: 0.10.0
libtpu: 0.0.40
codegen_flags: <defaults>
</compile_context>

<pallas_src>
import numpy as np

import jax
import jax.numpy as jnp
from jax.experimental import pallas as pl
from jax.experimental.pallas import tpu as pltpu


# ---------------------------------------------------------------------------
# Fused Pallas kernel: conv1 + pool1 + conv2 + pool2 + linear head, per image.
# ---------------------------------------------------------------------------
def fused_kernel(x_ref, w1_ref, b1_ref, m1_ref, w2_ref, b2_ref, m2_ref,
                 sel_ref, wl_ref, bl_ref, o_ref,
                 col1_ref, col2_ref, h1p_ref):
    """All activations stay in VMEM; the only HBM write is the (10,1) logits.

    x_ref   : (1, 8, 1156)  Cin padded 3->8, H zero-padded by 2, row-major flat,
                            2-lane front/back pad
    w1_ref  : (16, 200)     conv1 weight, column = (kh*5+kw)*8 + ci
    b1_ref  : (16, 1)
    m1_ref  : (200, 1024)   host-expanded conv1 width-padding mask
    w2_ref  : (32, 144)     conv2 weight, column = (kh*3+kw)*16 + ci
    b2_ref  : (32, 1)
    m2_ref  : (144, 1024)   host-expanded conv2 width-padding mask (dilated grid)
    sel_ref : (64, 1024)    0/1 selector of the 64 valid pooled conv2 lanes
    wl_ref  : (10, 32, 64)  classifier weight (PyTorch (C,H,W) flatten order)
    bl_ref  : (10, 1)
    o_ref   : (1, 10, 1)    logits for this image
    col1_ref: (200, 1024)   VMEM scratch: conv1 im2col columns
    col2_ref: (144, 1024)   VMEM scratch: conv2 im2col columns
    h1p_ref : (16, 1280)    VMEM scratch: pooled conv1 + 128-lane H-pad margins

    Load-bearing invariants:
      * pooling uses circular rolls; wrapped lanes and the junk at non-dilated
        lanes only ever reach positions that are width-masked or never selected
        (valid lanes: 64i+2j after pool1, 128i+4j after pool2).
      * bias + ReLU applied AFTER max-pool is exact: bias is a per-channel
        constant and ReLU is monotone.
    """
    HW = 1024  # dense 32x32 lane grid shared by both conv layers

    # ---- conv1 (5x5, pad 2): 25 taps x 8 padded-Cin sublanes -> aligned scratch
    x = x_ref[0]                                            # (8, 1156)
    for kh in range(5):
        for kw in range(5):
            k = kh * 5 + kw
            s = kh * 32 + kw                                # constant lane shift
            col1_ref[k * 8:(k + 1) * 8, :] = x[:, s:s + HW]
    col1_ref[...] = col1_ref[...] * m1_ref[...]             # one dense mask pass
    y1 = jnp.dot(w1_ref[...], col1_ref[...],
                 preferred_element_type=jnp.float32)        # (16, 1024)

    # ---- 2x2 max-pool on the (h*32+w) lane grid, then bias + ReLU
    a1 = jnp.maximum(y1, jnp.roll(y1, -1, axis=1))
    p1 = jnp.maximum(a1, jnp.roll(a1, -32, axis=1))
    h1 = jnp.maximum(p1 + b1_ref[...], 0.0)                 # valid at 64*i + 2*j

    # ---- conv2 (3x3, pad 1) on the dilated lane grid; 128-lane aligned margins
    h1p_ref[:, :128] = jnp.zeros((16, 128), jnp.float32)
    h1p_ref[:, 1152:] = jnp.zeros((16, 128), jnp.float32)
    h1p_ref[:, 128:1152] = h1                               # lane-aligned copy
    for kh in range(3):
        for kw in range(3):
            k = kh * 3 + kw
            s = 62 + 64 * kh + 2 * kw
            col2_ref[k * 16:(k + 1) * 16, :] = h1p_ref[:, s:s + HW]
    col2_ref[...] = col2_ref[...] * m2_ref[...]
    y2 = jnp.dot(w2_ref[...], col2_ref[...],
                 preferred_element_type=jnp.float32)        # (32, 1024)

    a2 = jnp.maximum(y2, jnp.roll(y2, -2, axis=1))
    p2 = jnp.maximum(a2, jnp.roll(a2, -64, axis=1))
    h2 = jnp.maximum(p2 + b2_ref[...], 0.0)                 # valid at 128*i + 4*j

    # ---- compact the 64 valid pooled pixels with the host-built 0/1 matmul
    feats = jax.lax.dot_general(h2, sel_ref[...], (((1,), (1,)), ((), ())),
                                preferred_element_type=jnp.float32)  # (32, 64)

    # ---- fused classifier head: logits[o] = sum_{c,m} wl[o,c,m]*feats[c,m] + bl
    prod = wl_ref[...] * feats[None, :, :]                  # (10, 32, 64)
    r1 = jnp.sum(prod, axis=2)                              # (10, 32)
    logits = jnp.sum(r1, axis=1, keepdims=True) + bl_ref[...]   # (10, 1)
    o_ref[0] = logits.astype(o_ref.dtype)


# ---------------------------------------------------------------------------
# classifier_2 forward (host glue: cheap padding / reshapes only, no im2col)
# ---------------------------------------------------------------------------
def classifier_2_forward(x_nchw, params):
    w1, b1, w2, b2, wl, bl = params   # PyTorch layouts: OIHW convs, (10, 2048) linear
    N = x_nchw.shape[0]

    # conv1 input: Cin 3->8, H-pad by 2, row-major flatten, 2-lane front/back pad.
    xp = jnp.pad(x_nchw, ((0, 0), (0, 5), (2, 2), (0, 0)))               # (N, 8, 36, 32)
    xbuf = jnp.pad(xp.reshape(N, 8, 36 * 32), ((0, 0), (0, 0), (2, 2)))  # (N, 8, 1156)

    # Weights laid out to match the in-kernel column assembly.
    w1m = jnp.pad(jnp.transpose(w1, (0, 2, 3, 1)),                        # (16,5,5,8)
                  ((0, 0), (0, 0), (0, 0), (0, 5))).reshape(16, 200)
    w2m = jnp.transpose(w2, (0, 2, 3, 1)).reshape(32, 144)
    wlr = wl.reshape(10, 32, 64)                                          # (C,H,W) flatten

    # Host-expanded static width-padding masks + pooled-pixel selector (all constant).
    lane = np.arange(1024)
    wcol = lane % 32                       # conv1 grid: lane = 32*h + w
    m1_kw = np.stack([(wcol + kw - 2 >= 0) & (wcol + kw - 2 < 32)
                      for kw in range(5)]).astype(np.float32)             # (5, 1024)
    m1 = np.repeat(np.tile(m1_kw, (5, 1)), 8, axis=0)                     # (200, 1024)
    u = lane % 64                          # conv2 dilated grid: lane = 64*h2 + 2*w2
    m2_kw = np.stack([(u >= 2 - 2 * kw) & (u < 34 - 2 * kw)
                      for kw in range(3)]).astype(np.float32)             # (3, 1024)
    m2 = np.repeat(np.tile(m2_kw, (3, 1)), 16, axis=0)                    # (144, 1024)
    m = np.arange(64)
    sel_lane = 128 * (m // 8) + 4 * (m % 8)                               # valid pool2 lanes
    sel = (lane[None, :] == sel_lane[:, None]).astype(np.float32)         # (64, 1024)

    out = pl.pallas_call(
        fused_kernel,
        out_shape=jax.ShapeDtypeStruct((N, 10, 1), jnp.float32),
        grid=(N,),
        in_specs=[
            pl.BlockSpec((1, 8, 1156), lambda n: (n, 0, 0)),
            pl.BlockSpec((16, 200), lambda n: (0, 0)),
            pl.BlockSpec((16, 1), lambda n: (0, 0)),
            pl.BlockSpec((200, 1024), lambda n: (0, 0)),
            pl.BlockSpec((32, 144), lambda n: (0, 0)),
            pl.BlockSpec((32, 1), lambda n: (0, 0)),
            pl.BlockSpec((144, 1024), lambda n: (0, 0)),
            pl.BlockSpec((64, 1024), lambda n: (0, 0)),
            pl.BlockSpec((10, 32, 64), lambda n: (0, 0, 0)),
            pl.BlockSpec((10, 1), lambda n: (0, 0)),
        ],
        out_specs=pl.BlockSpec((1, 10, 1), lambda n: (n, 0, 0)),
        scratch_shapes=[
            pltpu.VMEM((200, 1024), jnp.float32),   # conv1 im2col columns
            pltpu.VMEM((144, 1024), jnp.float32),   # conv2 im2col columns
            pltpu.VMEM((16, 1280), jnp.float32),    # padded pooled-conv1 plane
        ],
        compiler_params=pltpu.CompilerParams(
            dimension_semantics=("parallel",)),     # one image per TC on v7x
    )(xbuf, w1m, b1.reshape(16, 1), jnp.asarray(m1),
      w2m, b2.reshape(32, 1), jnp.asarray(m2), jnp.asarray(sel),
      wlr, bl.reshape(10, 1))

    return out.reshape(N, 10)


# ---------------------------------------------------------------------------
# Pure-JAX reference (mirrors the PyTorch module semantics)
# ---------------------------------------------------------------------------
def reference_forward(x_nchw, params):
    w1, b1, w2, b2, wl, bl = params

    def conv(x, w, b, pad):
        y = jax.lax.conv_general_dilated(
            x, w, window_strides=(1, 1), padding=[(pad, pad), (pad, pad)],
            dimension_numbers=('NCHW', 'OIHW', 'NCHW'))
        return y + b[None, :, None, None]

    def pool(x):
        return jax.lax.reduce_window(x, -jnp.inf, jax.lax.max,
                                     (1, 1, 2, 2), (1, 1, 2, 2), 'VALID')

    y = pool(jax.nn.relu(conv(x_nchw, w1, b1, 2)))
    y = pool(jax.nn.relu(conv(y, w2, b2, 1)))
    y = y.reshape(y.shape[0], -1)
    return y @ wl.T + bl


# ---------------------------------------------------------------------------
if __name__ == "__main__":
    key = jax.random.PRNGKey(0)
    k_x, k_w1, k_b1, k_w2, k_b2, k_wl, k_bl = jax.random.split(key, 7)

    # Input: batch=2, 3x32x32 (the Linear(32*8*8, 10) layer implies 32x32 input).
    x = jax.random.normal(k_x, (2, 3, 32, 32), dtype=jnp.float32)

    # Deterministic synthetic parameters (PyTorch layouts).
    w1 = 0.1 * jax.random.normal(k_w1, (16, 3, 5, 5), dtype=jnp.float32)     # conv1
    b1 = 0.1 * jax.random.normal(k_b1, (16,), dtype=jnp.float32)
    w2 = 0.1 * jax.random.normal(k_w2, (32, 16, 3, 3), dtype=jnp.float32)    # conv2
    b2 = 0.1 * jax.random.normal(k_b2, (32,), dtype=jnp.float32)
    wl = 0.05 * jax.random.normal(k_wl, (10, 32 * 8 * 8), dtype=jnp.float32)  # head
    bl = 0.05 * jax.random.normal(k_bl, (10,), dtype=jnp.float32)
    params = (w1, b1, w2, b2, wl, bl)

    out = jax.jit(classifier_2_forward)(x, params)
    out = jax.block_until_ready(out)
    assert out.shape == (2, 10), out.shape

    ref = jax.block_until_ready(reference_forward(x, params))
    assert jnp.allclose(out, ref, atol=1e-3, rtol=1e-3), \
        f"max abs err {jnp.max(jnp.abs(out - ref))}"

    print("KERNEL_OK")
</pallas_src>

<mosaic_0001>
module attributes {stable_mosaic.version = 11 : i64} {
  func.func @fused_kernel(%arg0: i32, %arg1: memref<1x8x1156xf32, #tpu.memory_space<vmem>>, %arg2: memref<16x200xf32, #tpu.memory_space<vmem>>, %arg3: memref<16x1xf32, #tpu.memory_space<vmem>>, %arg4: memref<200x1024xf32, #tpu.memory_space<vmem>>, %arg5: memref<32x144xf32, #tpu.memory_space<vmem>>, %arg6: memref<32x1xf32, #tpu.memory_space<vmem>>, %arg7: memref<144x1024xf32, #tpu.memory_space<vmem>>, %arg8: memref<64x1024xf32, #tpu.memory_space<vmem>>, %arg9: memref<10x32x64xf32, #tpu.memory_space<vmem>>, %arg10: memref<10x1xf32, #tpu.memory_space<vmem>>, %arg11: memref<1x10x1xf32, #tpu.memory_space<vmem>>, %arg12: memref<200x1024xf32, #tpu.memory_space<vmem>>, %arg13: memref<144x1024xf32, #tpu.memory_space<vmem>>, %arg14: memref<16x1280xf32, #tpu.memory_space<vmem>>) attributes {dimension_semantics = [#tpu.dimension_semantics<parallel>], iteration_bounds = array<i64: 2>, scalar_prefetch = 0 : i64, scratch_operands = 3 : i64, tpu.core_type = #tpu.core_type<tc>, window_params = [{transform_indices = @transform_0, window_bounds = array<i64: 1, 8, 1156>}, {pipeline_mode = #tpu.pipeline_mode<synchronous>, transform_indices = @transform_1, window_bounds = array<i64: 16, 200>}, {pipeline_mode = #tpu.pipeline_mode<synchronous>, transform_indices = @transform_2, window_bounds = array<i64: 16, 1>}, {pipeline_mode = #tpu.pipeline_mode<synchronous>, transform_indices = @transform_3, window_bounds = array<i64: 200, 1024>}, {pipeline_mode = #tpu.pipeline_mode<synchronous>, transform_indices = @transform_4, window_bounds = array<i64: 32, 144>}, {pipeline_mode = #tpu.pipeline_mode<synchronous>, transform_indices = @transform_5, window_bounds = array<i64: 32, 1>}, {pipeline_mode = #tpu.pipeline_mode<synchronous>, transform_indices = @transform_6, window_bounds = array<i64: 144, 1024>}, {pipeline_mode = #tpu.pipeline_mode<synchronous>, transform_indices = @transform_7, window_bounds = array<i64: 64, 1024>}, {pipeline_mode = #tpu.pipeline_mode<synchronous>, transform_indices = @transform_8, window_bounds = array<i64: 10, 32, 64>}, {pipeline_mode = #tpu.pipeline_mode<synchronous>, transform_indices = @transform_9, window_bounds = array<i64: 10, 1>}, {transform_indices = @transform_10, window_bounds = array<i64: 1, 10, 1>}]} {
    %c0 = arith.constant 0 : index
    %c0_0 = arith.constant 0 : index
    %c0_1 = arith.constant 0 : index
    %0 = vector.load %arg1[%c0, %c0_0, %c0_1] : memref<1x8x1156xf32, #tpu.memory_space<vmem>>, vector<1x8x1156xf32>
    %1 = vector.shape_cast %0 : vector<1x8x1156xf32> to vector<8x1156xf32>
    %2 = vector.extract_strided_slice %1 {offsets = [0, 0], sizes = [8, 1024], strides = [1, 1]} : vector<8x1156xf32> to vector<8x1024xf32>
    %c0_2 = arith.constant 0 : index
    %c0_3 = arith.constant 0 : index
    %3 = vector.load %arg12[%c0_2, %c0_3] : memref<200x1024xf32, #tpu.memory_space<vmem>>, vector<8x1024xf32>
    tpu.vector_store %arg12[%c0_2, %c0_3], %2 {strides = array<i32>} : memref<200x1024xf32, #tpu.memory_space<vmem>>, vector<8x1024xf32>,
    %4 = vector.extract_strided_slice %1 {offsets = [0, 1], sizes = [8, 1024], strides = [1, 1]} : vector<8x1156xf32> to vector<8x1024xf32>
    %c8 = arith.constant 8 : index
    %c0_4 = arith.constant 0 : index
    %5 = vector.load %arg12[%c8, %c0_4] : memref<200x1024xf32, #tpu.memory_space<vmem>>, vector<8x1024xf32>
    tpu.vector_store %arg12[%c8, %c0_4], %4 {strides = array<i32>} : memref<200x1024xf32, #tpu.memory_space<vmem>>, vector<8x1024xf32>,
    %6 = vector.extract_strided_slice %1 {offsets = [0, 2], sizes = [8, 1024], strides = [1, 1]} : vector<8x1156xf32> to vector<8x1024xf32>
    %c16 = arith.constant 16 : index
    %c0_5 = arith.constant 0 : index
    %7 = vector.load %arg12[%c16, %c0_5] : memref<200x1024xf32, #tpu.memory_space<vmem>>, vector<8x1024xf32>
    tpu.vector_store %arg12[%c16, %c0_5], %6 {strides = array<i32>} : memref<200x1024xf32, #tpu.memory_space<vmem>>, vector<8x1024xf32>,
    %8 = vector.extract_strided_slice %1 {offsets = [0, 3], sizes = [8, 1024], strides = [1, 1]} : vector<8x1156xf32> to vector<8x1024xf32>
    %c24 = arith.constant 24 : index
    %c0_6 = arith.constant 0 : index
    %9 = vector.load %arg12[%c24, %c0_6] : memref<200x1024xf32, #tpu.memory_space<vmem>>, vector<8x1024xf32>
    tpu.vector_store %arg12[%c24, %c0_6], %8 {strides = array<i32>} : memref<200x1024xf32, #tpu.memory_space<vmem>>, vector<8x1024xf32>,
    %10 = vector.extract_strided_slice %1 {offsets = [0, 4], sizes = [8, 1024], strides = [1, 1]} : vector<8x1156xf32> to vector<8x1024xf32>
    %c32 = arith.constant 32 : index
    %c0_7 = arith.constant 0 : index
    %11 = vector.load %arg12[%c32, %c0_7] : memref<200x1024xf32, #tpu.memory_space<vmem>>, vector<8x1024xf32>
    tpu.vector_store %arg12[%c32, %c0_7], %10 {strides = array<i32>} : memref<200x1024xf32, #tpu.memory_space<vmem>>, vector<8x1024xf32>,
    %12 = vector.extract_strided_slice %1 {offsets = [0, 32], sizes = [8, 1024], strides = [1, 1]} : vector<8x1156xf32> to vector<8x1024xf32>
    %c40 = arith.constant 40 : index
    %c0_8 = arith.constant 0 : index
    %13 = vector.load %arg12[%c40, %c0_8] : memref<200x1024xf32, #tpu.memory_space<vmem>>, vector<8x1024xf32>
    tpu.vector_store %arg12[%c40, %c0_8], %12 {strides = array<i32>} : memref<200x1024xf32, #tpu.memory_space<vmem>>, vector<8x1024xf32>,
    %14 = vector.extract_strided_slice %1 {offsets = [0, 33], sizes = [8, 1024], strides = [1, 1]} : vector<8x1156xf32> to vector<8x1024xf32>
    %c48 = arith.constant 48 : index
    %c0_9 = arith.constant 0 : index
    %15 = vector.load %arg12[%c48, %c0_9] : memref<200x1024xf32, #tpu.memory_space<vmem>>, vector<8x1024xf32>
    tpu.vector_store %arg12[%c48, %c0_9], %14 {strides = array<i32>} : memref<200x1024xf32, #tpu.memory_space<vmem>>, vector<8x1024xf32>,
    %16 = vector.extract_strided_slice %1 {offsets = [0, 34], sizes = [8, 1024], strides = [1, 1]} : vector<8x1156xf32> to vector<8x1024xf32>
    %c56 = arith.constant 56 : index
    %c0_10 = arith.constant 0 : index
    %17 = vector.load %arg12[%c56, %c0_10] : memref<200x1024xf32, #tpu.memory_space<vmem>>, vector<8x1024xf32>
    tpu.vector_store %arg12[%c56, %c0_10], %16 {strides = array<i32>} : memref<200x1024xf32, #tpu.memory_space<vmem>>, vector<8x1024xf32>,
    %18 = vector.extract_strided_slice %1 {offsets = [0, 35], sizes = [8, 1024], strides = [1, 1]} : vector<8x1156xf32> to vector<8x1024xf32>
    %c64 = arith.constant 64 : index
    %c0_11 = arith.constant 0 : index
    %19 = vector.load %arg12[%c64, %c0_11] : memref<200x1024xf32, #tpu.memory_space<vmem>>, vector<8x1024xf32>
    tpu.vector_store %arg12[%c64, %c0_11], %18 {strides = array<i32>} : memref<200x1024xf32, #tpu.memory_space<vmem>>, vector<8x1024xf32>,
    %20 = vector.extract_strided_slice %1 {offsets = [0, 36], sizes = [8, 1024], strides = [1, 1]} : vector<8x1156xf32> to vector<8x1024xf32>
    %c72 = arith.constant 72 : index
    %c0_12 = arith.constant 0 : index
    %21 = vector.load %arg12[%c72, %c0_12] : memref<200x1024xf32, #tpu.memory_space<vmem>>, vector<8x1024xf32>
    tpu.vector_store %arg12[%c72, %c0_12], %20 {strides = array<i32>} : memref<200x1024xf32, #tpu.memory_space<vmem>>, vector<8x1024xf32>,
    %22 = vector.extract_strided_slice %1 {offsets = [0, 64], sizes = [8, 1024], strides = [1, 1]} : vector<8x1156xf32> to vector<8x1024xf32>
    %c80 = arith.constant 80 : index
    %c0_13 = arith.constant 0 : index
    %23 = vector.load %arg12[%c80, %c0_13] : memref<200x1024xf32, #tpu.memory_space<vmem>>, vector<8x1024xf32>
    tpu.vector_store %arg12[%c80, %c0_13], %22 {strides = array<i32>} : memref<200x1024xf32, #tpu.memory_space<vmem>>, vector<8x1024xf32>,
    %24 = vector.extract_strided_slice %1 {offsets = [0, 65], sizes = [8, 1024], strides = [1, 1]} : vector<8x1156xf32> to vector<8x1024xf32>
    %c88 = arith.constant 88 : index
    %c0_14 = arith.constant 0 : index
    %25 = vector.load %arg12[%c88, %c0_14] : memref<200x1024xf32, #tpu.memory_space<vmem>>, vector<8x1024xf32>
    tpu.vector_store %arg12[%c88, %c0_14], %24 {strides = array<i32>} : memref<200x1024xf32, #tpu.memory_space<vmem>>, vector<8x1024xf32>,
    %26 = vector.extract_strided_slice %1 {offsets = [0, 66], sizes = [8, 1024], strides = [1, 1]} : vector<8x1156xf32> to vector<8x1024xf32>
    %c96 = arith.constant 96 : index
    %c0_15 = arith.constant 0 : index
    %27 = vector.load %arg12[%c96, %c0_15] : memref<200x1024xf32, #tpu.memory_space<vmem>>, vector<8x1024xf32>
    tpu.vector_store %arg12[%c96, %c0_15], %26 {strides = array<i32>} : memref<200x1024xf32, #tpu.memory_space<vmem>>, vector<8x1024xf32>,
    %28 = vector.extract_strided_slice %1 {offsets = [0, 67], sizes = [8, 1024], strides = [1, 1]} : vector<8x1156xf32> to vector<8x1024xf32>
    %c104 = arith.constant 104 : index
    %c0_16 = arith.constant 0 : index
    %29 = vector.load %arg12[%c104, %c0_16] : memref<200x1024xf32, #tpu.memory_space<vmem>>, vector<8x1024xf32>
    tpu.vector_store %arg12[%c104, %c0_16], %28 {strides = array<i32>} : memref<200x1024xf32, #tpu.memory_space<vmem>>, vector<8x1024xf32>,
    %30 = vector.extract_strided_slice %1 {offsets = [0, 68], sizes = [8, 1024], strides = [1, 1]} : vector<8x1156xf32> to vector<8x1024xf32>
    %c112 = arith.constant 112 : index
    %c0_17 = arith.constant 0 : index
    %31 = vector.load %arg12[%c112, %c0_17] : memref<200x1024xf32, #tpu.memory_space<vmem>>, vector<8x1024xf32>
    tpu.vector_store %arg12[%c112, %c0_17], %30 {strides = array<i32>} : memref<200x1024xf32, #tpu.memory_space<vmem>>, vector<8x1024xf32>,
    %32 = vector.extract_strided_slice %1 {offsets = [0, 96], sizes = [8, 1024], strides = [1, 1]} : vector<8x1156xf32> to vector<8x1024xf32>
    %c120 = arith.constant 120 : index
    %c0_18 = arith.constant 0 : index
    %33 = vector.load %arg12[%c120, %c0_18] : memref<200x1024xf32, #tpu.memory_space<vmem>>, vector<8x1024xf32>
    tpu.vector_store %arg12[%c120, %c0_18], %32 {strides = array<i32>} : memref<200x1024xf32, #tpu.memory_space<vmem>>, vector<8x1024xf32>,
    %34 = vector.extract_strided_slice %1 {offsets = [0, 97], sizes = [8, 1024], strides = [1, 1]} : vector<8x1156xf32> to vector<8x1024xf32>
    %c128 = arith.constant 128 : index
    %c0_19 = arith.constant 0 : index
    %35 = vector.load %arg12[%c128, %c0_19] : memref<200x1024xf32, #tpu.memory_space<vmem>>, vector<8x1024xf32>
    tpu.vector_store %arg12[%c128, %c0_19], %34 {strides = array<i32>} : memref<200x1024xf32, #tpu.memory_space<vmem>>, vector<8x1024xf32>,
    %36 = vector.extract_strided_slice %1 {offsets = [0, 98], sizes = [8, 1024], strides = [1, 1]} : vector<8x1156xf32> to vector<8x1024xf32>
    %c136 = arith.constant 136 : index
    %c0_20 = arith.constant 0 : index
    %37 = vector.load %arg12[%c136, %c0_20] : memref<200x1024xf32, #tpu.memory_space<vmem>>, vector<8x1024xf32>
    tpu.vector_store %arg12[%c136, %c0_20], %36 {strides = array<i32>} : memref<200x1024xf32, #tpu.memory_space<vmem>>, vector<8x1024xf32>,
    %38 = vector.extract_strided_slice %1 {offsets = [0, 99], sizes = [8, 1024], strides = [1, 1]} : vector<8x1156xf32> to vector<8x1024xf32>
    %c144 = arith.constant 144 : index
    %c0_21 = arith.constant 0 : index
    %39 = vector.load %arg12[%c144, %c0_21] : memref<200x1024xf32, #tpu.memory_space<vmem>>, vector<8x1024xf32>
    tpu.vector_store %arg12[%c144, %c0_21], %38 {strides = array<i32>} : memref<200x1024xf32, #tpu.memory_space<vmem>>, vector<8x1024xf32>,
    %40 = vector.extract_strided_slice %1 {offsets = [0, 100], sizes = [8, 1024], strides = [1, 1]} : vector<8x1156xf32> to vector<8x1024xf32>
    %c152 = arith.constant 152 : index
    %c0_22 = arith.constant 0 : index
    %41 = vector.load %arg12[%c152, %c0_22] : memref<200x1024xf32, #tpu.memory_space<vmem>>, vector<8x1024xf32>
    tpu.vector_store %arg12[%c152, %c0_22], %40 {strides = array<i32>} : memref<200x1024xf32, #tpu.memory_space<vmem>>, vector<8x1024xf32>,
    %42 = vector.extract_strided_slice %1 {offsets = [0, 128], sizes = [8, 1024], strides = [1, 1]} : vector<8x1156xf32> to vector<8x1024xf32>
    %c160 = arith.constant 160 : index
    %c0_23 = arith.constant 0 : index
    %43 = vector.load %arg12[%c160, %c0_23] : memref<200x1024xf32, #tpu.memory_space<vmem>>, vector<8x1024xf32>
    tpu.vector_store %arg12[%c160, %c0_23], %42 {strides = array<i32>} : memref<200x1024xf32, #tpu.memory_space<vmem>>, vector<8x1024xf32>,
    %44 = vector.extract_strided_slice %1 {offsets = [0, 129], sizes = [8, 1024], strides = [1, 1]} : vector<8x1156xf32> to vector<8x1024xf32>
    %c168 = arith.constant 168 : index
    %c0_24 = arith.constant 0 : index
    %45 = vector.load %arg12[%c168, %c0_24] : memref<200x1024xf32, #tpu.memory_space<vmem>>, vector<8x1024xf32>
    tpu.vector_store %arg12[%c168, %c0_24], %44 {strides = array<i32>} : memref<200x1024xf32, #tpu.memory_space<vmem>>, vector<8x1024xf32>,
    %46 = vector.extract_strided_slice %1 {offsets = [0, 130], sizes = [8, 1024], strides = [1, 1]} : vector<8x1156xf32> to vector<8x1024xf32>
    %c176 = arith.constant 176 : index
    %c0_25 = arith.constant 0 : index
    %47 = vector.load %arg12[%c176, %c0_25] : memref<200x1024xf32, #tpu.memory_space<vmem>>, vector<8x1024xf32>
    tpu.vector_store %arg12[%c176, %c0_25], %46 {strides = array<i32>} : memref<200x1024xf32, #tpu.memory_space<vmem>>, vector<8x1024xf32>,
    %48 = vector.extract_strided_slice %1 {offsets = [0, 131], sizes = [8, 1024], strides = [1, 1]} : vector<8x1156xf32> to vector<8x1024xf32>
    %c184 = arith.constant 184 : index
    %c0_26 = arith.constant 0 : index
    %49 = vector.load %arg12[%c184, %c0_26] : memref<200x1024xf32, #tpu.memory_space<vmem>>, vector<8x1024xf32>
    tpu.vector_store %arg12[%c184, %c0_26], %48 {strides = array<i32>} : memref<200x1024xf32, #tpu.memory_space<vmem>>, vector<8x1024xf32>,
    %50 = vector.extract_strided_slice %1 {offsets = [0, 132], sizes = [8, 1024], strides = [1, 1]} : vector<8x1156xf32> to vector<8x1024xf32>
    %c192 = arith.constant 192 : index
    %c0_27 = arith.constant 0 : index
    %51 = vector.load %arg12[%c192, %c0_27] : memref<200x1024xf32, #tpu.memory_space<vmem>>, vector<8x1024xf32>
    tpu.vector_store %arg12[%c192, %c0_27], %50 {strides = array<i32>} : memref<200x1024xf32, #tpu.memory_space<vmem>>, vector<8x1024xf32>,
    %c0_28 = arith.constant 0 : index
    %c0_29 = arith.constant 0 : index
    %52 = vector.load %arg12[%c0_28, %c0_29] : memref<200x1024xf32, #tpu.memory_space<vmem>>, vector<200x1024xf32>
    %c0_30 = arith.constant 0 : index
    %c0_31 = arith.constant 0 : index
    %53 = vector.load %arg4[%c0_30, %c0_31] : memref<200x1024xf32, #tpu.memory_space<vmem>>, vector<200x1024xf32>
    %54 = arith.mulf %52, %53 : vector<200x1024xf32>
    %c0_32 = arith.constant 0 : index
    %c0_33 = arith.constant 0 : index
    %55 = vector.load %arg12[%c0_32, %c0_33] : memref<200x1024xf32, #tpu.memory_space<vmem>>, vector<200x1024xf32>
    tpu.vector_store %arg12[%c0_32, %c0_33], %54 {strides = array<i32>} : memref<200x1024xf32, #tpu.memory_space<vmem>>, vector<200x1024xf32>,
    %c0_34 = arith.constant 0 : index
    %c0_35 = arith.constant 0 : index
    %56 = vector.load %arg2[%c0_34, %c0_35] : memref<16x200xf32, #tpu.memory_space<vmem>>, vector<16x200xf32>
    %c0_36 = arith.constant 0 : index
    %c0_37 = arith.constant 0 : index
    %57 = vector.load %arg12[%c0_36, %c0_37] : memref<200x1024xf32, #tpu.memory_space<vmem>>, vector<200x1024xf32>
    %cst = arith.constant dense<0.000000e+00> : vector<16x1024xf32>
    %58 = tpu.matmul %56, %57, %cst {dimension_numbers = #tpu.dot_dimension_numbers<[1], [0], [0], [1], [0, 0, 1, 1], [], []>} : vector<16x200xf32>, vector<200x1024xf32>, vector<16x1024xf32> -> vector<16x1024xf32>
    %59 = vector.extract_strided_slice %58 {offsets = [0, 1], sizes = [16, 1023], strides = [1, 1]} : vector<16x1024xf32> to vector<16x1023xf32>
    %60 = vector.extract_strided_slice %58 {offsets = [0, 0], sizes = [16, 1], strides = [1, 1]} : vector<16x1024xf32> to vector<16x1xf32>
    %61 = tpu.concatenate %59, %60 in 1 : vector<16x1023xf32>, vector<16x1xf32> -> vector<16x1024xf32>
    %62 = arith.maximumf %58, %61 : vector<16x1024xf32>
    %63 = vector.extract_strided_slice %62 {offsets = [0, 32], sizes = [16, 992], strides = [1, 1]} : vector<16x1024xf32> to vector<16x992xf32>
    %64 = vector.extract_strided_slice %62 {offsets = [0, 0], sizes = [16, 32], strides = [1, 1]} : vector<16x1024xf32> to vector<16x32xf32>
    %65 = tpu.concatenate %63, %64 in 1 : vector<16x992xf32>, vector<16x32xf32> -> vector<16x1024xf32>
    %66 = arith.maximumf %62, %65 : vector<16x1024xf32>
    %c0_38 = arith.constant 0 : index
    %c0_39 = arith.constant 0 : index
    %67 = vector.load %arg3[%c0_38, %c0_39] : memref<16x1xf32, #tpu.memory_space<vmem>>, vector<16x1xf32>
    %68 = vector.broadcast %67 : vector<16x1xf32> to vector<16x1024xf32>
    %69 = arith.addf %66, %68 : vector<16x1024xf32>
    %cst_40 = arith.constant 0.000000e+00 : f32
    %70 = vector.broadcast %cst_40 : f32 to vector<16x1024xf32>
    %71 = arith.maximumf %69, %70 : vector<16x1024xf32>
    %cst_41 = arith.constant 0.000000e+00 : f32
    %72 = vector.broadcast %cst_41 : f32 to vector<16x128xf32>
    %c0_42 = arith.constant 0 : index
    %c0_43 = arith.constant 0 : index
    %73 = vector.load %arg14[%c0_42, %c0_43] : memref<16x1280xf32, #tpu.memory_space<vmem>>, vector<16x128xf32>
    tpu.vector_store %arg14[%c0_42, %c0_43], %72 {strides = array<i32>} : memref<16x1280xf32, #tpu.memory_space<vmem>>, vector<16x128xf32>,
    %cst_44 = arith.constant 0.000000e+00 : f32
    %74 = vector.broadcast %cst_44 : f32 to vector<16x128xf32>
    %c0_45 = arith.constant 0 : index
    %c1152 = arith.constant 1152 : index
    %75 = vector.load %arg14[%c0_45, %c1152] : memref<16x1280xf32, #tpu.memory_space<vmem>>, vector<16x128xf32>
    tpu.vector_store %arg14[%c0_45, %c1152], %74 {strides = array<i32>} : memref<16x1280xf32, #tpu.memory_space<vmem>>, vector<16x128xf32>,
    %c0_46 = arith.constant 0 : index
    %c128_47 = arith.constant 128 : index
    %76 = vector.load %arg14[%c0_46, %c128_47] : memref<16x1280xf32, #tpu.memory_space<vmem>>, vector<16x1024xf32>
    tpu.vector_store %arg14[%c0_46, %c128_47], %71 {strides = array<i32>} : memref<16x1280xf32, #tpu.memory_space<vmem>>, vector<16x1024xf32>,
    %c0_48 = arith.constant 0 : index
    %c62 = arith.constant 62 : index
    %77 = vector.load %arg14[%c0_48, %c62] : memref<16x1280xf32, #tpu.memory_space<vmem>>, vector<16x1024xf32>
    %c0_49 = arith.constant 0 : index
    %c0_50 = arith.constant 0 : index
    %78 = vector.load %arg13[%c0_49, %c0_50] : memref<144x1024xf32, #tpu.memory_space<vmem>>, vector<16x1024xf32>
    tpu.vector_store %arg13[%c0_49, %c0_50], %77 {strides = array<i32>} : memref<144x1024xf32, #tpu.memory_space<vmem>>, vector<16x1024xf32>,
    %c0_51 = arith.constant 0 : index
    %c64_52 = arith.constant 64 : index
    %79 = vector.load %arg14[%c0_51, %c64_52] : memref<16x1280xf32, #tpu.memory_space<vmem>>, vector<16x1024xf32>
    %c16_53 = arith.constant 16 : index
    %c0_54 = arith.constant 0 : index
    %80 = vector.load %arg13[%c16_53, %c0_54] : memref<144x1024xf32, #tpu.memory_space<vmem>>, vector<16x1024xf32>
    tpu.vector_store %arg13[%c16_53, %c0_54], %79 {strides = array<i32>} : memref<144x1024xf32, #tpu.memory_space<vmem>>, vector<16x1024xf32>,
    %c0_55 = arith.constant 0 : index
    %c66 = arith.constant 66 : index
    %81 = vector.load %arg14[%c0_55, %c66] : memref<16x1280xf32, #tpu.memory_space<vmem>>, vector<16x1024xf32>
    %c32_56 = arith.constant 32 : index
    %c0_57 = arith.constant 0 : index
    %82 = vector.load %arg13[%c32_56, %c0_57] : memref<144x1024xf32, #tpu.memory_space<vmem>>, vector<16x1024xf32>
    tpu.vector_store %arg13[%c32_56, %c0_57], %81 {strides = array<i32>} : memref<144x1024xf32, #tpu.memory_space<vmem>>, vector<16x1024xf32>,
    %c0_58 = arith.constant 0 : index
    %c126 = arith.constant 126 : index
    %83 = vector.load %arg14[%c0_58, %c126] : memref<16x1280xf32, #tpu.memory_space<vmem>>, vector<16x1024xf32>
    %c48_59 = arith.constant 48 : index
    %c0_60 = arith.constant 0 : index
    %84 = vector.load %arg13[%c48_59, %c0_60] : memref<144x1024xf32, #tpu.memory_space<vmem>>, vector<16x1024xf32>
    tpu.vector_store %arg13[%c48_59, %c0_60], %83 {strides = array<i32>} : memref<144x1024xf32, #tpu.memory_space<vmem>>, vector<16x1024xf32>,
    %c0_61 = arith.constant 0 : index
    %c128_62 = arith.constant 128 : index
    %85 = vector.load %arg14[%c0_61, %c128_62] : memref<16x1280xf32, #tpu.memory_space<vmem>>, vector<16x1024xf32>
    %c64_63 = arith.constant 64 : index
    %c0_64 = arith.constant 0 : index
    %86 = vector.load %arg13[%c64_63, %c0_64] : memref<144x1024xf32, #tpu.memory_space<vmem>>, vector<16x1024xf32>
    tpu.vector_store %arg13[%c64_63, %c0_64], %85 {strides = array<i32>} : memref<144x1024xf32, #tpu.memory_space<vmem>>, vector<16x1024xf32>,
    %c0_65 = arith.constant 0 : index
    %c130 = arith.constant 130 : index
    %87 = vector.load %arg14[%c0_65, %c130] : memref<16x1280xf32, #tpu.memory_space<vmem>>, vector<16x1024xf32>
    %c80_66 = arith.constant 80 : index
    %c0_67 = arith.constant 0 : index
    %88 = vector.load %arg13[%c80_66, %c0_67] : memref<144x1024xf32, #tpu.memory_space<vmem>>, vector<16x1024xf32>
    tpu.vector_store %arg13[%c80_66, %c0_67], %87 {strides = array<i32>} : memref<144x1024xf32, #tpu.memory_space<vmem>>, vector<16x1024xf32>,
    %c0_68 = arith.constant 0 : index
    %c190 = arith.constant 190 : index
    %89 = vector.load %arg14[%c0_68, %c190] : memref<16x1280xf32, #tpu.memory_space<vmem>>, vector<16x1024xf32>
    %c96_69 = arith.constant 96 : index
    %c0_70 = arith.constant 0 : index
    %90 = vector.load %arg13[%c96_69, %c0_70] : memref<144x1024xf32, #tpu.memory_space<vmem>>, vector<16x1024xf32>
    tpu.vector_store %arg13[%c96_69, %c0_70], %89 {strides = array<i32>} : memref<144x1024xf32, #tpu.memory_space<vmem>>, vector<16x1024xf32>,
    %c0_71 = arith.constant 0 : index
    %c192_72 = arith.constant 192 : index
    %91 = vector.load %arg14[%c0_71, %c192_72] : memref<16x1280xf32, #tpu.memory_space<vmem>>, vector<16x1024xf32>
    %c112_73 = arith.constant 112 : index
    %c0_74 = arith.constant 0 : index
    %92 = vector.load %arg13[%c112_73, %c0_74] : memref<144x1024xf32, #tpu.memory_space<vmem>>, vector<16x1024xf32>
    tpu.vector_store %arg13[%c112_73, %c0_74], %91 {strides = array<i32>} : memref<144x1024xf32, #tpu.memory_space<vmem>>, vector<16x1024xf32>,
    %c0_75 = arith.constant 0 : index
    %c194 = arith.constant 194 : index
    %93 = vector.load %arg14[%c0_75, %c194] : memref<16x1280xf32, #tpu.memory_space<vmem>>, vector<16x1024xf32>
    %c128_76 = arith.constant 128 : index
    %c0_77 = arith.constant 0 : index
    %94 = vector.load %arg13[%c128_76, %c0_77] : memref<144x1024xf32, #tpu.memory_space<vmem>>, vector<16x1024xf32>
    tpu.vector_store %arg13[%c128_76, %c0_77], %93 {strides = array<i32>} : memref<144x1024xf32, #tpu.memory_space<vmem>>, vector<16x1024xf32>,
    %c0_78 = arith.constant 0 : index
    %c0_79 = arith.constant 0 : index
    %95 = vector.load %arg13[%c0_78, %c0_79] : memref<144x1024xf32, #tpu.memory_space<vmem>>, vector<144x1024xf32>
    %c0_80 = arith.constant 0 : index
    %c0_81 = arith.constant 0 : index
    %96 = vector.load %arg7[%c0_80, %c0_81] : memref<144x1024xf32, #tpu.memory_space<vmem>>, vector<144x1024xf32>
    %97 = arith.mulf %95, %96 : vector<144x1024xf32>
    %c0_82 = arith.constant 0 : index
    %c0_83 = arith.constant 0 : index
    %98 = vector.load %arg13[%c0_82, %c0_83] : memref<144x1024xf32, #tpu.memory_space<vmem>>, vector<144x1024xf32>
    tpu.vector_store %arg13[%c0_82, %c0_83], %97 {strides = array<i32>} : memref<144x1024xf32, #tpu.memory_space<vmem>>, vector<144x1024xf32>,
    %c0_84 = arith.constant 0 : index
    %c0_85 = arith.constant 0 : index
    %99 = vector.load %arg5[%c0_84, %c0_85] : memref<32x144xf32, #tpu.memory_space<vmem>>, vector<32x144xf32>
    %c0_86 = arith.constant 0 : index
    %c0_87 = arith.constant 0 : index
    %100 = vector.load %arg13[%c0_86, %c0_87] : memref<144x1024xf32, #tpu.memory_space<vmem>>, vector<144x1024xf32>
    %cst_88 = arith.constant dense<0.000000e+00> : vector<32x1024xf32>
    %101 = tpu.matmul %99, %100, %cst_88 {dimension_numbers = #tpu.dot_dimension_numbers<[1], [0], [0], [1], [0, 0, 1, 1], [], []>} : vector<32x144xf32>, vector<144x1024xf32>, vector<32x1024xf32> -> vector<32x1024xf32>
    %102 = vector.extract_strided_slice %101 {offsets = [0, 2], sizes = [32, 1022], strides = [1, 1]} : vector<32x1024xf32> to vector<32x1022xf32>
    %103 = vector.extract_strided_slice %101 {offsets = [0, 0], sizes = [32, 2], strides = [1, 1]} : vector<32x1024xf32> to vector<32x2xf32>
    %104 = tpu.concatenate %102, %103 in 1 : vector<32x1022xf32>, vector<32x2xf32> -> vector<32x1024xf32>
    %105 = arith.maximumf %101, %104 : vector<32x1024xf32>
    %106 = vector.extract_strided_slice %105 {offsets = [0, 64], sizes = [32, 960], strides = [1, 1]} : vector<32x1024xf32> to vector<32x960xf32>
    %107 = vector.extract_strided_slice %105 {offsets = [0, 0], sizes = [32, 64], strides = [1, 1]} : vector<32x1024xf32> to vector<32x64xf32>
    %108 = tpu.concatenate %106, %107 in 1 : vector<32x960xf32>, vector<32x64xf32> -> vector<32x1024xf32>
    %109 = arith.maximumf %105, %108 : vector<32x1024xf32>
    %c0_89 = arith.constant 0 : index
    %c0_90 = arith.constant 0 : index
    %110 = vector.load %arg6[%c0_89, %c0_90] : memref<32x1xf32, #tpu.memory_space<vmem>>, vector<32x1xf32>
    %111 = vector.broadcast %110 : vector<32x1xf32> to vector<32x1024xf32>
    %112 = arith.addf %109, %111 : vector<32x1024xf32>
    %cst_91 = arith.constant 0.000000e+00 : f32
    %113 = vector.broadcast %cst_91 : f32 to vector<32x1024xf32>
    %114 = arith.maximumf %112, %113 : vector<32x1024xf32>
    %c0_92 = arith.constant 0 : index
    %c0_93 = arith.constant 0 : index
    %115 = vector.load %arg8[%c0_92, %c0_93] : memref<64x1024xf32, #tpu.memory_space<vmem>>, vector<64x1024xf32>
    %cst_94 = arith.constant dense<0.000000e+00> : vector<32x64xf32>
    %116 = tpu.matmul %114, %115, %cst_94 {dimension_numbers = #tpu.dot_dimension_numbers<[1], [1], [0], [0], [0, 0, 1, 0], [], []>} : vector<32x1024xf32>, vector<64x1024xf32>, vector<32x64xf32> -> vector<32x64xf32>
    %c0_95 = arith.constant 0 : index
    %c0_96 = arith.constant 0 : index
    %c0_97 = arith.constant 0 : index
    %117 = vector.load %arg9[%c0_95, %c0_96, %c0_97] : memref<10x32x64xf32, #tpu.memory_space<vmem>>, vector<10x32x64xf32>
    %118 = vector.shape_cast %116 : vector<32x64xf32> to vector<1x32x64xf32>
    %119 = vector.broadcast %118 : vector<1x32x64xf32> to vector<10x32x64xf32>
    %120 = arith.mulf %117, %119 : vector<10x32x64xf32>
    %cst_98 = arith.constant dense<0.000000e+00> : vector<10x32xf32>
    %121 = vector.multi_reduction <add>, %120, %cst_98 [2] : vector<10x32x64xf32> to vector<10x32xf32>
    %cst_99 = arith.constant dense<0.000000e+00> : vector<10xf32>
    %122 = vector.multi_reduction <add>, %121, %cst_99 [1] : vector<10x32xf32> to vector<10xf32>
    %123 = vector.shape_cast %122 : vector<10xf32> to vector<10x1xf32>
    %c0_100 = arith.constant 0 : index
    %c0_101 = arith.constant 0 : index
    %124 = vector.load %arg10[%c0_100, %c0_101] : memref<10x1xf32, #tpu.memory_space<vmem>>, vector<10x1xf32>
    %125 = arith.addf %123, %124 : vector<10x1xf32>
    %c0_102 = arith.constant 0 : index
    %c0_103 = arith.constant 0 : index
    %c0_104 = arith.constant 0 : index
    %126 = vector.load %arg11[%c0_102, %c0_103, %c0_104] : memref<1x10x1xf32, #tpu.memory_space<vmem>>, vector<1x10x1xf32>
    %127 = vector.shape_cast %126 : vector<1x10x1xf32> to vector<10x1xf32>
    %128 = vector.shape_cast %125 : vector<10x1xf32> to vector<1x10x1xf32>
    tpu.vector_store %arg11[%c0_102, %c0_103, %c0_104], %128 {strides = array<i32>} : memref<1x10x1xf32, #tpu.memory_space<vmem>>, vector<1x10x1xf32>,
    return
  }
  func.func @transform_0(%arg0: i32) -> (i32, i32, i32) {
    %c0_i32 = arith.constant 0 : i32
    %c0_i32_0 = arith.constant 0 : i32
    %c0_i32_1 = arith.constant 0 : i32
    return %arg0, %c0_i32, %c0_i32_0 : i32, i32, i32
  }
  func.func @transform_1(%arg0: i32) -> (i32, i32) {
    %c0_i32 = arith.constant 0 : i32
    %c0_i32_0 = arith.constant 0 : i32
    %c0_i32_1 = arith.constant 0 : i32
    return %c0_i32, %c0_i32_0 : i32, i32
  }
  func.func @transform_2(%arg0: i32) -> (i32, i32) {
    %c0_i32 = arith.constant 0 : i32
    %c0_i32_0 = arith.constant 0 : i32
    %c0_i32_1 = arith.constant 0 : i32
    return %c0_i32, %c0_i32_0 : i32, i32
  }
  func.func @transform_3(%arg0: i32) -> (i32, i32) {
    %c0_i32 = arith.constant 0 : i32
    %c0_i32_0 = arith.constant 0 : i32
    %c0_i32_1 = arith.constant 0 : i32
    return %c0_i32, %c0_i32_0 : i32, i32
  }
  func.func @transform_4(%arg0: i32) -> (i32, i32) {
    %c0_i32 = arith.constant 0 : i32
    %c0_i32_0 = arith.constant 0 : i32
    %c0_i32_1 = arith.constant 0 : i32
    return %c0_i32, %c0_i32_0 : i32, i32
  }
  func.func @transform_5(%arg0: i32) -> (i32, i32) {
    %c0_i32 = arith.constant 0 : i32
    %c0_i32_0 = arith.constant 0 : i32
    %c0_i32_1 = arith.constant 0 : i32
    return %c0_i32, %c0_i32_0 : i32, i32
  }
  func.func @transform_6(%arg0: i32) -> (i32, i32) {
    %c0_i32 = arith.constant 0 : i32
    %c0_i32_0 = arith.constant 0 : i32
    %c0_i32_1 = arith.constant 0 : i32
    return %c0_i32, %c0_i32_0 : i32, i32
  }
  func.func @transform_7(%arg0: i32) -> (i32, i32) {
    %c0_i32 = arith.constant 0 : i32
    %c0_i32_0 = arith.constant 0 : i32
    %c0_i32_1 = arith.constant 0 : i32
    return %c0_i32, %c0_i32_0 : i32, i32
  }
  func.func @transform_8(%arg0: i32) -> (i32, i32, i32) {
    %c0_i32 = arith.constant 0 : i32
    %c0_i32_0 = arith.constant 0 : i32
    %c0_i32_1 = arith.constant 0 : i32
    %c0_i32_2 = arith.constant 0 : i32
    return %c0_i32, %c0_i32_0, %c0_i32_1 : i32, i32, i32
  }
  func.func @transform_9(%arg0: i32) -> (i32, i32) {
    %c0_i32 = arith.constant 0 : i32
    %c0_i32_0 = arith.constant 0 : i32
    %c0_i32_1 = arith.constant 0 : i32
    return %c0_i32, %c0_i32_0 : i32, i32
  }
  func.func @transform_10(%arg0: i32) -> (i32, i32, i32) {
    %c0_i32 = arith.constant 0 : i32
    %c0_i32_0 = arith.constant 0 : i32
    %c0_i32_1 = arith.constant 0 : i32
    return %arg0, %c0_i32, %c0_i32_0 : i32, i32, i32
  }
}

</mosaic_0001>

<llo_original>
// kernel: classifier_2_forward.1
$region0: #{classifier_2_forward.1}
  #allocation0 [shape = 'u32[]', space=smem, size = 0x4, offset = 0x4, fixed_abs, tag = 'smem constant byte address 0x4 - core index']
  #allocation1 [shape = 'u32[144,128]{1,0:T(1,128)}', space=vmem, size = 0x12000, scoped, tag = 'internal scratch']
  #allocation2 [shape = 'f32[200,1024]{1,0:T(8,128)}', space=vmem, size = 0xc8000, scoped, tag = 'scratch operand']
  #allocation3 [shape = 'f32[144,1024]{1,0:T(8,128)}', space=vmem, size = 0x90000, scoped, tag = 'scratch operand']
  #allocation4 [shape = 'f32[16,1280]{1,0:T(8,128)}', space=vmem, size = 0x14000, scoped, tag = 'scratch operand']
  %s0 = inlined_call_operand.vmem [shape: f32[2,8,1156], index: 0, kind: input, shape index: {}]
  %s1 = inlined_call_operand.vmem [shape: f32[16,200], index: 1, kind: input, shape index: {}]
  %s2 = inlined_call_operand.vmem [shape: f32[16,1], index: 2, kind: input, shape index: {}]
  %s3 = inlined_call_operand.vmem [shape: f32[200,1024], index: 3, kind: input, shape index: {}]
  %s4 = inlined_call_operand.vmem [shape: f32[32,144], index: 4, kind: input, shape index: {}]
  %s5 = inlined_call_operand.vmem [shape: f32[32,1], index: 5, kind: input, shape index: {}]
  %s6 = inlined_call_operand.vmem [shape: f32[144,1024], index: 6, kind: input, shape index: {}]
  %s7 = inlined_call_operand.vmem [shape: f32[64,1024], index: 7, kind: input, shape index: {}]
  %s8 = inlined_call_operand.vmem [shape: f32[10,32,64], index: 8, kind: input, shape index: {}]
  %s9 = inlined_call_operand.vmem [shape: f32[10,1], index: 9, kind: input, shape index: {}]
  %s10 = inlined_call_operand.vmem [shape: f32[2,10,1], index: 10, kind: output, shape index: {}]
  %s11 = sld [smem:[#allocation0]]
  $region73: #{classifier_2_forward.1} parent=0
    _
  %s13 = ssub.s32 1, %s11
  %s14 = scalar_select 0, %s13, %s11
  loop: start=0, step=1, limit=4
  $region2: #{classifier_2_forward.1} parent=0 // loop_pre_header
    _
  $region3: #{classifier_2_forward.1} parent=0 // loop_header
    %s16 = sphi 0, %s20
    %p17 = scmp.ge.s32.totalorder %s16, 4
    %s26 = sphi 0, %s28
    %s29 = sphi 0, %s26
    %s30 = sphi 0, %s29
    %s46 = sphi 0, %s30
    %s50 = sphi 0, %s50
    %s52 = sphi 0, %s50
    %s53 = sphi 0, %s52
    %s67 = sphi 0, %s53
    %s71 = sphi 0, %s71
    %s73 = sphi 0, %s71
    %s74 = sphi 0, %s73
    %s88 = sphi 0, %s74
    %s92 = sphi 0, %s92
    %s94 = sphi 0, %s92
    %s95 = sphi 0, %s94
    %s109 = sphi 0, %s95
    %s113 = sphi 0, %s113
    %s115 = sphi 0, %s113
    %s116 = sphi 0, %s115
    %s130 = sphi 0, %s116
    %s134 = sphi 0, %s134
    %s136 = sphi 0, %s134
    %s137 = sphi 0, %s136
    %s151 = sphi 0, %s137
    %s155 = sphi 0, %s155
    %s157 = sphi 0, %s155
    %s158 = sphi 0, %s157
    %s172 = sphi 0, %s158
    %s176 = sphi 0, %s176
    %s178 = sphi 0, %s176
    %s179 = sphi 0, %s178
    %s193 = sphi 0, %s179
    %s197 = sphi 0, %s197
    %s199 = sphi 0, %s197
    %s200 = sphi 0, %s199
    %s214 = sphi 0, %s200
    %s218 = sphi 0, %s218
    %s220 = sphi 0, %s218
    %s221 = sphi 0, %s220
    %s235 = sphi 0, %s221
    %s241 = sphi 0, %s243
    %s244 = sphi 0, %s241
    %s245 = sphi 0, %s244
    %s261 = sphi 0, %s245
  $region4: #{classifier_2_forward.1} parent=0 // loop_header_branch
    %19 = sbr.rel (%p17) target = $region8
  $region5: #{classifier_2_forward.1} parent=0 // loop_body
    %s21 = ssub.s32 %s16, 1
    %s22 = ssub.s32 %s16, 2
    %s23 = sadd.s32 %s16, 1
    %s24 = ssub.s32 %s16, %s23
    %p25 = scmp.eq.s32.totalorder %s24, 0
    %s27 = sadd.s32 %s26, 1
    %s28 = scalar_select %p25, %s26, %s27
    %p31 = pneg %p25
    %p32 = scmp.eq.s32.totalorder %s16, 1
    %p33 = por %p31, %p32
    %p34 = scmp.ne.s32.totalorder %s26, %s29
    %p35 = scmp.eq.s32.totalorder %s16, 0
    %p36 = por %p34, %p35
    %p37 = scmp.ne.s32.totalorder %s26, %s29
    %p38 = scmp.eq.s32.totalorder %s21, 1
    %p39 = por %p37, %p38
    %p40 = scmp.ne.s32.totalorder %s29, %s30
    %p41 = scmp.eq.s32.totalorder %s21, 0
    %p42 = por %p40, %p41
    %p43 = scmp.ne.s32.totalorder %s29, %s30
    %p44 = scmp.eq.s32.totalorder %s22, 1
    %p45 = por %p43, %p44
    %p47 = scmp.ne.s32.totalorder %s30, %s46
    %p48 = scmp.eq.s32.totalorder %s22, 0
    %p49 = por %p47, %p48
    %s51 = sadd.s32 %s50, 1
    %p54 = scmp.eq.s32.totalorder %s16, 1
    %p55 = scmp.ne.s32.totalorder %s50, %s52
    %p56 = scmp.eq.s32.totalorder %s16, 0
    %p57 = por %p55, %p56
    %p58 = scmp.ne.s32.totalorder %s50, %s52
    %p59 = scmp.eq.s32.totalorder %s21, 1
    %p60 = por %p58, %p59
    %p61 = scmp.ne.s32.totalorder %s52, %s53
    %p62 = scmp.eq.s32.totalorder %s21, 0
    %p63 = por %p61, %p62
    %p64 = scmp.ne.s32.totalorder %s52, %s53
    %p65 = scmp.eq.s32.totalorder %s22, 1
    %p66 = por %p64, %p65
    %p68 = scmp.ne.s32.totalorder %s53, %s67
    %p69 = scmp.eq.s32.totalorder %s22, 0
    %p70 = por %p68, %p69
    %s72 = sadd.s32 %s71, 1
    %p75 = scmp.eq.s32.totalorder %s16, 1
    %p76 = scmp.ne.s32.totalorder %s71, %s73
    %p77 = scmp.eq.s32.totalorder %s16, 0
    %p78 = por %p76, %p77
    %p79 = scmp.ne.s32.totalorder %s71, %s73
    %p80 = scmp.eq.s32.totalorder %s21, 1
    %p81 = por %p79, %p80
    %p82 = scmp.ne.s32.totalorder %s73, %s74
    %p83 = scmp.eq.s32.totalorder %s21, 0
    %p84 = por %p82, %p83
    %p85 = scmp.ne.s32.totalorder %s73, %s74
    %p86 = scmp.eq.s32.totalorder %s22, 1
    %p87 = por %p85, %p86
    %p89 = scmp.ne.s32.totalorder %s74, %s88
    %p90 = scmp.eq.s32.totalorder %s22, 0
    %p91 = por %p89, %p90
    %s93 = sadd.s32 %s92, 1
    %p96 = scmp.eq.s32.totalorder %s16, 1
    %p97 = scmp.ne.s32.totalorder %s92, %s94
    %p98 = scmp.eq.s32.totalorder %s16, 0
    %p99 = por %p97, %p98
    %p100 = scmp.ne.s32.totalorder %s92, %s94
    %p101 = scmp.eq.s32.totalorder %s21, 1
    %p102 = por %p100, %p101
    %p103 = scmp.ne.s32.totalorder %s94, %s95
    %p104 = scmp.eq.s32.totalorder %s21, 0
    %p105 = por %p103, %p104
    %p106 = scmp.ne.s32.totalorder %s94, %s95
    %p107 = scmp.eq.s32.totalorder %s22, 1
    %p108 = por %p106, %p107
    %p110 = scmp.ne.s32.totalorder %s95, %s109
    %p111 = scmp.eq.s32.totalorder %s22, 0
    %p112 = por %p110, %p111
    %s114 = sadd.s32 %s113, 1
    %p117 = scmp.eq.s32.totalorder %s16, 1
    %p118 = scmp.ne.s32.totalorder %s113, %s115
    %p119 = scmp.eq.s32.totalorder %s16, 0
    %p120 = por %p118, %p119
    %p121 = scmp.ne.s32.totalorder %s113, %s115
    %p122 = scmp.eq.s32.totalorder %s21, 1
    %p123 = por %p121, %p122
    %p124 = scmp.ne.s32.totalorder %s115, %s116
    %p125 = scmp.eq.s32.totalorder %s21, 0
    %p126 = por %p124, %p125
    %p127 = scmp.ne.s32.totalorder %s115, %s116
    %p128 = scmp.eq.s32.totalorder %s22, 1
    %p129 = por %p127, %p128
    %p131 = scmp.ne.s32.totalorder %s116, %s130
    %p132 = scmp.eq.s32.totalorder %s22, 0
    %p133 = por %p131, %p132
    %s135 = sadd.s32 %s134, 1
    %p138 = scmp.eq.s32.totalorder %s16, 1
    %p139 = scmp.ne.s32.totalorder %s134, %s136
    %p140 = scmp.eq.s32.totalorder %s16, 0
    %p141 = por %p139, %p140
    %p142 = scmp.ne.s32.totalorder %s134, %s136
    %p143 = scmp.eq.s32.totalorder %s21, 1
    %p144 = por %p142, %p143
    %p145 = scmp.ne.s32.totalorder %s136, %s137
    %p146 = scmp.eq.s32.totalorder %s21, 0
    %p147 = por %p145, %p146
    %p148 = scmp.ne.s32.totalorder %s136, %s137
    %p149 = scmp.eq.s32.totalorder %s22, 1
    %p150 = por %p148, %p149
    %p152 = scmp.ne.s32.totalorder %s137, %s151
    %p153 = scmp.eq.s32.totalorder %s22, 0
    %p154 = por %p152, %p153
    %s156 = sadd.s32 %s155, 1
    %p159 = scmp.eq.s32.totalorder %s16, 1
    %p160 = scmp.ne.s32.totalorder %s155, %s157
    %p161 = scmp.eq.s32.totalorder %s16, 0
    %p162 = por %p160, %p161
    %p163 = scmp.ne.s32.totalorder %s155, %s157
    %p164 = scmp.eq.s32.totalorder %s21, 1
    %p165 = por %p163, %p164
    %p166 = scmp.ne.s32.totalorder %s157, %s158
    %p167 = scmp.eq.s32.totalorder %s21, 0
    %p168 = por %p166, %p167
    %p169 = scmp.ne.s32.totalorder %s157, %s158
    %p170 = scmp.eq.s32.totalorder %s22, 1
    %p171 = por %p169, %p170
    %p173 = scmp.ne.s32.totalorder %s158, %s172
    %p174 = scmp.eq.s32.totalorder %s22, 0
    %p175 = por %p173, %p174
    %s177 = sadd.s32 %s176, 1
    %p180 = scmp.eq.s32.totalorder %s16, 1
    %p181 = scmp.ne.s32.totalorder %s176, %s178
    %p182 = scmp.eq.s32.totalorder %s16, 0
    %p183 = por %p181, %p182
    %p184 = scmp.ne.s32.totalorder %s176, %s178
    %p185 = scmp.eq.s32.totalorder %s21, 1
    %p186 = por %p184, %p185
    %p187 = scmp.ne.s32.totalorder %s178, %s179
    %p188 = scmp.eq.s32.totalorder %s21, 0
    %p189 = por %p187, %p188
    %p190 = scmp.ne.s32.totalorder %s178, %s179
    %p191 = scmp.eq.s32.totalorder %s22, 1
    %p192 = por %p190, %p191
    %p194 = scmp.ne.s32.totalorder %s179, %s193
    %p195 = scmp.eq.s32.totalorder %s22, 0
    %p196 = por %p194, %p195
    %s198 = sadd.s32 %s197, 1
    %p201 = scmp.eq.s32.totalorder %s16, 1
    %p202 = scmp.ne.s32.totalorder %s197, %s199
    %p203 = scmp.eq.s32.totalorder %s16, 0
    %p204 = por %p202, %p203
    %p205 = scmp.ne.s32.totalorder %s197, %s199
    %p206 = scmp.eq.s32.totalorder %s21, 1
    %p207 = por %p205, %p206
    %p208 = scmp.ne.s32.totalorder %s199, %s200
    %p209 = scmp.eq.s32.totalorder %s21, 0
    %p210 = por %p208, %p209
    %p211 = scmp.ne.s32.totalorder %s199, %s200
    %p212 = scmp.eq.s32.totalorder %s22, 1
    %p213 = por %p211, %p212
    %p215 = scmp.ne.s32.totalorder %s200, %s214
    %p216 = scmp.eq.s32.totalorder %s22, 0
    %p217 = por %p215, %p216
    %s219 = sadd.s32 %s218, 1
    %p222 = scmp.eq.s32.totalorder %s16, 1
    %p223 = scmp.ne.s32.totalorder %s218, %s220
    %p224 = scmp.eq.s32.totalorder %s16, 0
    %p225 = por %p223, %p224
    %p226 = scmp.ne.s32.totalorder %s218, %s220
    %p227 = scmp.eq.s32.totalorder %s21, 1
    %p228 = por %p226, %p227
    %p229 = scmp.ne.s32.totalorder %s220, %s221
    %p230 = scmp.eq.s32.totalorder %s21, 0
    %p231 = por %p229, %p230
    %p232 = scmp.ne.s32.totalorder %s220, %s221
    %p233 = scmp.eq.s32.totalorder %s22, 1
    %p234 = por %p232, %p233
    %p236 = scmp.ne.s32.totalorder %s221, %s235
    %p237 = scmp.eq.s32.totalorder %s22, 0
    %p238 = por %p236, %p237
    %s239 = ssub.s32 %s16, %s23
    %p240 = scmp.eq.s32.totalorder %s239, 0
    %s242 = sadd.s32 %s241, 1
    %s243 = scalar_select %p240, %s241, %s242
    %p246 = pneg %p240
    %p247 = scmp.eq.s32.totalorder %s16, 1
    %p248 = por %p246, %p247
    %p249 = scmp.ne.s32.totalorder %s241, %s244
    %p250 = scmp.eq.s32.totalorder %s16, 0
    %p251 = por %p249, %p250
    %p252 = scmp.ne.s32.totalorder %s241, %s244
    %p253 = scmp.eq.s32.totalorder %s21, 1
    %p254 = por %p252, %p253
    %p255 = scmp.ne.s32.totalorder %s244, %s245
    %p256 = scmp.eq.s32.totalorder %s21, 0
    %p257 = por %p255, %p256
    %p258 = scmp.ne.s32.totalorder %s244, %s245
    %p259 = scmp.eq.s32.totalorder %s22, 1
    %p260 = por %p258, %p259
    %p262 = scmp.ne.s32.totalorder %s245, %s261
    %p263 = scmp.eq.s32.totalorder %s22, 0
    %p264 = por %p262, %p263
    %p265 = scmp.le.s32.totalorder 1, %s16
    %p266 = scmp.lt.s32.totalorder %s16, 3
    %p267 = pnand %p265, %p266
    %p268 = pneg %p267
    // Predicated region
    $region9: #{classifier_2_forward.1} parent=5 // pred_check
      _
    $region10: #{classifier_2_forward.1} parent=5 // pred_check_branch
      %270 = sbr.rel (%p267) target = $region12
    $region11: #{classifier_2_forward.1} parent=5 // pred_region
      %s271 = ssub.s32 %s16, 1
      // Predicated region
      $region13: #{classifier_2_forward.1} parent=11 // pred_check
        %p272 = pneg %p63
      $region14: #{classifier_2_forward.1} parent=11 // pred_check_branch
        %274 = sbr.rel (%p272) target = $region16
      $region15: #{classifier_2_forward.1} parent=11 // pred_region
        _
      $region16: #{classifier_2_forward.1} parent=11 // pred_fallthru
        _
      // Predicated region
      $region17: #{classifier_2_forward.1} parent=11 // pred_check
        %p275 = pneg %p84
      $region18: #{classifier_2_forward.1} parent=11 // pred_check_branch
        %277 = sbr.rel (%p275) target = $region20
      $region19: #{classifier_2_forward.1} parent=11 // pred_region
        _
      $region20: #{classifier_2_forward.1} parent=11 // pred_fallthru
        _
      // Predicated region
      $region21: #{classifier_2_forward.1} parent=11 // pred_check
        %p278 = pneg %p105
      $region22: #{classifier_2_forward.1} parent=11 // pred_check_branch
        %280 = sbr.rel (%p278) target = $region24
      $region23: #{classifier_2_forward.1} parent=11 // pred_region
        _
      $region24: #{classifier_2_forward.1} parent=11 // pred_fallthru
        _
      // Predicated region
      $region25: #{classifier_2_forward.1} parent=11 // pred_check
        %p281 = pneg %p126
      $region26: #{classifier_2_forward.1} parent=11 // pred_check_branch
        %283 = sbr.rel (%p281) target = $region28
      $region27: #{classifier_2_forward.1} parent=11 // pred_region
        _
      $region28: #{classifier_2_forward.1} parent=11 // pred_fallthru
        _
      // Predicated region
      $region29: #{classifier_2_forward.1} parent=11 // pred_check
        %p284 = pneg %p147
      $region30: #{classifier_2_forward.1} parent=11 // pred_check_branch
        %286 = sbr.rel (%p284) target = $region32
      $region31: #{classifier_2_forward.1} parent=11 // pred_region
        _
      $region32: #{classifier_2_forward.1} parent=11 // pred_fallthru
        _
      // Predicated region
      $region33: #{classifier_2_forward.1} parent=11 // pred_check
        %p287 = pneg %p168
      $region34: #{classifier_2_forward.1} parent=11 // pred_check_branch
        %289 = sbr.rel (%p287) target = $region36
      $region35: #{classifier_2_forward.1} parent=11 // pred_region
        _
      $region36: #{classifier_2_forward.1} parent=11 // pred_fallthru
        _
      // Predicated region
      $region37: #{classifier_2_forward.1} parent=11 // pred_check
        %p290 = pneg %p189
      $region38: #{classifier_2_forward.1} parent=11 // pred_check_branch
        %292 = sbr.rel (%p290) target = $region40
      $region39: #{classifier_2_forward.1} parent=11 // pred_region
        _
      $region40: #{classifier_2_forward.1} parent=11 // pred_fallthru
        _
      // Predicated region
      $region41: #{classifier_2_forward.1} parent=11 // pred_check
        %p293 = pneg %p210
      $region42: #{classifier_2_forward.1} parent=11 // pred_check_branch
        %295 = sbr.rel (%p293) target = $region44
      $region43: #{classifier_2_forward.1} parent=11 // pred_region
        _
      $region44: #{classifier_2_forward.1} parent=11 // pred_fallthru
        _
      // Predicated region
      $region45: #{classifier_2_forward.1} parent=11 // pred_check
        %p296 = pneg %p231
      $region46: #{classifier_2_forward.1} parent=11 // pred_check_branch
        %298 = sbr.rel (%p296) target = $region48
      $region47: #{classifier_2_forward.1} parent=11 // pred_region
        _
      $region48: #{classifier_2_forward.1} parent=11 // pred_fallthru
        _
    $region12: #{classifier_2_forward.1} parent=5 // pred_fallthru
      _
    %p299 = scmp.lt.s32.totalorder %s16, 2
    // Predicated region
    $region49: #{classifier_2_forward.1} parent=5 // pred_check
      %p300 = pneg %p299
    $region50: #{classifier_2_forward.1} parent=5 // pred_check_branch
      %302 = sbr.rel (%p300) target = $region52
    $region51: #{classifier_2_forward.1} parent=5 // pred_region
      // Predicated region
      $region53: #{classifier_2_forward.1} parent=51 // pred_check
        %p303 = pneg %p36
      $region54: #{classifier_2_forward.1} parent=51 // pred_check_branch
        %305 = sbr.rel (%p303) target = $region56
      $region55: #{classifier_2_forward.1} parent=51 // pred_region
        %p306 = scmp.lt.s32.totalorder %s16, 1
        %s307 = scalar_select %p306, %s16, 1
        %s308 = smul.addr %s307, 10
        %s309 = smul.addr %s308, 8
        %s310 = scalar_lea.vmem %s0, %s309
      $region56: #{classifier_2_forward.1} parent=51 // pred_fallthru
        _
    $region52: #{classifier_2_forward.1} parent=5 // pred_fallthru
      _
    %p311 = scmp.le.s32.totalorder 1, %s16
    %p312 = scmp.lt.s32.totalorder %s16, 3
    %p313 = pnand %p311, %p312
    %p314 = pneg %p313
    // Predicated region
    $region57: #{classifier_2_forward.1} parent=5 // pred_check
      _
    $region58: #{classifier_2_forward.1} parent=5 // pred_check_branch
      %316 = sbr.rel (%p313) target = $region60
    $region59: #{classifier_2_forward.1} parent=5 // pred_region
      %s317 = ssub.s32 %s16, 1
      %p318 = scmp.lt.s32.totalorder %s21, 1
      %s319 = scalar_select %p318, %s21, 1
      %s320 = smul.addr %s319, 10
      %s321 = smul.addr %s320, 8
      %s322 = scalar_lea.vmem %s0, %s321
      %p323 = pneg %p42
      %p324 = pneg %p39
      %p325 = pneg %p63
      %p326 = pneg %p60
      %p327 = pneg %p84
      %p328 = pneg %p81
      %p329 = pneg %p105
      %p330 = pneg %p102
      %p331 = pneg %p126
      %p332 = pneg %p123
      %p333 = pneg %p147
      %p334 = pneg %p144
      %p335 = pneg %p168
      %p336 = pneg %p165
      %p337 = pneg %p189
      %p338 = pneg %p186
      %p339 = pneg %p210
      %p340 = pneg %p207
      %p341 = pneg %p231
      %p342 = pneg %p228
      %p343 = pneg %p257
      %p344 = pneg %p254
      %p345 = scmp.lt.s32.totalorder %s21, 1
      %s346 = scalar_select %p345, %s21, 1
      %s347 = smul.addr %s346, 2
      %s348 = smul.addr %s347, 8
      %s349 = scalar_lea.vmem %s10, %s348
      %p350 = scmp.lt.s32.totalorder %s21, 1
      %s351 = scalar_select %p350, %s21, 1
      %s352 = smul.addr %s351, 10
      %s353 = smul.addr %s352, 8
      %s354 = scalar_lea.vmem %s0, %s353
      %p355 = scmp.lt.s32.totalorder %s21, 1
      %s356 = scalar_select %p355, %s21, 1
      %s357 = smul.addr %s356, 2
      %s358 = smul.addr %s357, 8
      %s359 = scalar_lea.vmem %s10, %s358
      %v360 = vld [vmem:[%s354] sm:$0xff]
      %v361 = vld [vmem:[%s354 + $0x8] sm:$0xff]
      %v362 = vld [vmem:[%s354 + $0x10] sm:$0xff]
      %v363 = vld [vmem:[%s354 + $0x18] sm:$0xff]
      %v364 = vld [vmem:[%s354 + $0x20] sm:$0xff]
      %v365 = vld [vmem:[%s354 + $0x28] sm:$0xff]
      %v366 = vld [vmem:[%s354 + $0x30] sm:$0xff]
      %v367 = vld [vmem:[%s354 + $0x38] sm:$0xff]
      %v368 = vld [vmem:[%s354 + $0x40] sm:$0xff]
      %v369 = vld [vmem:[%s354 + $0x48] sm:$0xff]
      %370 = vst [vmem:[#allocation2] sm:$0xff] %v360
      %371 = vst [vmem:[#allocation2 + $0x8] sm:$0xff] %v361
      %372 = vst [vmem:[#allocation2 + $0x10] sm:$0xff] %v362
      %373 = vst [vmem:[#allocation2 + $0x18] sm:$0xff] %v363
      %374 = vst [vmem:[#allocation2 + $0x20] sm:$0xff] %v364
      %375 = vst [vmem:[#allocation2 + $0x28] sm:$0xff] %v365
      %376 = vst [vmem:[#allocation2 + $0x30] sm:$0xff] %v366
      %377 = vst [vmem:[#allocation2 + $0x38] sm:$0xff] %v367
      %387 = vrot.lane.b32.xlu0 %v360, 127
      %v388 = vpop.permute.xlu0 %387
      %389 = vrot.lane.b32.xlu0 %v361, 127
      %v390 = vpop.permute.xlu0 %389
      %391 = vrot.lane.b32.xlu0 %v362, 127
      %v392 = vpop.permute.xlu0 %391
      %393 = vrot.lane.b32.xlu0 %v363, 127
      %v394 = vpop.permute.xlu0 %393
      %395 = vrot.lane.b32.xlu0 %v364, 127
      %v396 = vpop.permute.xlu0 %395
      %397 = vrot.lane.b32.xlu0 %v365, 127
      %v398 = vpop.permute.xlu0 %397
      %399 = vrot.lane.b32.xlu0 %v366, 127
      %v400 = vpop.permute.xlu0 %399
      %401 = vrot.lane.b32.xlu0 %v367, 127
      %v402 = vpop.permute.xlu0 %401
      %403 = vrot.lane.b32.xlu0 %v368, 127
      %v404 = vpop.permute.xlu0 %403
      %vm405 = vcmask 1039360
      %v406 = vsel %vm405, %v388, %v390
      %v407 = vsel %vm405, %v390, %v392
      %v408 = vsel %vm405, %v392, %v394
      %v409 = vsel %vm405, %v394, %v396
      %v410 = vsel %vm405, %v396, %v398
      %v411 = vsel %vm405, %v398, %v400
      %v412 = vsel %vm405, %v400, %v402
      %v413 = vsel %vm405, %v402, %v404
      %422 = vst [vmem:[#allocation2 + $0x40] sm:$0xff] %v406
      %423 = vst [vmem:[#allocation2 + $0x48] sm:$0xff] %v407
      %424 = vst [vmem:[#allocation2 + $0x50] sm:$0xff] %v408
      %425 = vst [vmem:[#allocation2 + $0x58] sm:$0xff] %v409
      %426 = vst [vmem:[#allocation2 + $0x60] sm:$0xff] %v410
      %427 = vst [vmem:[#allocation2 + $0x68] sm:$0xff] %v411
      %428 = vst [vmem:[#allocation2 + $0x70] sm:$0xff] %v412
      %429 = vst [vmem:[#allocation2 + $0x78] sm:$0xff] %v413
      %430 = vrot.lane.b32.xlu0 %v360, 126
      %v431 = vpop.permute.xlu0 %430
      %432 = vrot.lane.b32.xlu0 %v361, 126
      %v433 = vpop.permute.xlu0 %432
      %434 = vrot.lane.b32.xlu0 %v362, 126
      %v435 = vpop.permute.xlu0 %434
      %436 = vrot.lane.b32.xlu0 %v363, 126
      %v437 = vpop.permute.xlu0 %436
      %438 = vrot.lane.b32.xlu0 %v364, 126
      %v439 = vpop.permute.xlu0 %438
      %440 = vrot.lane.b32.xlu0 %v365, 126
      %v441 = vpop.permute.xlu0 %440
      %442 = vrot.lane.b32.xlu0 %v366, 126
      %v443 = vpop.permute.xlu0 %442
      %444 = vrot.lane.b32.xlu0 %v367, 126
      %v445 = vpop.permute.xlu0 %444
      %446 = vrot.lane.b32.xlu0 %v368, 126
      %v447 = vpop.permute.xlu0 %446
      %vm448 = vcmask 1031168
      %v449 = vsel %vm448, %v431, %v433
      %v450 = vsel %vm448, %v433, %v435
      %v451 = vsel %vm448, %v435, %v437
      %v452 = vsel %vm448, %v437, %v439
      %v453 = vsel %vm448, %v439, %v441
      %v454 = vsel %vm448, %v441, %v443
      %v455 = vsel %vm448, %v443, %v445
      %v456 = vsel %vm448, %v445, %v447
      %465 = vst [vmem:[#allocation2 + $0x80] sm:$0xff] %v449
      %466 = vst [vmem:[#allocation2 + $0x88] sm:$0xff] %v450
      %467 = vst [vmem:[#allocation2 + $0x90] sm:$0xff] %v451
      %468 = vst [vmem:[#allocation2 + $0x98] sm:$0xff] %v452
      %469 = vst [vmem:[#allocation2 + $0xa0] sm:$0xff] %v453
      %470 = vst [vmem:[#allocation2 + $0xa8] sm:$0xff] %v454
      %471 = vst [vmem:[#allocation2 + $0xb0] sm:$0xff] %v455
      %472 = vst [vmem:[#allocation2 + $0xb8] sm:$0xff] %v456
      %473 = vrot.lane.b32.xlu0 %v360, 125
      %v474 = vpop.permute.xlu0 %473
      %475 = vrot.lane.b32.xlu0 %v361, 125
      %v476 = vpop.permute.xlu0 %475
      %477 = vrot.lane.b32.xlu0 %v362, 125
      %v478 = vpop.permute.xlu0 %477
      %479 = vrot.lane.b32.xlu0 %v363, 125
      %v480 = vpop.permute.xlu0 %479
      %481 = vrot.lane.b32.xlu0 %v364, 125
      %v482 = vpop.permute.xlu0 %481
      %483 = vrot.lane.b32.xlu0 %v365, 125
      %v484 = vpop.permute.xlu0 %483
      %485 = vrot.lane.b32.xlu0 %v366, 125
      %v486 = vpop.permute.xlu0 %485
      %487 = vrot.lane.b32.xlu0 %v367, 125
      %v488 = vpop.permute.xlu0 %487
      %489 = vrot.lane.b32.xlu0 %v368, 125
      %v490 = vpop.permute.xlu0 %489
      %vm491 = vcmask 1022976
      %v492 = vsel %vm491, %v474, %v476
      %v493 = vsel %vm491, %v476, %v478
      %v494 = vsel %vm491, %v478, %v480
      %v495 = vsel %vm491, %v480, %v482
      %v496 = vsel %vm491, %v482, %v484
      %v497 = vsel %vm491, %v484, %v486
      %v498 = vsel %vm491, %v486, %v488
      %v499 = vsel %vm491, %v488, %v490
      %508 = vst [vmem:[#allocation2 + $0xc0] sm:$0xff] %v492
      %509 = vst [vmem:[#allocation2 + $0xc8] sm:$0xff] %v493
      %510 = vst [vmem:[#allocation2 + $0xd0] sm:$0xff] %v494
      %511 = vst [vmem:[#allocation2 + $0xd8] sm:$0xff] %v495
      %512 = vst [vmem:[#allocation2 + $0xe0] sm:$0xff] %v496
      %513 = vst [vmem:[#allocation2 + $0xe8] sm:$0xff] %v497
      %514 = vst [vmem:[#allocation2 + $0xf0] sm:$0xff] %v498
      %515 = vst [vmem:[#allocation2 + $0xf8] sm:$0xff] %v499
      %516 = vrot.lane.b32.xlu0 %v360, 124
      %v517 = vpop.permute.xlu0 %516
      %518 = vrot.lane.b32.xlu0 %v361, 124
      %v519 = vpop.permute.xlu0 %518
      %520 = vrot.lane.b32.xlu0 %v362, 124
      %v521 = vpop.permute.xlu0 %520
      %522 = vrot.lane.b32.xlu0 %v363, 124
      %v523 = vpop.permute.xlu0 %522
      %524 = vrot.lane.b32.xlu0 %v364, 124
      %v525 = vpop.permute.xlu0 %524
      %526 = vrot.lane.b32.xlu0 %v365, 124
      %v527 = vpop.permute.xlu0 %526
      %528 = vrot.lane.b32.xlu0 %v366, 124
      %v529 = vpop.permute.xlu0 %528
      %530 = vrot.lane.b32.xlu0 %v367, 124
      %v531 = vpop.permute.xlu0 %530
      %532 = vrot.lane.b32.xlu0 %v368, 124
      %v533 = vpop.permute.xlu0 %532
      %vm534 = vcmask 1014784
      %v535 = vsel %vm534, %v517, %v519
      %v536 = vsel %vm534, %v519, %v521
      %v537 = vsel %vm534, %v521, %v523
      %v538 = vsel %vm534, %v523, %v525
      %v539 = vsel %vm534, %v525, %v527
      %v540 = vsel %vm534, %v527, %v529
      %v541 = vsel %vm534, %v529, %v531
      %v542 = vsel %vm534, %v531, %v533
      %551 = vst [vmem:[#allocation2 + $0x100] sm:$0xff] %v535
      %552 = vst [vmem:[#allocation2 + $0x108] sm:$0xff] %v536
      %553 = vst [vmem:[#allocation2 + $0x110] sm:$0xff] %v537
      %554 = vst [vmem:[#allocation2 + $0x118] sm:$0xff] %v538
      %555 = vst [vmem:[#allocation2 + $0x120] sm:$0xff] %v539
      %556 = vst [vmem:[#allocation2 + $0x128] sm:$0xff] %v540
      %557 = vst [vmem:[#allocation2 + $0x130] sm:$0xff] %v541
      %558 = vst [vmem:[#allocation2 + $0x138] sm:$0xff] %v542
      %559 = vrot.lane.b32.xlu0 %v360, 96
      %v560 = vpop.permute.xlu0 %559
      %561 = vrot.lane.b32.xlu0 %v361, 96
      %v562 = vpop.permute.xlu0 %561
      %563 = vrot.lane.b32.xlu0 %v362, 96
      %v564 = vpop.permute.xlu0 %563
      %565 = vrot.lane.b32.xlu0 %v363, 96
      %v566 = vpop.permute.xlu0 %565
      %567 = vrot.lane.b32.xlu0 %v364, 96
      %v568 = vpop.permute.xlu0 %567
      %569 = vrot.lane.b32.xlu0 %v365, 96
      %v570 = vpop.permute.xlu0 %569
      %571 = vrot.lane.b32.xlu0 %v366, 96
      %v572 = vpop.permute.xlu0 %571
      %573 = vrot.lane.b32.xlu0 %v367, 96
      %v574 = vpop.permute.xlu0 %573
      %575 = vrot.lane.b32.xlu0 %v368, 96
      %v576 = vpop.permute.xlu0 %575
      %vm577 = vcmask 785408
      %v578 = vsel %vm577, %v560, %v562
      %v579 = vsel %vm577, %v562, %v564
      %v580 = vsel %vm577, %v564, %v566
      %v581 = vsel %vm577, %v566, %v568
      %v582 = vsel %vm577, %v568, %v570
      %v583 = vsel %vm577, %v570, %v572
      %v584 = vsel %vm577, %v572, %v574
      %v585 = vsel %vm577, %v574, %v576
      %594 = vst [vmem:[#allocation2 + $0x140] sm:$0xff] %v578
      %595 = vst [vmem:[#allocation2 + $0x148] sm:$0xff] %v579
      %596 = vst [vmem:[#allocation2 + $0x150] sm:$0xff] %v580
      %597 = vst [vmem:[#allocation2 + $0x158] sm:$0xff] %v581
      %598 = vst [vmem:[#allocation2 + $0x160] sm:$0xff] %v582
      %599 = vst [vmem:[#allocation2 + $0x168] sm:$0xff] %v583
      %600 = vst [vmem:[#allocation2 + $0x170] sm:$0xff] %v584
      %601 = vst [vmem:[#allocation2 + $0x178] sm:$0xff] %v585
      %602 = vrot.lane.b32.xlu0 %v360, 95
      %v603 = vpop.permute.xlu0 %602
      %604 = vrot.lane.b32.xlu0 %v361, 95
      %v605 = vpop.permute.xlu0 %604
      %606 = vrot.lane.b32.xlu0 %v362, 95
      %v607 = vpop.permute.xlu0 %606
      %608 = vrot.lane.b32.xlu0 %v363, 95
      %v609 = vpop.permute.xlu0 %608
      %610 = vrot.lane.b32.xlu0 %v364, 95
      %v611 = vpop.permute.xlu0 %610
      %612 = vrot.lane.b32.xlu0 %v365, 95
      %v613 = vpop.permute.xlu0 %612
      %614 = vrot.lane.b32.xlu0 %v366, 95
      %v615 = vpop.permute.xlu0 %614
      %616 = vrot.lane.b32.xlu0 %v367, 95
      %v617 = vpop.permute.xlu0 %616
      %618 = vrot.lane.b32.xlu0 %v368, 95
      %v619 = vpop.permute.xlu0 %618
      %vm620 = vcmask 777216
      %v621 = vsel %vm620, %v603, %v605
      %v622 = vsel %vm620, %v605, %v607
      %v623 = vsel %vm620, %v607, %v609
      %v624 = vsel %vm620, %v609, %v611
      %v625 = vsel %vm620, %v611, %v613
      %v626 = vsel %vm620, %v613, %v615
      %v627 = vsel %vm620, %v615, %v617
      %v628 = vsel %vm620, %v617, %v619
      %637 = vst [vmem:[#allocation2 + $0x180] sm:$0xff] %v621
      %638 = vst [vmem:[#allocation2 + $0x188] sm:$0xff] %v622
      %639 = vst [vmem:[#allocation2 + $0x190] sm:$0xff] %v623
      %640 = vst [vmem:[#allocation2 + $0x198] sm:$0xff] %v624
      %641 = vst [vmem:[#allocation2 + $0x1a0] sm:$0xff] %v625
      %642 = vst [vmem:[#allocation2 + $0x1a8] sm:$0xff] %v626
      %643 = vst [vmem:[#allocation2 + $0x1b0] sm:$0xff] %v627
      %644 = vst [vmem:[#allocation2 + $0x1b8] sm:$0xff] %v628
      %645 = vrot.lane.b32.xlu0 %v360, 94
      %v646 = vpop.permute.xlu0 %645
      %647 = vrot.lane.b32.xlu0 %v361, 94
      %v648 = vpop.permute.xlu0 %647
      %649 = vrot.lane.b32.xlu0 %v362, 94
      %v650 = vpop.permute.xlu0 %649
      %651 = vrot.lane.b32.xlu0 %v363, 94
      %v652 = vpop.permute.xlu0 %651
      %653 = vrot.lane.b32.xlu0 %v364, 94
      %v654 = vpop.permute.xlu0 %653
      %655 = vrot.lane.b32.xlu0 %v365, 94
      %v656 = vpop.permute.xlu0 %655
      %657 = vrot.lane.b32.xlu0 %v366, 94
      %v658 = vpop.permute.xlu0 %657
      %659 = vrot.lane.b32.xlu0 %v367, 94
      %v660 = vpop.permute.xlu0 %659
      %661 = vrot.lane.b32.xlu0 %v368, 94
      %v662 = vpop.permute.xlu0 %661
      %vm663 = vcmask 769024
      %v664 = vsel %vm663, %v646, %v648
      %v665 = vsel %vm663, %v648, %v650
      %v666 = vsel %vm663, %v650, %v652
      %v667 = vsel %vm663, %v652, %v654
      %v668 = vsel %vm663, %v654, %v656
      %v669 = vsel %vm663, %v656, %v658
      %v670 = vsel %vm663, %v658, %v660
      %v671 = vsel %vm663, %v660, %v662
      %680 = vst [vmem:[#allocation2 + $0x1c0] sm:$0xff] %v664
      %681 = vst [vmem:[#allocation2 + $0x1c8] sm:$0xff] %v665
      %682 = vst [vmem:[#allocation2 + $0x1d0] sm:$0xff] %v666
      %683 = vst [vmem:[#allocation2 + $0x1d8] sm:$0xff] %v667
      %684 = vst [vmem:[#allocation2 + $0x1e0] sm:$0xff] %v668
      %685 = vst [vmem:[#allocation2 + $0x1e8] sm:$0xff] %v669
      %686 = vst [vmem:[#allocation2 + $0x1f0] sm:$0xff] %v670
      %687 = vst [vmem:[#allocation2 + $0x1f8] sm:$0xff] %v671
      %688 = vrot.lane.b32.xlu0 %v360, 93
      %v689 = vpop.permute.xlu0 %688
      %690 = vrot.lane.b32.xlu0 %v361, 93
      %v691 = vpop.permute.xlu0 %690
      %692 = vrot.lane.b32.xlu0 %v362, 93
      %v693 = vpop.permute.xlu0 %692
      %694 = vrot.lane.b32.xlu0 %v363, 93
      %v695 = vpop.permute.xlu0 %694
      %696 = vrot.lane.b32.xlu0 %v364, 93
      %v697 = vpop.permute.xlu0 %696
      %698 = vrot.lane.b32.xlu0 %v365, 93
      %v699 = vpop.permute.xlu0 %698
      %700 = vrot.lane.b32.xlu0 %v366, 93
      %v701 = vpop.permute.xlu0 %700
      %702 = vrot.lane.b32.xlu0 %v367, 93
      %v703 = vpop.permute.xlu0 %702
      %704 = vrot.lane.b32.xlu0 %v368, 93
      %v705 = vpop.permute.xlu0 %704
      %vm706 = vcmask 760832
      %v707 = vsel %vm706, %v689, %v691
      %v708 = vsel %vm706, %v691, %v693
      %v709 = vsel %vm706, %v693, %v695
      %v710 = vsel %vm706, %v695, %v697
      %v711 = vsel %vm706, %v697, %v699
      %v712 = vsel %vm706, %v699, %v701
      %v713 = vsel %vm706, %v701, %v703
      %v714 = vsel %vm706, %v703, %v705
      %723 = vst [vmem:[#allocation2 + $0x200] sm:$0xff] %v707
      %724 = vst [vmem:[#allocation2 + $0x208] sm:$0xff] %v708
      %725 = vst [vmem:[#allocation2 + $0x210] sm:$0xff] %v709
      %726 = vst [vmem:[#allocation2 + $0x218] sm:$0xff] %v710
      %727 = vst [vmem:[#allocation2 + $0x220] sm:$0xff] %v711
      %728 = vst [vmem:[#allocation2 + $0x228] sm:$0xff] %v712
      %729 = vst [vmem:[#allocation2 + $0x230] sm:$0xff] %v713
      %730 = vst [vmem:[#allocation2 + $0x238] sm:$0xff] %v714
      %731 = vrot.lane.b32.xlu0 %v360, 92
      %v732 = vpop.permute.xlu0 %731
      %733 = vrot.lane.b32.xlu0 %v361, 92
      %v734 = vpop.permute.xlu0 %733
      %735 = vrot.lane.b32.xlu0 %v362, 92
      %v736 = vpop.permute.xlu0 %735
      %737 = vrot.lane.b32.xlu0 %v363, 92
      %v738 = vpop.permute.xlu0 %737
      %739 = vrot.lane.b32.xlu0 %v364, 92
      %v740 = vpop.permute.xlu0 %739
      %741 = vrot.lane.b32.xlu0 %v365, 92
      %v742 = vpop.permute.xlu0 %741
      %743 = vrot.lane.b32.xlu0 %v366, 92
      %v744 = vpop.permute.xlu0 %743
      %745 = vrot.lane.b32.xlu0 %v367, 92
      %v746 = vpop.permute.xlu0 %745
      %747 = vrot.lane.b32.xlu0 %v368, 92
      %v748 = vpop.permute.xlu0 %747
      %vm749 = vcmask 752640
      %v750 = vsel %vm749, %v732, %v734
      %v751 = vsel %vm749, %v734, %v736
      %v752 = vsel %vm749, %v736, %v738
      %v753 = vsel %vm749, %v738, %v740
      %v754 = vsel %vm749, %v740, %v742
      %v755 = vsel %vm749, %v742, %v744
      %v756 = vsel %vm749, %v744, %v746
      %v757 = vsel %vm749, %v746, %v748
      %766 = vst [vmem:[#allocation2 + $0x240] sm:$0xff] %v750
      %767 = vst [vmem:[#allocation2 + $0x248] sm:$0xff] %v751
      %768 = vst [vmem:[#allocation2 + $0x250] sm:$0xff] %v752
      %769 = vst [vmem:[#allocation2 + $0x258] sm:$0xff] %v753
      %770 = vst [vmem:[#allocation2 + $0x260] sm:$0xff] %v754
      %771 = vst [vmem:[#allocation2 + $0x268] sm:$0xff] %v755
      %772 = vst [vmem:[#allocation2 + $0x270] sm:$0xff] %v756
      %773 = vst [vmem:[#allocation2 + $0x278] sm:$0xff] %v757
      %774 = vrot.lane.b32.xlu0 %v360, 64
      %v775 = vpop.permute.xlu0 %774
      %776 = vrot.lane.b32.xlu0 %v361, 64
      %v777 = vpop.permute.xlu0 %776
      %778 = vrot.lane.b32.xlu0 %v362, 64
      %v779 = vpop.permute.xlu0 %778
      %780 = vrot.lane.b32.xlu0 %v363, 64
      %v781 = vpop.permute.xlu0 %780
      %782 = vrot.lane.b32.xlu0 %v364, 64
      %v783 = vpop.permute.xlu0 %782
      %784 = vrot.lane.b32.xlu0 %v365, 64
      %v785 = vpop.permute.xlu0 %784
      %786 = vrot.lane.b32.xlu0 %v366, 64
      %v787 = vpop.permute.xlu0 %786
      %788 = vrot.lane.b32.xlu0 %v367, 64
      %v789 = vpop.permute.xlu0 %788
      %790 = vrot.lane.b32.xlu0 %v368, 64
      %v791 = vpop.permute.xlu0 %790
      %vm792 = vcmask 523264
      %v793 = vsel %vm792, %v775, %v777
      %v794 = vsel %vm792, %v777, %v779
      %v795 = vsel %vm792, %v779, %v781
      %v796 = vsel %vm792, %v781, %v783
      %v797 = vsel %vm792, %v783, %v785
      %v798 = vsel %vm792, %v785, %v787
      %v799 = vsel %vm792, %v787, %v789
      %v800 = vsel %vm792, %v789, %v791
      %809 = vst [vmem:[#allocation2 + $0x280] sm:$0xff] %v793
      %810 = vst [vmem:[#allocation2 + $0x288] sm:$0xff] %v794
      %811 = vst [vmem:[#allocation2 + $0x290] sm:$0xff] %v795
      %812 = vst [vmem:[#allocation2 + $0x298] sm:$0xff] %v796
      %813 = vst [vmem:[#allocation2 + $0x2a0] sm:$0xff] %v797
      %814 = vst [vmem:[#allocation2 + $0x2a8] sm:$0xff] %v798
      %815 = vst [vmem:[#allocation2 + $0x2b0] sm:$0xff] %v799
      %816 = vst [vmem:[#allocation2 + $0x2b8] sm:$0xff] %v800
      %817 = vrot.lane.b32.xlu0 %v360, 63
      %v818 = vpop.permute.xlu0 %817
      %819 = vrot.lane.b32.xlu0 %v361, 63
      %v820 = vpop.permute.xlu0 %819
      %821 = vrot.lane.b32.xlu0 %v362, 63
      %v822 = vpop.permute.xlu0 %821
      %823 = vrot.lane.b32.xlu0 %v363, 63
      %v824 = vpop.permute.xlu0 %823
      %825 = vrot.lane.b32.xlu0 %v364, 63
      %v826 = vpop.permute.xlu0 %825
      %827 = vrot.lane.b32.xlu0 %v365, 63
      %v828 = vpop.permute.xlu0 %827
      %829 = vrot.lane.b32.xlu0 %v366, 63
      %v830 = vpop.permute.xlu0 %829
      %831 = vrot.lane.b32.xlu0 %v367, 63
      %v832 = vpop.permute.xlu0 %831
      %833 = vrot.lane.b32.xlu0 %v368, 63
      %v834 = vpop.permute.xlu0 %833
      %vm835 = vcmask 515072
      %v836 = vsel %vm835, %v818, %v820
      %v837 = vsel %vm835, %v820, %v822
      %v838 = vsel %vm835, %v822, %v824
      %v839 = vsel %vm835, %v824, %v826
      %v840 = vsel %vm835, %v826, %v828
      %v841 = vsel %vm835, %v828, %v830
      %v842 = vsel %vm835, %v830, %v832
      %v843 = vsel %vm835, %v832, %v834
      %852 = vst [vmem:[#allocation2 + $0x2c0] sm:$0xff] %v836
      %853 = vst [vmem:[#allocation2 + $0x2c8] sm:$0xff] %v837
      %854 = vst [vmem:[#allocation2 + $0x2d0] sm:$0xff] %v838
      %855 = vst [vmem:[#allocation2 + $0x2d8] sm:$0xff] %v839
      %856 = vst [vmem:[#allocation2 + $0x2e0] sm:$0xff] %v840
      %857 = vst [vmem:[#allocation2 + $0x2e8] sm:$0xff] %v841
      %858 = vst [vmem:[#allocation2 + $0x2f0] sm:$0xff] %v842
      %859 = vst [vmem:[#allocation2 + $0x2f8] sm:$0xff] %v843
      %860 = vrot.lane.b32.xlu0 %v360, 62
      %v861 = vpop.permute.xlu0 %860
      %862 = vrot.lane.b32.xlu0 %v361, 62
      %v863 = vpop.permute.xlu0 %862
      %864 = vrot.lane.b32.xlu0 %v362, 62
      %v865 = vpop.permute.xlu0 %864
      %866 = vrot.lane.b32.xlu0 %v363, 62
      %v867 = vpop.permute.xlu0 %866
      %868 = vrot.lane.b32.xlu0 %v364, 62
      %v869 = vpop.permute.xlu0 %868
      %870 = vrot.lane.b32.xlu0 %v365, 62
      %v871 = vpop.permute.xlu0 %870
      %872 = vrot.lane.b32.xlu0 %v366, 62
      %v873 = vpop.permute.xlu0 %872
      %874 = vrot.lane.b32.xlu0 %v367, 62
      %v875 = vpop.permute.xlu0 %874
      %876 = vrot.lane.b32.xlu0 %v368, 62
      %v877 = vpop.permute.xlu0 %876
      %vm878 = vcmask 506880
      %v879 = vsel %vm878, %v861, %v863
      %v880 = vsel %vm878, %v863, %v865
      %v881 = vsel %vm878, %v865, %v867
      %v882 = vsel %vm878, %v867, %v869
      %v883 = vsel %vm878, %v869, %v871
      %v884 = vsel %vm878, %v871, %v873
      %v885 = vsel %vm878, %v873, %v875
      %v886 = vsel %vm878, %v875, %v877
      %895 = vst [vmem:[#allocation2 + $0x300] sm:$0xff] %v879
      %896 = vst [vmem:[#allocation2 + $0x308] sm:$0xff] %v880
      %897 = vst [vmem:[#allocation2 + $0x310] sm:$0xff] %v881
      %898 = vst [vmem:[#allocation2 + $0x318] sm:$0xff] %v882
      %899 = vst [vmem:[#allocation2 + $0x320] sm:$0xff] %v883
      %900 = vst [vmem:[#allocation2 + $0x328] sm:$0xff] %v884
      %901 = vst [vmem:[#allocation2 + $0x330] sm:$0xff] %v885
      %902 = vst [vmem:[#allocation2 + $0x338] sm:$0xff] %v886
      %903 = vrot.lane.b32.xlu0 %v360, 61
      %v904 = vpop.permute.xlu0 %903
      %905 = vrot.lane.b32.xlu0 %v361, 61
      %v906 = vpop.permute.xlu0 %905
      %907 = vrot.lane.b32.xlu0 %v362, 61
      %v908 = vpop.permute.xlu0 %907
      %909 = vrot.lane.b32.xlu0 %v363, 61
      %v910 = vpop.permute.xlu0 %909
      %911 = vrot.lane.b32.xlu0 %v364, 61
      %v912 = vpop.permute.xlu0 %911
      %913 = vrot.lane.b32.xlu0 %v365, 61
      %v914 = vpop.permute.xlu0 %913
      %915 = vrot.lane.b32.xlu0 %v366, 61
      %v916 = vpop.permute.xlu0 %915
      %917 = vrot.lane.b32.xlu0 %v367, 61
      %v918 = vpop.permute.xlu0 %917
      %919 = vrot.lane.b32.xlu0 %v368, 61
      %v920 = vpop.permute.xlu0 %919
      %vm921 = vcmask 498688
      %v922 = vsel %vm921, %v904, %v906
      %v923 = vsel %vm921, %v906, %v908
      %v924 = vsel %vm921, %v908, %v910
      %v925 = vsel %vm921, %v910, %v912
      %v926 = vsel %vm921, %v912, %v914
      %v927 = vsel %vm921, %v914, %v916
      %v928 = vsel %vm921, %v916, %v918
      %v929 = vsel %vm921, %v918, %v920
      %938 = vst [vmem:[#allocation2 + $0x340] sm:$0xff] %v922
      %939 = vst [vmem:[#allocation2 + $0x348] sm:$0xff] %v923
      %940 = vst [vmem:[#allocation2 + $0x350] sm:$0xff] %v924
      %941 = vst [vmem:[#allocation2 + $0x358] sm:$0xff] %v925
      %942 = vst [vmem:[#allocation2 + $0x360] sm:$0xff] %v926
      %943 = vst [vmem:[#allocation2 + $0x368] sm:$0xff] %v927
      %944 = vst [vmem:[#allocation2 + $0x370] sm:$0xff] %v928
      %945 = vst [vmem:[#allocation2 + $0x378] sm:$0xff] %v929
      %946 = vrot.lane.b32.xlu0 %v360, 60
      %v947 = vpop.permute.xlu0 %946
      %948 = vrot.lane.b32.xlu0 %v361, 60
      %v949 = vpop.permute.xlu0 %948
      %950 = vrot.lane.b32.xlu0 %v362, 60
      %v951 = vpop.permute.xlu0 %950
      %952 = vrot.lane.b32.xlu0 %v363, 60
      %v953 = vpop.permute.xlu0 %952
      %954 = vrot.lane.b32.xlu0 %v364, 60
      %v955 = vpop.permute.xlu0 %954
      %956 = vrot.lane.b32.xlu0 %v365, 60
      %v957 = vpop.permute.xlu0 %956
      %958 = vrot.lane.b32.xlu0 %v366, 60
      %v959 = vpop.permute.xlu0 %958
      %960 = vrot.lane.b32.xlu0 %v367, 60
      %v961 = vpop.permute.xlu0 %960
      %962 = vrot.lane.b32.xlu0 %v368, 60
      %v963 = vpop.permute.xlu0 %962
      %vm964 = vcmask 490496
      %v965 = vsel %vm964, %v947, %v949
      %v966 = vsel %vm964, %v949, %v951
      %v967 = vsel %vm964, %v951, %v953
      %v968 = vsel %vm964, %v953, %v955
      %v969 = vsel %vm964, %v955, %v957
      %v970 = vsel %vm964, %v957, %v959
      %v971 = vsel %vm964, %v959, %v961
      %v972 = vsel %vm964, %v961, %v963
      %981 = vst [vmem:[#allocation2 + $0x380] sm:$0xff] %v965
      %982 = vst [vmem:[#allocation2 + $0x388] sm:$0xff] %v966
      %983 = vst [vmem:[#allocation2 + $0x390] sm:$0xff] %v967
      %984 = vst [vmem:[#allocation2 + $0x398] sm:$0xff] %v968
      %985 = vst [vmem:[#allocation2 + $0x3a0] sm:$0xff] %v969
      %986 = vst [vmem:[#allocation2 + $0x3a8] sm:$0xff] %v970
      %987 = vst [vmem:[#allocation2 + $0x3b0] sm:$0xff] %v971
      %988 = vst [vmem:[#allocation2 + $0x3b8] sm:$0xff] %v972
      %989 = vrot.lane.b32.xlu0 %v360, 32
      %v990 = vpop.permute.xlu0 %989
      %991 = vrot.lane.b32.xlu0 %v361, 32
      %v992 = vpop.permute.xlu0 %991
      %993 = vrot.lane.b32.xlu0 %v362, 32
      %v994 = vpop.permute.xlu0 %993
      %995 = vrot.lane.b32.xlu0 %v363, 32
      %v996 = vpop.permute.xlu0 %995
      %997 = vrot.lane.b32.xlu0 %v364, 32
      %v998 = vpop.permute.xlu0 %997
      %999 = vrot.lane.b32.xlu0 %v365, 32
      %v1000 = vpop.permute.xlu0 %999
      %1001 = vrot.lane.b32.xlu0 %v366, 32
      %v1002 = vpop.permute.xlu0 %1001
      %1003 = vrot.lane.b32.xlu0 %v367, 32
      %v1004 = vpop.permute.xlu0 %1003
      %1005 = vrot.lane.b32.xlu0 %v368, 32
      %v1006 = vpop.permute.xlu0 %1005
      %vm1007 = vcmask 261120
      %v1008 = vsel %vm1007, %v990, %v992
      %v1009 = vsel %vm1007, %v992, %v994
      %v1010 = vsel %vm1007, %v994, %v996
      %v1011 = vsel %vm1007, %v996, %v998
      %v1012 = vsel %vm1007, %v998, %v1000
      %v1013 = vsel %vm1007, %v1000, %v1002
      %v1014 = vsel %vm1007, %v1002, %v1004
      %v1015 = vsel %vm1007, %v1004, %v1006
      %1024 = vst [vmem:[#allocation2 + $0x3c0] sm:$0xff] %v1008
      %1025 = vst [vmem:[#allocation2 + $0x3c8] sm:$0xff] %v1009
      %1026 = vst [vmem:[#allocation2 + $0x3d0] sm:$0xff] %v1010
      %1027 = vst [vmem:[#allocation2 + $0x3d8] sm:$0xff] %v1011
      %1028 = vst [vmem:[#allocation2 + $0x3e0] sm:$0xff] %v1012
      %1029 = vst [vmem:[#allocation2 + $0x3e8] sm:$0xff] %v1013
      %1030 = vst [vmem:[#allocation2 + $0x3f0] sm:$0xff] %v1014
      %1031 = vst [vmem:[#allocation2 + $0x3f8] sm:$0xff] %v1015
      %1032 = vrot.lane.b32.xlu0 %v360, 31
      %v1033 = vpop.permute.xlu0 %1032
      %1034 = vrot.lane.b32.xlu0 %v361, 31
      %v1035 = vpop.permute.xlu0 %1034
      %1036 = vrot.lane.b32.xlu0 %v362, 31
      %v1037 = vpop.permute.xlu0 %1036
      %1038 = vrot.lane.b32.xlu0 %v363, 31
      %v1039 = vpop.permute.xlu0 %1038
      %1040 = vrot.lane.b32.xlu0 %v364, 31
      %v1041 = vpop.permute.xlu0 %1040
      %1042 = vrot.lane.b32.xlu0 %v365, 31
      %v1043 = vpop.permute.xlu0 %1042
      %1044 = vrot.lane.b32.xlu0 %v366, 31
      %v1045 = vpop.permute.xlu0 %1044
      %1046 = vrot.lane.b32.xlu0 %v367, 31
      %v1047 = vpop.permute.xlu0 %1046
      %1048 = vrot.lane.b32.xlu0 %v368, 31
      %v1049 = vpop.permute.xlu0 %1048
      %vm1050 = vcmask 252928
      %v1051 = vsel %vm1050, %v1033, %v1035
      %v1052 = vsel %vm1050, %v1035, %v1037
      %v1053 = vsel %vm1050, %v1037, %v1039
      %v1054 = vsel %vm1050, %v1039, %v1041
      %v1055 = vsel %vm1050, %v1041, %v1043
      %v1056 = vsel %vm1050, %v1043, %v1045
      %v1057 = vsel %vm1050, %v1045, %v1047
      %v1058 = vsel %vm1050, %v1047, %v1049
      %1067 = vst [vmem:[#allocation2 + $0x400] sm:$0xff] %v1051
      %1068 = vst [vmem:[#allocation2 + $0x408] sm:$0xff] %v1052
      %1069 = vst [vmem:[#allocation2 + $0x410] sm:$0xff] %v1053
      %1070 = vst [vmem:[#allocation2 + $0x418] sm:$0xff] %v1054
      %1071 = vst [vmem:[#allocation2 + $0x420] sm:$0xff] %v1055
      %1072 = vst [vmem:[#allocation2 + $0x428] sm:$0xff] %v1056
      %1073 = vst [vmem:[#allocation2 + $0x430] sm:$0xff] %v1057
      %1074 = vst [vmem:[#allocation2 + $0x438] sm:$0xff] %v1058
      %1075 = vrot.lane.b32.xlu0 %v360, 30
      %v1076 = vpop.permute.xlu0 %1075
      %1077 = vrot.lane.b32.xlu0 %v361, 30
      %v1078 = vpop.permute.xlu0 %1077
      %1079 = vrot.lane.b32.xlu0 %v362, 30
      %v1080 = vpop.permute.xlu0 %1079
      %1081 = vrot.lane.b32.xlu0 %v363, 30
      %v1082 = vpop.permute.xlu0 %1081
      %1083 = vrot.lane.b32.xlu0 %v364, 30
      %v1084 = vpop.permute.xlu0 %1083
      %1085 = vrot.lane.b32.xlu0 %v365, 30
      %v1086 = vpop.permute.xlu0 %1085
      %1087 = vrot.lane.b32.xlu0 %v366, 30
      %v1088 = vpop.permute.xlu0 %1087
      %1089 = vrot.lane.b32.xlu0 %v367, 30
      %v1090 = vpop.permute.xlu0 %1089
      %1091 = vrot.lane.b32.xlu0 %v368, 30
      %v1092 = vpop.permute.xlu0 %1091
      %vm1093 = vcmask 244736
      %v1094 = vsel %vm1093, %v1076, %v1078
      %v1095 = vsel %vm1093, %v1078, %v1080
      %v1096 = vsel %vm1093, %v1080, %v1082
      %v1097 = vsel %vm1093, %v1082, %v1084
      %v1098 = vsel %vm1093, %v1084, %v1086
      %v1099 = vsel %vm1093, %v1086, %v1088
      %v1100 = vsel %vm1093, %v1088, %v1090
      %v1101 = vsel %vm1093, %v1090, %v1092
      %1110 = vst [vmem:[#allocation2 + $0x440] sm:$0xff] %v1094
      %1111 = vst [vmem:[#allocation2 + $0x448] sm:$0xff] %v1095
      %1112 = vst [vmem:[#allocation2 + $0x450] sm:$0xff] %v1096
      %1113 = vst [vmem:[#allocation2 + $0x458] sm:$0xff] %v1097
      %1114 = vst [vmem:[#allocation2 + $0x460] sm:$0xff] %v1098
      %1115 = vst [vmem:[#allocation2 + $0x468] sm:$0xff] %v1099
      %1116 = vst [vmem:[#allocation2 + $0x470] sm:$0xff] %v1100
      %1117 = vst [vmem:[#allocation2 + $0x478] sm:$0xff] %v1101
      %1118 = vrot.lane.b32.xlu0 %v360, 29
      %v1119 = vpop.permute.xlu0 %1118
      %1120 = vrot.lane.b32.xlu0 %v361, 29
      %v1121 = vpop.permute.xlu0 %1120
      %1122 = vrot.lane.b32.xlu0 %v362, 29
      %v1123 = vpop.permute.xlu0 %1122
      %1124 = vrot.lane.b32.xlu0 %v363, 29
      %v1125 = vpop.permute.xlu0 %1124
      %1126 = vrot.lane.b32.xlu0 %v364, 29
      %v1127 = vpop.permute.xlu0 %1126
      %1128 = vrot.lane.b32.xlu0 %v365, 29
      %v1129 = vpop.permute.xlu0 %1128
      %1130 = vrot.lane.b32.xlu0 %v366, 29
      %v1131 = vpop.permute.xlu0 %1130
      %1132 = vrot.lane.b32.xlu0 %v367, 29
      %v1133 = vpop.permute.xlu0 %1132
      %1134 = vrot.lane.b32.xlu0 %v368, 29
      %v1135 = vpop.permute.xlu0 %1134
      %vm1136 = vcmask 236544
      %v1137 = vsel %vm1136, %v1119, %v1121
      %v1138 = vsel %vm1136, %v1121, %v1123
      %v1139 = vsel %vm1136, %v1123, %v1125
      %v1140 = vsel %vm1136, %v1125, %v1127
      %v1141 = vsel %vm1136, %v1127, %v1129
      %v1142 = vsel %vm1136, %v1129, %v1131
      %v1143 = vsel %vm1136, %v1131, %v1133
      %v1144 = vsel %vm1136, %v1133, %v1135
      %1153 = vst [vmem:[#allocation2 + $0x480] sm:$0xff] %v1137
      %1154 = vst [vmem:[#allocation2 + $0x488] sm:$0xff] %v1138
      %1155 = vst [vmem:[#allocation2 + $0x490] sm:$0xff] %v1139
      %1156 = vst [vmem:[#allocation2 + $0x498] sm:$0xff] %v1140
      %1157 = vst [vmem:[#allocation2 + $0x4a0] sm:$0xff] %v1141
      %1158 = vst [vmem:[#allocation2 + $0x4a8] sm:$0xff] %v1142
      %1159 = vst [vmem:[#allocation2 + $0x4b0] sm:$0xff] %v1143
      %1160 = vst [vmem:[#allocation2 + $0x4b8] sm:$0xff] %v1144
      %1161 = vrot.lane.b32.xlu0 %v360, 28
      %v1162 = vpop.permute.xlu0 %1161
      %1163 = vrot.lane.b32.xlu0 %v361, 28
      %v1164 = vpop.permute.xlu0 %1163
      %1165 = vrot.lane.b32.xlu0 %v362, 28
      %v1166 = vpop.permute.xlu0 %1165
      %1167 = vrot.lane.b32.xlu0 %v363, 28
      %v1168 = vpop.permute.xlu0 %1167
      %1169 = vrot.lane.b32.xlu0 %v364, 28
      %v1170 = vpop.permute.xlu0 %1169
      %1171 = vrot.lane.b32.xlu0 %v365, 28
      %v1172 = vpop.permute.xlu0 %1171
      %1173 = vrot.lane.b32.xlu0 %v366, 28
      %v1174 = vpop.permute.xlu0 %1173
      %1175 = vrot.lane.b32.xlu0 %v367, 28
      %v1176 = vpop.permute.xlu0 %1175
      %1177 = vrot.lane.b32.xlu0 %v368, 28
      %v1178 = vpop.permute.xlu0 %1177
      %vm1179 = vcmask 228352
      %v1180 = vsel %vm1179, %v1162, %v1164
      %v1181 = vsel %vm1179, %v1164, %v1166
      %v1182 = vsel %vm1179, %v1166, %v1168
      %v1183 = vsel %vm1179, %v1168, %v1170
      %v1184 = vsel %vm1179, %v1170, %v1172
      %v1185 = vsel %vm1179, %v1172, %v1174
      %v1186 = vsel %vm1179, %v1174, %v1176
      %v1187 = vsel %vm1179, %v1176, %v1178
      %1196 = vst [vmem:[#allocation2 + $0x4c0] sm:$0xff] %v1180
      %1197 = vst [vmem:[#allocation2 + $0x4c8] sm:$0xff] %v1181
      %1198 = vst [vmem:[#allocation2 + $0x4d0] sm:$0xff] %v1182
      %1199 = vst [vmem:[#allocation2 + $0x4d8] sm:$0xff] %v1183
      %1200 = vst [vmem:[#allocation2 + $0x4e0] sm:$0xff] %v1184
      %1201 = vst [vmem:[#allocation2 + $0x4e8] sm:$0xff] %v1185
      %1202 = vst [vmem:[#allocation2 + $0x4f0] sm:$0xff] %v1186
      %1203 = vst [vmem:[#allocation2 + $0x4f8] sm:$0xff] %v1187
      %1204 = vst [vmem:[#allocation2 + $0x500] sm:$0xff] %v361
      %1205 = vst [vmem:[#allocation2 + $0x508] sm:$0xff] %v362
      %1206 = vst [vmem:[#allocation2 + $0x510] sm:$0xff] %v363
      %1207 = vst [vmem:[#allocation2 + $0x518] sm:$0xff] %v364
      %1208 = vst [vmem:[#allocation2 + $0x520] sm:$0xff] %v365
      %1209 = vst [vmem:[#allocation2 + $0x528] sm:$0xff] %v366
      %1210 = vst [vmem:[#allocation2 + $0x530] sm:$0xff] %v367
      %1211 = vst [vmem:[#allocation2 + $0x538] sm:$0xff] %v368
      %1213 = vrot.lane.b32.xlu0 %v369, 127
      %v1214 = vpop.permute.xlu0 %1213
      %v1215 = vsel %vm405, %v404, %v1214
      %1217 = vst [vmem:[#allocation2 + $0x540] sm:$0xff] %v407
      %1218 = vst [vmem:[#allocation2 + $0x548] sm:$0xff] %v408
      %1219 = vst [vmem:[#allocation2 + $0x550] sm:$0xff] %v409
      %1220 = vst [vmem:[#allocation2 + $0x558] sm:$0xff] %v410
      %1221 = vst [vmem:[#allocation2 + $0x560] sm:$0xff] %v411
      %1222 = vst [vmem:[#allocation2 + $0x568] sm:$0xff] %v412
      %1223 = vst [vmem:[#allocation2 + $0x570] sm:$0xff] %v413
      %1224 = vst [vmem:[#allocation2 + $0x578] sm:$0xff] %v1215
      %1225 = vrot.lane.b32.xlu0 %v369, 126
      %v1226 = vpop.permute.xlu0 %1225
      %v1227 = vsel %vm448, %v447, %v1226
      %1229 = vst [vmem:[#allocation2 + $0x580] sm:$0xff] %v450
      %1230 = vst [vmem:[#allocation2 + $0x588] sm:$0xff] %v451
      %1231 = vst [vmem:[#allocation2 + $0x590] sm:$0xff] %v452
      %1232 = vst [vmem:[#allocation2 + $0x598] sm:$0xff] %v453
      %1233 = vst [vmem:[#allocation2 + $0x5a0] sm:$0xff] %v454
      %1234 = vst [vmem:[#allocation2 + $0x5a8] sm:$0xff] %v455
      %1235 = vst [vmem:[#allocation2 + $0x5b0] sm:$0xff] %v456
      %1236 = vst [vmem:[#allocation2 + $0x5b8] sm:$0xff] %v1227
      %1237 = vrot.lane.b32.xlu0 %v369, 125
      %v1238 = vpop.permute.xlu0 %1237
      %v1239 = vsel %vm491, %v490, %v1238
      %1241 = vst [vmem:[#allocation2 + $0x5c0] sm:$0xff] %v493
      %1242 = vst [vmem:[#allocation2 + $0x5c8] sm:$0xff] %v494
      %1243 = vst [vmem:[#allocation2 + $0x5d0] sm:$0xff] %v495
      %1244 = vst [vmem:[#allocation2 + $0x5d8] sm:$0xff] %v496
      %1245 = vst [vmem:[#allocation2 + $0x5e0] sm:$0xff] %v497
      %1246 = vst [vmem:[#allocation2 + $0x5e8] sm:$0xff] %v498
      %1247 = vst [vmem:[#allocation2 + $0x5f0] sm:$0xff] %v499
      %1248 = vst [vmem:[#allocation2 + $0x5f8] sm:$0xff] %v1239
      %1249 = vrot.lane.b32.xlu0 %v369, 124
      %v1250 = vpop.permute.xlu0 %1249
      %v1251 = vsel %vm534, %v533, %v1250
      %1253 = vst [vmem:[#allocation2 + $0x600] sm:$0xff] %v536
      %1254 = vst [vmem:[#allocation2 + $0x608] sm:$0xff] %v537
      %1255 = vst [vmem:[#allocation2 + $0x610] sm:$0xff] %v538
      %1256 = vst [vmem:[#allocation2 + $0x618] sm:$0xff] %v539
      %1257 = vst [vmem:[#allocation2 + $0x620] sm:$0xff] %v540
      %1258 = vst [vmem:[#allocation2 + $0x628] sm:$0xff] %v541
      %1259 = vst [vmem:[#allocation2 + $0x630] sm:$0xff] %v542
      %1260 = vst [vmem:[#allocation2 + $0x638] sm:$0xff] %v1251
      %v1261 = vld [vmem:[#allocation2] sm:$0xff]
      %v1262 = vld [vmem:[#allocation2 + $0x8] sm:$0xff]
      %v1263 = vld [vmem:[#allocation2 + $0x10] sm:$0xff]
      %v1264 = vld [vmem:[#allocation2 + $0x18] sm:$0xff]
      %v1265 = vld [vmem:[#allocation2 + $0x20] sm:$0xff]
      %v1266 = vld [vmem:[#allocation2 + $0x28] sm:$0xff]
      %v1267 = vld [vmem:[#allocation2 + $0x30] sm:$0xff]
      %v1268 = vld [vmem:[#allocation2 + $0x38] sm:$0xff]
      %v1269 = vld [vmem:[#allocation2 + $0x40] sm:$0xff]
      %v1270 = vld [vmem:[#allocation2 + $0x48] sm:$0xff]
      %v1271 = vld [vmem:[#allocation2 + $0x50] sm:$0xff]
      %v1272 = vld [vmem:[#allocation2 + $0x58] sm:$0xff]
      %v1273 = vld [vmem:[#allocation2 + $0x60] sm:$0xff]
      %v1274 = vld [vmem:[#allocation2 + $0x68] sm:$0xff]
      %v1275 = vld [vmem:[#allocation2 + $0x70] sm:$0xff]
      %v1276 = vld [vmem:[#allocation2 + $0x78] sm:$0xff]
      %v1277 = vld [vmem:[#allocation2 + $0x80] sm:$0xff]
      %v1278 = vld [vmem:[#allocation2 + $0x88] sm:$0xff]
      %v1279 = vld [vmem:[#allocation2 + $0x90] sm:$0xff]
      %v1280 = vld [vmem:[#allocation2 + $0x98] sm:$0xff]
      %v1281 = vld [vmem:[#allocation2 + $0xa0] sm:$0xff]
      %v1282 = vld [vmem:[#allocation2 + $0xa8] sm:$0xff]
      %v1283 = vld [vmem:[#allocation2 + $0xb0] sm:$0xff]
      %v1284 = vld [vmem:[#allocation2 + $0xb8] sm:$0xff]
      %v1285 = vld [vmem:[#allocation2 + $0xc0] sm:$0xff]
      %v1286 = vld [vmem:[#allocation2 + $0xc8] sm:$0xff]
      %v1287 = vld [vmem:[#allocation2 + $0xd0] sm:$0xff]
      %v1288 = vld [vmem:[#allocation2 + $0xd8] sm:$0xff]
      %v1289 = vld [vmem:[#allocation2 + $0xe0] sm:$0xff]
      %v1290 = vld [vmem:[#allocation2 + $0xe8] sm:$0xff]
      %v1291 = vld [vmem:[#allocation2 + $0xf0] sm:$0xff]
      %v1292 = vld [vmem:[#allocation2 + $0xf8] sm:$0xff]
      %v1293 = vld [vmem:[#allocation2 + $0x100] sm:$0xff]
      %v1294 = vld [vmem:[#allocation2 + $0x108] sm:$0xff]
      %v1295 = vld [vmem:[#allocation2 + $0x110] sm:$0xff]
      %v1296 = vld [vmem:[#allocation2 + $0x118] sm:$0xff]
      %v1297 = vld [vmem:[#allocation2 + $0x120] sm:$0xff]
      %v1298 = vld [vmem:[#allocation2 + $0x128] sm:$0xff]
      %v1299 = vld [vmem:[#allocation2 + $0x130] sm:$0xff]
      %v1300 = vld [vmem:[#allocation2 + $0x138] sm:$0xff]
      %v1301 = vld [vmem:[#allocation2 + $0x140] sm:$0xff]
      %v1302 = vld [vmem:[#allocation2 + $0x148] sm:$0xff]
      %v1303 = vld [vmem:[#allocation2 + $0x150] sm:$0xff]
      %v1304 = vld [vmem:[#allocation2 + $0x158] sm:$0xff]
      %v1305 = vld [vmem:[#allocation2 + $0x160] sm:$0xff]
      %v1306 = vld [vmem:[#allocation2 + $0x168] sm:$0xff]
      %v1307 = vld [vmem:[#allocation2 + $0x170] sm:$0xff]
      %v1308 = vld [vmem:[#allocation2 + $0x178] sm:$0xff]
      %v1309 = vld [vmem:[#allocation2 + $0x180] sm:$0xff]
      %v1310 = vld [vmem:[#allocation2 + $0x188] sm:$0xff]
      %v1311 = vld [vmem:[#allocation2 + $0x190] sm:$0xff]
      %v1312 = vld [vmem:[#allocation2 + $0x198] sm:$0xff]
      %v1313 = vld [vmem:[#allocation2 + $0x1a0] sm:$0xff]
      %v1314 = vld [vmem:[#allocation2 + $0x1a8] sm:$0xff]
      %v1315 = vld [vmem:[#allocation2 + $0x1b0] sm:$0xff]
      %v1316 = vld [vmem:[#allocation2 + $0x1b8] sm:$0xff]
      %v1317 = vld [vmem:[#allocation2 + $0x1c0] sm:$0xff]
      %v1318 = vld [vmem:[#allocation2 + $0x1c8] sm:$0xff]
      %v1319 = vld [vmem:[#allocation2 + $0x1d0] sm:$0xff]
      %v1320 = vld [vmem:[#allocation2 + $0x1d8] sm:$0xff]
      %v1321 = vld [vmem:[#allocation2 + $0x1e0] sm:$0xff]
      %v1322 = vld [vmem:[#allocation2 + $0x1e8] sm:$0xff]
      %v1323 = vld [vmem:[#allocation2 + $0x1f0] sm:$0xff]
      %v1324 = vld [vmem:[#allocation2 + $0x1f8] sm:$0xff]
      %v1325 = vld [vmem:[#allocation2 + $0x200] sm:$0xff]
      %v1326 = vld [vmem:[#allocation2 + $0x208] sm:$0xff]
      %v1327 = vld [vmem:[#allocation2 + $0x210] sm:$0xff]
      %v1328 = vld [vmem:[#allocation2 + $0x218] sm:$0xff]
      %v1329 = vld [vmem:[#allocation2 + $0x220] sm:$0xff]
      %v1330 = vld [vmem:[#allocation2 + $0x228] sm:$0xff]
      %v1331 = vld [vmem:[#allocation2 + $0x230] sm:$0xff]
      %v1332 = vld [vmem:[#allocation2 + $0x238] sm:$0xff]
      %v1333 = vld [vmem:[#allocation2 + $0x240] sm:$0xff]
      %v1334 = vld [vmem:[#allocation2 + $0x248] sm:$0xff]
      %v1335 = vld [vmem:[#allocation2 + $0x250] sm:$0xff]
      %v1336 = vld [vmem:[#allocation2 + $0x258] sm:$0xff]
      %v1337 = vld [vmem:[#allocation2 + $0x260] sm:$0xff]
      %v1338 = vld [vmem:[#allocation2 + $0x268] sm:$0xff]
      %v1339 = vld [vmem:[#allocation2 + $0x270] sm:$0xff]
      %v1340 = vld [vmem:[#allocation2 + $0x278] sm:$0xff]
      %v1341 = vld [vmem:[#allocation2 + $0x280] sm:$0xff]
      %v1342 = vld [vmem:[#allocation2 + $0x288] sm:$0xff]
      %v1343 = vld [vmem:[#allocation2 + $0x290] sm:$0xff]
      %v1344 = vld [vmem:[#allocation2 + $0x298] sm:$0xff]
      %v1345 = vld [vmem:[#allocation2 + $0x2a0] sm:$0xff]
      %v1346 = vld [vmem:[#allocation2 + $0x2a8] sm:$0xff]
      %v1347 = vld [vmem:[#allocation2 + $0x2b0] sm:$0xff]
      %v1348 = vld [vmem:[#allocation2 + $0x2b8] sm:$0xff]
      %v1349 = vld [vmem:[#allocation2 + $0x2c0] sm:$0xff]
      %v1350 = vld [vmem:[#allocation2 + $0x2c8] sm:$0xff]
      %v1351 = vld [vmem:[#allocation2 + $0x2d0] sm:$0xff]
      %v1352 = vld [vmem:[#allocation2 + $0x2d8] sm:$0xff]
      %v1353 = vld [vmem:[#allocation2 + $0x2e0] sm:$0xff]
      %v1354 = vld [vmem:[#allocation2 + $0x2e8] sm:$0xff]
      %v1355 = vld [vmem:[#allocation2 + $0x2f0] sm:$0xff]
      %v1356 = vld [vmem:[#allocation2 + $0x2f8] sm:$0xff]
      %v1357 = vld [vmem:[#allocation2 + $0x300] sm:$0xff]
      %v1358 = vld [vmem:[#allocation2 + $0x308] sm:$0xff]
      %v1359 = vld [vmem:[#allocation2 + $0x310] sm:$0xff]
      %v1360 = vld [vmem:[#allocation2 + $0x318] sm:$0xff]
      %v1361 = vld [vmem:[#allocation2 + $0x320] sm:$0xff]
      %v1362 = vld [vmem:[#allocation2 + $0x328] sm:$0xff]
      %v1363 = vld [vmem:[#allocation2 + $0x330] sm:$0xff]
      %v1364 = vld [vmem:[#allocation2 + $0x338] sm:$0xff]
      %v1365 = vld [vmem:[#allocation2 + $0x340] sm:$0xff]
      %v1366 = vld [vmem:[#allocation2 + $0x348] sm:$0xff]
      %v1367 = vld [vmem:[#allocation2 + $0x350] sm:$0xff]
      %v1368 = vld [vmem:[#allocation2 + $0x358] sm:$0xff]
      %v1369 = vld [vmem:[#allocation2 + $0x360] sm:$0xff]
      %v1370 = vld [vmem:[#allocation2 + $0x368] sm:$0xff]
      %v1371 = vld [vmem:[#allocation2 + $0x370] sm:$0xff]
      %v1372 = vld [vmem:[#allocation2 + $0x378] sm:$0xff]
      %v1373 = vld [vmem:[#allocation2 + $0x380] sm:$0xff]
      %v1374 = vld [vmem:[#allocation2 + $0x388] sm:$0xff]
      %v1375 = vld [vmem:[#allocation2 + $0x390] sm:$0xff]
      %v1376 = vld [vmem:[#allocation2 + $0x398] sm:$0xff]
      %v1377 = vld [vmem:[#allocation2 + $0x3a0] sm:$0xff]
      %v1378 = vld [vmem:[#allocation2 + $0x3a8] sm:$0xff]
      %v1379 = vld [vmem:[#allocation2 + $0x3b0] sm:$0xff]
      %v1380 = vld [vmem:[#allocation2 + $0x3b8] sm:$0xff]
      %v1381 = vld [vmem:[#allocation2 + $0x3c0] sm:$0xff]
      %v1382 = vld [vmem:[#allocation2 + $0x3c8] sm:$0xff]
      %v1383 = vld [vmem:[#allocation2 + $0x3d0] sm:$0xff]
      %v1384 = vld [vmem:[#allocation2 + $0x3d8] sm:$0xff]
      %v1385 = vld [vmem:[#allocation2 + $0x3e0] sm:$0xff]
      %v1386 = vld [vmem:[#allocation2 + $0x3e8] sm:$0xff]
      %v1387 = vld [vmem:[#allocation2 + $0x3f0] sm:$0xff]
      %v1388 = vld [vmem:[#allocation2 + $0x3f8] sm:$0xff]
      %v1389 = vld [vmem:[#allocation2 + $0x400] sm:$0xff]
      %v1390 = vld [vmem:[#allocation2 + $0x408] sm:$0xff]
      %v1391 = vld [vmem:[#allocation2 + $0x410] sm:$0xff]
      %v1392 = vld [vmem:[#allocation2 + $0x418] sm:$0xff]
      %v1393 = vld [vmem:[#allocation2 + $0x420] sm:$0xff]
      %v1394 = vld [vmem:[#allocation2 + $0x428] sm:$0xff]
      %v1395 = vld [vmem:[#allocation2 + $0x430] sm:$0xff]
      %v1396 = vld [vmem:[#allocation2 + $0x438] sm:$0xff]
      %v1397 = vld [vmem:[#allocation2 + $0x440] sm:$0xff]
      %v1398 = vld [vmem:[#allocation2 + $0x448] sm:$0xff]
      %v1399 = vld [vmem:[#allocation2 + $0x450] sm:$0xff]
      %v1400 = vld [vmem:[#allocation2 + $0x458] sm:$0xff]
      %v1401 = vld [vmem:[#allocation2 + $0x460] sm:$0xff]
      %v1402 = vld [vmem:[#allocation2 + $0x468] sm:$0xff]
      %v1403 = vld [vmem:[#allocation2 + $0x470] sm:$0xff]
      %v1404 = vld [vmem:[#allocation2 + $0x478] sm:$0xff]
      %v1405 = vld [vmem:[#allocation2 + $0x480] sm:$0xff]
      %v1406 = vld [vmem:[#allocation2 + $0x488] sm:$0xff]
      %v1407 = vld [vmem:[#allocation2 + $0x490] sm:$0xff]
      %v1408 = vld [vmem:[#allocation2 + $0x498] sm:$0xff]
      %v1409 = vld [vmem:[#allocation2 + $0x4a0] sm:$0xff]
      %v1410 = vld [vmem:[#allocation2 + $0x4a8] sm:$0xff]
      %v1411 = vld [vmem:[#allocation2 + $0x4b0] sm:$0xff]
      %v1412 = vld [vmem:[#allocation2 + $0x4b8] sm:$0xff]
      %v1413 = vld [vmem:[#allocation2 + $0x4c0] sm:$0xff]
      %v1414 = vld [vmem:[#allocation2 + $0x4c8] sm:$0xff]
      %v1415 = vld [vmem:[#allocation2 + $0x4d0] sm:$0xff]
      %v1416 = vld [vmem:[#allocation2 + $0x4d8] sm:$0xff]
      %v1417 = vld [vmem:[#allocation2 + $0x4e0] sm:$0xff]
      %v1418 = vld [vmem:[#allocation2 + $0x4e8] sm:$0xff]
      %v1419 = vld [vmem:[#allocation2 + $0x4f0] sm:$0xff]
      %v1420 = vld [vmem:[#allocation2 + $0x4f8] sm:$0xff]
      %v1421 = vld [vmem:[#allocation2 + $0x500] sm:$0xff]
      %v1422 = vld [vmem:[#allocation2 + $0x508] sm:$0xff]
      %v1423 = vld [vmem:[#allocation2 + $0x510] sm:$0xff]
      %v1424 = vld [vmem:[#allocation2 + $0x518] sm:$0xff]
      %v1425 = vld [vmem:[#allocation2 + $0x520] sm:$0xff]
      %v1426 = vld [vmem:[#allocation2 + $0x528] sm:$0xff]
      %v1427 = vld [vmem:[#allocation2 + $0x530] sm:$0xff]
      %v1428 = vld [vmem:[#allocation2 + $0x538] sm:$0xff]
      %v1429 = vld [vmem:[#allocation2 + $0x540] sm:$0xff]
      %v1430 = vld [vmem:[#allocation2 + $0x548] sm:$0xff]
      %v1431 = vld [vmem:[#allocation2 + $0x550] sm:$0xff]
      %v1432 = vld [vmem:[#allocation2 + $0x558] sm:$0xff]
      %v1433 = vld [vmem:[#allocation2 + $0x560] sm:$0xff]
      %v1434 = vld [vmem:[#allocation2 + $0x568] sm:$0xff]
      %v1435 = vld [vmem:[#allocation2 + $0x570] sm:$0xff]
      %v1436 = vld [vmem:[#allocation2 + $0x578] sm:$0xff]
      %v1437 = vld [vmem:[#allocation2 + $0x580] sm:$0xff]
      %v1438 = vld [vmem:[#allocation2 + $0x588] sm:$0xff]
      %v1439 = vld [vmem:[#allocation2 + $0x590] sm:$0xff]
      %v1440 = vld [vmem:[#allocation2 + $0x598] sm:$0xff]
      %v1441 = vld [vmem:[#allocation2 + $0x5a0] sm:$0xff]
      %v1442 = vld [vmem:[#allocation2 + $0x5a8] sm:$0xff]
      %v1443 = vld [vmem:[#allocation2 + $0x5b0] sm:$0xff]
      %v1444 = vld [vmem:[#allocation2 + $0x5b8] sm:$0xff]
      %v1445 = vld [vmem:[#allocation2 + $0x5c0] sm:$0xff]
      %v1446 = vld [vmem:[#allocation2 + $0x5c8] sm:$0xff]
      %v1447 = vld [vmem:[#allocation2 + $0x5d0] sm:$0xff]
      %v1448 = vld [vmem:[#allocation2 + $0x5d8] sm:$0xff]
      %v1449 = vld [vmem:[#allocation2 + $0x5e0] sm:$0xff]
      %v1450 = vld [vmem:[#allocation2 + $0x5e8] sm:$0xff]
      %v1451 = vld [vmem:[#allocation2 + $0x5f0] sm:$0xff]
      %v1452 = vld [vmem:[#allocation2 + $0x5f8] sm:$0xff]
      %v1453 = vld [vmem:[#allocation2 + $0x600] sm:$0xff]
      %v1454 = vld [vmem:[#allocation2 + $0x608] sm:$0xff]
      %v1455 = vld [vmem:[#allocation2 + $0x610] sm:$0xff]
      %v1456 = vld [vmem:[#allocation2 + $0x618] sm:$0xff]
      %v1457 = vld [vmem:[#allocation2 + $0x620] sm:$0xff]
      %v1458 = vld [vmem:[#allocation2 + $0x628] sm:$0xff]
      %v1459 = vld [vmem:[#allocation2 + $0x630] sm:$0xff]
      %v1460 = vld [vmem:[#allocation2 + $0x638] sm:$0xff]
      %v1461 = vld [vmem:[%s3] sm:$0xff]
      %v1462 = vld [vmem:[%s3 + $0x8] sm:$0xff]
      %v1463 = vld [vmem:[%s3 + $0x10] sm:$0xff]
      %v1464 = vld [vmem:[%s3 + $0x18] sm:$0xff]
      %v1465 = vld [vmem:[%s3 + $0x20] sm:$0xff]
      %v1466 = vld [vmem:[%s3 + $0x28] sm:$0xff]
      %v1467 = vld [vmem:[%s3 + $0x30] sm:$0xff]
      %v1468 = vld [vmem:[%s3 + $0x38] sm:$0xff]
      %v1469 = vld [vmem:[%s3 + $0x40] sm:$0xff]
      %v1470 = vld [vmem:[%s3 + $0x48] sm:$0xff]
      %v1471 = vld [vmem:[%s3 + $0x50] sm:$0xff]
      %v1472 = vld [vmem:[%s3 + $0x58] sm:$0xff]
      %v1473 = vld [vmem:[%s3 + $0x60] sm:$0xff]
      %v1474 = vld [vmem:[%s3 + $0x68] sm:$0xff]
      %v1475 = vld [vmem:[%s3 + $0x70] sm:$0xff]
      %v1476 = vld [vmem:[%s3 + $0x78] sm:$0xff]
      %v1477 = vld [vmem:[%s3 + $0x80] sm:$0xff]
      %v1478 = vld [vmem:[%s3 + $0x88] sm:$0xff]
      %v1479 = vld [vmem:[%s3 + $0x90] sm:$0xff]
      %v1480 = vld [vmem:[%s3 + $0x98] sm:$0xff]
      %v1481 = vld [vmem:[%s3 + $0xa0] sm:$0xff]
      %v1482 = vld [vmem:[%s3 + $0xa8] sm:$0xff]
      %v1483 = vld [vmem:[%s3 + $0xb0] sm:$0xff]
      %v1484 = vld [vmem:[%s3 + $0xb8] sm:$0xff]
      %v1485 = vld [vmem:[%s3 + $0xc0] sm:$0xff]
      %v1486 = vld [vmem:[%s3 + $0xc8] sm:$0xff]
      %v1487 = vld [vmem:[%s3 + $0xd0] sm:$0xff]
      %v1488 = vld [vmem:[%s3 + $0xd8] sm:$0xff]
      %v1489 = vld [vmem:[%s3 + $0xe0] sm:$0xff]
      %v1490 = vld [vmem:[%s3 + $0xe8] sm:$0xff]
      %v1491 = vld [vmem:[%s3 + $0xf0] sm:$0xff]
      %v1492 = vld [vmem:[%s3 + $0xf8] sm:$0xff]
      %v1493 = vld [vmem:[%s3 + $0x100] sm:$0xff]
      %v1494 = vld [vmem:[%s3 + $0x108] sm:$0xff]
      %v1495 = vld [vmem:[%s3 + $0x110] sm:$0xff]
      %v1496 = vld [vmem:[%s3 + $0x118] sm:$0xff]
      %v1497 = vld [vmem:[%s3 + $0x120] sm:$0xff]
      %v1498 = vld [vmem:[%s3 + $0x128] sm:$0xff]
      %v1499 = vld [vmem:[%s3 + $0x130] sm:$0xff]
      %v1500 = vld [vmem:[%s3 + $0x138] sm:$0xff]
      %v1501 = vld [vmem:[%s3 + $0x140] sm:$0xff]
      %v1502 = vld [vmem:[%s3 + $0x148] sm:$0xff]
      %v1503 = vld [vmem:[%s3 + $0x150] sm:$0xff]
      %v1504 = vld [vmem:[%s3 + $0x158] sm:$0xff]
      %v1505 = vld [vmem:[%s3 + $0x160] sm:$0xff]
      %v1506 = vld [vmem:[%s3 + $0x168] sm:$0xff]
      %v1507 = vld [vmem:[%s3 + $0x170] sm:$0xff]
      %v1508 = vld [vmem:[%s3 + $0x178] sm:$0xff]
      %v1509 = vld [vmem:[%s3 + $0x180] sm:$0xff]
      %v1510 = vld [vmem:[%s3 + $0x188] sm:$0xff]
      %v1511 = vld [vmem:[%s3 + $0x190] sm:$0xff]
      %v1512 = vld [vmem:[%s3 + $0x198] sm:$0xff]
      %v1513 = vld [vmem:[%s3 + $0x1a0] sm:$0xff]
      %v1514 = vld [vmem:[%s3 + $0x1a8] sm:$0xff]
      %v1515 = vld [vmem:[%s3 + $0x1b0] sm:$0xff]
      %v1516 = vld [vmem:[%s3 + $0x1b8] sm:$0xff]
      %v1517 = vld [vmem:[%s3 + $0x1c0] sm:$0xff]
      %v1518 = vld [vmem:[%s3 + $0x1c8] sm:$0xff]
      %v1519 = vld [vmem:[%s3 + $0x1d0] sm:$0xff]
      %v1520 = vld [vmem:[%s3 + $0x1d8] sm:$0xff]
      %v1521 = vld [vmem:[%s3 + $0x1e0] sm:$0xff]
      %v1522 = vld [vmem:[%s3 + $0x1e8] sm:$0xff]
      %v1523 = vld [vmem:[%s3 + $0x1f0] sm:$0xff]
      %v1524 = vld [vmem:[%s3 + $0x1f8] sm:$0xff]
      %v1525 = vld [vmem:[%s3 + $0x200] sm:$0xff]
      %v1526 = vld [vmem:[%s3 + $0x208] sm:$0xff]
      %v1527 = vld [vmem:[%s3 + $0x210] sm:$0xff]
      %v1528 = vld [vmem:[%s3 + $0x218] sm:$0xff]
      %v1529 = vld [vmem:[%s3 + $0x220] sm:$0xff]
      %v1530 = vld [vmem:[%s3 + $0x228] sm:$0xff]
      %v1531 = vld [vmem:[%s3 + $0x230] sm:$0xff]
      %v1532 = vld [vmem:[%s3 + $0x238] sm:$0xff]
      %v1533 = vld [vmem:[%s3 + $0x240] sm:$0xff]
      %v1534 = vld [vmem:[%s3 + $0x248] sm:$0xff]
      %v1535 = vld [vmem:[%s3 + $0x250] sm:$0xff]
      %v1536 = vld [vmem:[%s3 + $0x258] sm:$0xff]
      %v1537 = vld [vmem:[%s3 + $0x260] sm:$0xff]
      %v1538 = vld [vmem:[%s3 + $0x268] sm:$0xff]
      %v1539 = vld [vmem:[%s3 + $0x270] sm:$0xff]
      %v1540 = vld [vmem:[%s3 + $0x278] sm:$0xff]
      %v1541 = vld [vmem:[%s3 + $0x280] sm:$0xff]
      %v1542 = vld [vmem:[%s3 + $0x288] sm:$0xff]
      %v1543 = vld [vmem:[%s3 + $0x290] sm:$0xff]
      %v1544 = vld [vmem:[%s3 + $0x298] sm:$0xff]
      %v1545 = vld [vmem:[%s3 + $0x2a0] sm:$0xff]
      %v1546 = vld [vmem:[%s3 + $0x2a8] sm:$0xff]
      %v1547 = vld [vmem:[%s3 + $0x2b0] sm:$0xff]
      %v1548 = vld [vmem:[%s3 + $0x2b8] sm:$0xff]
      %v1549 = vld [vmem:[%s3 + $0x2c0] sm:$0xff]
      %v1550 = vld [vmem:[%s3 + $0x2c8] sm:$0xff]
      %v1551 = vld [vmem:[%s3 + $0x2d0] sm:$0xff]
      %v1552 = vld [vmem:[%s3 + $0x2d8] sm:$0xff]
      %v1553 = vld [vmem:[%s3 + $0x2e0] sm:$0xff]
      %v1554 = vld [vmem:[%s3 + $0x2e8] sm:$0xff]
      %v1555 = vld [vmem:[%s3 + $0x2f0] sm:$0xff]
      %v1556 = vld [vmem:[%s3 + $0x2f8] sm:$0xff]
      %v1557 = vld [vmem:[%s3 + $0x300] sm:$0xff]
      %v1558 = vld [vmem:[%s3 + $0x308] sm:$0xff]
      %v1559 = vld [vmem:[%s3 + $0x310] sm:$0xff]
      %v1560 = vld [vmem:[%s3 + $0x318] sm:$0xff]
      %v1561 = vld [vmem:[%s3 + $0x320] sm:$0xff]
      %v1562 = vld [vmem:[%s3 + $0x328] sm:$0xff]
      %v1563 = vld [vmem:[%s3 + $0x330] sm:$0xff]
      %v1564 = vld [vmem:[%s3 + $0x338] sm:$0xff]
      %v1565 = vld [vmem:[%s3 + $0x340] sm:$0xff]
      %v1566 = vld [vmem:[%s3 + $0x348] sm:$0xff]
      %v1567 = vld [vmem:[%s3 + $0x350] sm:$0xff]
      %v1568 = vld [vmem:[%s3 + $0x358] sm:$0xff]
      %v1569 = vld [vmem:[%s3 + $0x360] sm:$0xff]
      %v1570 = vld [vmem:[%s3 + $0x368] sm:$0xff]
      %v1571 = vld [vmem:[%s3 + $0x370] sm:$0xff]
      %v1572 = vld [vmem:[%s3 + $0x378] sm:$0xff]
      %v1573 = vld [vmem:[%s3 + $0x380] sm:$0xff]
      %v1574 = vld [vmem:[%s3 + $0x388] sm:$0xff]
      %v1575 = vld [vmem:[%s3 + $0x390] sm:$0xff]
      %v1576 = vld [vmem:[%s3 + $0x398] sm:$0xff]
      %v1577 = vld [vmem:[%s3 + $0x3a0] sm:$0xff]
      %v1578 = vld [vmem:[%s3 + $0x3a8] sm:$0xff]
      %v1579 = vld [vmem:[%s3 + $0x3b0] sm:$0xff]
      %v1580 = vld [vmem:[%s3 + $0x3b8] sm:$0xff]
      %v1581 = vld [vmem:[%s3 + $0x3c0] sm:$0xff]
      %v1582 = vld [vmem:[%s3 + $0x3c8] sm:$0xff]
      %v1583 = vld [vmem:[%s3 + $0x3d0] sm:$0xff]
      %v1584 = vld [vmem:[%s3 + $0x3d8] sm:$0xff]
      %v1585 = vld [vmem:[%s3 + $0x3e0] sm:$0xff]
      %v1586 = vld [vmem:[%s3 + $0x3e8] sm:$0xff]
      %v1587 = vld [vmem:[%s3 + $0x3f0] sm:$0xff]
      %v1588 = vld [vmem:[%s3 + $0x3f8] sm:$0xff]
      %v1589 = vld [vmem:[%s3 + $0x400] sm:$0xff]
      %v1590 = vld [vmem:[%s3 + $0x408] sm:$0xff]
      %v1591 = vld [vmem:[%s3 + $0x410] sm:$0xff]
      %v1592 = vld [vmem:[%s3 + $0x418] sm:$0xff]
      %v1593 = vld [vmem:[%s3 + $0x420] sm:$0xff]
      %v1594 = vld [vmem:[%s3 + $0x428] sm:$0xff]
      %v1595 = vld [vmem:[%s3 + $0x430] sm:$0xff]
      %v1596 = vld [vmem:[%s3 + $0x438] sm:$0xff]
      %v1597 = vld [vmem:[%s3 + $0x440] sm:$0xff]
      %v1598 = vld [vmem:[%s3 + $0x448] sm:$0xff]
      %v1599 = vld [vmem:[%s3 + $0x450] sm:$0xff]
      %v1600 = vld [vmem:[%s3 + $0x458] sm:$0xff]
      %v1601 = vld [vmem:[%s3 + $0x460] sm:$0xff]
      %v1602 = vld [vmem:[%s3 + $0x468] sm:$0xff]
      %v1603 = vld [vmem:[%s3 + $0x470] sm:$0xff]
      %v1604 = vld [vmem:[%s3 + $0x478] sm:$0xff]
      %v1605 = vld [vmem:[%s3 + $0x480] sm:$0xff]
      %v1606 = vld [vmem:[%s3 + $0x488] sm:$0xff]
      %v1607 = vld [vmem:[%s3 + $0x490] sm:$0xff]
      %v1608 = vld [vmem:[%s3 + $0x498] sm:$0xff]
      %v1609 = vld [vmem:[%s3 + $0x4a0] sm:$0xff]
      %v1610 = vld [vmem:[%s3 + $0x4a8] sm:$0xff]
      %v1611 = vld [vmem:[%s3 + $0x4b0] sm:$0xff]
      %v1612 = vld [vmem:[%s3 + $0x4b8] sm:$0xff]
      %v1613 = vld [vmem:[%s3 + $0x4c0] sm:$0xff]
      %v1614 = vld [vmem:[%s3 + $0x4c8] sm:$0xff]
      %v1615 = vld [vmem:[%s3 + $0x4d0] sm:$0xff]
      %v1616 = vld [vmem:[%s3 + $0x4d8] sm:$0xff]
      %v1617 = vld [vmem:[%s3 + $0x4e0] sm:$0xff]
      %v1618 = vld [vmem:[%s3 + $0x4e8] sm:$0xff]
      %v1619 = vld [vmem:[%s3 + $0x4f0] sm:$0xff]
      %v1620 = vld [vmem:[%s3 + $0x4f8] sm:$0xff]
      %v1621 = vld [vmem:[%s3 + $0x500] sm:$0xff]
      %v1622 = vld [vmem:[%s3 + $0x508] sm:$0xff]
      %v1623 = vld [vmem:[%s3 + $0x510] sm:$0xff]
      %v1624 = vld [vmem:[%s3 + $0x518] sm:$0xff]
      %v1625 = vld [vmem:[%s3 + $0x520] sm:$0xff]
      %v1626 = vld [vmem:[%s3 + $0x528] sm:$0xff]
      %v1627 = vld [vmem:[%s3 + $0x530] sm:$0xff]
      %v1628 = vld [vmem:[%s3 + $0x538] sm:$0xff]
      %v1629 = vld [vmem:[%s3 + $0x540] sm:$0xff]
      %v1630 = vld [vmem:[%s3 + $0x548] sm:$0xff]
      %v1631 = vld [vmem:[%s3 + $0x550] sm:$0xff]
      %v1632 = vld [vmem:[%s3 + $0x558] sm:$0xff]
      %v1633 = vld [vmem:[%s3 + $0x560] sm:$0xff]
      %v1634 = vld [vmem:[%s3 + $0x568] sm:$0xff]
      %v1635 = vld [vmem:[%s3 + $0x570] sm:$0xff]
      %v1636 = vld [vmem:[%s3 + $0x578] sm:$0xff]
      %v1637 = vld [vmem:[%s3 + $0x580] sm:$0xff]
      %v1638 = vld [vmem:[%s3 + $0x588] sm:$0xff]
      %v1639 = vld [vmem:[%s3 + $0x590] sm:$0xff]
      %v1640 = vld [vmem:[%s3 + $0x598] sm:$0xff]
      %v1641 = vld [vmem:[%s3 + $0x5a0] sm:$0xff]
      %v1642 = vld [vmem:[%s3 + $0x5a8] sm:$0xff]
      %v1643 = vld [vmem:[%s3 + $0x5b0] sm:$0xff]
      %v1644 = vld [vmem:[%s3 + $0x5b8] sm:$0xff]
      %v1645 = vld [vmem:[%s3 + $0x5c0] sm:$0xff]
      %v1646 = vld [vmem:[%s3 + $0x5c8] sm:$0xff]
      %v1647 = vld [vmem:[%s3 + $0x5d0] sm:$0xff]
      %v1648 = vld [vmem:[%s3 + $0x5d8] sm:$0xff]
      %v1649 = vld [vmem:[%s3 + $0x5e0] sm:$0xff]
      %v1650 = vld [vmem:[%s3 + $0x5e8] sm:$0xff]
      %v1651 = vld [vmem:[%s3 + $0x5f0] sm:$0xff]
      %v1652 = vld [vmem:[%s3 + $0x5f8] sm:$0xff]
      %v1653 = vld [vmem:[%s3 + $0x600] sm:$0xff]
      %v1654 = vld [vmem:[%s3 + $0x608] sm:$0xff]
      %v1655 = vld [vmem:[%s3 + $0x610] sm:$0xff]
      %v1656 = vld [vmem:[%s3 + $0x618] sm:$0xff]
      %v1657 = vld [vmem:[%s3 + $0x620] sm:$0xff]
      %v1658 = vld [vmem:[%s3 + $0x628] sm:$0xff]
      %v1659 = vld [vmem:[%s3 + $0x630] sm:$0xff]
      %v1660 = vld [vmem:[%s3 + $0x638] sm:$0xff]
      %v1661 = vmul.f32 %v1261, %v1461
      %v1662 = vmul.f32 %v1262, %v1462
      %v1663 = vmul.f32 %v1263, %v1463
      %v1664 = vmul.f32 %v1264, %v1464
      %v1665 = vmul.f32 %v1265, %v1465
      %v1666 = vmul.f32 %v1266, %v1466
      %v1667 = vmul.f32 %v1267, %v1467
      %v1668 = vmul.f32 %v1268, %v1468
      %v1669 = vmul.f32 %v1269, %v1469
      %v1670 = vmul.f32 %v1270, %v1470
      %v1671 = vmul.f32 %v1271, %v1471
      %v1672 = vmul.f32 %v1272, %v1472
      %v1673 = vmul.f32 %v1273, %v1473
      %v1674 = vmul.f32 %v1274, %v1474
      %v1675 = vmul.f32 %v1275, %v1475
      %v1676 = vmul.f32 %v1276, %v1476
      %v1677 = vmul.f32 %v1277, %v1477
      %v1678 = vmul.f32 %v1278, %v1478
      %v1679 = vmul.f32 %v1279, %v1479
      %v1680 = vmul.f32 %v1280, %v1480
      %v1681 = vmul.f32 %v1281, %v1481
      %v1682 = vmul.f32 %v1282, %v1482
      %v1683 = vmul.f32 %v1283, %v1483
      %v1684 = vmul.f32 %v1284, %v1484
      %v1685 = vmul.f32 %v1285, %v1485
      %v1686 = vmul.f32 %v1286, %v1486
      %v1687 = vmul.f32 %v1287, %v1487
      %v1688 = vmul.f32 %v1288, %v1488
      %v1689 = vmul.f32 %v1289, %v1489
      %v1690 = vmul.f32 %v1290, %v1490
      %v1691 = vmul.f32 %v1291, %v1491
      %v1692 = vmul.f32 %v1292, %v1492
      %v1693 = vmul.f32 %v1293, %v1493
      %v1694 = vmul.f32 %v1294, %v1494
      %v1695 = vmul.f32 %v1295, %v1495
      %v1696 = vmul.f32 %v1296, %v1496
      %v1697 = vmul.f32 %v1297, %v1497
      %v1698 = vmul.f32 %v1298, %v1498
      %v1699 = vmul.f32 %v1299, %v1499
      %v1700 = vmul.f32 %v1300, %v1500
      %v1701 = vmul.f32 %v1301, %v1501
      %v1702 = vmul.f32 %v1302, %v1502
      %v1703 = vmul.f32 %v1303, %v1503
      %v1704 = vmul.f32 %v1304, %v1504
      %v1705 = vmul.f32 %v1305, %v1505
      %v1706 = vmul.f32 %v1306, %v1506
      %v1707 = vmul.f32 %v1307, %v1507
      %v1708 = vmul.f32 %v1308, %v1508
      %v1709 = vmul.f32 %v1309, %v1509
      %v1710 = vmul.f32 %v1310, %v1510
      %v1711 = vmul.f32 %v1311, %v1511
      %v1712 = vmul.f32 %v1312, %v1512
      %v1713 = vmul.f32 %v1313, %v1513
      %v1714 = vmul.f32 %v1314, %v1514
      %v1715 = vmul.f32 %v1315, %v1515
      %v1716 = vmul.f32 %v1316, %v1516
      %v1717 = vmul.f32 %v1317, %v1517
      %v1718 = vmul.f32 %v1318, %v1518
      %v1719 = vmul.f32 %v1319, %v1519
      %v1720 = vmul.f32 %v1320, %v1520
      %v1721 = vmul.f32 %v1321, %v1521
      %v1722 = vmul.f32 %v1322, %v1522
      %v1723 = vmul.f32 %v1323, %v1523
      %v1724 = vmul.f32 %v1324, %v1524
      %v1725 = vmul.f32 %v1325, %v1525
      %v1726 = vmul.f32 %v1326, %v1526
      %v1727 = vmul.f32 %v1327, %v1527
      %v1728 = vmul.f32 %v1328, %v1528
      %v1729 = vmul.f32 %v1329, %v1529
      %v1730 = vmul.f32 %v1330, %v1530
      %v1731 = vmul.f32 %v1331, %v1531
      %v1732 = vmul.f32 %v1332, %v1532
      %v1733 = vmul.f32 %v1333, %v1533
      %v1734 = vmul.f32 %v1334, %v1534
      %v1735 = vmul.f32 %v1335, %v1535
      %v1736 = vmul.f32 %v1336, %v1536
      %v1737 = vmul.f32 %v1337, %v1537
      %v1738 = vmul.f32 %v1338, %v1538
      %v1739 = vmul.f32 %v1339, %v1539
      %v1740 = vmul.f32 %v1340, %v1540
      %v1741 = vmul.f32 %v1341, %v1541
      %v1742 = vmul.f32 %v1342, %v1542
      %v1743 = vmul.f32 %v1343, %v1543
      %v1744 = vmul.f32 %v1344, %v1544
      %v1745 = vmul.f32 %v1345, %v1545
      %v1746 = vmul.f32 %v1346, %v1546
      %v1747 = vmul.f32 %v1347, %v1547
      %v1748 = vmul.f32 %v1348, %v1548
      %v1749 = vmul.f32 %v1349, %v1549
      %v1750 = vmul.f32 %v1350, %v1550
      %v1751 = vmul.f32 %v1351, %v1551
      %v1752 = vmul.f32 %v1352, %v1552
      %v1753 = vmul.f32 %v1353, %v1553
      %v1754 = vmul.f32 %v1354, %v1554
      %v1755 = vmul.f32 %v1355, %v1555
      %v1756 = vmul.f32 %v1356, %v1556
      %v1757 = vmul.f32 %v1357, %v1557
      %v1758 = vmul.f32 %v1358, %v1558
      %v1759 = vmul.f32 %v1359, %v1559
      %v1760 = vmul.f32 %v1360, %v1560
      %v1761 = vmul.f32 %v1361, %v1561
      %v1762 = vmul.f32 %v1362, %v1562
      %v1763 = vmul.f32 %v1363, %v1563
      %v1764 = vmul.f32 %v1364, %v1564
      %v1765 = vmul.f32 %v1365, %v1565
      %v1766 = vmul.f32 %v1366, %v1566
      %v1767 = vmul.f32 %v1367, %v1567
      %v1768 = vmul.f32 %v1368, %v1568
      %v1769 = vmul.f32 %v1369, %v1569
      %v1770 = vmul.f32 %v1370, %v1570
      %v1771 = vmul.f32 %v1371, %v1571
      %v1772 = vmul.f32 %v1372, %v1572
      %v1773 = vmul.f32 %v1373, %v1573
      %v1774 = vmul.f32 %v1374, %v1574
      %v1775 = vmul.f32 %v1375, %v1575
      %v1776 = vmul.f32 %v1376, %v1576
      %v1777 = vmul.f32 %v1377, %v1577
      %v1778 = vmul.f32 %v1378, %v1578
      %v1779 = vmul.f32 %v1379, %v1579
      %v1780 = vmul.f32 %v1380, %v1580
      %v1781 = vmul.f32 %v1381, %v1581
      %v1782 = vmul.f32 %v1382, %v1582
      %v1783 = vmul.f32 %v1383, %v1583
      %v1784 = vmul.f32 %v1384, %v1584
      %v1785 = vmul.f32 %v1385, %v1585
      %v1786 = vmul.f32 %v1386, %v1586
      %v1787 = vmul.f32 %v1387, %v1587
      %v1788 = vmul.f32 %v1388, %v1588
      %v1789 = vmul.f32 %v1389, %v1589
      %v1790 = vmul.f32 %v1390, %v1590
      %v1791 = vmul.f32 %v1391, %v1591
      %v1792 = vmul.f32 %v1392, %v1592
      %v1793 = vmul.f32 %v1393, %v1593
      %v1794 = vmul.f32 %v1394, %v1594
      %v1795 = vmul.f32 %v1395, %v1595
      %v1796 = vmul.f32 %v1396, %v1596
      %v1797 = vmul.f32 %v1397, %v1597
      %v1798 = vmul.f32 %v1398, %v1598
      %v1799 = vmul.f32 %v1399, %v1599
      %v1800 = vmul.f32 %v1400, %v1600
      %v1801 = vmul.f32 %v1401, %v1601
      %v1802 = vmul.f32 %v1402, %v1602
      %v1803 = vmul.f32 %v1403, %v1603
      %v1804 = vmul.f32 %v1404, %v1604
      %v1805 = vmul.f32 %v1405, %v1605
      %v1806 = vmul.f32 %v1406, %v1606
      %v1807 = vmul.f32 %v1407, %v1607
      %v1808 = vmul.f32 %v1408, %v1608
      %v1809 = vmul.f32 %v1409, %v1609
      %v1810 = vmul.f32 %v1410, %v1610
      %v1811 = vmul.f32 %v1411, %v1611
      %v1812 = vmul.f32 %v1412, %v1612
      %v1813 = vmul.f32 %v1413, %v1613
      %v1814 = vmul.f32 %v1414, %v1614
      %v1815 = vmul.f32 %v1415, %v1615
      %v1816 = vmul.f32 %v1416, %v1616
      %v1817 = vmul.f32 %v1417, %v1617
      %v1818 = vmul.f32 %v1418, %v1618
      %v1819 = vmul.f32 %v1419, %v1619
      %v1820 = vmul.f32 %v1420, %v1620
      %v1821 = vmul.f32 %v1421, %v1621
      %v1822 = vmul.f32 %v1422, %v1622
      %v1823 = vmul.f32 %v1423, %v1623
      %v1824 = vmul.f32 %v1424, %v1624
      %v1825 = vmul.f32 %v1425, %v1625
      %v1826 = vmul.f32 %v1426, %v1626
      %v1827 = vmul.f32 %v1427, %v1627
      %v1828 = vmul.f32 %v1428, %v1628
      %v1829 = vmul.f32 %v1429, %v1629
      %v1830 = vmul.f32 %v1430, %v1630
      %v1831 = vmul.f32 %v1431, %v1631
      %v1832 = vmul.f32 %v1432, %v1632
      %v1833 = vmul.f32 %v1433, %v1633
      %v1834 = vmul.f32 %v1434, %v1634
      %v1835 = vmul.f32 %v1435, %v1635
      %v1836 = vmul.f32 %v1436, %v1636
      %v1837 = vmul.f32 %v1437, %v1637
      %v1838 = vmul.f32 %v1438, %v1638
      %v1839 = vmul.f32 %v1439, %v1639
      %v1840 = vmul.f32 %v1440, %v1640
      %v1841 = vmul.f32 %v1441, %v1641
      %v1842 = vmul.f32 %v1442, %v1642
      %v1843 = vmul.f32 %v1443, %v1643
      %v1844 = vmul.f32 %v1444, %v1644
      %v1845 = vmul.f32 %v1445, %v1645
      %v1846 = vmul.f32 %v1446, %v1646
      %v1847 = vmul.f32 %v1447, %v1647
      %v1848 = vmul.f32 %v1448, %v1648
      %v1849 = vmul.f32 %v1449, %v1649
      %v1850 = vmul.f32 %v1450, %v1650
      %v1851 = vmul.f32 %v1451, %v1651
      %v1852 = vmul.f32 %v1452, %v1652
      %v1853 = vmul.f32 %v1453, %v1653
      %v1854 = vmul.f32 %v1454, %v1654
      %v1855 = vmul.f32 %v1455, %v1655
      %v1856 = vmul.f32 %v1456, %v1656
      %v1857 = vmul.f32 %v1457, %v1657
      %v1858 = vmul.f32 %v1458, %v1658
      %v1859 = vmul.f32 %v1459, %v1659
      %v1860 = vmul.f32 %v1460, %v1660
      %1861 = vst [vmem:[#allocation2] sm:$0xff] %v1661
      %1862 = vst [vmem:[#allocation2 + $0x8] sm:$0xff] %v1662
      %1863 = vst [vmem:[#allocation2 + $0x10] sm:$0xff] %v1663
      %1864 = vst [vmem:[#allocation2 + $0x18] sm:$0xff] %v1664
      %1865 = vst [vmem:[#allocation2 + $0x20] sm:$0xff] %v1665
      %1866 = vst [vmem:[#allocation2 + $0x28] sm:$0xff] %v1666
      %1867 = vst [vmem:[#allocation2 + $0x30] sm:$0xff] %v1667
      %1868 = vst [vmem:[#allocation2 + $0x38] sm:$0xff] %v1668
      %1869 = vst [vmem:[#allocation2 + $0x40] sm:$0xff] %v1669
      %1870 = vst [vmem:[#allocation2 + $0x48] sm:$0xff] %v1670
      %1871 = vst [vmem:[#allocation2 + $0x50] sm:$0xff] %v1671
      %1872 = vst [vmem:[#allocation2 + $0x58] sm:$0xff] %v1672
      %1873 = vst [vmem:[#allocation2 + $0x60] sm:$0xff] %v1673
      %1874 = vst [vmem:[#allocation2 + $0x68] sm:$0xff] %v1674
      %1875 = vst [vmem:[#allocation2 + $0x70] sm:$0xff] %v1675
      %1876 = vst [vmem:[#allocation2 + $0x78] sm:$0xff] %v1676
      %1877 = vst [vmem:[#allocation2 + $0x80] sm:$0xff] %v1677
      %1878 = vst [vmem:[#allocation2 + $0x88] sm:$0xff] %v1678
      %1879 = vst [vmem:[#allocation2 + $0x90] sm:$0xff] %v1679
      %1880 = vst [vmem:[#allocation2 + $0x98] sm:$0xff] %v1680
      %1881 = vst [vmem:[#allocation2 + $0xa0] sm:$0xff] %v1681
      %1882 = vst [vmem:[#allocation2 + $0xa8] sm:$0xff] %v1682
      %1883 = vst [vmem:[#allocation2 + $0xb0] sm:$0xff] %v1683
      %1884 = vst [vmem:[#allocation2 + $0xb8] sm:$0xff] %v1684
      %1885 = vst [vmem:[#allocation2 + $0xc0] sm:$0xff] %v1685
      %1886 = vst [vmem:[#allocation2 + $0xc8] sm:$0xff] %v1686
      %1887 = vst [vmem:[#allocation2 + $0xd0] sm:$0xff] %v1687
      %1888 = vst [vmem:[#allocation2 + $0xd8] sm:$0xff] %v1688
      %1889 = vst [vmem:[#allocation2 + $0xe0] sm:$0xff] %v1689
      %1890 = vst [vmem:[#allocation2 + $0xe8] sm:$0xff] %v1690
      %1891 = vst [vmem:[#allocation2 + $0xf0] sm:$0xff] %v1691
      %1892 = vst [vmem:[#allocation2 + $0xf8] sm:$0xff] %v1692
      %1893 = vst [vmem:[#allocation2 + $0x100] sm:$0xff] %v1693
      %1894 = vst [vmem:[#allocation2 + $0x108] sm:$0xff] %v1694
      %1895 = vst [vmem:[#allocation2 + $0x110] sm:$0xff] %v1695
      %1896 = vst [vmem:[#allocation2 + $0x118] sm:$0xff] %v1696
      %1897 = vst [vmem:[#allocation2 + $0x120] sm:$0xff] %v1697
      %1898 = vst [vmem:[#allocation2 + $0x128] sm:$0xff] %v1698
      %1899 = vst [vmem:[#allocation2 + $0x130] sm:$0xff] %v1699
      %1900 = vst [vmem:[#allocation2 + $0x138] sm:$0xff] %v1700
      %1901 = vst [vmem:[#allocation2 + $0x140] sm:$0xff] %v1701
      %1902 = vst [vmem:[#allocation2 + $0x148] sm:$0xff] %v1702
      %1903 = vst [vmem:[#allocation2 + $0x150] sm:$0xff] %v1703
      %1904 = vst [vmem:[#allocation2 + $0x158] sm:$0xff] %v1704
      %1905 = vst [vmem:[#allocation2 + $0x160] sm:$0xff] %v1705
      %1906 = vst [vmem:[#allocation2 + $0x168] sm:$0xff] %v1706
      %1907 = vst [vmem:[#allocation2 + $0x170] sm:$0xff] %v1707
      %1908 = vst [vmem:[#allocation2 + $0x178] sm:$0xff] %v1708
      %1909 = vst [vmem:[#allocation2 + $0x180] sm:$0xff] %v1709
      %1910 = vst [vmem:[#allocation2 + $0x188] sm:$0xff] %v1710
      %1911 = vst [vmem:[#allocation2 + $0x190] sm:$0xff] %v1711
      %1912 = vst [vmem:[#allocation2 + $0x198] sm:$0xff] %v1712
      %1913 = vst [vmem:[#allocation2 + $0x1a0] sm:$0xff] %v1713
      %1914 = vst [vmem:[#allocation2 + $0x1a8] sm:$0xff] %v1714
      %1915 = vst [vmem:[#allocation2 + $0x1b0] sm:$0xff] %v1715
      %1916 = vst [vmem:[#allocation2 + $0x1b8] sm:$0xff] %v1716
      %1917 = vst [vmem:[#allocation2 + $0x1c0] sm:$0xff] %v1717
      %1918 = vst [vmem:[#allocation2 + $0x1c8] sm:$0xff] %v1718
      %1919 = vst [vmem:[#allocation2 + $0x1d0] sm:$0xff] %v1719
      %1920 = vst [vmem:[#allocation2 + $0x1d8] sm:$0xff] %v1720
      %1921 = vst [vmem:[#allocation2 + $0x1e0] sm:$0xff] %v1721
      %1922 = vst [vmem:[#allocation2 + $0x1e8] sm:$0xff] %v1722
      %1923 = vst [vmem:[#allocation2 + $0x1f0] sm:$0xff] %v1723
      %1924 = vst [vmem:[#allocation2 + $0x1f8] sm:$0xff] %v1724
      %1925 = vst [vmem:[#allocation2 + $0x200] sm:$0xff] %v1725
      %1926 = vst [vmem:[#allocation2 + $0x208] sm:$0xff] %v1726
      %1927 = vst [vmem:[#allocation2 + $0x210] sm:$0xff] %v1727
      %1928 = vst [vmem:[#allocation2 + $0x218] sm:$0xff] %v1728
      %1929 = vst [vmem:[#allocation2 + $0x220] sm:$0xff] %v1729
      %1930 = vst [vmem:[#allocation2 + $0x228] sm:$0xff] %v1730
      %1931 = vst [vmem:[#allocation2 + $0x230] sm:$0xff] %v1731
      %1932 = vst [vmem:[#allocation2 + $0x238] sm:$0xff] %v1732
      %1933 = vst [vmem:[#allocation2 + $0x240] sm:$0xff] %v1733
      %1934 = vst [vmem:[#allocation2 + $0x248] sm:$0xff] %v1734
      %1935 = vst [vmem:[#allocation2 + $0x250] sm:$0xff] %v1735
      %1936 = vst [vmem:[#allocation2 + $0x258] sm:$0xff] %v1736
      %1937 = vst [vmem:[#allocation2 + $0x260] sm:$0xff] %v1737
      %1938 = vst [vmem:[#allocation2 + $0x268] sm:$0xff] %v1738
      %1939 = vst [vmem:[#allocation2 + $0x270] sm:$0xff] %v1739
      %1940 = vst [vmem:[#allocation2 + $0x278] sm:$0xff] %v1740
      %1941 = vst [vmem:[#allocation2 + $0x280] sm:$0xff] %v1741
      %1942 = vst [vmem:[#allocation2 + $0x288] sm:$0xff] %v1742
      %1943 = vst [vmem:[#allocation2 + $0x290] sm:$0xff] %v1743
      %1944 = vst [vmem:[#allocation2 + $0x298] sm:$0xff] %v1744
      %1945 = vst [vmem:[#allocation2 + $0x2a0] sm:$0xff] %v1745
      %1946 = vst [vmem:[#allocation2 + $0x2a8] sm:$0xff] %v1746
      %1947 = vst [vmem:[#allocation2 + $0x2b0] sm:$0xff] %v1747
      %1948 = vst [vmem:[#allocation2 + $0x2b8] sm:$0xff] %v1748
      %1949 = vst [vmem:[#allocation2 + $0x2c0] sm:$0xff] %v1749
      %1950 = vst [vmem:[#allocation2 + $0x2c8] sm:$0xff] %v1750
      %1951 = vst [vmem:[#allocation2 + $0x2d0] sm:$0xff] %v1751
      %1952 = vst [vmem:[#allocation2 + $0x2d8] sm:$0xff] %v1752
      %1953 = vst [vmem:[#allocation2 + $0x2e0] sm:$0xff] %v1753
      %1954 = vst [vmem:[#allocation2 + $0x2e8] sm:$0xff] %v1754
      %1955 = vst [vmem:[#allocation2 + $0x2f0] sm:$0xff] %v1755
      %1956 = vst [vmem:[#allocation2 + $0x2f8] sm:$0xff] %v1756
      %1957 = vst [vmem:[#allocation2 + $0x300] sm:$0xff] %v1757
      %1958 = vst [vmem:[#allocation2 + $0x308] sm:$0xff] %v1758
      %1959 = vst [vmem:[#allocation2 + $0x310] sm:$0xff] %v1759
      %1960 = vst [vmem:[#allocation2 + $0x318] sm:$0xff] %v1760
      %1961 = vst [vmem:[#allocation2 + $0x320] sm:$0xff] %v1761
      %1962 = vst [vmem:[#allocation2 + $0x328] sm:$0xff] %v1762
      %1963 = vst [vmem:[#allocation2 + $0x330] sm:$0xff] %v1763
      %1964 = vst [vmem:[#allocation2 + $0x338] sm:$0xff] %v1764
      %1965 = vst [vmem:[#allocation2 + $0x340] sm:$0xff] %v1765
      %1966 = vst [vmem:[#allocation2 + $0x348] sm:$0xff] %v1766
      %1967 = vst [vmem:[#allocation2 + $0x350] sm:$0xff] %v1767
      %1968 = vst [vmem:[#allocation2 + $0x358] sm:$0xff] %v1768
      %1969 = vst [vmem:[#allocation2 + $0x360] sm:$0xff] %v1769
      %1970 = vst [vmem:[#allocation2 + $0x368] sm:$0xff] %v1770
      %1971 = vst [vmem:[#allocation2 + $0x370] sm:$0xff] %v1771
      %1972 = vst [vmem:[#allocation2 + $0x378] sm:$0xff] %v1772
      %1973 = vst [vmem:[#allocation2 + $0x380] sm:$0xff] %v1773
      %1974 = vst [vmem:[#allocation2 + $0x388] sm:$0xff] %v1774
      %1975 = vst [vmem:[#allocation2 + $0x390] sm:$0xff] %v1775
      %1976 = vst [vmem:[#allocation2 + $0x398] sm:$0xff] %v1776
      %1977 = vst [vmem:[#allocation2 + $0x3a0] sm:$0xff] %v1777
      %1978 = vst [vmem:[#allocation2 + $0x3a8] sm:$0xff] %v1778
      %1979 = vst [vmem:[#allocation2 + $0x3b0] sm:$0xff] %v1779
      %1980 = vst [vmem:[#allocation2 + $0x3b8] sm:$0xff] %v1780
      %1981 = vst [vmem:[#allocation2 + $0x3c0] sm:$0xff] %v1781
      %1982 = vst [vmem:[#allocation2 + $0x3c8] sm:$0xff] %v1782
      %1983 = vst [vmem:[#allocation2 + $0x3d0] sm:$0xff] %v1783
      %1984 = vst [vmem:[#allocation2 + $0x3d8] sm:$0xff] %v1784
      %1985 = vst [vmem:[#allocation2 + $0x3e0] sm:$0xff] %v1785
      %1986 = vst [vmem:[#allocation2 + $0x3e8] sm:$0xff] %v1786
      %1987 = vst [vmem:[#allocation2 + $0x3f0] sm:$0xff] %v1787
      %1988 = vst [vmem:[#allocation2 + $0x3f8] sm:$0xff] %v1788
      %1989 = vst [vmem:[#allocation2 + $0x400] sm:$0xff] %v1789
      %1990 = vst [vmem:[#allocation2 + $0x408] sm:$0xff] %v1790
      %1991 = vst [vmem:[#allocation2 + $0x410] sm:$0xff] %v1791
      %1992 = vst [vmem:[#allocation2 + $0x418] sm:$0xff] %v1792
      %1993 = vst [vmem:[#allocation2 + $0x420] sm:$0xff] %v1793
      %1994 = vst [vmem:[#allocation2 + $0x428] sm:$0xff] %v1794
      %1995 = vst [vmem:[#allocation2 + $0x430] sm:$0xff] %v1795
      %1996 = vst [vmem:[#allocation2 + $0x438] sm:$0xff] %v1796
      %1997 = vst [vmem:[#allocation2 + $0x440] sm:$0xff] %v1797
      %1998 = vst [vmem:[#allocation2 + $0x448] sm:$0xff] %v1798
      %1999 = vst [vmem:[#allocation2 + $0x450] sm:$0xff] %v1799
      %2000 = vst [vmem:[#allocation2 + $0x458] sm:$0xff] %v1800
      %2001 = vst [vmem:[#allocation2 + $0x460] sm:$0xff] %v1801
      %2002 = vst [vmem:[#allocation2 + $0x468] sm:$0xff] %v1802
      %2003 = vst [vmem:[#allocation2 + $0x470] sm:$0xff] %v1803
      %2004 = vst [vmem:[#allocation2 + $0x478] sm:$0xff] %v1804
      %2005 = vst [vmem:[#allocation2 + $0x480] sm:$0xff] %v1805
      %2006 = vst [vmem:[#allocation2 + $0x488] sm:$0xff] %v1806
      %2007 = vst [vmem:[#allocation2 + $0x490] sm:$0xff] %v1807
      %2008 = vst [vmem:[#allocation2 + $0x498] sm:$0xff] %v1808
      %2009 = vst [vmem:[#allocation2 + $0x4a0] sm:$0xff] %v1809
      %2010 = vst [vmem:[#allocation2 + $0x4a8] sm:$0xff] %v1810
      %2011 = vst [vmem:[#allocation2 + $0x4b0] sm:$0xff] %v1811
      %2012 = vst [vmem:[#allocation2 + $0x4b8] sm:$0xff] %v1812
      %2013 = vst [vmem:[#allocation2 + $0x4c0] sm:$0xff] %v1813
      %2014 = vst [vmem:[#allocation2 + $0x4c8] sm:$0xff] %v1814
      %2015 = vst [vmem:[#allocation2 + $0x4d0] sm:$0xff] %v1815
      %2016 = vst [vmem:[#allocation2 + $0x4d8] sm:$0xff] %v1816
      %2017 = vst [vmem:[#allocation2 + $0x4e0] sm:$0xff] %v1817
      %2018 = vst [vmem:[#allocation2 + $0x4e8] sm:$0xff] %v1818
      %2019 = vst [vmem:[#allocation2 + $0x4f0] sm:$0xff] %v1819
      %2020 = vst [vmem:[#allocation2 + $0x4f8] sm:$0xff] %v1820
      %2021 = vst [vmem:[#allocation2 + $0x500] sm:$0xff] %v1821
      %2022 = vst [vmem:[#allocation2 + $0x508] sm:$0xff] %v1822
      %2023 = vst [vmem:[#allocation2 + $0x510] sm:$0xff] %v1823
      %2024 = vst [vmem:[#allocation2 + $0x518] sm:$0xff] %v1824
      %2025 = vst [vmem:[#allocation2 + $0x520] sm:$0xff] %v1825
      %2026 = vst [vmem:[#allocation2 + $0x528] sm:$0xff] %v1826
      %2027 = vst [vmem:[#allocation2 + $0x530] sm:$0xff] %v1827
      %2028 = vst [vmem:[#allocation2 + $0x538] sm:$0xff] %v1828
      %2029 = vst [vmem:[#allocation2 + $0x540] sm:$0xff] %v1829
      %2030 = vst [vmem:[#allocation2 + $0x548] sm:$0xff] %v1830
      %2031 = vst [vmem:[#allocation2 + $0x550] sm:$0xff] %v1831
      %2032 = vst [vmem:[#allocation2 + $0x558] sm:$0xff] %v1832
      %2033 = vst [vmem:[#allocation2 + $0x560] sm:$0xff] %v1833
      %2034 = vst [vmem:[#allocation2 + $0x568] sm:$0xff] %v1834
      %2035 = vst [vmem:[#allocation2 + $0x570] sm:$0xff] %v1835
      %2036 = vst [vmem:[#allocation2 + $0x578] sm:$0xff] %v1836
      %2037 = vst [vmem:[#allocation2 + $0x580] sm:$0xff] %v1837
      %2038 = vst [vmem:[#allocation2 + $0x588] sm:$0xff] %v1838
      %2039 = vst [vmem:[#allocation2 + $0x590] sm:$0xff] %v1839
      %2040 = vst [vmem:[#allocation2 + $0x598] sm:$0xff] %v1840
      %2041 = vst [vmem:[#allocation2 + $0x5a0] sm:$0xff] %v1841
      %2042 = vst [vmem:[#allocation2 + $0x5a8] sm:$0xff] %v1842
      %2043 = vst [vmem:[#allocation2 + $0x5b0] sm:$0xff] %v1843
      %2044 = vst [vmem:[#allocation2 + $0x5b8] sm:$0xff] %v1844
      %2045 = vst [vmem:[#allocation2 + $0x5c0] sm:$0xff] %v1845
      %2046 = vst [vmem:[#allocation2 + $0x5c8] sm:$0xff] %v1846
      %2047 = vst [vmem:[#allocation2 + $0x5d0] sm:$0xff] %v1847
      %2048 = vst [vmem:[#allocation2 + $0x5d8] sm:$0xff] %v1848
      %2049 = vst [vmem:[#allocation2 + $0x5e0] sm:$0xff] %v1849
      %2050 = vst [vmem:[#allocation2 + $0x5e8] sm:$0xff] %v1850
      %2051 = vst [vmem:[#allocation2 + $0x5f0] sm:$0xff] %v1851
      %2052 = vst [vmem:[#allocation2 + $0x5f8] sm:$0xff] %v1852
      %2053 = vst [vmem:[#allocation2 + $0x600] sm:$0xff] %v1853
      %2054 = vst [vmem:[#allocation2 + $0x608] sm:$0xff] %v1854
      %2055 = vst [vmem:[#allocation2 + $0x610] sm:$0xff] %v1855
      %2056 = vst [vmem:[#allocation2 + $0x618] sm:$0xff] %v1856
      %2057 = vst [vmem:[#allocation2 + $0x620] sm:$0xff] %v1857
      %2058 = vst [vmem:[#allocation2 + $0x628] sm:$0xff] %v1858
      %2059 = vst [vmem:[#allocation2 + $0x630] sm:$0xff] %v1859
      %2060 = vst [vmem:[#allocation2 + $0x638] sm:$0xff] %v1860
      %v2061 = vld [vmem:[%s1] sm:$0xff]
      %v2062 = vld [vmem:[%s1 + $0x8] sm:$0xff]
      %v2063 = vld [vmem:[%s1 + $0x10] sm:$0xff]
      %v2064 = vld [vmem:[%s1 + $0x18] sm:$0xff]
      %v2065 = vld [vmem:[#allocation2] sm:$0xff]
      %v2066 = vld [vmem:[#allocation2 + $0x8] sm:$0xff]
      %v2067 = vld [vmem:[#allocation2 + $0x10] sm:$0xff]
      %v2068 = vld [vmem:[#allocation2 + $0x18] sm:$0xff]
      %v2069 = vld [vmem:[#allocation2 + $0x20] sm:$0xff]
      %v2070 = vld [vmem:[#allocation2 + $0x28] sm:$0xff]
      %v2071 = vld [vmem:[#allocation2 + $0x30] sm:$0xff]
      %v2072 = vld [vmem:[#allocation2 + $0x38] sm:$0xff]
      %v2073 = vld [vmem:[#allocation2 + $0x40] sm:$0xff]
      %v2074 = vld [vmem:[#allocation2 + $0x48] sm:$0xff]
      %v2075 = vld [vmem:[#allocation2 + $0x50] sm:$0xff]
      %v2076 = vld [vmem:[#allocation2 + $0x58] sm:$0xff]
      %v2077 = vld [vmem:[#allocation2 + $0x60] sm:$0xff]
      %v2078 = vld [vmem:[#allocation2 + $0x68] sm:$0xff]
      %v2079 = vld [vmem:[#allocation2 + $0x70] sm:$0xff]
      %v2080 = vld [vmem:[#allocation2 + $0x78] sm:$0xff]
      %v2081 = vld [vmem:[#allocation2 + $0x80] sm:$0xff]
      %v2082 = vld [vmem:[#allocation2 + $0x88] sm:$0xff]
      %v2083 = vld [vmem:[#allocation2 + $0x90] sm:$0xff]
      %v2084 = vld [vmem:[#allocation2 + $0x98] sm:$0xff]
      %v2085 = vld [vmem:[#allocation2 + $0xa0] sm:$0xff]
      %v2086 = vld [vmem:[#allocation2 + $0xa8] sm:$0xff]
      %v2087 = vld [vmem:[#allocation2 + $0xb0] sm:$0xff]
      %v2088 = vld [vmem:[#allocation2 + $0xb8] sm:$0xff]
      %v2089 = vld [vmem:[#allocation2 + $0xc0] sm:$0xff]
      %v2090 = vld [vmem:[#allocation2 + $0xc8] sm:$0xff]
      %v2091 = vld [vmem:[#allocation2 + $0xd0] sm:$0xff]
      %v2092 = vld [vmem:[#allocation2 + $0xd8] sm:$0xff]
      %v2093 = vld [vmem:[#allocation2 + $0xe0] sm:$0xff]
      %v2094 = vld [vmem:[#allocation2 + $0xe8] sm:$0xff]
      %v2095 = vld [vmem:[#allocation2 + $0xf0] sm:$0xff]
      %v2096 = vld [vmem:[#allocation2 + $0xf8] sm:$0xff]
      %v2097 = vld [vmem:[#allocation2 + $0x100] sm:$0xff]
      %v2098 = vld [vmem:[#allocation2 + $0x108] sm:$0xff]
      %v2099 = vld [vmem:[#allocation2 + $0x110] sm:$0xff]
      %v2100 = vld [vmem:[#allocation2 + $0x118] sm:$0xff]
      %v2101 = vld [vmem:[#allocation2 + $0x120] sm:$0xff]
      %v2102 = vld [vmem:[#allocation2 + $0x128] sm:$0xff]
      %v2103 = vld [vmem:[#allocation2 + $0x130] sm:$0xff]
      %v2104 = vld [vmem:[#allocation2 + $0x138] sm:$0xff]
      %v2105 = vld [vmem:[#allocation2 + $0x140] sm:$0xff]
      %v2106 = vld [vmem:[#allocation2 + $0x148] sm:$0xff]
      %v2107 = vld [vmem:[#allocation2 + $0x150] sm:$0xff]
      %v2108 = vld [vmem:[#allocation2 + $0x158] sm:$0xff]
      %v2109 = vld [vmem:[#allocation2 + $0x160] sm:$0xff]
      %v2110 = vld [vmem:[#allocation2 + $0x168] sm:$0xff]
      %v2111 = vld [vmem:[#allocation2 + $0x170] sm:$0xff]
      %v2112 = vld [vmem:[#allocation2 + $0x178] sm:$0xff]
      %v2113 = vld [vmem:[#allocation2 + $0x180] sm:$0xff]
      %v2114 = vld [vmem:[#allocation2 + $0x188] sm:$0xff]
      %v2115 = vld [vmem:[#allocation2 + $0x190] sm:$0xff]
      %v2116 = vld [vmem:[#allocation2 + $0x198] sm:$0xff]
      %v2117 = vld [vmem:[#allocation2 + $0x1a0] sm:$0xff]
      %v2118 = vld [vmem:[#allocation2 + $0x1a8] sm:$0xff]
      %v2119 = vld [vmem:[#allocation2 + $0x1b0] sm:$0xff]
      %v2120 = vld [vmem:[#allocation2 + $0x1b8] sm:$0xff]
      %v2121 = vld [vmem:[#allocation2 + $0x1c0] sm:$0xff]
      %v2122 = vld [vmem:[#allocation2 + $0x1c8] sm:$0xff]
      %v2123 = vld [vmem:[#allocation2 + $0x1d0] sm:$0xff]
      %v2124 = vld [vmem:[#allocation2 + $0x1d8] sm:$0xff]
      %v2125 = vld [vmem:[#allocation2 + $0x1e0] sm:$0xff]
      %v2126 = vld [vmem:[#allocation2 + $0x1e8] sm:$0xff]
      %v2127 = vld [vmem:[#allocation2 + $0x1f0] sm:$0xff]
      %v2128 = vld [vmem:[#allocation2 + $0x1f8] sm:$0xff]
      %v2129 = vld [vmem:[#allocation2 + $0x200] sm:$0xff]
      %v2130 = vld [vmem:[#allocation2 + $0x208] sm:$0xff]
      %v2131 = vld [vmem:[#allocation2 + $0x210] sm:$0xff]
      %v2132 = vld [vmem:[#allocation2 + $0x218] sm:$0xff]
      %v2133 = vld [vmem:[#allocation2 + $0x220] sm:$0xff]
      %v2134 = vld [vmem:[#allocation2 + $0x228] sm:$0xff]
      %v2135 = vld [vmem:[#allocation2 + $0x230] sm:$0xff]
      %v2136 = vld [vmem:[#allocation2 + $0x238] sm:$0xff]
      %v2137 = vld [vmem:[#allocation2 + $0x240] sm:$0xff]
      %v2138 = vld [vmem:[#allocation2 + $0x248] sm:$0xff]
      %v2139 = vld [vmem:[#allocation2 + $0x250] sm:$0xff]
      %v2140 = vld [vmem:[#allocation2 + $0x258] sm:$0xff]
      %v2141 = vld [vmem:[#allocation2 + $0x260] sm:$0xff]
      %v2142 = vld [vmem:[#allocation2 + $0x268] sm:$0xff]
      %v2143 = vld [vmem:[#allocation2 + $0x270] sm:$0xff]
      %v2144 = vld [vmem:[#allocation2 + $0x278] sm:$0xff]
      %v2145 = vld [vmem:[#allocation2 + $0x280] sm:$0xff]
      %v2146 = vld [vmem:[#allocation2 + $0x288] sm:$0xff]
      %v2147 = vld [vmem:[#allocation2 + $0x290] sm:$0xff]
      %v2148 = vld [vmem:[#allocation2 + $0x298] sm:$0xff]
      %v2149 = vld [vmem:[#allocation2 + $0x2a0] sm:$0xff]
      %v2150 = vld [vmem:[#allocation2 + $0x2a8] sm:$0xff]
      %v2151 = vld [vmem:[#allocation2 + $0x2b0] sm:$0xff]
      %v2152 = vld [vmem:[#allocation2 + $0x2b8] sm:$0xff]
      %v2153 = vld [vmem:[#allocation2 + $0x2c0] sm:$0xff]
      %v2154 = vld [vmem:[#allocation2 + $0x2c8] sm:$0xff]
      %v2155 = vld [vmem:[#allocation2 + $0x2d0] sm:$0xff]
      %v2156 = vld [vmem:[#allocation2 + $0x2d8] sm:$0xff]
      %v2157 = vld [vmem:[#allocation2 + $0x2e0] sm:$0xff]
      %v2158 = vld [vmem:[#allocation2 + $0x2e8] sm:$0xff]
      %v2159 = vld [vmem:[#allocation2 + $0x2f0] sm:$0xff]
      %v2160 = vld [vmem:[#allocation2 + $0x2f8] sm:$0xff]
      %v2161 = vld [vmem:[#allocation2 + $0x300] sm:$0xff]
      %v2162 = vld [vmem:[#allocation2 + $0x308] sm:$0xff]
      %v2163 = vld [vmem:[#allocation2 + $0x310] sm:$0xff]
      %v2164 = vld [vmem:[#allocation2 + $0x318] sm:$0xff]
      %v2165 = vld [vmem:[#allocation2 + $0x320] sm:$0xff]
      %v2166 = vld [vmem:[#allocation2 + $0x328] sm:$0xff]
      %v2167 = vld [vmem:[#allocation2 + $0x330] sm:$0xff]
      %v2168 = vld [vmem:[#allocation2 + $0x338] sm:$0xff]
      %v2169 = vld [vmem:[#allocation2 + $0x340] sm:$0xff]
      %v2170 = vld [vmem:[#allocation2 + $0x348] sm:$0xff]
      %v2171 = vld [vmem:[#allocation2 + $0x350] sm:$0xff]
      %v2172 = vld [vmem:[#allocation2 + $0x358] sm:$0xff]
      %v2173 = vld [vmem:[#allocation2 + $0x360] sm:$0xff]
      %v2174 = vld [vmem:[#allocation2 + $0x368] sm:$0xff]
      %v2175 = vld [vmem:[#allocation2 + $0x370] sm:$0xff]
      %v2176 = vld [vmem:[#allocation2 + $0x378] sm:$0xff]
      %v2177 = vld [vmem:[#allocation2 + $0x380] sm:$0xff]
      %v2178 = vld [vmem:[#allocation2 + $0x388] sm:$0xff]
      %v2179 = vld [vmem:[#allocation2 + $0x390] sm:$0xff]
      %v2180 = vld [vmem:[#allocation2 + $0x398] sm:$0xff]
      %v2181 = vld [vmem:[#allocation2 + $0x3a0] sm:$0xff]
      %v2182 = vld [vmem:[#allocation2 + $0x3a8] sm:$0xff]
      %v2183 = vld [vmem:[#allocation2 + $0x3b0] sm:$0xff]
      %v2184 = vld [vmem:[#allocation2 + $0x3b8] sm:$0xff]
      %v2185 = vld [vmem:[#allocation2 + $0x3c0] sm:$0xff]
      %v2186 = vld [vmem:[#allocation2 + $0x3c8] sm:$0xff]
      %v2187 = vld [vmem:[#allocation2 + $0x3d0] sm:$0xff]
      %v2188 = vld [vmem:[#allocation2 + $0x3d8] sm:$0xff]
      %v2189 = vld [vmem:[#allocation2 + $0x3e0] sm:$0xff]
      %v2190 = vld [vmem:[#allocation2 + $0x3e8] sm:$0xff]
      %v2191 = vld [vmem:[#allocation2 + $0x3f0] sm:$0xff]
      %v2192 = vld [vmem:[#allocation2 + $0x3f8] sm:$0xff]
      %v2193 = vld [vmem:[#allocation2 + $0x400] sm:$0xff]
      %v2194 = vld [vmem:[#allocation2 + $0x408] sm:$0xff]
      %v2195 = vld [vmem:[#allocation2 + $0x410] sm:$0xff]
      %v2196 = vld [vmem:[#allocation2 + $0x418] sm:$0xff]
      %v2197 = vld [vmem:[#allocation2 + $0x420] sm:$0xff]
      %v2198 = vld [vmem:[#allocation2 + $0x428] sm:$0xff]
      %v2199 = vld [vmem:[#allocation2 + $0x430] sm:$0xff]
      %v2200 = vld [vmem:[#allocation2 + $0x438] sm:$0xff]
      %v2201 = vld [vmem:[#allocation2 + $0x440] sm:$0xff]
      %v2202 = vld [vmem:[#allocation2 + $0x448] sm:$0xff]
      %v2203 = vld [vmem:[#allocation2 + $0x450] sm:$0xff]
      %v2204 = vld [vmem:[#allocation2 + $0x458] sm:$0xff]
      %v2205 = vld [vmem:[#allocation2 + $0x460] sm:$0xff]
      %v2206 = vld [vmem:[#allocation2 + $0x468] sm:$0xff]
      %v2207 = vld [vmem:[#allocation2 + $0x470] sm:$0xff]
      %v2208 = vld [vmem:[#allocation2 + $0x478] sm:$0xff]
      %v2209 = vld [vmem:[#allocation2 + $0x480] sm:$0xff]
      %v2210 = vld [vmem:[#allocation2 + $0x488] sm:$0xff]
      %v2211 = vld [vmem:[#allocation2 + $0x490] sm:$0xff]
      %v2212 = vld [vmem:[#allocation2 + $0x498] sm:$0xff]
      %v2213 = vld [vmem:[#allocation2 + $0x4a0] sm:$0xff]
      %v2214 = vld [vmem:[#allocation2 + $0x4a8] sm:$0xff]
      %v2215 = vld [vmem:[#allocation2 + $0x4b0] sm:$0xff]
      %v2216 = vld [vmem:[#allocation2 + $0x4b8] sm:$0xff]
      %v2217 = vld [vmem:[#allocation2 + $0x4c0] sm:$0xff]
      %v2218 = vld [vmem:[#allocation2 + $0x4c8] sm:$0xff]
      %v2219 = vld [vmem:[#allocation2 + $0x4d0] sm:$0xff]
      %v2220 = vld [vmem:[#allocation2 + $0x4d8] sm:$0xff]
      %v2221 = vld [vmem:[#allocation2 + $0x4e0] sm:$0xff]
      %v2222 = vld [vmem:[#allocation2 + $0x4e8] sm:$0xff]
      %v2223 = vld [vmem:[#allocation2 + $0x4f0] sm:$0xff]
      %v2224 = vld [vmem:[#allocation2 + $0x4f8] sm:$0xff]
      %v2225 = vld [vmem:[#allocation2 + $0x500] sm:$0xff]
      %v2226 = vld [vmem:[#allocation2 + $0x508] sm:$0xff]
      %v2227 = vld [vmem:[#allocation2 + $0x510] sm:$0xff]
      %v2228 = vld [vmem:[#allocation2 + $0x518] sm:$0xff]
      %v2229 = vld [vmem:[#allocation2 + $0x520] sm:$0xff]
      %v2230 = vld [vmem:[#allocation2 + $0x528] sm:$0xff]
      %v2231 = vld [vmem:[#allocation2 + $0x530] sm:$0xff]
      %v2232 = vld [vmem:[#allocation2 + $0x538] sm:$0xff]
      %v2233 = vld [vmem:[#allocation2 + $0x540] sm:$0xff]
      %v2234 = vld [vmem:[#allocation2 + $0x548] sm:$0xff]
      %v2235 = vld [vmem:[#allocation2 + $0x550] sm:$0xff]
      %v2236 = vld [vmem:[#allocation2 + $0x558] sm:$0xff]
      %v2237 = vld [vmem:[#allocation2 + $0x560] sm:$0xff]
      %v2238 = vld [vmem:[#allocation2 + $0x568] sm:$0xff]
      %v2239 = vld [vmem:[#allocation2 + $0x570] sm:$0xff]
      %v2240 = vld [vmem:[#allocation2 + $0x578] sm:$0xff]
      %v2241 = vld [vmem:[#allocation2 + $0x580] sm:$0xff]
      %v2242 = vld [vmem:[#allocation2 + $0x588] sm:$0xff]
      %v2243 = vld [vmem:[#allocation2 + $0x590] sm:$0xff]
      %v2244 = vld [vmem:[#allocation2 + $0x598] sm:$0xff]
      %v2245 = vld [vmem:[#allocation2 + $0x5a0] sm:$0xff]
      %v2246 = vld [vmem:[#allocation2 + $0x5a8] sm:$0xff]
      %v2247 = vld [vmem:[#allocation2 + $0x5b0] sm:$0xff]
      %v2248 = vld [vmem:[#allocation2 + $0x5b8] sm:$0xff]
      %v2249 = vld [vmem:[#allocation2 + $0x5c0] sm:$0xff]
      %v2250 = vld [vmem:[#allocation2 + $0x5c8] sm:$0xff]
      %v2251 = vld [vmem:[#allocation2 + $0x5d0] sm:$0xff]
      %v2252 = vld [vmem:[#allocation2 + $0x5d8] sm:$0xff]
      %v2253 = vld [vmem:[#allocation2 + $0x5e0] sm:$0xff]
      %v2254 = vld [vmem:[#allocation2 + $0x5e8] sm:$0xff]
      %v2255 = vld [vmem:[#allocation2 + $0x5f0] sm:$0xff]
      %v2256 = vld [vmem:[#allocation2 + $0x5f8] sm:$0xff]
      %v2257 = vld [vmem:[#allocation2 + $0x600] sm:$0xff]
      %v2258 = vld [vmem:[#allocation2 + $0x608] sm:$0xff]
      %v2259 = vld [vmem:[#allocation2 + $0x610] sm:$0xff]
      %v2260 = vld [vmem:[#allocation2 + $0x618] sm:$0xff]
      %v2261 = vld [vmem:[#allocation2 + $0x620] sm:$0xff]
      %v2262 = vld [vmem:[#allocation2 + $0x628] sm:$0xff]
      %v2263 = vld [vmem:[#allocation2 + $0x630] sm:$0xff]
      %v2264 = vld [vmem:[#allocation2 + $0x638] sm:$0xff]
      %vm2265 = vcmask 588800
      %v2267 = vsel %vm2265, %v2062, 0
      %v2270 = vsel %vm2265, %v2064, 0
      %2272 = vmatprep.subr.mxu0 %v2186
      %2273 = vmatpush1.msra.mxu0 %v2185
      %2274 = vmatprep.subr.mxu0 %v2178
      %2275 = vmatpush1.msra.mxu0 %v2177
      %2276 = vmatprep.subr.mxu0 %v2170
      %2277 = vmatpush1.msra.mxu0 %v2169
      %2278 = vmatprep.subr.mxu0 %v2162
      %2279 = vmatpush1.msra.mxu0 %v2161
      %2280 = vmatprep.subr.mxu0 %v2154
      %2281 = vmatpush1.msra.mxu0 %v2153
      %2282 = vmatprep.subr.mxu0 %v2146
      %2283 = vmatpush1.msra.mxu0 %v2145
      %2284 = vmatprep.subr.mxu0 %v2138
      %2285 = vmatpush1.msra.mxu0 %v2137
      %2286 = vmatprep.subr.mxu0 %v2130
      %2287 = vmatpush1.msra.mxu0 %v2129
      %2288 = vmatprep.subr.mxu0 %v2122
      %2289 = vmatpush1.msra.mxu0 %v2121
      %2290 = vmatprep.subr.mxu0 %v2114
      %2291 = vmatpush1.msra.mxu0 %v2113
      %2292 = vmatprep.subr.mxu0 %v2106
      %2293 = vmatpush1.msra.mxu0 %v2105
      %2294 = vmatprep.subr.mxu0 %v2098
      %2295 = vmatpush1.msra.mxu0 %v2097
      %2296 = vmatprep.subr.mxu0 %v2090
      %2297 = vmatpush1.msra.mxu0 %v2089
      %2298 = vmatprep.subr.mxu0 %v2082
      %2299 = vmatpush1.msra.mxu0 %v2081
      %2300 = vmatprep.subr.mxu0 %v2074
      %2301 = vmatpush1.msra.mxu0 %v2073
      %2302 = vmatprep.subr.mxu0 %v2066
      %2303 = vmatpush1.msra.mxu0 %v2065
      %2304 = vmatprep.subr.mxu0 0.0
      %2305 = vmatpush2.msra.mxu0 0.0
      %2306 = vmatprep.subr.mxu0 0.0
      %2307 = vmatpush2.msra.mxu0 0.0
      %2308 = vmatprep.subr.mxu0 0.0
      %2309 = vmatpush2.msra.mxu0 0.0
      %2310 = vmatprep.subr.mxu0 0.0
      %2311 = vmatpush2.msra.mxu0 0.0
      %2312 = vmatprep.subr.mxu0 0.0
      %2313 = vmatpush2.msra.mxu0 0.0
      %2314 = vmatprep.subr.mxu0 0.0
      %2315 = vmatpush2.msra.mxu0 0.0
      %2316 = vmatprep.subr.mxu0 0.0
      %2317 = vmatpush2.msra.mxu0 0.0
      %2318 = vmatprep.subr.mxu0 %v2258
      %2319 = vmatpush2.msra.mxu0 %v2257
      %2320 = vmatprep.subr.mxu0 %v2250
      %2321 = vmatpush2.msra.mxu0 %v2249
      %2322 = vmatprep.subr.mxu0 %v2242
      %2323 = vmatpush2.msra.mxu0 %v2241
      %2324 = vmatprep.subr.mxu0 %v2234
      %2325 = vmatpush2.msra.mxu0 %v2233
      %2326 = vmatprep.subr.mxu0 %v2226
      %2327 = vmatpush2.msra.mxu0 %v2225
      %2328 = vmatprep.subr.mxu0 %v2218
      %2329 = vmatpush2.msra.mxu0 %v2217
      %2330 = vmatprep.subr.mxu0 %v2210
      %2331 = vmatpush2.msra.mxu0 %v2209
      %2332 = vmatprep.subr.mxu0 %v2202
      %2333 = vmatpush2.msra.mxu0 %v2201
      %2334 = vmatprep.subr.mxu0 %v2194
      %2335 = vmatpush2.msra.mxu0 %v2193
      %2336 = vmatprep.mubr.f32.mxu0 %v2267
      %2337 = vmatmul.mubr.f32.gmra.mxu0 %v2061
      %v2338 = vpop.f32.mrf.mxu0
      %v2339 = vadd.f32 0.0, %v2338
      %v2340 = vpop.f32.mrf.mxu0
      %v2341 = vadd.f32 0.0, %v2340
      %2342 = vmatprep.mubr.f32.mxu0 %v2270
      %2343 = vmatmul.mubr.f32.gmra.mxu0 %v2063
      %v2344 = vpop.f32.mrf.mxu0
      %v2345 = vadd.f32 0.0, %v2344
      %v2346 = vpop.f32.mrf.mxu0
      %v2347 = vadd.f32 0.0, %v2346
      %2348 = vdwg.mxu0
      %2349 = vmatprep.subr.mxu0 %v2188
      %2350 = vmatpush1.msra.mxu0 %v2187
      %2351 = vmatprep.subr.mxu0 %v2180
      %2352 = vmatpush1.msra.mxu0 %v2179
      %2353 = vmatprep.subr.mxu0 %v2172
      %2354 = vmatpush1.msra.mxu0 %v2171
      %2355 = vmatprep.subr.mxu0 %v2164
      %2356 = vmatpush1.msra.mxu0 %v2163
      %2357 = vmatprep.subr.mxu0 %v2156
      %2358 = vmatpush1.msra.mxu0 %v2155
      %2359 = vmatprep.subr.mxu0 %v2148
      %2360 = vmatpush1.msra.mxu0 %v2147
      %2361 = vmatprep.subr.mxu0 %v2140
      %2362 = vmatpush1.msra.mxu0 %v2139
      %2363 = vmatprep.subr.mxu0 %v2132
      %2364 = vmatpush1.msra.mxu0 %v2131
      %2365 = vmatprep.subr.mxu0 %v2124
      %2366 = vmatpush1.msra.mxu0 %v2123
      %2367 = vmatprep.subr.mxu0 %v2116
      %2368 = vmatpush1.msra.mxu0 %v2115
      %2369 = vmatprep.subr.mxu0 %v2108
      %2370 = vmatpush1.msra.mxu0 %v2107
      %2371 = vmatprep.subr.mxu0 %v2100
      %2372 = vmatpush1.msra.mxu0 %v2099
      %2373 = vmatprep.subr.mxu0 %v2092
      %2374 = vmatpush1.msra.mxu0 %v2091
      %2375 = vmatprep.subr.mxu0 %v2084
      %2376 = vmatpush1.msra.mxu0 %v2083
      %2377 = vmatprep.subr.mxu0 %v2076
      %2378 = vmatpush1.msra.mxu0 %v2075
      %2379 = vmatprep.subr.mxu0 %v2068
      %2380 = vmatpush1.msra.mxu0 %v2067
      %2381 = vmatprep.subr.mxu0 0.0
      %2382 = vmatpush2.msra.mxu0 0.0
      %2383 = vmatprep.subr.mxu0 0.0
      %2384 = vmatpush2.msra.mxu0 0.0
      %2385 = vmatprep.subr.mxu0 0.0
      %2386 = vmatpush2.msra.mxu0 0.0
      %2387 = vmatprep.subr.mxu0 0.0
      %2388 = vmatpush2.msra.mxu0 0.0
      %2389 = vmatprep.subr.mxu0 0.0
      %2390 = vmatpush2.msra.mxu0 0.0
      %2391 = vmatprep.subr.mxu0 0.0
      %2392 = vmatpush2.msra.mxu0 0.0
      %2393 = vmatprep.subr.mxu0 0.0
      %2394 = vmatpush2.msra.mxu0 0.0
      %2395 = vmatprep.subr.mxu0 %v2260
      %2396 = vmatpush2.msra.mxu0 %v2259
      %2397 = vmatprep.subr.mxu0 %v2252
      %2398 = vmatpush2.msra.mxu0 %v2251
      %2399 = vmatprep.subr.mxu0 %v2244
      %2400 = vmatpush2.msra.mxu0 %v2243
      %2401 = vmatprep.subr.mxu0 %v2236
      %2402 = vmatpush2.msra.mxu0 %v2235
      %2403 = vmatprep.subr.mxu0 %v2228
      %2404 = vmatpush2.msra.mxu0 %v2227
      %2405 = vmatprep.subr.mxu0 %v2220
      %2406 = vmatpush2.msra.mxu0 %v2219
      %2407 = vmatprep.subr.mxu0 %v2212
      %2408 = vmatpush2.msra.mxu0 %v2211
      %2409 = vmatprep.subr.mxu0 %v2204
      %2410 = vmatpush2.msra.mxu0 %v2203
      %2411 = vmatprep.subr.mxu0 %v2196
      %2412 = vmatpush2.msra.mxu0 %v2195
      %2413 = vmatprep.mubr.f32.mxu0 %v2267
      %2414 = vmatmul.mubr.f32.gmra.mxu0 %v2061
      %v2415 = vpop.f32.mrf.mxu0
      %v2416 = vadd.f32 0.0, %v2415
      %v2417 = vpop.f32.mrf.mxu0
      %v2418 = vadd.f32 0.0, %v2417
      %2419 = vmatprep.mubr.f32.mxu0 %v2270
      %2420 = vmatmul.mubr.f32.gmra.mxu0 %v2063
      %v2421 = vpop.f32.mrf.mxu0
      %v2422 = vadd.f32 0.0, %v2421
      %v2423 = vpop.f32.mrf.mxu0
      %v2424 = vadd.f32 0.0, %v2423
      %2425 = vdwg.mxu0
      %2426 = vmatprep.subr.mxu0 %v2190
      %2427 = vmatpush1.msra.mxu0 %v2189
      %2428 = vmatprep.subr.mxu0 %v2182
      %2429 = vmatpush1.msra.mxu0 %v2181
      %2430 = vmatprep.subr.mxu0 %v2174
      %2431 = vmatpush1.msra.mxu0 %v2173
      %2432 = vmatprep.subr.mxu0 %v2166
      %2433 = vmatpush1.msra.mxu0 %v2165
      %2434 = vmatprep.subr.mxu0 %v2158
      %2435 = vmatpush1.msra.mxu0 %v2157
      %2436 = vmatprep.subr.mxu0 %v2150
      %2437 = vmatpush1.msra.mxu0 %v2149
      %2438 = vmatprep.subr.mxu0 %v2142
      %2439 = vmatpush1.msra.mxu0 %v2141
      %2440 = vmatprep.subr.mxu0 %v2134
      %2441 = vmatpush1.msra.mxu0 %v2133
      %2442 = vmatprep.subr.mxu0 %v2126
      %2443 = vmatpush1.msra.mxu0 %v2125
      %2444 = vmatprep.subr.mxu0 %v2118
      %2445 = vmatpush1.msra.mxu0 %v2117
      %2446 = vmatprep.subr.mxu0 %v2110
      %2447 = vmatpush1.msra.mxu0 %v2109
      %2448 = vmatprep.subr.mxu0 %v2102
      %2449 = vmatpush1.msra.mxu0 %v2101
      %2450 = vmatprep.subr.mxu0 %v2094
      %2451 = vmatpush1.msra.mxu0 %v2093
      %2452 = vmatprep.subr.mxu0 %v2086
      %2453 = vmatpush1.msra.mxu0 %v2085
      %2454 = vmatprep.subr.mxu0 %v2078
      %2455 = vmatpush1.msra.mxu0 %v2077
      %2456 = vmatprep.subr.mxu0 %v2070
      %2457 = vmatpush1.msra.mxu0 %v2069
      %2458 = vmatprep.subr.mxu0 0.0
      %2459 = vmatpush2.msra.mxu0 0.0
      %2460 = vmatprep.subr.mxu0 0.0
      %2461 = vmatpush2.msra.mxu0 0.0
      %2462 = vmatprep.subr.mxu0 0.0
      %2463 = vmatpush2.msra.mxu0 0.0
      %2464 = vmatprep.subr.mxu0 0.0
      %2465 = vmatpush2.msra.mxu0 0.0
      %2466 = vmatprep.subr.mxu0 0.0
      %2467 = vmatpush2.msra.mxu0 0.0
      %2468 = vmatprep.subr.mxu0 0.0
      %2469 = vmatpush2.msra.mxu0 0.0
      %2470 = vmatprep.subr.mxu0 0.0
      %2471 = vmatpush2.msra.mxu0 0.0
      %2472 = vmatprep.subr.mxu0 %v2262
      %2473 = vmatpush2.msra.mxu0 %v2261
      %2474 = vmatprep.subr.mxu0 %v2254
      %2475 = vmatpush2.msra.mxu0 %v2253
      %2476 = vmatprep.subr.mxu0 %v2246
      %2477 = vmatpush2.msra.mxu0 %v2245
      %2478 = vmatprep.subr.mxu0 %v2238
      %2479 = vmatpush2.msra.mxu0 %v2237
      %2480 = vmatprep.subr.mxu0 %v2230
      %2481 = vmatpush2.msra.mxu0 %v2229
      %2482 = vmatprep.subr.mxu0 %v2222
      %2483 = vmatpush2.msra.mxu0 %v2221
      %2484 = vmatprep.subr.mxu0 %v2214
      %2485 = vmatpush2.msra.mxu0 %v2213
      %2486 = vmatprep.subr.mxu0 %v2206
      %2487 = vmatpush2.msra.mxu0 %v2205
      %2488 = vmatprep.subr.mxu0 %v2198
      %2489 = vmatpush2.msra.mxu0 %v2197
      %2490 = vmatprep.mubr.f32.mxu0 %v2267
      %2491 = vmatmul.mubr.f32.gmra.mxu0 %v2061
      %v2492 = vpop.f32.mrf.mxu0
      %v2493 = vadd.f32 0.0, %v2492
      %v2494 = vpop.f32.mrf.mxu0
      %v2495 = vadd.f32 0.0, %v2494
      %2496 = vmatprep.mubr.f32.mxu0 %v2270
      %2497 = vmatmul.mubr.f32.gmra.mxu0 %v2063
      %v2498 = vpop.f32.mrf.mxu0
      %v2499 = vadd.f32 0.0, %v2498
      %v2500 = vpop.f32.mrf.mxu0
      %v2501 = vadd.f32 0.0, %v2500
      %2502 = vdwg.mxu0
      %2503 = vmatprep.subr.mxu0 %v2192
      %2504 = vmatpush1.msra.mxu0 %v2191
      %2505 = vmatprep.subr.mxu0 %v2184
      %2506 = vmatpush1.msra.mxu0 %v2183
      %2507 = vmatprep.subr.mxu0 %v2176
      %2508 = vmatpush1.msra.mxu0 %v2175
      %2509 = vmatprep.subr.mxu0 %v2168
      %2510 = vmatpush1.msra.mxu0 %v2167
      %2511 = vmatprep.subr.mxu0 %v2160
      %2512 = vmatpush1.msra.mxu0 %v2159
      %2513 = vmatprep.subr.mxu0 %v2152
      %2514 = vmatpush1.msra.mxu0 %v2151
      %2515 = vmatprep.subr.mxu0 %v2144
      %2516 = vmatpush1.msra.mxu0 %v2143
      %2517 = vmatprep.subr.mxu0 %v2136
      %2518 = vmatpush1.msra.mxu0 %v2135
      %2519 = vmatprep.subr.mxu0 %v2128
      %2520 = vmatpush1.msra.mxu0 %v2127
      %2521 = vmatprep.subr.mxu0 %v2120
      %2522 = vmatpush1.msra.mxu0 %v2119
      %2523 = vmatprep.subr.mxu0 %v2112
      %2524 = vmatpush1.msra.mxu0 %v2111
      %2525 = vmatprep.subr.mxu0 %v2104
      %2526 = vmatpush1.msra.mxu0 %v2103
      %2527 = vmatprep.subr.mxu0 %v2096
      %2528 = vmatpush1.msra.mxu0 %v2095
      %2529 = vmatprep.subr.mxu0 %v2088
      %2530 = vmatpush1.msra.mxu0 %v2087
      %2531 = vmatprep.subr.mxu0 %v2080
      %2532 = vmatpush1.msra.mxu0 %v2079
      %2533 = vmatprep.subr.mxu0 %v2072
      %2534 = vmatpush1.msra.mxu0 %v2071
      %2535 = vmatprep.subr.mxu0 0.0
      %2536 = vmatpush2.msra.mxu0 0.0
      %2537 = vmatprep.subr.mxu0 0.0
      %2538 = vmatpush2.msra.mxu0 0.0
      %2539 = vmatprep.subr.mxu0 0.0
      %2540 = vmatpush2.msra.mxu0 0.0
      %2541 = vmatprep.subr.mxu0 0.0
      %2542 = vmatpush2.msra.mxu0 0.0
      %2543 = vmatprep.subr.mxu0 0.0
      %2544 = vmatpush2.msra.mxu0 0.0
      %2545 = vmatprep.subr.mxu0 0.0
      %2546 = vmatpush2.msra.mxu0 0.0
      %2547 = vmatprep.subr.mxu0 0.0
      %2548 = vmatpush2.msra.mxu0 0.0
      %2549 = vmatprep.subr.mxu0 %v2264
      %2550 = vmatpush2.msra.mxu0 %v2263
      %2551 = vmatprep.subr.mxu0 %v2256
      %2552 = vmatpush2.msra.mxu0 %v2255
      %2553 = vmatprep.subr.mxu0 %v2248
      %2554 = vmatpush2.msra.mxu0 %v2247
      %2555 = vmatprep.subr.mxu0 %v2240
      %2556 = vmatpush2.msra.mxu0 %v2239
      %2557 = vmatprep.subr.mxu0 %v2232
      %2558 = vmatpush2.msra.mxu0 %v2231
      %2559 = vmatprep.subr.mxu0 %v2224
      %2560 = vmatpush2.msra.mxu0 %v2223
      %2561 = vmatprep.subr.mxu0 %v2216
      %2562 = vmatpush2.msra.mxu0 %v2215
      %2563 = vmatprep.subr.mxu0 %v2208
      %2564 = vmatpush2.msra.mxu0 %v2207
      %2565 = vmatprep.subr.mxu0 %v2200
      %2566 = vmatpush2.msra.mxu0 %v2199
      %2567 = vmatprep.mubr.f32.mxu0 %v2267
      %2568 = vmatmul.mubr.f32.gmra.mxu0 %v2061
      %v2569 = vpop.f32.mrf.mxu0
      %v2570 = vadd.f32 0.0, %v2569
      %v2571 = vpop.f32.mrf.mxu0
      %v2572 = vadd.f32 0.0, %v2571
      %2573 = vmatprep.mubr.f32.mxu0 %v2270
      %2574 = vmatmul.mubr.f32.gmra.mxu0 %v2063
      %v2575 = vpop.f32.mrf.mxu0
      %v2576 = vadd.f32 0.0, %v2575
      %v2577 = vpop.f32.mrf.mxu0
      %v2578 = vadd.f32 0.0, %v2577
      %2579 = vdwg.mxu0
      %2596 = vrot.lane.b32.xlu0 %v2339, 127
      %v2597 = vpop.permute.xlu0 %2596
      %2598 = vrot.lane.b32.xlu0 %v2341, 127
      %v2599 = vpop.permute.xlu0 %2598
      %2600 = vrot.lane.b32.xlu0 %v2416, 127
      %v2601 = vpop.permute.xlu0 %2600
      %2602 = vrot.lane.b32.xlu0 %v2418, 127
      %v2603 = vpop.permute.xlu0 %2602
      %2604 = vrot.lane.b32.xlu0 %v2493, 127
      %v2605 = vpop.permute.xlu0 %2604
      %2606 = vrot.lane.b32.xlu0 %v2495, 127
      %v2607 = vpop.permute.xlu0 %2606
      %2608 = vrot.lane.b32.xlu0 %v2570, 127
      %v2609 = vpop.permute.xlu0 %2608
      %2610 = vrot.lane.b32.xlu0 %v2572, 127
      %v2611 = vpop.permute.xlu0 %2610
      %2612 = vrot.lane.b32.xlu0 %v2345, 127
      %v2613 = vpop.permute.xlu0 %2612
      %2614 = vrot.lane.b32.xlu0 %v2347, 127
      %v2615 = vpop.permute.xlu0 %2614
      %2616 = vrot.lane.b32.xlu0 %v2422, 127
      %v2617 = vpop.permute.xlu0 %2616
      %2618 = vrot.lane.b32.xlu0 %v2424, 127
      %v2619 = vpop.permute.xlu0 %2618
      %2620 = vrot.lane.b32.xlu0 %v2499, 127
      %v2621 = vpop.permute.xlu0 %2620
      %2622 = vrot.lane.b32.xlu0 %v2501, 127
      %v2623 = vpop.permute.xlu0 %2622
      %2624 = vrot.lane.b32.xlu0 %v2576, 127
      %v2625 = vpop.permute.xlu0 %2624
      %2626 = vrot.lane.b32.xlu0 %v2578, 127
      %v2627 = vpop.permute.xlu0 %2626
      %v2628 = vsel %vm405, %v2597, %v2599
      %v2629 = vsel %vm405, %v2599, %v2601
      %v2630 = vsel %vm405, %v2601, %v2603
      %v2631 = vsel %vm405, %v2603, %v2605
      %v2632 = vsel %vm405, %v2605, %v2607
      %v2633 = vsel %vm405, %v2607, %v2609
      %v2634 = vsel %vm405, %v2609, %v2611
      %v2635 = vsel %vm405, %v2613, %v2615
      %v2636 = vsel %vm405, %v2615, %v2617
      %v2637 = vsel %vm405, %v2617, %v2619
      %v2638 = vsel %vm405, %v2619, %v2621
      %v2639 = vsel %vm405, %v2621, %v2623
      %v2640 = vsel %vm405, %v2623, %v2625
      %v2641 = vsel %vm405, %v2625, %v2627
      %v2660 = vsel %vm405, %v2611, %v2597
      %v2661 = vsel %vm405, %v2627, %v2613
      %v2662 = vmax.f32 %v2339, %v2628
      %v2663 = vmax.f32 %v2341, %v2629
      %v2664 = vmax.f32 %v2416, %v2630
      %v2665 = vmax.f32 %v2418, %v2631
      %v2666 = vmax.f32 %v2493, %v2632
      %v2667 = vmax.f32 %v2495, %v2633
      %v2668 = vmax.f32 %v2570, %v2634
      %v2669 = vmax.f32 %v2572, %v2660
      %v2670 = vmax.f32 %v2345, %v2635
      %v2671 = vmax.f32 %v2347, %v2636
      %v2672 = vmax.f32 %v2422, %v2637
      %v2673 = vmax.f32 %v2424, %v2638
      %v2674 = vmax.f32 %v2499, %v2639
      %v2675 = vmax.f32 %v2501, %v2640
      %v2676 = vmax.f32 %v2576, %v2641
      %v2677 = vmax.f32 %v2578, %v2661
      %2694 = vrot.lane.b32.xlu0 %v2662, 96
      %v2695 = vpop.permute.xlu0 %2694
      %2696 = vrot.lane.b32.xlu0 %v2663, 96
      %v2697 = vpop.permute.xlu0 %2696
      %2698 = vrot.lane.b32.xlu0 %v2664, 96
      %v2699 = vpop.permute.xlu0 %2698
      %2700 = vrot.lane.b32.xlu0 %v2665, 96
      %v2701 = vpop.permute.xlu0 %2700
      %2702 = vrot.lane.b32.xlu0 %v2666, 96
      %v2703 = vpop.permute.xlu0 %2702
      %2704 = vrot.lane.b32.xlu0 %v2667, 96
      %v2705 = vpop.permute.xlu0 %2704
      %2706 = vrot.lane.b32.xlu0 %v2668, 96
      %v2707 = vpop.permute.xlu0 %2706
      %2708 = vrot.lane.b32.xlu0 %v2669, 96
      %v2709 = vpop.permute.xlu0 %2708
      %2710 = vrot.lane.b32.xlu0 %v2670, 96
      %v2711 = vpop.permute.xlu0 %2710
      %2712 = vrot.lane.b32.xlu0 %v2671, 96
      %v2713 = vpop.permute.xlu0 %2712
      %2714 = vrot.lane.b32.xlu0 %v2672, 96
      %v2715 = vpop.permute.xlu0 %2714
      %2716 = vrot.lane.b32.xlu0 %v2673, 96
      %v2717 = vpop.permute.xlu0 %2716
      %2718 = vrot.lane.b32.xlu0 %v2674, 96
      %v2719 = vpop.permute.xlu0 %2718
      %2720 = vrot.lane.b32.xlu0 %v2675, 96
      %v2721 = vpop.permute.xlu0 %2720
      %2722 = vrot.lane.b32.xlu0 %v2676, 96
      %v2723 = vpop.permute.xlu0 %2722
      %2724 = vrot.lane.b32.xlu0 %v2677, 96
      %v2725 = vpop.permute.xlu0 %2724
      %v2726 = vsel %vm577, %v2695, %v2697
      %v2727 = vsel %vm577, %v2697, %v2699
      %v2728 = vsel %vm577, %v2699, %v2701
      %v2729 = vsel %vm577, %v2701, %v2703
      %v2730 = vsel %vm577, %v2703, %v2705
      %v2731 = vsel %vm577, %v2705, %v2707
      %v2732 = vsel %vm577, %v2707, %v2709
      %v2733 = vsel %vm577, %v2711, %v2713
      %v2734 = vsel %vm577, %v2713, %v2715
      %v2735 = vsel %vm577, %v2715, %v2717
      %v2736 = vsel %vm577, %v2717, %v2719
      %v2737 = vsel %vm577, %v2719, %v2721
      %v2738 = vsel %vm577, %v2721, %v2723
      %v2739 = vsel %vm577, %v2723, %v2725
      %v2758 = vsel %vm577, %v2709, %v2695
      %v2759 = vsel %vm577, %v2725, %v2711
      %v2760 = vmax.f32 %v2662, %v2726
      %v2761 = vmax.f32 %v2663, %v2727
      %v2762 = vmax.f32 %v2664, %v2728
      %v2763 = vmax.f32 %v2665, %v2729
      %v2764 = vmax.f32 %v2666, %v2730
      %v2765 = vmax.f32 %v2667, %v2731
      %v2766 = vmax.f32 %v2668, %v2732
      %v2767 = vmax.f32 %v2669, %v2758
      %v2768 = vmax.f32 %v2670, %v2733
      %v2769 = vmax.f32 %v2671, %v2734
      %v2770 = vmax.f32 %v2672, %v2735
      %v2771 = vmax.f32 %v2673, %v2736
      %v2772 = vmax.f32 %v2674, %v2737
      %v2773 = vmax.f32 %v2675, %v2738
      %v2774 = vmax.f32 %v2676, %v2739
      %v2775 = vmax.f32 %v2677, %v2759
      %v2776 = vld [vmem:[%s2] sm:$0xff]
      %v2777 = vld [vmem:[%s2 + $0x8] sm:$0xff]
      %2779 = vset.pattern.permute.xlu0 0
      %2780 = vperm.xlu0 %2779, %v2776
      %v2781 = vpop.permute.xlu0 %2780
      %2784 = vset.pattern.permute.xlu0 0
      %2785 = vperm.xlu0 %2784, %v2777
      %v2786 = vpop.permute.xlu0 %2785
      %v2788 = vadd.f32 %v2760, %v2781
      %v2789 = vadd.f32 %v2761, %v2781
      %v2790 = vadd.f32 %v2762, %v2781
      %v2791 = vadd.f32 %v2763, %v2781
      %v2792 = vadd.f32 %v2764, %v2781
      %v2793 = vadd.f32 %v2765, %v2781
      %v2794 = vadd.f32 %v2766, %v2781
      %v2795 = vadd.f32 %v2767, %v2781
      %v2796 = vadd.f32 %v2768, %v2786
      %v2797 = vadd.f32 %v2769, %v2786
      %v2798 = vadd.f32 %v2770, %v2786
      %v2799 = vadd.f32 %v2771, %v2786
      %v2800 = vadd.f32 %v2772, %v2786
      %v2801 = vadd.f32 %v2773, %v2786
      %v2802 = vadd.f32 %v2774, %v2786
      %v2803 = vadd.f32 %v2775, %v2786
      %v2804 = vmax.f32 %v2788, 0.0
      %v2805 = vmax.f32 %v2789, 0.0
      %v2806 = vmax.f32 %v2790, 0.0
      %v2807 = vmax.f32 %v2791, 0.0
      %v2808 = vmax.f32 %v2792, 0.0
      %v2809 = vmax.f32 %v2793, 0.0
      %v2810 = vmax.f32 %v2794, 0.0
      %v2811 = vmax.f32 %v2795, 0.0
      %v2812 = vmax.f32 %v2796, 0.0
      %v2813 = vmax.f32 %v2797, 0.0
      %v2814 = vmax.f32 %v2798, 0.0
      %v2815 = vmax.f32 %v2799, 0.0
      %v2816 = vmax.f32 %v2800, 0.0
      %v2817 = vmax.f32 %v2801, 0.0
      %v2818 = vmax.f32 %v2802, 0.0
      %v2819 = vmax.f32 %v2803, 0.0
      %2820 = vst [vmem:[#allocation4] sm:$0xff] 0.0
      %2821 = vst [vmem:[#allocation4 + $0x50] sm:$0xff] 0.0
      %2822 = vst [vmem:[#allocation4 + $0x48] sm:$0xff] 0.0
      %2823 = vst [vmem:[#allocation4 + $0x98] sm:$0xff] 0.0
      %2824 = vst [vmem:[#allocation4 + $0x8] sm:$0xff] %v2804
      %2825 = vst [vmem:[#allocation4 + $0x10] sm:$0xff] %v2805
      %2826 = vst [vmem:[#allocation4 + $0x18] sm:$0xff] %v2806
      %2827 = vst [vmem:[#allocation4 + $0x20] sm:$0xff] %v2807
      %2828 = vst [vmem:[#allocation4 + $0x28] sm:$0xff] %v2808
      %2829 = vst [vmem:[#allocation4 + $0x30] sm:$0xff] %v2809
      %2830 = vst [vmem:[#allocation4 + $0x38] sm:$0xff] %v2810
      %2831 = vst [vmem:[#allocation4 + $0x40] sm:$0xff] %v2811
      %2832 = vst [vmem:[#allocation4 + $0x58] sm:$0xff] %v2812
      %2833 = vst [vmem:[#allocation4 + $0x60] sm:$0xff] %v2813
      %2834 = vst [vmem:[#allocation4 + $0x68] sm:$0xff] %v2814
      %2835 = vst [vmem:[#allocation4 + $0x70] sm:$0xff] %v2815
      %2836 = vst [vmem:[#allocation4 + $0x78] sm:$0xff] %v2816
      %2837 = vst [vmem:[#allocation4 + $0x80] sm:$0xff] %v2817
      %2838 = vst [vmem:[#allocation4 + $0x88] sm:$0xff] %v2818
      %2839 = vst [vmem:[#allocation4 + $0x90] sm:$0xff] %v2819
      %v2840 = vld [vmem:[#allocation4] sm:$0xff]
      %v2841 = vld [vmem:[#allocation4 + $0x8] sm:$0xff]
      %v2842 = vld [vmem:[#allocation4 + $0x10] sm:$0xff]
      %v2843 = vld [vmem:[#allocation4 + $0x18] sm:$0xff]
      %v2844 = vld [vmem:[#allocation4 + $0x20] sm:$0xff]
      %v2845 = vld [vmem:[#allocation4 + $0x28] sm:$0xff]
      %v2846 = vld [vmem:[#allocation4 + $0x30] sm:$0xff]
      %v2847 = vld [vmem:[#allocation4 + $0x38] sm:$0xff]
      %v2848 = vld [vmem:[#allocation4 + $0x40] sm:$0xff]
      %v2849 = vld [vmem:[#allocation4 + $0x50] sm:$0xff]
      %v2850 = vld [vmem:[#allocation4 + $0x58] sm:$0xff]
      %v2851 = vld [vmem:[#allocation4 + $0x60] sm:$0xff]
      %v2852 = vld [vmem:[#allocation4 + $0x68] sm:$0xff]
      %v2853 = vld [vmem:[#allocation4 + $0x70] sm:$0xff]
      %v2854 = vld [vmem:[#allocation4 + $0x78] sm:$0xff]
      %v2855 = vld [vmem:[#allocation4 + $0x80] sm:$0xff]
      %v2856 = vld [vmem:[#allocation4 + $0x88] sm:$0xff]
      %v2857 = vld [vmem:[#allocation4 + $0x90] sm:$0xff]
      %2876 = vrot.lane.b32.xlu0 %v2840, 66
      %v2877 = vpop.permute.xlu0 %2876
      %2878 = vrot.lane.b32.xlu0 %v2841, 66
      %v2879 = vpop.permute.xlu0 %2878
      %2880 = vrot.lane.b32.xlu0 %v2842, 66
      %v2881 = vpop.permute.xlu0 %2880
      %2882 = vrot.lane.b32.xlu0 %v2843, 66
      %v2883 = vpop.permute.xlu0 %2882
      %2884 = vrot.lane.b32.xlu0 %v2844, 66
      %v2885 = vpop.permute.xlu0 %2884
      %2886 = vrot.lane.b32.xlu0 %v2845, 66
      %v2887 = vpop.permute.xlu0 %2886
      %2888 = vrot.lane.b32.xlu0 %v2846, 66
      %v2889 = vpop.permute.xlu0 %2888
      %2890 = vrot.lane.b32.xlu0 %v2847, 66
      %v2891 = vpop.permute.xlu0 %2890
      %2892 = vrot.lane.b32.xlu0 %v2848, 66
      %v2893 = vpop.permute.xlu0 %2892
      %2894 = vrot.lane.b32.xlu0 %v2849, 66
      %v2895 = vpop.permute.xlu0 %2894
      %2896 = vrot.lane.b32.xlu0 %v2850, 66
      %v2897 = vpop.permute.xlu0 %2896
      %2898 = vrot.lane.b32.xlu0 %v2851, 66
      %v2899 = vpop.permute.xlu0 %2898
      %2900 = vrot.lane.b32.xlu0 %v2852, 66
      %v2901 = vpop.permute.xlu0 %2900
      %2902 = vrot.lane.b32.xlu0 %v2853, 66
      %v2903 = vpop.permute.xlu0 %2902
      %2904 = vrot.lane.b32.xlu0 %v2854, 66
      %v2905 = vpop.permute.xlu0 %2904
      %2906 = vrot.lane.b32.xlu0 %v2855, 66
      %v2907 = vpop.permute.xlu0 %2906
      %2908 = vrot.lane.b32.xlu0 %v2856, 66
      %v2909 = vpop.permute.xlu0 %2908
      %2910 = vrot.lane.b32.xlu0 %v2857, 66
      %v2911 = vpop.permute.xlu0 %2910
      %vm2912 = vcmask 539648
      %v2913 = vsel %vm2912, %v2877, %v2879
      %v2914 = vsel %vm2912, %v2879, %v2881
      %v2915 = vsel %vm2912, %v2881, %v2883
      %v2916 = vsel %vm2912, %v2883, %v2885
      %v2917 = vsel %vm2912, %v2885, %v2887
      %v2918 = vsel %vm2912, %v2887, %v2889
      %v2919 = vsel %vm2912, %v2889, %v2891
      %v2920 = vsel %vm2912, %v2891, %v2893
      %v2921 = vsel %vm2912, %v2895, %v2897
      %v2922 = vsel %vm2912, %v2897, %v2899
      %v2923 = vsel %vm2912, %v2899, %v2901
      %v2924 = vsel %vm2912, %v2901, %v2903
      %v2925 = vsel %vm2912, %v2903, %v2905
      %v2926 = vsel %vm2912, %v2905, %v2907
      %v2927 = vsel %vm2912, %v2907, %v2909
      %v2928 = vsel %vm2912, %v2909, %v2911
      %2945 = vst [vmem:[#allocation3] sm:$0xff] %v2913
      %2946 = vst [vmem:[#allocation3 + $0x8] sm:$0xff] %v2914
      %2947 = vst [vmem:[#allocation3 + $0x10] sm:$0xff] %v2915
      %2948 = vst [vmem:[#allocation3 + $0x18] sm:$0xff] %v2916
      %2949 = vst [vmem:[#allocation3 + $0x20] sm:$0xff] %v2917
      %2950 = vst [vmem:[#allocation3 + $0x28] sm:$0xff] %v2918
      %2951 = vst [vmem:[#allocation3 + $0x30] sm:$0xff] %v2919
      %2952 = vst [vmem:[#allocation3 + $0x38] sm:$0xff] %v2920
      %2953 = vst [vmem:[#allocation3 + $0x40] sm:$0xff] %v2921
      %2954 = vst [vmem:[#allocation3 + $0x48] sm:$0xff] %v2922
      %2955 = vst [vmem:[#allocation3 + $0x50] sm:$0xff] %v2923
      %2956 = vst [vmem:[#allocation3 + $0x58] sm:$0xff] %v2924
      %2957 = vst [vmem:[#allocation3 + $0x60] sm:$0xff] %v2925
      %2958 = vst [vmem:[#allocation3 + $0x68] sm:$0xff] %v2926
      %2959 = vst [vmem:[#allocation3 + $0x70] sm:$0xff] %v2927
      %2960 = vst [vmem:[#allocation3 + $0x78] sm:$0xff] %v2928
      %v2961 = vld [vmem:[#allocation4] sm:$0xff]
      %v2962 = vld [vmem:[#allocation4 + $0x8] sm:$0xff]
      %v2963 = vld [vmem:[#allocation4 + $0x10] sm:$0xff]
      %v2964 = vld [vmem:[#allocation4 + $0x18] sm:$0xff]
      %v2965 = vld [vmem:[#allocation4 + $0x20] sm:$0xff]
      %v2966 = vld [vmem:[#allocation4 + $0x28] sm:$0xff]
      %v2967 = vld [vmem:[#allocation4 + $0x30] sm:$0xff]
      %v2968 = vld [vmem:[#allocation4 + $0x38] sm:$0xff]
      %v2969 = vld [vmem:[#allocation4 + $0x40] sm:$0xff]
      %v2970 = vld [vmem:[#allocation4 + $0x50] sm:$0xff]
      %v2971 = vld [vmem:[#allocation4 + $0x58] sm:$0xff]
      %v2972 = vld [vmem:[#allocation4 + $0x60] sm:$0xff]
      %v2973 = vld [vmem:[#allocation4 + $0x68] sm:$0xff]
      %v2974 = vld [vmem:[#allocation4 + $0x70] sm:$0xff]
      %v2975 = vld [vmem:[#allocation4 + $0x78] sm:$0xff]
      %v2976 = vld [vmem:[#allocation4 + $0x80] sm:$0xff]
      %v2977 = vld [vmem:[#allocation4 + $0x88] sm:$0xff]
      %v2978 = vld [vmem:[#allocation4 + $0x90] sm:$0xff]
      %2997 = vrot.lane.b32.xlu0 %v2961, 64
      %v2998 = vpop.permute.xlu0 %2997
      %2999 = vrot.lane.b32.xlu0 %v2962, 64
      %v3000 = vpop.permute.xlu0 %2999
      %3001 = vrot.lane.b32.xlu0 %v2963, 64
      %v3002 = vpop.permute.xlu0 %3001
      %3003 = vrot.lane.b32.xlu0 %v2964, 64
      %v3004 = vpop.permute.xlu0 %3003
      %3005 = vrot.lane.b32.xlu0 %v2965, 64
      %v3006 = vpop.permute.xlu0 %3005
      %3007 = vrot.lane.b32.xlu0 %v2966, 64
      %v3008 = vpop.permute.xlu0 %3007
      %3009 = vrot.lane.b32.xlu0 %v2967, 64
      %v3010 = vpop.permute.xlu0 %3009
      %3011 = vrot.lane.b32.xlu0 %v2968, 64
      %v3012 = vpop.permute.xlu0 %3011
      %3013 = vrot.lane.b32.xlu0 %v2969, 64
      %v3014 = vpop.permute.xlu0 %3013
      %3015 = vrot.lane.b32.xlu0 %v2970, 64
      %v3016 = vpop.permute.xlu0 %3015
      %3017 = vrot.lane.b32.xlu0 %v2971, 64
      %v3018 = vpop.permute.xlu0 %3017
      %3019 = vrot.lane.b32.xlu0 %v2972, 64
      %v3020 = vpop.permute.xlu0 %3019
      %3021 = vrot.lane.b32.xlu0 %v2973, 64
      %v3022 = vpop.permute.xlu0 %3021
      %3023 = vrot.lane.b32.xlu0 %v2974, 64
      %v3024 = vpop.permute.xlu0 %3023
      %3025 = vrot.lane.b32.xlu0 %v2975, 64
      %v3026 = vpop.permute.xlu0 %3025
      %3027 = vrot.lane.b32.xlu0 %v2976, 64
      %v3028 = vpop.permute.xlu0 %3027
      %3029 = vrot.lane.b32.xlu0 %v2977, 64
      %v3030 = vpop.permute.xlu0 %3029
      %3031 = vrot.lane.b32.xlu0 %v2978, 64
      %v3032 = vpop.permute.xlu0 %3031
      %v3033 = vsel %vm792, %v2998, %v3000
      %v3034 = vsel %vm792, %v3000, %v3002
      %v3035 = vsel %vm792, %v3002, %v3004
      %v3036 = vsel %vm792, %v3004, %v3006
      %v3037 = vsel %vm792, %v3006, %v3008
      %v3038 = vsel %vm792, %v3008, %v3010
      %v3039 = vsel %vm792, %v3010, %v3012
      %v3040 = vsel %vm792, %v3012, %v3014
      %v3041 = vsel %vm792, %v3016, %v3018
      %v3042 = vsel %vm792, %v3018, %v3020
      %v3043 = vsel %vm792, %v3020, %v3022
      %v3044 = vsel %vm792, %v3022, %v3024
      %v3045 = vsel %vm792, %v3024, %v3026
      %v3046 = vsel %vm792, %v3026, %v3028
      %v3047 = vsel %vm792, %v3028, %v3030
      %v3048 = vsel %vm792, %v3030, %v3032
      %3065 = vst [vmem:[#allocation3 + $0x80] sm:$0xff] %v3033
      %3066 = vst [vmem:[#allocation3 + $0x88] sm:$0xff] %v3034
      %3067 = vst [vmem:[#allocation3 + $0x90] sm:$0xff] %v3035
      %3068 = vst [vmem:[#allocation3 + $0x98] sm:$0xff] %v3036
      %3069 = vst [vmem:[#allocation3 + $0xa0] sm:$0xff] %v3037
      %3070 = vst [vmem:[#allocation3 + $0xa8] sm:$0xff] %v3038
      %3071 = vst [vmem:[#allocation3 + $0xb0] sm:$0xff] %v3039
      %3072 = vst [vmem:[#allocation3 + $0xb8] sm:$0xff] %v3040
      %3073 = vst [vmem:[#allocation3 + $0xc0] sm:$0xff] %v3041
      %3074 = vst [vmem:[#allocation3 + $0xc8] sm:$0xff] %v3042
      %3075 = vst [vmem:[#allocation3 + $0xd0] sm:$0xff] %v3043
      %3076 = vst [vmem:[#allocation3 + $0xd8] sm:$0xff] %v3044
      %3077 = vst [vmem:[#allocation3 + $0xe0] sm:$0xff] %v3045
      %3078 = vst [vmem:[#allocation3 + $0xe8] sm:$0xff] %v3046
      %3079 = vst [vmem:[#allocation3 + $0xf0] sm:$0xff] %v3047
      %3080 = vst [vmem:[#allocation3 + $0xf8] sm:$0xff] %v3048
      %v3081 = vld [vmem:[#allocation4] sm:$0xff]
      %v3082 = vld [vmem:[#allocation4 + $0x8] sm:$0xff]
      %v3083 = vld [vmem:[#allocation4 + $0x10] sm:$0xff]
      %v3084 = vld [vmem:[#allocation4 + $0x18] sm:$0xff]
      %v3085 = vld [vmem:[#allocation4 + $0x20] sm:$0xff]
      %v3086 = vld [vmem:[#allocation4 + $0x28] sm:$0xff]
      %v3087 = vld [vmem:[#allocation4 + $0x30] sm:$0xff]
      %v3088 = vld [vmem:[#allocation4 + $0x38] sm:$0xff]
      %v3089 = vld [vmem:[#allocation4 + $0x40] sm:$0xff]
      %v3090 = vld [vmem:[#allocation4 + $0x50] sm:$0xff]
      %v3091 = vld [vmem:[#allocation4 + $0x58] sm:$0xff]
      %v3092 = vld [vmem:[#allocation4 + $0x60] sm:$0xff]
      %v3093 = vld [vmem:[#allocation4 + $0x68] sm:$0xff]
      %v3094 = vld [vmem:[#allocation4 + $0x70] sm:$0xff]
      %v3095 = vld [vmem:[#allocation4 + $0x78] sm:$0xff]
      %v3096 = vld [vmem:[#allocation4 + $0x80] sm:$0xff]
      %v3097 = vld [vmem:[#allocation4 + $0x88] sm:$0xff]
      %v3098 = vld [vmem:[#allocation4 + $0x90] sm:$0xff]
      %3117 = vrot.lane.b32.xlu0 %v3081, 62
      %v3118 = vpop.permute.xlu0 %3117
      %3119 = vrot.lane.b32.xlu0 %v3082, 62
      %v3120 = vpop.permute.xlu0 %3119
      %3121 = vrot.lane.b32.xlu0 %v3083, 62
      %v3122 = vpop.permute.xlu0 %3121
      %3123 = vrot.lane.b32.xlu0 %v3084, 62
      %v3124 = vpop.permute.xlu0 %3123
      %3125 = vrot.lane.b32.xlu0 %v3085, 62
      %v3126 = vpop.permute.xlu0 %3125
      %3127 = vrot.lane.b32.xlu0 %v3086, 62
      %v3128 = vpop.permute.xlu0 %3127
      %3129 = vrot.lane.b32.xlu0 %v3087, 62
      %v3130 = vpop.permute.xlu0 %3129
      %3131 = vrot.lane.b32.xlu0 %v3088, 62
      %v3132 = vpop.permute.xlu0 %3131
      %3133 = vrot.lane.b32.xlu0 %v3089, 62
      %v3134 = vpop.permute.xlu0 %3133
      %3135 = vrot.lane.b32.xlu0 %v3090, 62
      %v3136 = vpop.permute.xlu0 %3135
      %3137 = vrot.lane.b32.xlu0 %v3091, 62
      %v3138 = vpop.permute.xlu0 %3137
      %3139 = vrot.lane.b32.xlu0 %v3092, 62
      %v3140 = vpop.permute.xlu0 %3139
      %3141 = vrot.lane.b32.xlu0 %v3093, 62
      %v3142 = vpop.permute.xlu0 %3141
      %3143 = vrot.lane.b32.xlu0 %v3094, 62
      %v3144 = vpop.permute.xlu0 %3143
      %3145 = vrot.lane.b32.xlu0 %v3095, 62
      %v3146 = vpop.permute.xlu0 %3145
      %3147 = vrot.lane.b32.xlu0 %v3096, 62
      %v3148 = vpop.permute.xlu0 %3147
      %3149 = vrot.lane.b32.xlu0 %v3097, 62
      %v3150 = vpop.permute.xlu0 %3149
      %3151 = vrot.lane.b32.xlu0 %v3098, 62
      %v3152 = vpop.permute.xlu0 %3151
      %v3153 = vsel %vm878, %v3118, %v3120
      %v3154 = vsel %vm878, %v3120, %v3122
      %v3155 = vsel %vm878, %v3122, %v3124
      %v3156 = vsel %vm878, %v3124, %v3126
      %v3157 = vsel %vm878, %v3126, %v3128
      %v3158 = vsel %vm878, %v3128, %v3130
      %v3159 = vsel %vm878, %v3130, %v3132
      %v3160 = vsel %vm878, %v3132, %v3134
      %v3161 = vsel %vm878, %v3136, %v3138
      %v3162 = vsel %vm878, %v3138, %v3140
      %v3163 = vsel %vm878, %v3140, %v3142
      %v3164 = vsel %vm878, %v3142, %v3144
      %v3165 = vsel %vm878, %v3144, %v3146
      %v3166 = vsel %vm878, %v3146, %v3148
      %v3167 = vsel %vm878, %v3148, %v3150
      %v3168 = vsel %vm878, %v3150, %v3152
      %3185 = vst [vmem:[#allocation3 + $0x100] sm:$0xff] %v3153
      %3186 = vst [vmem:[#allocation3 + $0x108] sm:$0xff] %v3154
      %3187 = vst [vmem:[#allocation3 + $0x110] sm:$0xff] %v3155
      %3188 = vst [vmem:[#allocation3 + $0x118] sm:$0xff] %v3156
      %3189 = vst [vmem:[#allocation3 + $0x120] sm:$0xff] %v3157
      %3190 = vst [vmem:[#allocation3 + $0x128] sm:$0xff] %v3158
      %3191 = vst [vmem:[#allocation3 + $0x130] sm:$0xff] %v3159
      %3192 = vst [vmem:[#allocation3 + $0x138] sm:$0xff] %v3160
      %3193 = vst [vmem:[#allocation3 + $0x140] sm:$0xff] %v3161
      %3194 = vst [vmem:[#allocation3 + $0x148] sm:$0xff] %v3162
      %3195 = vst [vmem:[#allocation3 + $0x150] sm:$0xff] %v3163
      %3196 = vst [vmem:[#allocation3 + $0x158] sm:$0xff] %v3164
      %3197 = vst [vmem:[#allocation3 + $0x160] sm:$0xff] %v3165
      %3198 = vst [vmem:[#allocation3 + $0x168] sm:$0xff] %v3166
      %3199 = vst [vmem:[#allocation3 + $0x170] sm:$0xff] %v3167
      %3200 = vst [vmem:[#allocation3 + $0x178] sm:$0xff] %v3168
      %v3201 = vld [vmem:[#allocation4] sm:$0xff]
      %v3202 = vld [vmem:[#allocation4 + $0x8] sm:$0xff]
      %v3203 = vld [vmem:[#allocation4 + $0x10] sm:$0xff]
      %v3204 = vld [vmem:[#allocation4 + $0x18] sm:$0xff]
      %v3205 = vld [vmem:[#allocation4 + $0x20] sm:$0xff]
      %v3206 = vld [vmem:[#allocation4 + $0x28] sm:$0xff]
      %v3207 = vld [vmem:[#allocation4 + $0x30] sm:$0xff]
      %v3208 = vld [vmem:[#allocation4 + $0x38] sm:$0xff]
      %v3209 = vld [vmem:[#allocation4 + $0x40] sm:$0xff]
      %v3210 = vld [vmem:[#allocation4 + $0x50] sm:$0xff]
      %v3211 = vld [vmem:[#allocation4 + $0x58] sm:$0xff]
      %v3212 = vld [vmem:[#allocation4 + $0x60] sm:$0xff]
      %v3213 = vld [vmem:[#allocation4 + $0x68] sm:$0xff]
      %v3214 = vld [vmem:[#allocation4 + $0x70] sm:$0xff]
      %v3215 = vld [vmem:[#allocation4 + $0x78] sm:$0xff]
      %v3216 = vld [vmem:[#allocation4 + $0x80] sm:$0xff]
      %v3217 = vld [vmem:[#allocation4 + $0x88] sm:$0xff]
      %v3218 = vld [vmem:[#allocation4 + $0x90] sm:$0xff]
      %3237 = vrot.lane.b32.xlu0 %v3201, 2
      %v3238 = vpop.permute.xlu0 %3237
      %3239 = vrot.lane.b32.xlu0 %v3202, 2
      %v3240 = vpop.permute.xlu0 %3239
      %3241 = vrot.lane.b32.xlu0 %v3203, 2
      %v3242 = vpop.permute.xlu0 %3241
      %3243 = vrot.lane.b32.xlu0 %v3204, 2
      %v3244 = vpop.permute.xlu0 %3243
      %3245 = vrot.lane.b32.xlu0 %v3205, 2
      %v3246 = vpop.permute.xlu0 %3245
      %3247 = vrot.lane.b32.xlu0 %v3206, 2
      %v3248 = vpop.permute.xlu0 %3247
      %3249 = vrot.lane.b32.xlu0 %v3207, 2
      %v3250 = vpop.permute.xlu0 %3249
      %3251 = vrot.lane.b32.xlu0 %v3208, 2
      %v3252 = vpop.permute.xlu0 %3251
      %3253 = vrot.lane.b32.xlu0 %v3209, 2
      %v3254 = vpop.permute.xlu0 %3253
      %3255 = vrot.lane.b32.xlu0 %v3210, 2
      %v3256 = vpop.permute.xlu0 %3255
      %3257 = vrot.lane.b32.xlu0 %v3211, 2
      %v3258 = vpop.permute.xlu0 %3257
      %3259 = vrot.lane.b32.xlu0 %v3212, 2
      %v3260 = vpop.permute.xlu0 %3259
      %3261 = vrot.lane.b32.xlu0 %v3213, 2
      %v3262 = vpop.permute.xlu0 %3261
      %3263 = vrot.lane.b32.xlu0 %v3214, 2
      %v3264 = vpop.permute.xlu0 %3263
      %3265 = vrot.lane.b32.xlu0 %v3215, 2
      %v3266 = vpop.permute.xlu0 %3265
      %3267 = vrot.lane.b32.xlu0 %v3216, 2
      %v3268 = vpop.permute.xlu0 %3267
      %3269 = vrot.lane.b32.xlu0 %v3217, 2
      %v3270 = vpop.permute.xlu0 %3269
      %3271 = vrot.lane.b32.xlu0 %v3218, 2
      %v3272 = vpop.permute.xlu0 %3271
      %vm3273 = vcmask 15360
      %v3274 = vsel %vm3273, %v3238, %v3240
      %v3275 = vsel %vm3273, %v3240, %v3242
      %v3276 = vsel %vm3273, %v3242, %v3244
      %v3277 = vsel %vm3273, %v3244, %v3246
      %v3278 = vsel %vm3273, %v3246, %v3248
      %v3279 = vsel %vm3273, %v3248, %v3250
      %v3280 = vsel %vm3273, %v3250, %v3252
      %v3281 = vsel %vm3273, %v3252, %v3254
      %v3282 = vsel %vm3273, %v3256, %v3258
      %v3283 = vsel %vm3273, %v3258, %v3260
      %v3284 = vsel %vm3273, %v3260, %v3262
      %v3285 = vsel %vm3273, %v3262, %v3264
      %v3286 = vsel %vm3273, %v3264, %v3266
      %v3287 = vsel %vm3273, %v3266, %v3268
      %v3288 = vsel %vm3273, %v3268, %v3270
      %v3289 = vsel %vm3273, %v3270, %v3272
      %3306 = vst [vmem:[#allocation3 + $0x180] sm:$0xff] %v3274
      %3307 = vst [vmem:[#allocation3 + $0x188] sm:$0xff] %v3275
      %3308 = vst [vmem:[#allocation3 + $0x190] sm:$0xff] %v3276
      %3309 = vst [vmem:[#allocation3 + $0x198] sm:$0xff] %v3277
      %3310 = vst [vmem:[#allocation3 + $0x1a0] sm:$0xff] %v3278
      %3311 = vst [vmem:[#allocation3 + $0x1a8] sm:$0xff] %v3279
      %3312 = vst [vmem:[#allocation3 + $0x1b0] sm:$0xff] %v3280
      %3313 = vst [vmem:[#allocation3 + $0x1b8] sm:$0xff] %v3281
      %3314 = vst [vmem:[#allocation3 + $0x1c0] sm:$0xff] %v3282
      %3315 = vst [vmem:[#allocation3 + $0x1c8] sm:$0xff] %v3283
      %3316 = vst [vmem:[#allocation3 + $0x1d0] sm:$0xff] %v3284
      %3317 = vst [vmem:[#allocation3 + $0x1d8] sm:$0xff] %v3285
      %3318 = vst [vmem:[#allocation3 + $0x1e0] sm:$0xff] %v3286
      %3319 = vst [vmem:[#allocation3 + $0x1e8] sm:$0xff] %v3287
      %3320 = vst [vmem:[#allocation3 + $0x1f0] sm:$0xff] %v3288
      %3321 = vst [vmem:[#allocation3 + $0x1f8] sm:$0xff] %v3289
      %v3322 = vld [vmem:[#allocation4 + $0x8] sm:$0xff]
      %v3323 = vld [vmem:[#allocation4 + $0x10] sm:$0xff]
      %v3324 = vld [vmem:[#allocation4 + $0x18] sm:$0xff]
      %v3325 = vld [vmem:[#allocation4 + $0x20] sm:$0xff]
      %v3326 = vld [vmem:[#allocation4 + $0x28] sm:$0xff]
      %v3327 = vld [vmem:[#allocation4 + $0x30] sm:$0xff]
      %v3328 = vld [vmem:[#allocation4 + $0x38] sm:$0xff]
      %v3329 = vld [vmem:[#allocation4 + $0x40] sm:$0xff]
      %v3330 = vld [vmem:[#allocation4 + $0x58] sm:$0xff]
      %v3331 = vld [vmem:[#allocation4 + $0x60] sm:$0xff]
      %v3332 = vld [vmem:[#allocation4 + $0x68] sm:$0xff]
      %v3333 = vld [vmem:[#allocation4 + $0x70] sm:$0xff]
      %v3334 = vld [vmem:[#allocation4 + $0x78] sm:$0xff]
      %v3335 = vld [vmem:[#allocation4 + $0x80] sm:$0xff]
      %v3336 = vld [vmem:[#allocation4 + $0x88] sm:$0xff]
      %v3337 = vld [vmem:[#allocation4 + $0x90] sm:$0xff]
      %3338 = vst [vmem:[#allocation3 + $0x200] sm:$0xff] %v3322
      %3339 = vst [vmem:[#allocation3 + $0x208] sm:$0xff] %v3323
      %3340 = vst [vmem:[#allocation3 + $0x210] sm:$0xff] %v3324
      %3341 = vst [vmem:[#allocation3 + $0x218] sm:$0xff] %v3325
      %3342 = vst [vmem:[#allocation3 + $0x220] sm:$0xff] %v3326
      %3343 = vst [vmem:[#allocation3 + $0x228] sm:$0xff] %v3327
      %3344 = vst [vmem:[#allocation3 + $0x230] sm:$0xff] %v3328
      %3345 = vst [vmem:[#allocation3 + $0x238] sm:$0xff] %v3329
      %3346 = vst [vmem:[#allocation3 + $0x240] sm:$0xff] %v3330
      %3347 = vst [vmem:[#allocation3 + $0x248] sm:$0xff] %v3331
      %3348 = vst [vmem:[#allocation3 + $0x250] sm:$0xff] %v3332
      %3349 = vst [vmem:[#allocation3 + $0x258] sm:$0xff] %v3333
      %3350 = vst [vmem:[#allocation3 + $0x260] sm:$0xff] %v3334
      %3351 = vst [vmem:[#allocation3 + $0x268] sm:$0xff] %v3335
      %3352 = vst [vmem:[#allocation3 + $0x270] sm:$0xff] %v3336
      %3353 = vst [vmem:[#allocation3 + $0x278] sm:$0xff] %v3337
      %v3354 = vld [vmem:[#allocation4 + $0x8] sm:$0xff]
      %v3355 = vld [vmem:[#allocation4 + $0x10] sm:$0xff]
      %v3356 = vld [vmem:[#allocation4 + $0x18] sm:$0xff]
      %v3357 = vld [vmem:[#allocation4 + $0x20] sm:$0xff]
      %v3358 = vld [vmem:[#allocation4 + $0x28] sm:$0xff]
      %v3359 = vld [vmem:[#allocation4 + $0x30] sm:$0xff]
      %v3360 = vld [vmem:[#allocation4 + $0x38] sm:$0xff]
      %v3361 = vld [vmem:[#allocation4 + $0x40] sm:$0xff]
      %v3362 = vld [vmem:[#allocation4 + $0x48] sm:$0xff]
      %v3363 = vld [vmem:[#allocation4 + $0x58] sm:$0xff]
      %v3364 = vld [vmem:[#allocation4 + $0x60] sm:$0xff]
      %v3365 = vld [vmem:[#allocation4 + $0x68] sm:$0xff]
      %v3366 = vld [vmem:[#allocation4 + $0x70] sm:$0xff]
      %v3367 = vld [vmem:[#allocation4 + $0x78] sm:$0xff]
      %v3368 = vld [vmem:[#allocation4 + $0x80] sm:$0xff]
      %v3369 = vld [vmem:[#allocation4 + $0x88] sm:$0xff]
      %v3370 = vld [vmem:[#allocation4 + $0x90] sm:$0xff]
      %v3371 = vld [vmem:[#allocation4 + $0x98] sm:$0xff]
      %3390 = vrot.lane.b32.xlu0 %v3354, 126
      %v3391 = vpop.permute.xlu0 %3390
      %3392 = vrot.lane.b32.xlu0 %v3355, 126
      %v3393 = vpop.permute.xlu0 %3392
      %3394 = vrot.lane.b32.xlu0 %v3356, 126
      %v3395 = vpop.permute.xlu0 %3394
      %3396 = vrot.lane.b32.xlu0 %v3357, 126
      %v3397 = vpop.permute.xlu0 %3396
      %3398 = vrot.lane.b32.xlu0 %v3358, 126
      %v3399 = vpop.permute.xlu0 %3398
      %3400 = vrot.lane.b32.xlu0 %v3359, 126
      %v3401 = vpop.permute.xlu0 %3400
      %3402 = vrot.lane.b32.xlu0 %v3360, 126
      %v3403 = vpop.permute.xlu0 %3402
      %3404 = vrot.lane.b32.xlu0 %v3361, 126
      %v3405 = vpop.permute.xlu0 %3404
      %3406 = vrot.lane.b32.xlu0 %v3362, 126
      %v3407 = vpop.permute.xlu0 %3406
      %3408 = vrot.lane.b32.xlu0 %v3363, 126
      %v3409 = vpop.permute.xlu0 %3408
      %3410 = vrot.lane.b32.xlu0 %v3364, 126
      %v3411 = vpop.permute.xlu0 %3410
      %3412 = vrot.lane.b32.xlu0 %v3365, 126
      %v3413 = vpop.permute.xlu0 %3412
      %3414 = vrot.lane.b32.xlu0 %v3366, 126
      %v3415 = vpop.permute.xlu0 %3414
      %3416 = vrot.lane.b32.xlu0 %v3367, 126
      %v3417 = vpop.permute.xlu0 %3416
      %3418 = vrot.lane.b32.xlu0 %v3368, 126
      %v3419 = vpop.permute.xlu0 %3418
      %3420 = vrot.lane.b32.xlu0 %v3369, 126
      %v3421 = vpop.permute.xlu0 %3420
      %3422 = vrot.lane.b32.xlu0 %v3370, 126
      %v3423 = vpop.permute.xlu0 %3422
      %3424 = vrot.lane.b32.xlu0 %v3371, 126
      %v3425 = vpop.permute.xlu0 %3424
      %v3426 = vsel %vm448, %v3391, %v3393
      %v3427 = vsel %vm448, %v3393, %v3395
      %v3428 = vsel %vm448, %v3395, %v3397
      %v3429 = vsel %vm448, %v3397, %v3399
      %v3430 = vsel %vm448, %v3399, %v3401
      %v3431 = vsel %vm448, %v3401, %v3403
      %v3432 = vsel %vm448, %v3403, %v3405
      %v3433 = vsel %vm448, %v3405, %v3407
      %v3434 = vsel %vm448, %v3409, %v3411
      %v3435 = vsel %vm448, %v3411, %v3413
      %v3436 = vsel %vm448, %v3413, %v3415
      %v3437 = vsel %vm448, %v3415, %v3417
      %v3438 = vsel %vm448, %v3417, %v3419
      %v3439 = vsel %vm448, %v3419, %v3421
      %v3440 = vsel %vm448, %v3421, %v3423
      %v3441 = vsel %vm448, %v3423, %v3425
      %3458 = vst [vmem:[#allocation3 + $0x280] sm:$0xff] %v3426
      %3459 = vst [vmem:[#allocation3 + $0x288] sm:$0xff] %v3427
      %3460 = vst [vmem:[#allocation3 + $0x290] sm:$0xff] %v3428
      %3461 = vst [vmem:[#allocation3 + $0x298] sm:$0xff] %v3429
      %3462 = vst [vmem:[#allocation3 + $0x2a0] sm:$0xff] %v3430
      %3463 = vst [vmem:[#allocation3 + $0x2a8] sm:$0xff] %v3431
      %3464 = vst [vmem:[#allocation3 + $0x2b0] sm:$0xff] %v3432
      %3465 = vst [vmem:[#allocation3 + $0x2b8] sm:$0xff] %v3433
      %3466 = vst [vmem:[#allocation3 + $0x2c0] sm:$0xff] %v3434
      %3467 = vst [vmem:[#allocation3 + $0x2c8] sm:$0xff] %v3435
      %3468 = vst [vmem:[#allocation3 + $0x2d0] sm:$0xff] %v3436
      %3469 = vst [vmem:[#allocation3 + $0x2d8] sm:$0xff] %v3437
      %3470 = vst [vmem:[#allocation3 + $0x2e0] sm:$0xff] %v3438
      %3471 = vst [vmem:[#allocation3 + $0x2e8] sm:$0xff] %v3439
      %3472 = vst [vmem:[#allocation3 + $0x2f0] sm:$0xff] %v3440
      %3473 = vst [vmem:[#allocation3 + $0x2f8] sm:$0xff] %v3441
      %v3474 = vld [vmem:[#allocation4 + $0x8] sm:$0xff]
      %v3475 = vld [vmem:[#allocation4 + $0x10] sm:$0xff]
      %v3476 = vld [vmem:[#allocation4 + $0x18] sm:$0xff]
      %v3477 = vld [vmem:[#allocation4 + $0x20] sm:$0xff]
      %v3478 = vld [vmem:[#allocation4 + $0x28] sm:$0xff]
      %v3479 = vld [vmem:[#allocation4 + $0x30] sm:$0xff]
      %v3480 = vld [vmem:[#allocation4 + $0x38] sm:$0xff]
      %v3481 = vld [vmem:[#allocation4 + $0x40] sm:$0xff]
      %v3482 = vld [vmem:[#allocation4 + $0x48] sm:$0xff]
      %v3483 = vld [vmem:[#allocation4 + $0x58] sm:$0xff]
      %v3484 = vld [vmem:[#allocation4 + $0x60] sm:$0xff]
      %v3485 = vld [vmem:[#allocation4 + $0x68] sm:$0xff]
      %v3486 = vld [vmem:[#allocation4 + $0x70] sm:$0xff]
      %v3487 = vld [vmem:[#allocation4 + $0x78] sm:$0xff]
      %v3488 = vld [vmem:[#allocation4 + $0x80] sm:$0xff]
      %v3489 = vld [vmem:[#allocation4 + $0x88] sm:$0xff]
      %v3490 = vld [vmem:[#allocation4 + $0x90] sm:$0xff]
      %v3491 = vld [vmem:[#allocation4 + $0x98] sm:$0xff]
      %3510 = vrot.lane.b32.xlu0 %v3474, 66
      %v3511 = vpop.permute.xlu0 %3510
      %3512 = vrot.lane.b32.xlu0 %v3475, 66
      %v3513 = vpop.permute.xlu0 %3512
      %3514 = vrot.lane.b32.xlu0 %v3476, 66
      %v3515 = vpop.permute.xlu0 %3514
      %3516 = vrot.lane.b32.xlu0 %v3477, 66
      %v3517 = vpop.permute.xlu0 %3516
      %3518 = vrot.lane.b32.xlu0 %v3478, 66
      %v3519 = vpop.permute.xlu0 %3518
      %3520 = vrot.lane.b32.xlu0 %v3479, 66
      %v3521 = vpop.permute.xlu0 %3520
      %3522 = vrot.lane.b32.xlu0 %v3480, 66
      %v3523 = vpop.permute.xlu0 %3522
      %3524 = vrot.lane.b32.xlu0 %v3481, 66
      %v3525 = vpop.permute.xlu0 %3524
      %3526 = vrot.lane.b32.xlu0 %v3482, 66
      %v3527 = vpop.permute.xlu0 %3526
      %3528 = vrot.lane.b32.xlu0 %v3483, 66
      %v3529 = vpop.permute.xlu0 %3528
      %3530 = vrot.lane.b32.xlu0 %v3484, 66
      %v3531 = vpop.permute.xlu0 %3530
      %3532 = vrot.lane.b32.xlu0 %v3485, 66
      %v3533 = vpop.permute.xlu0 %3532
      %3534 = vrot.lane.b32.xlu0 %v3486, 66
      %v3535 = vpop.permute.xlu0 %3534
      %3536 = vrot.lane.b32.xlu0 %v3487, 66
      %v3537 = vpop.permute.xlu0 %3536
      %3538 = vrot.lane.b32.xlu0 %v3488, 66
      %v3539 = vpop.permute.xlu0 %3538
      %3540 = vrot.lane.b32.xlu0 %v3489, 66
      %v3541 = vpop.permute.xlu0 %3540
      %3542 = vrot.lane.b32.xlu0 %v3490, 66
      %v3543 = vpop.permute.xlu0 %3542
      %3544 = vrot.lane.b32.xlu0 %v3491, 66
      %v3545 = vpop.permute.xlu0 %3544
      %v3546 = vsel %vm2912, %v3511, %v3513
      %v3547 = vsel %vm2912, %v3513, %v3515
      %v3548 = vsel %vm2912, %v3515, %v3517
      %v3549 = vsel %vm2912, %v3517, %v3519
      %v3550 = vsel %vm2912, %v3519, %v3521
      %v3551 = vsel %vm2912, %v3521, %v3523
      %v3552 = vsel %vm2912, %v3523, %v3525
      %v3553 = vsel %vm2912, %v3525, %v3527
      %v3554 = vsel %vm2912, %v3529, %v3531
      %v3555 = vsel %vm2912, %v3531, %v3533
      %v3556 = vsel %vm2912, %v3533, %v3535
      %v3557 = vsel %vm2912, %v3535, %v3537
      %v3558 = vsel %vm2912, %v3537, %v3539
      %v3559 = vsel %vm2912, %v3539, %v3541
      %v3560 = vsel %vm2912, %v3541, %v3543
      %v3561 = vsel %vm2912, %v3543, %v3545
      %3578 = vst [vmem:[#allocation3 + $0x300] sm:$0xff] %v3546
      %3579 = vst [vmem:[#allocation3 + $0x308] sm:$0xff] %v3547
      %3580 = vst [vmem:[#allocation3 + $0x310] sm:$0xff] %v3548
      %3581 = vst [vmem:[#allocation3 + $0x318] sm:$0xff] %v3549
      %3582 = vst [vmem:[#allocation3 + $0x320] sm:$0xff] %v3550
      %3583 = vst [vmem:[#allocation3 + $0x328] sm:$0xff] %v3551
      %3584 = vst [vmem:[#allocation3 + $0x330] sm:$0xff] %v3552
      %3585 = vst [vmem:[#allocation3 + $0x338] sm:$0xff] %v3553
      %3586 = vst [vmem:[#allocation3 + $0x340] sm:$0xff] %v3554
      %3587 = vst [vmem:[#allocation3 + $0x348] sm:$0xff] %v3555
      %3588 = vst [vmem:[#allocation3 + $0x350] sm:$0xff] %v3556
      %3589 = vst [vmem:[#allocation3 + $0x358] sm:$0xff] %v3557
      %3590 = vst [vmem:[#allocation3 + $0x360] sm:$0xff] %v3558
      %3591 = vst [vmem:[#allocation3 + $0x368] sm:$0xff] %v3559
      %3592 = vst [vmem:[#allocation3 + $0x370] sm:$0xff] %v3560
      %3593 = vst [vmem:[#allocation3 + $0x378] sm:$0xff] %v3561
      %v3594 = vld [vmem:[#allocation4 + $0x8] sm:$0xff]
      %v3595 = vld [vmem:[#allocation4 + $0x10] sm:$0xff]
      %v3596 = vld [vmem:[#allocation4 + $0x18] sm:$0xff]
      %v3597 = vld [vmem:[#allocation4 + $0x20] sm:$0xff]
      %v3598 = vld [vmem:[#allocation4 + $0x28] sm:$0xff]
      %v3599 = vld [vmem:[#allocation4 + $0x30] sm:$0xff]
      %v3600 = vld [vmem:[#allocation4 + $0x38] sm:$0xff]
      %v3601 = vld [vmem:[#allocation4 + $0x40] sm:$0xff]
      %v3602 = vld [vmem:[#allocation4 + $0x48] sm:$0xff]
      %v3603 = vld [vmem:[#allocation4 + $0x58] sm:$0xff]
      %v3604 = vld [vmem:[#allocation4 + $0x60] sm:$0xff]
      %v3605 = vld [vmem:[#allocation4 + $0x68] sm:$0xff]
      %v3606 = vld [vmem:[#allocation4 + $0x70] sm:$0xff]
      %v3607 = vld [vmem:[#allocation4 + $0x78] sm:$0xff]
      %v3608 = vld [vmem:[#allocation4 + $0x80] sm:$0xff]
      %v3609 = vld [vmem:[#allocation4 + $0x88] sm:$0xff]
      %v3610 = vld [vmem:[#allocation4 + $0x90] sm:$0xff]
      %v3611 = vld [vmem:[#allocation4 + $0x98] sm:$0xff]
      %3630 = vrot.lane.b32.xlu0 %v3594, 64
      %v3631 = vpop.permute.xlu0 %3630
      %3632 = vrot.lane.b32.xlu0 %v3595, 64
      %v3633 = vpop.permute.xlu0 %3632
      %3634 = vrot.lane.b32.xlu0 %v3596, 64
      %v3635 = vpop.permute.xlu0 %3634
      %3636 = vrot.lane.b32.xlu0 %v3597, 64
      %v3637 = vpop.permute.xlu0 %3636
      %3638 = vrot.lane.b32.xlu0 %v3598, 64
      %v3639 = vpop.permute.xlu0 %3638
      %3640 = vrot.lane.b32.xlu0 %v3599, 64
      %v3641 = vpop.permute.xlu0 %3640
      %3642 = vrot.lane.b32.xlu0 %v3600, 64
      %v3643 = vpop.permute.xlu0 %3642
      %3644 = vrot.lane.b32.xlu0 %v3601, 64
      %v3645 = vpop.permute.xlu0 %3644
      %3646 = vrot.lane.b32.xlu0 %v3602, 64
      %v3647 = vpop.permute.xlu0 %3646
      %3648 = vrot.lane.b32.xlu0 %v3603, 64
      %v3649 = vpop.permute.xlu0 %3648
      %3650 = vrot.lane.b32.xlu0 %v3604, 64
      %v3651 = vpop.permute.xlu0 %3650
      %3652 = vrot.lane.b32.xlu0 %v3605, 64
      %v3653 = vpop.permute.xlu0 %3652
      %3654 = vrot.lane.b32.xlu0 %v3606, 64
      %v3655 = vpop.permute.xlu0 %3654
      %3656 = vrot.lane.b32.xlu0 %v3607, 64
      %v3657 = vpop.permute.xlu0 %3656
      %3658 = vrot.lane.b32.xlu0 %v3608, 64
      %v3659 = vpop.permute.xlu0 %3658
      %3660 = vrot.lane.b32.xlu0 %v3609, 64
      %v3661 = vpop.permute.xlu0 %3660
      %3662 = vrot.lane.b32.xlu0 %v3610, 64
      %v3663 = vpop.permute.xlu0 %3662
      %3664 = vrot.lane.b32.xlu0 %v3611, 64
      %v3665 = vpop.permute.xlu0 %3664
      %v3666 = vsel %vm792, %v3631, %v3633
      %v3667 = vsel %vm792, %v3633, %v3635
      %v3668 = vsel %vm792, %v3635, %v3637
      %v3669 = vsel %vm792, %v3637, %v3639
      %v3670 = vsel %vm792, %v3639, %v3641
      %v3671 = vsel %vm792, %v3641, %v3643
      %v3672 = vsel %vm792, %v3643, %v3645
      %v3673 = vsel %vm792, %v3645, %v3647
      %v3674 = vsel %vm792, %v3649, %v3651
      %v3675 = vsel %vm792, %v3651, %v3653
      %v3676 = vsel %vm792, %v3653, %v3655
      %v3677 = vsel %vm792, %v3655, %v3657
      %v3678 = vsel %vm792, %v3657, %v3659
      %v3679 = vsel %vm792, %v3659, %v3661
      %v3680 = vsel %vm792, %v3661, %v3663
      %v3681 = vsel %vm792, %v3663, %v3665
      %3698 = vst [vmem:[#allocation3 + $0x380] sm:$0xff] %v3666
      %3699 = vst [vmem:[#allocation3 + $0x388] sm:$0xff] %v3667
      %3700 = vst [vmem:[#allocation3 + $0x390] sm:$0xff] %v3668
      %3701 = vst [vmem:[#allocation3 + $0x398] sm:$0xff] %v3669
      %3702 = vst [vmem:[#allocation3 + $0x3a0] sm:$0xff] %v3670
      %3703 = vst [vmem:[#allocation3 + $0x3a8] sm:$0xff] %v3671
      %3704 = vst [vmem:[#allocation3 + $0x3b0] sm:$0xff] %v3672
      %3705 = vst [vmem:[#allocation3 + $0x3b8] sm:$0xff] %v3673
      %3706 = vst [vmem:[#allocation3 + $0x3c0] sm:$0xff] %v3674
      %3707 = vst [vmem:[#allocation3 + $0x3c8] sm:$0xff] %v3675
      %3708 = vst [vmem:[#allocation3 + $0x3d0] sm:$0xff] %v3676
      %3709 = vst [vmem:[#allocation3 + $0x3d8] sm:$0xff] %v3677
      %3710 = vst [vmem:[#allocation3 + $0x3e0] sm:$0xff] %v3678
      %3711 = vst [vmem:[#allocation3 + $0x3e8] sm:$0xff] %v3679
      %3712 = vst [vmem:[#allocation3 + $0x3f0] sm:$0xff] %v3680
      %3713 = vst [vmem:[#allocation3 + $0x3f8] sm:$0xff] %v3681
      %v3714 = vld [vmem:[#allocation4 + $0x8] sm:$0xff]
      %v3715 = vld [vmem:[#allocation4 + $0x10] sm:$0xff]
      %v3716 = vld [vmem:[#allocation4 + $0x18] sm:$0xff]
      %v3717 = vld [vmem:[#allocation4 + $0x20] sm:$0xff]
      %v3718 = vld [vmem:[#allocation4 + $0x28] sm:$0xff]
      %v3719 = vld [vmem:[#allocation4 + $0x30] sm:$0xff]
      %v3720 = vld [vmem:[#allocation4 + $0x38] sm:$0xff]
      %v3721 = vld [vmem:[#allocation4 + $0x40] sm:$0xff]
      %v3722 = vld [vmem:[#allocation4 + $0x48] sm:$0xff]
      %v3723 = vld [vmem:[#allocation4 + $0x58] sm:$0xff]
      %v3724 = vld [vmem:[#allocation4 + $0x60] sm:$0xff]
      %v3725 = vld [vmem:[#allocation4 + $0x68] sm:$0xff]
      %v3726 = vld [vmem:[#allocation4 + $0x70] sm:$0xff]
      %v3727 = vld [vmem:[#allocation4 + $0x78] sm:$0xff]
      %v3728 = vld [vmem:[#allocation4 + $0x80] sm:$0xff]
      %v3729 = vld [vmem:[#allocation4 + $0x88] sm:$0xff]
      %v3730 = vld [vmem:[#allocation4 + $0x90] sm:$0xff]
      %v3731 = vld [vmem:[#allocation4 + $0x98] sm:$0xff]
      %3750 = vrot.lane.b32.xlu0 %v3714, 62
      %v3751 = vpop.permute.xlu0 %3750
      %3752 = vrot.lane.b32.xlu0 %v3715, 62
      %v3753 = vpop.permute.xlu0 %3752
      %3754 = vrot.lane.b32.xlu0 %v3716, 62
      %v3755 = vpop.permute.xlu0 %3754
      %3756 = vrot.lane.b32.xlu0 %v3717, 62
      %v3757 = vpop.permute.xlu0 %3756
      %3758 = vrot.lane.b32.xlu0 %v3718, 62
      %v3759 = vpop.permute.xlu0 %3758
      %3760 = vrot.lane.b32.xlu0 %v3719, 62
      %v3761 = vpop.permute.xlu0 %3760
      %3762 = vrot.lane.b32.xlu0 %v3720, 62
      %v3763 = vpop.permute.xlu0 %3762
      %3764 = vrot.lane.b32.xlu0 %v3721, 62
      %v3765 = vpop.permute.xlu0 %3764
      %3766 = vrot.lane.b32.xlu0 %v3722, 62
      %v3767 = vpop.permute.xlu0 %3766
      %3768 = vrot.lane.b32.xlu0 %v3723, 62
      %v3769 = vpop.permute.xlu0 %3768
      %3770 = vrot.lane.b32.xlu0 %v3724, 62
      %v3771 = vpop.permute.xlu0 %3770
      %3772 = vrot.lane.b32.xlu0 %v3725, 62
      %v3773 = vpop.permute.xlu0 %3772
      %3774 = vrot.lane.b32.xlu0 %v3726, 62
      %v3775 = vpop.permute.xlu0 %3774
      %3776 = vrot.lane.b32.xlu0 %v3727, 62
      %v3777 = vpop.permute.xlu0 %3776
      %3778 = vrot.lane.b32.xlu0 %v3728, 62
      %v3779 = vpop.permute.xlu0 %3778
      %3780 = vrot.lane.b32.xlu0 %v3729, 62
      %v3781 = vpop.permute.xlu0 %3780
      %3782 = vrot.lane.b32.xlu0 %v3730, 62
      %v3783 = vpop.permute.xlu0 %3782
      %3784 = vrot.lane.b32.xlu0 %v3731, 62
      %v3785 = vpop.permute.xlu0 %3784
      %v3786 = vsel %vm878, %v3751, %v3753
      %v3787 = vsel %vm878, %v3753, %v3755
      %v3788 = vsel %vm878, %v3755, %v3757
      %v3789 = vsel %vm878, %v3757, %v3759
      %v3790 = vsel %vm878, %v3759, %v3761
      %v3791 = vsel %vm878, %v3761, %v3763
      %v3792 = vsel %vm878, %v3763, %v3765
      %v3793 = vsel %vm878, %v3765, %v3767
      %v3794 = vsel %vm878, %v3769, %v3771
      %v3795 = vsel %vm878, %v3771, %v3773
      %v3796 = vsel %vm878, %v3773, %v3775
      %v3797 = vsel %vm878, %v3775, %v3777
      %v3798 = vsel %vm878, %v3777, %v3779
      %v3799 = vsel %vm878, %v3779, %v3781
      %v3800 = vsel %vm878, %v3781, %v3783
      %v3801 = vsel %vm878, %v3783, %v3785
      %3818 = vst [vmem:[#allocation3 + $0x400] sm:$0xff] %v3786
      %3819 = vst [vmem:[#allocation3 + $0x408] sm:$0xff] %v3787
      %3820 = vst [vmem:[#allocation3 + $0x410] sm:$0xff] %v3788
      %3821 = vst [vmem:[#allocation3 + $0x418] sm:$0xff] %v3789
      %3822 = vst [vmem:[#allocation3 + $0x420] sm:$0xff] %v3790
      %3823 = vst [vmem:[#allocation3 + $0x428] sm:$0xff] %v3791
      %3824 = vst [vmem:[#allocation3 + $0x430] sm:$0xff] %v3792
      %3825 = vst [vmem:[#allocation3 + $0x438] sm:$0xff] %v3793
      %3826 = vst [vmem:[#allocation3 + $0x440] sm:$0xff] %v3794
      %3827 = vst [vmem:[#allocation3 + $0x448] sm:$0xff] %v3795
      %3828 = vst [vmem:[#allocation3 + $0x450] sm:$0xff] %v3796
      %3829 = vst [vmem:[#allocation3 + $0x458] sm:$0xff] %v3797
      %3830 = vst [vmem:[#allocation3 + $0x460] sm:$0xff] %v3798
      %3831 = vst [vmem:[#allocation3 + $0x468] sm:$0xff] %v3799
      %3832 = vst [vmem:[#allocation3 + $0x470] sm:$0xff] %v3800
      %3833 = vst [vmem:[#allocation3 + $0x478] sm:$0xff] %v3801
      %v3834 = vld [vmem:[#allocation3] sm:$0xff]
      %v3835 = vld [vmem:[#allocation3 + $0x8] sm:$0xff]
      %v3836 = vld [vmem:[#allocation3 + $0x10] sm:$0xff]
      %v3837 = vld [vmem:[#allocation3 + $0x18] sm:$0xff]
      %v3838 = vld [vmem:[#allocation3 + $0x20] sm:$0xff]
      %v3839 = vld [vmem:[#allocation3 + $0x28] sm:$0xff]
      %v3840 = vld [vmem:[#allocation3 + $0x30] sm:$0xff]
      %v3841 = vld [vmem:[#allocation3 + $0x38] sm:$0xff]
      %v3842 = vld [vmem:[#allocation3 + $0x40] sm:$0xff]
      %v3843 = vld [vmem:[#allocation3 + $0x48] sm:$0xff]
      %v3844 = vld [vmem:[#allocation3 + $0x50] sm:$0xff]
      %v3845 = vld [vmem:[#allocation3 + $0x58] sm:$0xff]
      %v3846 = vld [vmem:[#allocation3 + $0x60] sm:$0xff]
      %v3847 = vld [vmem:[#allocation3 + $0x68] sm:$0xff]
      %v3848 = vld [vmem:[#allocation3 + $0x70] sm:$0xff]
      %v3849 = vld [vmem:[#allocation3 + $0x78] sm:$0xff]
      %v3850 = vld [vmem:[#allocation3 + $0x80] sm:$0xff]
      %v3851 = vld [vmem:[#allocation3 + $0x88] sm:$0xff]
      %v3852 = vld [vmem:[#allocation3 + $0x90] sm:$0xff]
      %v3853 = vld [vmem:[#allocation3 + $0x98] sm:$0xff]
      %v3854 = vld [vmem:[#allocation3 + $0xa0] sm:$0xff]
      %v3855 = vld [vmem:[#allocation3 + $0xa8] sm:$0xff]
      %v3856 = vld [vmem:[#allocation3 + $0xb0] sm:$0xff]
      %v3857 = vld [vmem:[#allocation3 + $0xb8] sm:$0xff]
      %v3858 = vld [vmem:[#allocation3 + $0xc0] sm:$0xff]
      %v3859 = vld [vmem:[#allocation3 + $0xc8] sm:$0xff]
      %v3860 = vld [vmem:[#allocation3 + $0xd0] sm:$0xff]
      %v3861 = vld [vmem:[#allocation3 + $0xd8] sm:$0xff]
      %v3862 = vld [vmem:[#allocation3 + $0xe0] sm:$0xff]
      %v3863 = vld [vmem:[#allocation3 + $0xe8] sm:$0xff]
      %v3864 = vld [vmem:[#allocation3 + $0xf0] sm:$0xff]
      %v3865 = vld [vmem:[#allocation3 + $0xf8] sm:$0xff]
      %v3866 = vld [vmem:[#allocation3 + $0x100] sm:$0xff]
      %v3867 = vld [vmem:[#allocation3 + $0x108] sm:$0xff]
      %v3868 = vld [vmem:[#allocation3 + $0x110] sm:$0xff]
      %v3869 = vld [vmem:[#allocation3 + $0x118] sm:$0xff]
      %v3870 = vld [vmem:[#allocation3 + $0x120] sm:$0xff]
      %v3871 = vld [vmem:[#allocation3 + $0x128] sm:$0xff]
      %v3872 = vld [vmem:[#allocation3 + $0x130] sm:$0xff]
      %v3873 = vld [vmem:[#allocation3 + $0x138] sm:$0xff]
      %v3874 = vld [vmem:[#allocation3 + $0x140] sm:$0xff]
      %v3875 = vld [vmem:[#allocation3 + $0x148] sm:$0xff]
      %v3876 = vld [vmem:[#allocation3 + $0x150] sm:$0xff]
      %v3877 = vld [vmem:[#allocation3 + $0x158] sm:$0xff]
      %v3878 = vld [vmem:[#allocation3 + $0x160] sm:$0xff]
      %v3879 = vld [vmem:[#allocation3 + $0x168] sm:$0xff]
      %v3880 = vld [vmem:[#allocation3 + $0x170] sm:$0xff]
      %v3881 = vld [vmem:[#allocation3 + $0x178] sm:$0xff]
      %v3882 = vld [vmem:[#allocation3 + $0x180] sm:$0xff]
      %v3883 = vld [vmem:[#allocation3 + $0x188] sm:$0xff]
      %v3884 = vld [vmem:[#allocation3 + $0x190] sm:$0xff]
      %v3885 = vld [vmem:[#allocation3 + $0x198] sm:$0xff]
      %v3886 = vld [vmem:[#allocation3 + $0x1a0] sm:$0xff]
      %v3887 = vld [vmem:[#allocation3 + $0x1a8] sm:$0xff]
      %v3888 = vld [vmem:[#allocation3 + $0x1b0] sm:$0xff]
      %v3889 = vld [vmem:[#allocation3 + $0x1b8] sm:$0xff]
      %v3890 = vld [vmem:[#allocation3 + $0x1c0] sm:$0xff]
      %v3891 = vld [vmem:[#allocation3 + $0x1c8] sm:$0xff]
      %v3892 = vld [vmem:[#allocation3 + $0x1d0] sm:$0xff]
      %v3893 = vld [vmem:[#allocation3 + $0x1d8] sm:$0xff]
      %v3894 = vld [vmem:[#allocation3 + $0x1e0] sm:$0xff]
      %v3895 = vld [vmem:[#allocation3 + $0x1e8] sm:$0xff]
      %v3896 = vld [vmem:[#allocation3 + $0x1f0] sm:$0xff]
      %v3897 = vld [vmem:[#allocation3 + $0x1f8] sm:$0xff]
      %v3898 = vld [vmem:[#allocation3 + $0x200] sm:$0xff]
      %v3899 = vld [vmem:[#allocation3 + $0x208] sm:$0xff]
      %v3900 = vld [vmem:[#allocation3 + $0x210] sm:$0xff]
      %v3901 = vld [vmem:[#allocation3 + $0x218] sm:$0xff]
      %v3902 = vld [vmem:[#allocation3 + $0x220] sm:$0xff]
      %v3903 = vld [vmem:[#allocation3 + $0x228] sm:$0xff]
      %v3904 = vld [vmem:[#allocation3 + $0x230] sm:$0xff]
      %v3905 = vld [vmem:[#allocation3 + $0x238] sm:$0xff]
      %v3906 = vld [vmem:[#allocation3 + $0x240] sm:$0xff]
      %v3907 = vld [vmem:[#allocation3 + $0x248] sm:$0xff]
      %v3908 = vld [vmem:[#allocation3 + $0x250] sm:$0xff]
      %v3909 = vld [vmem:[#allocation3 + $0x258] sm:$0xff]
      %v3910 = vld [vmem:[#allocation3 + $0x260] sm:$0xff]
      %v3911 = vld [vmem:[#allocation3 + $0x268] sm:$0xff]
      %v3912 = vld [vmem:[#allocation3 + $0x270] sm:$0xff]
      %v3913 = vld [vmem:[#allocation3 + $0x278] sm:$0xff]
      %v3914 = vld [vmem:[#allocation3 + $0x280] sm:$0xff]
      %v3915 = vld [vmem:[#allocation3 + $0x288] sm:$0xff]
      %v3916 = vld [vmem:[#allocation3 + $0x290] sm:$0xff]
      %v3917 = vld [vmem:[#allocation3 + $0x298] sm:$0xff]
      %v3918 = vld [vmem:[#allocation3 + $0x2a0] sm:$0xff]
      %v3919 = vld [vmem:[#allocation3 + $0x2a8] sm:$0xff]
      %v3920 = vld [vmem:[#allocation3 + $0x2b0] sm:$0xff]
      %v3921 = vld [vmem:[#allocation3 + $0x2b8] sm:$0xff]
      %v3922 = vld [vmem:[#allocation3 + $0x2c0] sm:$0xff]
      %v3923 = vld [vmem:[#allocation3 + $0x2c8] sm:$0xff]
      %v3924 = vld [vmem:[#allocation3 + $0x2d0] sm:$0xff]
      %v3925 = vld [vmem:[#allocation3 + $0x2d8] sm:$0xff]
      %v3926 = vld [vmem:[#allocation3 + $0x2e0] sm:$0xff]
      %v3927 = vld [vmem:[#allocation3 + $0x2e8] sm:$0xff]
      %v3928 = vld [vmem:[#allocation3 + $0x2f0] sm:$0xff]
      %v3929 = vld [vmem:[#allocation3 + $0x2f8] sm:$0xff]
      %v3930 = vld [vmem:[#allocation3 + $0x300] sm:$0xff]
      %v3931 = vld [vmem:[#allocation3 + $0x308] sm:$0xff]
      %v3932 = vld [vmem:[#allocation3 + $0x310] sm:$0xff]
      %v3933 = vld [vmem:[#allocation3 + $0x318] sm:$0xff]
      %v3934 = vld [vmem:[#allocation3 + $0x320] sm:$0xff]
      %v3935 = vld [vmem:[#allocation3 + $0x328] sm:$0xff]
      %v3936 = vld [vmem:[#allocation3 + $0x330] sm:$0xff]
      %v3937 = vld [vmem:[#allocation3 + $0x338] sm:$0xff]
      %v3938 = vld [vmem:[#allocation3 + $0x340] sm:$0xff]
      %v3939 = vld [vmem:[#allocation3 + $0x348] sm:$0xff]
      %v3940 = vld [vmem:[#allocation3 + $0x350] sm:$0xff]
      %v3941 = vld [vmem:[#allocation3 + $0x358] sm:$0xff]
      %v3942 = vld [vmem:[#allocation3 + $0x360] sm:$0xff]
      %v3943 = vld [vmem:[#allocation3 + $0x368] sm:$0xff]
      %v3944 = vld [vmem:[#allocation3 + $0x370] sm:$0xff]
      %v3945 = vld [vmem:[#allocation3 + $0x378] sm:$0xff]
      %v3946 = vld [vmem:[#allocation3 + $0x380] sm:$0xff]
      %v3947 = vld [vmem:[#allocation3 + $0x388] sm:$0xff]
      %v3948 = vld [vmem:[#allocation3 + $0x390] sm:$0xff]
      %v3949 = vld [vmem:[#allocation3 + $0x398] sm:$0xff]
      %v3950 = vld [vmem:[#allocation3 + $0x3a0] sm:$0xff]
      %v3951 = vld [vmem:[#allocation3 + $0x3a8] sm:$0xff]
      %v3952 = vld [vmem:[#allocation3 + $0x3b0] sm:$0xff]
      %v3953 = vld [vmem:[#allocation3 + $0x3b8] sm:$0xff]
      %v3954 = vld [vmem:[#allocation3 + $0x3c0] sm:$0xff]
      %v3955 = vld [vmem:[#allocation3 + $0x3c8] sm:$0xff]
      %v3956 = vld [vmem:[#allocation3 + $0x3d0] sm:$0xff]
      %v3957 = vld [vmem:[#allocation3 + $0x3d8] sm:$0xff]
      %v3958 = vld [vmem:[#allocation3 + $0x3e0] sm:$0xff]
      %v3959 = vld [vmem:[#allocation3 + $0x3e8] sm:$0xff]
      %v3960 = vld [vmem:[#allocation3 + $0x3f0] sm:$0xff]
      %v3961 = vld [vmem:[#allocation3 + $0x3f8] sm:$0xff]
      %v3962 = vld [vmem:[#allocation3 + $0x400] sm:$0xff]
      %v3963 = vld [vmem:[#allocation3 + $0x408] sm:$0xff]
      %v3964 = vld [vmem:[#allocation3 + $0x410] sm:$0xff]
      %v3965 = vld [vmem:[#allocation3 + $0x418] sm:$0xff]
      %v3966 = vld [vmem:[#allocation3 + $0x420] sm:$0xff]
      %v3967 = vld [vmem:[#allocation3 + $0x428] sm:$0xff]
      %v3968 = vld [vmem:[#allocation3 + $0x430] sm:$0xff]
      %v3969 = vld [vmem:[#allocation3 + $0x438] sm:$0xff]
      %v3970 = vld [vmem:[#allocation3 + $0x440] sm:$0xff]
      %v3971 = vld [vmem:[#allocation3 + $0x448] sm:$0xff]
      %v3972 = vld [vmem:[#allocation3 + $0x450] sm:$0xff]
      %v3973 = vld [vmem:[#allocation3 + $0x458] sm:$0xff]
      %v3974 = vld [vmem:[#allocation3 + $0x460] sm:$0xff]
      %v3975 = vld [vmem:[#allocation3 + $0x468] sm:$0xff]
      %v3976 = vld [vmem:[#allocation3 + $0x470] sm:$0xff]
      %v3977 = vld [vmem:[#allocation3 + $0x478] sm:$0xff]
      %v3978 = vld [vmem:[%s6] sm:$0xff]
      %v3979 = vld [vmem:[%s6 + $0x8] sm:$0xff]
      %v3980 = vld [vmem:[%s6 + $0x10] sm:$0xff]
      %v3981 = vld [vmem:[%s6 + $0x18] sm:$0xff]
      %v3982 = vld [vmem:[%s6 + $0x20] sm:$0xff]
      %v3983 = vld [vmem:[%s6 + $0x28] sm:$0xff]
      %v3984 = vld [vmem:[%s6 + $0x30] sm:$0xff]
      %v3985 = vld [vmem:[%s6 + $0x38] sm:$0xff]
      %v3986 = vld [vmem:[%s6 + $0x40] sm:$0xff]
      %v3987 = vld [vmem:[%s6 + $0x48] sm:$0xff]
      %v3988 = vld [vmem:[%s6 + $0x50] sm:$0xff]
      %v3989 = vld [vmem:[%s6 + $0x58] sm:$0xff]
      %v3990 = vld [vmem:[%s6 + $0x60] sm:$0xff]
      %v3991 = vld [vmem:[%s6 + $0x68] sm:$0xff]
      %v3992 = vld [vmem:[%s6 + $0x70] sm:$0xff]
      %v3993 = vld [vmem:[%s6 + $0x78] sm:$0xff]
      %v3994 = vld [vmem:[%s6 + $0x80] sm:$0xff]
      %v3995 = vld [vmem:[%s6 + $0x88] sm:$0xff]
      %v3996 = vld [vmem:[%s6 + $0x90] sm:$0xff]
      %v3997 = vld [vmem:[%s6 + $0x98] sm:$0xff]
      %v3998 = vld [vmem:[%s6 + $0xa0] sm:$0xff]
      %v3999 = vld [vmem:[%s6 + $0xa8] sm:$0xff]
      %v4000 = vld [vmem:[%s6 + $0xb0] sm:$0xff]
      %v4001 = vld [vmem:[%s6 + $0xb8] sm:$0xff]
      %v4002 = vld [vmem:[%s6 + $0xc0] sm:$0xff]
      %v4003 = vld [vmem:[%s6 + $0xc8] sm:$0xff]
      %v4004 = vld [vmem:[%s6 + $0xd0] sm:$0xff]
      %v4005 = vld [vmem:[%s6 + $0xd8] sm:$0xff]
      %v4006 = vld [vmem:[%s6 + $0xe0] sm:$0xff]
      %v4007 = vld [vmem:[%s6 + $0xe8] sm:$0xff]
      %v4008 = vld [vmem:[%s6 + $0xf0] sm:$0xff]
      %v4009 = vld [vmem:[%s6 + $0xf8] sm:$0xff]
      %v4010 = vld [vmem:[%s6 + $0x100] sm:$0xff]
      %v4011 = vld [vmem:[%s6 + $0x108] sm:$0xff]
      %v4012 = vld [vmem:[%s6 + $0x110] sm:$0xff]
      %v4013 = vld [vmem:[%s6 + $0x118] sm:$0xff]
      %v4014 = vld [vmem:[%s6 + $0x120] sm:$0xff]
      %v4015 = vld [vmem:[%s6 + $0x128] sm:$0xff]
      %v4016 = vld [vmem:[%s6 + $0x130] sm:$0xff]
      %v4017 = vld [vmem:[%s6 + $0x138] sm:$0xff]
      %v4018 = vld [vmem:[%s6 + $0x140] sm:$0xff]
      %v4019 = vld [vmem:[%s6 + $0x148] sm:$0xff]
      %v4020 = vld [vmem:[%s6 + $0x150] sm:$0xff]
      %v4021 = vld [vmem:[%s6 + $0x158] sm:$0xff]
      %v4022 = vld [vmem:[%s6 + $0x160] sm:$0xff]
      %v4023 = vld [vmem:[%s6 + $0x168] sm:$0xff]
      %v4024 = vld [vmem:[%s6 + $0x170] sm:$0xff]
      %v4025 = vld [vmem:[%s6 + $0x178] sm:$0xff]
      %v4026 = vld [vmem:[%s6 + $0x180] sm:$0xff]
      %v4027 = vld [vmem:[%s6 + $0x188] sm:$0xff]
      %v4028 = vld [vmem:[%s6 + $0x190] sm:$0xff]
      %v4029 = vld [vmem:[%s6 + $0x198] sm:$0xff]
      %v4030 = vld [vmem:[%s6 + $0x1a0] sm:$0xff]
      %v4031 = vld [vmem:[%s6 + $0x1a8] sm:$0xff]
      %v4032 = vld [vmem:[%s6 + $0x1b0] sm:$0xff]
      %v4033 = vld [vmem:[%s6 + $0x1b8] sm:$0xff]
      %v4034 = vld [vmem:[%s6 + $0x1c0] sm:$0xff]
      %v4035 = vld [vmem:[%s6 + $0x1c8] sm:$0xff]
      %v4036 = vld [vmem:[%s6 + $0x1d0] sm:$0xff]
      %v4037 = vld [vmem:[%s6 + $0x1d8] sm:$0xff]
      %v4038 = vld [vmem:[%s6 + $0x1e0] sm:$0xff]
      %v4039 = vld [vmem:[%s6 + $0x1e8] sm:$0xff]
      %v4040 = vld [vmem:[%s6 + $0x1f0] sm:$0xff]
      %v4041 = vld [vmem:[%s6 + $0x1f8] sm:$0xff]
      %v4042 = vld [vmem:[%s6 + $0x200] sm:$0xff]
      %v4043 = vld [vmem:[%s6 + $0x208] sm:$0xff]
      %v4044 = vld [vmem:[%s6 + $0x210] sm:$0xff]
      %v4045 = vld [vmem:[%s6 + $0x218] sm:$0xff]
      %v4046 = vld [vmem:[%s6 + $0x220] sm:$0xff]
      %v4047 = vld [vmem:[%s6 + $0x228] sm:$0xff]
      %v4048 = vld [vmem:[%s6 + $0x230] sm:$0xff]
      %v4049 = vld [vmem:[%s6 + $0x238] sm:$0xff]
      %v4050 = vld [vmem:[%s6 + $0x240] sm:$0xff]
      %v4051 = vld [vmem:[%s6 + $0x248] sm:$0xff]
      %v4052 = vld [vmem:[%s6 + $0x250] sm:$0xff]
      %v4053 = vld [vmem:[%s6 + $0x258] sm:$0xff]
      %v4054 = vld [vmem:[%s6 + $0x260] sm:$0xff]
      %v4055 = vld [vmem:[%s6 + $0x268] sm:$0xff]
      %v4056 = vld [vmem:[%s6 + $0x270] sm:$0xff]
      %v4057 = vld [vmem:[%s6 + $0x278] sm:$0xff]
      %v4058 = vld [vmem:[%s6 + $0x280] sm:$0xff]
      %v4059 = vld [vmem:[%s6 + $0x288] sm:$0xff]
      %v4060 = vld [vmem:[%s6 + $0x290] sm:$0xff]
      %v4061 = vld [vmem:[%s6 + $0x298] sm:$0xff]
      %v4062 = vld [vmem:[%s6 + $0x2a0] sm:$0xff]
      %v4063 = vld [vmem:[%s6 + $0x2a8] sm:$0xff]
      %v4064 = vld [vmem:[%s6 + $0x2b0] sm:$0xff]
      %v4065 = vld [vmem:[%s6 + $0x2b8] sm:$0xff]
      %v4066 = vld [vmem:[%s6 + $0x2c0] sm:$0xff]
      %v4067 = vld [vmem:[%s6 + $0x2c8] sm:$0xff]
      %v4068 = vld [vmem:[%s6 + $0x2d0] sm:$0xff]
      %v4069 = vld [vmem:[%s6 + $0x2d8] sm:$0xff]
      %v4070 = vld [vmem:[%s6 + $0x2e0] sm:$0xff]
      %v4071 = vld [vmem:[%s6 + $0x2e8] sm:$0xff]
      %v4072 = vld [vmem:[%s6 + $0x2f0] sm:$0xff]
      %v4073 = vld [vmem:[%s6 + $0x2f8] sm:$0xff]
      %v4074 = vld [vmem:[%s6 + $0x300] sm:$0xff]
      %v4075 = vld [vmem:[%s6 + $0x308] sm:$0xff]
      %v4076 = vld [vmem:[%s6 + $0x310] sm:$0xff]
      %v4077 = vld [vmem:[%s6 + $0x318] sm:$0xff]
      %v4078 = vld [vmem:[%s6 + $0x320] sm:$0xff]
      %v4079 = vld [vmem:[%s6 + $0x328] sm:$0xff]
      %v4080 = vld [vmem:[%s6 + $0x330] sm:$0xff]
      %v4081 = vld [vmem:[%s6 + $0x338] sm:$0xff]
      %v4082 = vld [vmem:[%s6 + $0x340] sm:$0xff]
      %v4083 = vld [vmem:[%s6 + $0x348] sm:$0xff]
      %v4084 = vld [vmem:[%s6 + $0x350] sm:$0xff]
      %v4085 = vld [vmem:[%s6 + $0x358] sm:$0xff]
      %v4086 = vld [vmem:[%s6 + $0x360] sm:$0xff]
      %v4087 = vld [vmem:[%s6 + $0x368] sm:$0xff]
      %v4088 = vld [vmem:[%s6 + $0x370] sm:$0xff]
      %v4089 = vld [vmem:[%s6 + $0x378] sm:$0xff]
      %v4090 = vld [vmem:[%s6 + $0x380] sm:$0xff]
      %v4091 = vld [vmem:[%s6 + $0x388] sm:$0xff]
      %v4092 = vld [vmem:[%s6 + $0x390] sm:$0xff]
      %v4093 = vld [vmem:[%s6 + $0x398] sm:$0xff]
      %v4094 = vld [vmem:[%s6 + $0x3a0] sm:$0xff]
      %v4095 = vld [vmem:[%s6 + $0x3a8] sm:$0xff]
      %v4096 = vld [vmem:[%s6 + $0x3b0] sm:$0xff]
      %v4097 = vld [vmem:[%s6 + $0x3b8] sm:$0xff]
      %v4098 = vld [vmem:[%s6 + $0x3c0] sm:$0xff]
      %v4099 = vld [vmem:[%s6 + $0x3c8] sm:$0xff]
      %v4100 = vld [vmem:[%s6 + $0x3d0] sm:$0xff]
      %v4101 = vld [vmem:[%s6 + $0x3d8] sm:$0xff]
      %v4102 = vld [vmem:[%s6 + $0x3e0] sm:$0xff]
      %v4103 = vld [vmem:[%s6 + $0x3e8] sm:$0xff]
      %v4104 = vld [vmem:[%s6 + $0x3f0] sm:$0xff]
      %v4105 = vld [vmem:[%s6 + $0x3f8] sm:$0xff]
      %v4106 = vld [vmem:[%s6 + $0x400] sm:$0xff]
      %v4107 = vld [vmem:[%s6 + $0x408] sm:$0xff]
      %v4108 = vld [vmem:[%s6 + $0x410] sm:$0xff]
      %v4109 = vld [vmem:[%s6 + $0x418] sm:$0xff]
      %v4110 = vld [vmem:[%s6 + $0x420] sm:$0xff]
      %v4111 = vld [vmem:[%s6 + $0x428] sm:$0xff]
      %v4112 = vld [vmem:[%s6 + $0x430] sm:$0xff]
      %v4113 = vld [vmem:[%s6 + $0x438] sm:$0xff]
      %v4114 = vld [vmem:[%s6 + $0x440] sm:$0xff]
      %v4115 = vld [vmem:[%s6 + $0x448] sm:$0xff]
      %v4116 = vld [vmem:[%s6 + $0x450] sm:$0xff]
      %v4117 = vld [vmem:[%s6 + $0x458] sm:$0xff]
      %v4118 = vld [vmem:[%s6 + $0x460] sm:$0xff]
      %v4119 = vld [vmem:[%s6 + $0x468] sm:$0xff]
      %v4120 = vld [vmem:[%s6 + $0x470] sm:$0xff]
      %v4121 = vld [vmem:[%s6 + $0x478] sm:$0xff]
      %v4122 = vmul.f32 %v3834, %v3978
      %v4123 = vmul.f32 %v3835, %v3979
      %v4124 = vmul.f32 %v3836, %v3980
      %v4125 = vmul.f32 %v3837, %v3981
      %v4126 = vmul.f32 %v3838, %v3982
      %v4127 = vmul.f32 %v3839, %v3983
      %v4128 = vmul.f32 %v3840, %v3984
      %v4129 = vmul.f32 %v3841, %v3985
      %v4130 = vmul.f32 %v3842, %v3986
      %v4131 = vmul.f32 %v3843, %v3987
      %v4132 = vmul.f32 %v3844, %v3988
      %v4133 = vmul.f32 %v3845, %v3989
      %v4134 = vmul.f32 %v3846, %v3990
      %v4135 = vmul.f32 %v3847, %v3991
      %v4136 = vmul.f32 %v3848, %v3992
      %v4137 = vmul.f32 %v3849, %v3993
      %v4138 = vmul.f32 %v3850, %v3994
      %v4139 = vmul.f32 %v3851, %v3995
      %v4140 = vmul.f32 %v3852, %v3996
      %v4141 = vmul.f32 %v3853, %v3997
      %v4142 = vmul.f32 %v3854, %v3998
      %v4143 = vmul.f32 %v3855, %v3999
      %v4144 = vmul.f32 %v3856, %v4000
      %v4145 = vmul.f32 %v3857, %v4001
      %v4146 = vmul.f32 %v3858, %v4002
      %v4147 = vmul.f32 %v3859, %v4003
      %v4148 = vmul.f32 %v3860, %v4004
      %v4149 = vmul.f32 %v3861, %v4005
      %v4150 = vmul.f32 %v3862, %v4006
      %v4151 = vmul.f32 %v3863, %v4007
      %v4152 = vmul.f32 %v3864, %v4008
      %v4153 = vmul.f32 %v3865, %v4009
      %v4154 = vmul.f32 %v3866, %v4010
      %v4155 = vmul.f32 %v3867, %v4011
      %v4156 = vmul.f32 %v3868, %v4012
      %v4157 = vmul.f32 %v3869, %v4013
      %v4158 = vmul.f32 %v3870, %v4014
      %v4159 = vmul.f32 %v3871, %v4015
      %v4160 = vmul.f32 %v3872, %v4016
      %v4161 = vmul.f32 %v3873, %v4017
      %v4162 = vmul.f32 %v3874, %v4018
      %v4163 = vmul.f32 %v3875, %v4019
      %v4164 = vmul.f32 %v3876, %v4020
      %v4165 = vmul.f32 %v3877, %v4021
      %v4166 = vmul.f32 %v3878, %v4022
      %v4167 = vmul.f32 %v3879, %v4023
      %v4168 = vmul.f32 %v3880, %v4024
      %v4169 = vmul.f32 %v3881, %v4025
      %v4170 = vmul.f32 %v3882, %v4026
      %v4171 = vmul.f32 %v3883, %v4027
      %v4172 = vmul.f32 %v3884, %v4028
      %v4173 = vmul.f32 %v3885, %v4029
      %v4174 = vmul.f32 %v3886, %v4030
      %v4175 = vmul.f32 %v3887, %v4031
      %v4176 = vmul.f32 %v3888, %v4032
      %v4177 = vmul.f32 %v3889, %v4033
      %v4178 = vmul.f32 %v3890, %v4034
      %v4179 = vmul.f32 %v3891, %v4035
      %v4180 = vmul.f32 %v3892, %v4036
      %v4181 = vmul.f32 %v3893, %v4037
      %v4182 = vmul.f32 %v3894, %v4038
      %v4183 = vmul.f32 %v3895, %v4039
      %v4184 = vmul.f32 %v3896, %v4040
      %v4185 = vmul.f32 %v3897, %v4041
      %v4186 = vmul.f32 %v3898, %v4042
      %v4187 = vmul.f32 %v3899, %v4043
      %v4188 = vmul.f32 %v3900, %v4044
      %v4189 = vmul.f32 %v3901, %v4045
      %v4190 = vmul.f32 %v3902, %v4046
      %v4191 = vmul.f32 %v3903, %v4047
      %v4192 = vmul.f32 %v3904, %v4048
      %v4193 = vmul.f32 %v3905, %v4049
      %v4194 = vmul.f32 %v3906, %v4050
      %v4195 = vmul.f32 %v3907, %v4051
      %v4196 = vmul.f32 %v3908, %v4052
      %v4197 = vmul.f32 %v3909, %v4053
      %v4198 = vmul.f32 %v3910, %v4054
      %v4199 = vmul.f32 %v3911, %v4055
      %v4200 = vmul.f32 %v3912, %v4056
      %v4201 = vmul.f32 %v3913, %v4057
      %v4202 = vmul.f32 %v3914, %v4058
      %v4203 = vmul.f32 %v3915, %v4059
      %v4204 = vmul.f32 %v3916, %v4060
      %v4205 = vmul.f32 %v3917, %v4061
      %v4206 = vmul.f32 %v3918, %v4062
      %v4207 = vmul.f32 %v3919, %v4063
      %v4208 = vmul.f32 %v3920, %v4064
      %v4209 = vmul.f32 %v3921, %v4065
      %v4210 = vmul.f32 %v3922, %v4066
      %v4211 = vmul.f32 %v3923, %v4067
      %v4212 = vmul.f32 %v3924, %v4068
      %v4213 = vmul.f32 %v3925, %v4069
      %v4214 = vmul.f32 %v3926, %v4070
      %v4215 = vmul.f32 %v3927, %v4071
      %v4216 = vmul.f32 %v3928, %v4072
      %v4217 = vmul.f32 %v3929, %v4073
      %v4218 = vmul.f32 %v3930, %v4074
      %v4219 = vmul.f32 %v3931, %v4075
      %v4220 = vmul.f32 %v3932, %v4076
      %v4221 = vmul.f32 %v3933, %v4077
      %v4222 = vmul.f32 %v3934, %v4078
      %v4223 = vmul.f32 %v3935, %v4079
      %v4224 = vmul.f32 %v3936, %v4080
      %v4225 = vmul.f32 %v3937, %v4081
      %v4226 = vmul.f32 %v3938, %v4082
      %v4227 = vmul.f32 %v3939, %v4083
      %v4228 = vmul.f32 %v3940, %v4084
      %v4229 = vmul.f32 %v3941, %v4085
      %v4230 = vmul.f32 %v3942, %v4086
      %v4231 = vmul.f32 %v3943, %v4087
      %v4232 = vmul.f32 %v3944, %v4088
      %v4233 = vmul.f32 %v3945, %v4089
      %v4234 = vmul.f32 %v3946, %v4090
      %v4235 = vmul.f32 %v3947, %v4091
      %v4236 = vmul.f32 %v3948, %v4092
      %v4237 = vmul.f32 %v3949, %v4093
      %v4238 = vmul.f32 %v3950, %v4094
      %v4239 = vmul.f32 %v3951, %v4095
      %v4240 = vmul.f32 %v3952, %v4096
      %v4241 = vmul.f32 %v3953, %v4097
      %v4242 = vmul.f32 %v3954, %v4098
      %v4243 = vmul.f32 %v3955, %v4099
      %v4244 = vmul.f32 %v3956, %v4100
      %v4245 = vmul.f32 %v3957, %v4101
      %v4246 = vmul.f32 %v3958, %v4102
      %v4247 = vmul.f32 %v3959, %v4103
      %v4248 = vmul.f32 %v3960, %v4104
      %v4249 = vmul.f32 %v3961, %v4105
      %v4250 = vmul.f32 %v3962, %v4106
      %v4251 = vmul.f32 %v3963, %v4107
      %v4252 = vmul.f32 %v3964, %v4108
      %v4253 = vmul.f32 %v3965, %v4109
      %v4254 = vmul.f32 %v3966, %v4110
      %v4255 = vmul.f32 %v3967, %v4111
      %v4256 = vmul.f32 %v3968, %v4112
      %v4257 = vmul.f32 %v3969, %v4113
      %v4258 = vmul.f32 %v3970, %v4114
      %v4259 = vmul.f32 %v3971, %v4115
      %v4260 = vmul.f32 %v3972, %v4116
      %v4261 = vmul.f32 %v3973, %v4117
      %v4262 = vmul.f32 %v3974, %v4118
      %v4263 = vmul.f32 %v3975, %v4119
      %v4264 = vmul.f32 %v3976, %v4120
      %v4265 = vmul.f32 %v3977, %v4121
      %4266 = vst [vmem:[#allocation3] sm:$0xff] %v4122
      %4267 = vst [vmem:[#allocation3 + $0x8] sm:$0xff] %v4123
      %4268 = vst [vmem:[#allocation3 + $0x10] sm:$0xff] %v4124
      %4269 = vst [vmem:[#allocation3 + $0x18] sm:$0xff] %v4125
      %4270 = vst [vmem:[#allocation3 + $0x20] sm:$0xff] %v4126
      %4271 = vst [vmem:[#allocation3 + $0x28] sm:$0xff] %v4127
      %4272 = vst [vmem:[#allocation3 + $0x30] sm:$0xff] %v4128
      %4273 = vst [vmem:[#allocation3 + $0x38] sm:$0xff] %v4129
      %4274 = vst [vmem:[#allocation3 + $0x40] sm:$0xff] %v4130
      %4275 = vst [vmem:[#allocation3 + $0x48] sm:$0xff] %v4131
      %4276 = vst [vmem:[#allocation3 + $0x50] sm:$0xff] %v4132
      %4277 = vst [vmem:[#allocation3 + $0x58] sm:$0xff] %v4133
      %4278 = vst [vmem:[#allocation3 + $0x60] sm:$0xff] %v4134
      %4279 = vst [vmem:[#allocation3 + $0x68] sm:$0xff] %v4135
      %4280 = vst [vmem:[#allocation3 + $0x70] sm:$0xff] %v4136
      %4281 = vst [vmem:[#allocation3 + $0x78] sm:$0xff] %v4137
      %4282 = vst [vmem:[#allocation3 + $0x80] sm:$0xff] %v4138
      %4283 = vst [vmem:[#allocation3 + $0x88] sm:$0xff] %v4139
      %4284 = vst [vmem:[#allocation3 + $0x90] sm:$0xff] %v4140
      %4285 = vst [vmem:[#allocation3 + $0x98] sm:$0xff] %v4141
      %4286 = vst [vmem:[#allocation3 + $0xa0] sm:$0xff] %v4142
      %4287 = vst [vmem:[#allocation3 + $0xa8] sm:$0xff] %v4143
      %4288 = vst [vmem:[#allocation3 + $0xb0] sm:$0xff] %v4144
      %4289 = vst [vmem:[#allocation3 + $0xb8] sm:$0xff] %v4145
      %4290 = vst [vmem:[#allocation3 + $0xc0] sm:$0xff] %v4146
      %4291 = vst [vmem:[#allocation3 + $0xc8] sm:$0xff] %v4147
      %4292 = vst [vmem:[#allocation3 + $0xd0] sm:$0xff] %v4148
      %4293 = vst [vmem:[#allocation3 + $0xd8] sm:$0xff] %v4149
      %4294 = vst [vmem:[#allocation3 + $0xe0] sm:$0xff] %v4150
      %4295 = vst [vmem:[#allocation3 + $0xe8] sm:$0xff] %v4151
      %4296 = vst [vmem:[#allocation3 + $0xf0] sm:$0xff] %v4152
      %4297 = vst [vmem:[#allocation3 + $0xf8] sm:$0xff] %v4153
      %4298 = vst [vmem:[#allocation3 + $0x100] sm:$0xff] %v4154
      %4299 = vst [vmem:[#allocation3 + $0x108] sm:$0xff] %v4155
      %4300 = vst [vmem:[#allocation3 + $0x110] sm:$0xff] %v4156
      %4301 = vst [vmem:[#allocation3 + $0x118] sm:$0xff] %v4157
      %4302 = vst [vmem:[#allocation3 + $0x120] sm:$0xff] %v4158
      %4303 = vst [vmem:[#allocation3 + $0x128] sm:$0xff] %v4159
      %4304 = vst [vmem:[#allocation3 + $0x130] sm:$0xff] %v4160
      %4305 = vst [vmem:[#allocation3 + $0x138] sm:$0xff] %v4161
      %4306 = vst [vmem:[#allocation3 + $0x140] sm:$0xff] %v4162
      %4307 = vst [vmem:[#allocation3 + $0x148] sm:$0xff] %v4163
      %4308 = vst [vmem:[#allocation3 + $0x150] sm:$0xff] %v4164
      %4309 = vst [vmem:[#allocation3 + $0x158] sm:$0xff] %v4165
      %4310 = vst [vmem:[#allocation3 + $0x160] sm:$0xff] %v4166
      %4311 = vst [vmem:[#allocation3 + $0x168] sm:$0xff] %v4167
      %4312 = vst [vmem:[#allocation3 + $0x170] sm:$0xff] %v4168
      %4313 = vst [vmem:[#allocation3 + $0x178] sm:$0xff] %v4169
      %4314 = vst [vmem:[#allocation3 + $0x180] sm:$0xff] %v4170
      %4315 = vst [vmem:[#allocation3 + $0x188] sm:$0xff] %v4171
      %4316 = vst [vmem:[#allocation3 + $0x190] sm:$0xff] %v4172
      %4317 = vst [vmem:[#allocation3 + $0x198] sm:$0xff] %v4173
      %4318 = vst [vmem:[#allocation3 + $0x1a0] sm:$0xff] %v4174
      %4319 = vst [vmem:[#allocation3 + $0x1a8] sm:$0xff] %v4175
      %4320 = vst [vmem:[#allocation3 + $0x1b0] sm:$0xff] %v4176
      %4321 = vst [vmem:[#allocation3 + $0x1b8] sm:$0xff] %v4177
      %4322 = vst [vmem:[#allocation3 + $0x1c0] sm:$0xff] %v4178
      %4323 = vst [vmem:[#allocation3 + $0x1c8] sm:$0xff] %v4179
      %4324 = vst [vmem:[#allocation3 + $0x1d0] sm:$0xff] %v4180
      %4325 = vst [vmem:[#allocation3 + $0x1d8] sm:$0xff] %v4181
      %4326 = vst [vmem:[#allocation3 + $0x1e0] sm:$0xff] %v4182
      %4327 = vst [vmem:[#allocation3 + $0x1e8] sm:$0xff] %v4183
      %4328 = vst [vmem:[#allocation3 + $0x1f0] sm:$0xff] %v4184
      %4329 = vst [vmem:[#allocation3 + $0x1f8] sm:$0xff] %v4185
      %4330 = vst [vmem:[#allocation3 + $0x200] sm:$0xff] %v4186
      %4331 = vst [vmem:[#allocation3 + $0x208] sm:$0xff] %v4187
      %4332 = vst [vmem:[#allocation3 + $0x210] sm:$0xff] %v4188
      %4333 = vst [vmem:[#allocation3 + $0x218] sm:$0xff] %v4189
      %4334 = vst [vmem:[#allocation3 + $0x220] sm:$0xff] %v4190
      %4335 = vst [vmem:[#allocation3 + $0x228] sm:$0xff] %v4191
      %4336 = vst [vmem:[#allocation3 + $0x230] sm:$0xff] %v4192
      %4337 = vst [vmem:[#allocation3 + $0x238] sm:$0xff] %v4193
      %4338 = vst [vmem:[#allocation3 + $0x240] sm:$0xff] %v4194
      %4339 = vst [vmem:[#allocation3 + $0x248] sm:$0xff] %v4195
      %4340 = vst [vmem:[#allocation3 + $0x250] sm:$0xff] %v4196
      %4341 = vst [vmem:[#allocation3 + $0x258] sm:$0xff] %v4197
      %4342 = vst [vmem:[#allocation3 + $0x260] sm:$0xff] %v4198
      %4343 = vst [vmem:[#allocation3 + $0x268] sm:$0xff] %v4199
      %4344 = vst [vmem:[#allocation3 + $0x270] sm:$0xff] %v4200
      %4345 = vst [vmem:[#allocation3 + $0x278] sm:$0xff] %v4201
      %4346 = vst [vmem:[#allocation3 + $0x280] sm:$0xff] %v4202
      %4347 = vst [vmem:[#allocation3 + $0x288] sm:$0xff] %v4203
      %4348 = vst [vmem:[#allocation3 + $0x290] sm:$0xff] %v4204
      %4349 = vst [vmem:[#allocation3 + $0x298] sm:$0xff] %v4205
      %4350 = vst [vmem:[#allocation3 + $0x2a0] sm:$0xff] %v4206
      %4351 = vst [vmem:[#allocation3 + $0x2a8] sm:$0xff] %v4207
      %4352 = vst [vmem:[#allocation3 + $0x2b0] sm:$0xff] %v4208
      %4353 = vst [vmem:[#allocation3 + $0x2b8] sm:$0xff] %v4209
      %4354 = vst [vmem:[#allocation3 + $0x2c0] sm:$0xff] %v4210
      %4355 = vst [vmem:[#allocation3 + $0x2c8] sm:$0xff] %v4211
      %4356 = vst [vmem:[#allocation3 + $0x2d0] sm:$0xff] %v4212
      %4357 = vst [vmem:[#allocation3 + $0x2d8] sm:$0xff] %v4213
      %4358 = vst [vmem:[#allocation3 + $0x2e0] sm:$0xff] %v4214
      %4359 = vst [vmem:[#allocation3 + $0x2e8] sm:$0xff] %v4215
      %4360 = vst [vmem:[#allocation3 + $0x2f0] sm:$0xff] %v4216
      %4361 = vst [vmem:[#allocation3 + $0x2f8] sm:$0xff] %v4217
      %4362 = vst [vmem:[#allocation3 + $0x300] sm:$0xff] %v4218
      %4363 = vst [vmem:[#allocation3 + $0x308] sm:$0xff] %v4219
      %4364 = vst [vmem:[#allocation3 + $0x310] sm:$0xff] %v4220
      %4365 = vst [vmem:[#allocation3 + $0x318] sm:$0xff] %v4221
      %4366 = vst [vmem:[#allocation3 + $0x320] sm:$0xff] %v4222
      %4367 = vst [vmem:[#allocation3 + $0x328] sm:$0xff] %v4223
      %4368 = vst [vmem:[#allocation3 + $0x330] sm:$0xff] %v4224
      %4369 = vst [vmem:[#allocation3 + $0x338] sm:$0xff] %v4225
      %4370 = vst [vmem:[#allocation3 + $0x340] sm:$0xff] %v4226
      %4371 = vst [vmem:[#allocation3 + $0x348] sm:$0xff] %v4227
      %4372 = vst [vmem:[#allocation3 + $0x350] sm:$0xff] %v4228
      %4373 = vst [vmem:[#allocation3 + $0x358] sm:$0xff] %v4229
      %4374 = vst [vmem:[#allocation3 + $0x360] sm:$0xff] %v4230
      %4375 = vst [vmem:[#allocation3 + $0x368] sm:$0xff] %v4231
      %4376 = vst [vmem:[#allocation3 + $0x370] sm:$0xff] %v4232
      %4377 = vst [vmem:[#allocation3 + $0x378] sm:$0xff] %v4233
      %4378 = vst [vmem:[#allocation3 + $0x380] sm:$0xff] %v4234
      %4379 = vst [vmem:[#allocation3 + $0x388] sm:$0xff] %v4235
      %4380 = vst [vmem:[#allocation3 + $0x390] sm:$0xff] %v4236
      %4381 = vst [vmem:[#allocation3 + $0x398] sm:$0xff] %v4237
      %4382 = vst [vmem:[#allocation3 + $0x3a0] sm:$0xff] %v4238
      %4383 = vst [vmem:[#allocation3 + $0x3a8] sm:$0xff] %v4239
      %4384 = vst [vmem:[#allocation3 + $0x3b0] sm:$0xff] %v4240
      %4385 = vst [vmem:[#allocation3 + $0x3b8] sm:$0xff] %v4241
      %4386 = vst [vmem:[#allocation3 + $0x3c0] sm:$0xff] %v4242
      %4387 = vst [vmem:[#allocation3 + $0x3c8] sm:$0xff] %v4243
      %4388 = vst [vmem:[#allocation3 + $0x3d0] sm:$0xff] %v4244
      %4389 = vst [vmem:[#allocation3 + $0x3d8] sm:$0xff] %v4245
      %4390 = vst [vmem:[#allocation3 + $0x3e0] sm:$0xff] %v4246
      %4391 = vst [vmem:[#allocation3 + $0x3e8] sm:$0xff] %v4247
      %4392 = vst [vmem:[#allocation3 + $0x3f0] sm:$0xff] %v4248
      %4393 = vst [vmem:[#allocation3 + $0x3f8] sm:$0xff] %v4249
      %4394 = vst [vmem:[#allocation3 + $0x400] sm:$0xff] %v4250
      %4395 = vst [vmem:[#allocation3 + $0x408] sm:$0xff] %v4251
      %4396 = vst [vmem:[#allocation3 + $0x410] sm:$0xff] %v4252
      %4397 = vst [vmem:[#allocation3 + $0x418] sm:$0xff] %v4253
      %4398 = vst [vmem:[#allocation3 + $0x420] sm:$0xff] %v4254
      %4399 = vst [vmem:[#allocation3 + $0x428] sm:$0xff] %v4255
      %4400 = vst [vmem:[#allocation3 + $0x430] sm:$0xff] %v4256
      %4401 = vst [vmem:[#allocation3 + $0x438] sm:$0xff] %v4257
      %4402 = vst [vmem:[#allocation3 + $0x440] sm:$0xff] %v4258
      %4403 = vst [vmem:[#allocation3 + $0x448] sm:$0xff] %v4259
      %4404 = vst [vmem:[#allocation3 + $0x450] sm:$0xff] %v4260
      %4405 = vst [vmem:[#allocation3 + $0x458] sm:$0xff] %v4261
      %4406 = vst [vmem:[#allocation3 + $0x460] sm:$0xff] %v4262
      %4407 = vst [vmem:[#allocation3 + $0x468] sm:$0xff] %v4263
      %4408 = vst [vmem:[#allocation3 + $0x470] sm:$0xff] %v4264
      %4409 = vst [vmem:[#allocation3 + $0x478] sm:$0xff] %v4265
      %v4410 = vld [vmem:[%s4] sm:$0xff]
      %v4411 = vld [vmem:[%s4 + $0x8] sm:$0xff]
      %v4412 = vld [vmem:[%s4 + $0x10] sm:$0xff]
      %v4413 = vld [vmem:[%s4 + $0x18] sm:$0xff]
      %v4414 = vld [vmem:[%s4 + $0x20] sm:$0xff]
      %v4415 = vld [vmem:[%s4 + $0x28] sm:$0xff]
      %v4416 = vld [vmem:[%s4 + $0x30] sm:$0xff]
      %v4417 = vld [vmem:[%s4 + $0x38] sm:$0xff]
      %v4418 = vld [vmem:[#allocation3] sm:$0xff]
      %v4419 = vld [vmem:[#allocation3 + $0x8] sm:$0xff]
      %v4420 = vld [vmem:[#allocation3 + $0x10] sm:$0xff]
      %v4421 = vld [vmem:[#allocation3 + $0x18] sm:$0xff]
      %v4422 = vld [vmem:[#allocation3 + $0x20] sm:$0xff]
      %v4423 = vld [vmem:[#allocation3 + $0x28] sm:$0xff]
      %v4424 = vld [vmem:[#allocation3 + $0x30] sm:$0xff]
      %v4425 = vld [vmem:[#allocation3 + $0x38] sm:$0xff]
      %v4426 = vld [vmem:[#allocation3 + $0x40] sm:$0xff]
      %v4427 = vld [vmem:[#allocation3 + $0x48] sm:$0xff]
      %v4428 = vld [vmem:[#allocation3 + $0x50] sm:$0xff]
      %v4429 = vld [vmem:[#allocation3 + $0x58] sm:$0xff]
      %v4430 = vld [vmem:[#allocation3 + $0x60] sm:$0xff]
      %v4431 = vld [vmem:[#allocation3 + $0x68] sm:$0xff]
      %v4432 = vld [vmem:[#allocation3 + $0x70] sm:$0xff]
      %v4433 = vld [vmem:[#allocation3 + $0x78] sm:$0xff]
      %v4434 = vld [vmem:[#allocation3 + $0x80] sm:$0xff]
      %v4435 = vld [vmem:[#allocation3 + $0x88] sm:$0xff]
      %v4436 = vld [vmem:[#allocation3 + $0x90] sm:$0xff]
      %v4437 = vld [vmem:[#allocation3 + $0x98] sm:$0xff]
      %v4438 = vld [vmem:[#allocation3 + $0xa0] sm:$0xff]
      %v4439 = vld [vmem:[#allocation3 + $0xa8] sm:$0xff]
      %v4440 = vld [vmem:[#allocation3 + $0xb0] sm:$0xff]
      %v4441 = vld [vmem:[#allocation3 + $0xb8] sm:$0xff]
      %v4442 = vld [vmem:[#allocation3 + $0xc0] sm:$0xff]
      %v4443 = vld [vmem:[#allocation3 + $0xc8] sm:$0xff]
      %v4444 = vld [vmem:[#allocation3 + $0xd0] sm:$0xff]
      %v4445 = vld [vmem:[#allocation3 + $0xd8] sm:$0xff]
      %v4446 = vld [vmem:[#allocation3 + $0xe0] sm:$0xff]
      %v4447 = vld [vmem:[#allocation3 + $0xe8] sm:$0xff]
      %v4448 = vld [vmem:[#allocation3 + $0xf0] sm:$0xff]
      %v4449 = vld [vmem:[#allocation3 + $0xf8] sm:$0xff]
      %v4450 = vld [vmem:[#allocation3 + $0x100] sm:$0xff]
      %v4451 = vld [vmem:[#allocation3 + $0x108] sm:$0xff]
      %v4452 = vld [vmem:[#allocation3 + $0x110] sm:$0xff]
      %v4453 = vld [vmem:[#allocation3 + $0x118] sm:$0xff]
      %v4454 = vld [vmem:[#allocation3 + $0x120] sm:$0xff]
      %v4455 = vld [vmem:[#allocation3 + $0x128] sm:$0xff]
      %v4456 = vld [vmem:[#allocation3 + $0x130] sm:$0xff]
      %v4457 = vld [vmem:[#allocation3 + $0x138] sm:$0xff]
      %v4458 = vld [vmem:[#allocation3 + $0x140] sm:$0xff]
      %v4459 = vld [vmem:[#allocation3 + $0x148] sm:$0xff]
      %v4460 = vld [vmem:[#allocation3 + $0x150] sm:$0xff]
      %v4461 = vld [vmem:[#allocation3 + $0x158] sm:$0xff]
      %v4462 = vld [vmem:[#allocation3 + $0x160] sm:$0xff]
      %v4463 = vld [vmem:[#allocation3 + $0x168] sm:$0xff]
      %v4464 = vld [vmem:[#allocation3 + $0x170] sm:$0xff]
      %v4465 = vld [vmem:[#allocation3 + $0x178] sm:$0xff]
      %v4466 = vld [vmem:[#allocation3 + $0x180] sm:$0xff]
      %v4467 = vld [vmem:[#allocation3 + $0x188] sm:$0xff]
      %v4468 = vld [vmem:[#allocation3 + $0x190] sm:$0xff]
      %v4469 = vld [vmem:[#allocation3 + $0x198] sm:$0xff]
      %v4470 = vld [vmem:[#allocation3 + $0x1a0] sm:$0xff]
      %v4471 = vld [vmem:[#allocation3 + $0x1a8] sm:$0xff]
      %v4472 = vld [vmem:[#allocation3 + $0x1b0] sm:$0xff]
      %v4473 = vld [vmem:[#allocation3 + $0x1b8] sm:$0xff]
      %v4474 = vld [vmem:[#allocation3 + $0x1c0] sm:$0xff]
      %v4475 = vld [vmem:[#allocation3 + $0x1c8] sm:$0xff]
      %v4476 = vld [vmem:[#allocation3 + $0x1d0] sm:$0xff]
      %v4477 = vld [vmem:[#allocation3 + $0x1d8] sm:$0xff]
      %v4478 = vld [vmem:[#allocation3 + $0x1e0] sm:$0xff]
      %v4479 = vld [vmem:[#allocation3 + $0x1e8] sm:$0xff]
      %v4480 = vld [vmem:[#allocation3 + $0x1f0] sm:$0xff]
      %v4481 = vld [vmem:[#allocation3 + $0x1f8] sm:$0xff]
      %v4482 = vld [vmem:[#allocation3 + $0x200] sm:$0xff]
      %v4483 = vld [vmem:[#allocation3 + $0x208] sm:$0xff]
      %v4484 = vld [vmem:[#allocation3 + $0x210] sm:$0xff]
      %v4485 = vld [vmem:[#allocation3 + $0x218] sm:$0xff]
      %v4486 = vld [vmem:[#allocation3 + $0x220] sm:$0xff]
      %v4487 = vld [vmem:[#allocation3 + $0x228] sm:$0xff]
      %v4488 = vld [vmem:[#allocation3 + $0x230] sm:$0xff]
      %v4489 = vld [vmem:[#allocation3 + $0x238] sm:$0xff]
      %v4490 = vld [vmem:[#allocation3 + $0x240] sm:$0xff]
      %v4491 = vld [vmem:[#allocation3 + $0x248] sm:$0xff]
      %v4492 = vld [vmem:[#allocation3 + $0x250] sm:$0xff]
      %v4493 = vld [vmem:[#allocation3 + $0x258] sm:$0xff]
      %v4494 = vld [vmem:[#allocation3 + $0x260] sm:$0xff]
      %v4495 = vld [vmem:[#allocation3 + $0x268] sm:$0xff]
      %v4496 = vld [vmem:[#allocation3 + $0x270] sm:$0xff]
      %v4497 = vld [vmem:[#allocation3 + $0x278] sm:$0xff]
      %v4498 = vld [vmem:[#allocation3 + $0x280] sm:$0xff]
      %v4499 = vld [vmem:[#allocation3 + $0x288] sm:$0xff]
      %v4500 = vld [vmem:[#allocation3 + $0x290] sm:$0xff]
      %v4501 = vld [vmem:[#allocation3 + $0x298] sm:$0xff]
      %v4502 = vld [vmem:[#allocation3 + $0x2a0] sm:$0xff]
      %v4503 = vld [vmem:[#allocation3 + $0x2a8] sm:$0xff]
      %v4504 = vld [vmem:[#allocation3 + $0x2b0] sm:$0xff]
      %v4505 = vld [vmem:[#allocation3 + $0x2b8] sm:$0xff]
      %v4506 = vld [vmem:[#allocation3 + $0x2c0] sm:$0xff]
      %v4507 = vld [vmem:[#allocation3 + $0x2c8] sm:$0xff]
      %v4508 = vld [vmem:[#allocation3 + $0x2d0] sm:$0xff]
      %v4509 = vld [vmem:[#allocation3 + $0x2d8] sm:$0xff]
      %v4510 = vld [vmem:[#allocation3 + $0x2e0] sm:$0xff]
      %v4511 = vld [vmem:[#allocation3 + $0x2e8] sm:$0xff]
      %v4512 = vld [vmem:[#allocation3 + $0x2f0] sm:$0xff]
      %v4513 = vld [vmem:[#allocation3 + $0x2f8] sm:$0xff]
      %v4514 = vld [vmem:[#allocation3 + $0x300] sm:$0xff]
      %v4515 = vld [vmem:[#allocation3 + $0x308] sm:$0xff]
      %v4516 = vld [vmem:[#allocation3 + $0x310] sm:$0xff]
      %v4517 = vld [vmem:[#allocation3 + $0x318] sm:$0xff]
      %v4518 = vld [vmem:[#allocation3 + $0x320] sm:$0xff]
      %v4519 = vld [vmem:[#allocation3 + $0x328] sm:$0xff]
      %v4520 = vld [vmem:[#allocation3 + $0x330] sm:$0xff]
      %v4521 = vld [vmem:[#allocation3 + $0x338] sm:$0xff]
      %v4522 = vld [vmem:[#allocation3 + $0x340] sm:$0xff]
      %v4523 = vld [vmem:[#allocation3 + $0x348] sm:$0xff]
      %v4524 = vld [vmem:[#allocation3 + $0x350] sm:$0xff]
      %v4525 = vld [vmem:[#allocation3 + $0x358] sm:$0xff]
      %v4526 = vld [vmem:[#allocation3 + $0x360] sm:$0xff]
      %v4527 = vld [vmem:[#allocation3 + $0x368] sm:$0xff]
      %v4528 = vld [vmem:[#allocation3 + $0x370] sm:$0xff]
      %v4529 = vld [vmem:[#allocation3 + $0x378] sm:$0xff]
      %v4530 = vld [vmem:[#allocation3 + $0x380] sm:$0xff]
      %v4531 = vld [vmem:[#allocation3 + $0x388] sm:$0xff]
      %v4532 = vld [vmem:[#allocation3 + $0x390] sm:$0xff]
      %v4533 = vld [vmem:[#allocation3 + $0x398] sm:$0xff]
      %v4534 = vld [vmem:[#allocation3 + $0x3a0] sm:$0xff]
      %v4535 = vld [vmem:[#allocation3 + $0x3a8] sm:$0xff]
      %v4536 = vld [vmem:[#allocation3 + $0x3b0] sm:$0xff]
      %v4537 = vld [vmem:[#allocation3 + $0x3b8] sm:$0xff]
      %v4538 = vld [vmem:[#allocation3 + $0x3c0] sm:$0xff]
      %v4539 = vld [vmem:[#allocation3 + $0x3c8] sm:$0xff]
      %v4540 = vld [vmem:[#allocation3 + $0x3d0] sm:$0xff]
      %v4541 = vld [vmem:[#allocation3 + $0x3d8] sm:$0xff]
      %v4542 = vld [vmem:[#allocation3 + $0x3e0] sm:$0xff]
      %v4543 = vld [vmem:[#allocation3 + $0x3e8] sm:$0xff]
      %v4544 = vld [vmem:[#allocation3 + $0x3f0] sm:$0xff]
      %v4545 = vld [vmem:[#allocation3 + $0x3f8] sm:$0xff]
      %v4546 = vld [vmem:[#allocation3 + $0x400] sm:$0xff]
      %v4547 = vld [vmem:[#allocation3 + $0x408] sm:$0xff]
      %v4548 = vld [vmem:[#allocation3 + $0x410] sm:$0xff]
      %v4549 = vld [vmem:[#allocation3 + $0x418] sm:$0xff]
      %v4550 = vld [vmem:[#allocation3 + $0x420] sm:$0xff]
      %v4551 = vld [vmem:[#allocation3 + $0x428] sm:$0xff]
      %v4552 = vld [vmem:[#allocation3 + $0x430] sm:$0xff]
      %v4553 = vld [vmem:[#allocation3 + $0x438] sm:$0xff]
      %v4554 = vld [vmem:[#allocation3 + $0x440] sm:$0xff]
      %v4555 = vld [vmem:[#allocation3 + $0x448] sm:$0xff]
      %v4556 = vld [vmem:[#allocation3 + $0x450] sm:$0xff]
      %v4557 = vld [vmem:[#allocation3 + $0x458] sm:$0xff]
      %v4558 = vld [vmem:[#allocation3 + $0x460] sm:$0xff]
      %v4559 = vld [vmem:[#allocation3 + $0x468] sm:$0xff]
      %v4560 = vld [vmem:[#allocation3 + $0x470] sm:$0xff]
      %v4561 = vld [vmem:[#allocation3 + $0x478] sm:$0xff]
      %vm4562 = vcmask 130048
      %v4564 = vsel %vm4562, %v4411, 0
      %v4567 = vsel %vm4562, %v4413, 0
      %v4570 = vsel %vm4562, %v4415, 0
      %v4573 = vsel %vm4562, %v4417, 0
      %4575 = vmatprep.subr.mxu0 %v4539
      %4576 = vmatpush1.msra.mxu0 %v4538
      %4577 = vmatprep.subr.mxu0 %v4531
      %4578 = vmatpush1.msra.mxu0 %v4530
      %4579 = vmatprep.subr.mxu0 %v4523
      %4580 = vmatpush1.msra.mxu0 %v4522
      %4581 = vmatprep.subr.mxu0 %v4515
      %4582 = vmatpush1.msra.mxu0 %v4514
      %4583 = vmatprep.subr.mxu0 %v4507
      %4584 = vmatpush1.msra.mxu0 %v4506
      %4585 = vmatprep.subr.mxu0 %v4499
      %4586 = vmatpush1.msra.mxu0 %v4498
      %4587 = vmatprep.subr.mxu0 %v4491
      %4588 = vmatpush1.msra.mxu0 %v4490
      %4589 = vmatprep.subr.mxu0 %v4483
      %4590 = vmatpush1.msra.mxu0 %v4482
      %4591 = vmatprep.subr.mxu0 %v4475
      %4592 = vmatpush1.msra.mxu0 %v4474
      %4593 = vmatprep.subr.mxu0 %v4467
      %4594 = vmatpush1.msra.mxu0 %v4466
      %4595 = vmatprep.subr.mxu0 %v4459
      %4596 = vmatpush1.msra.mxu0 %v4458
      %4597 = vmatprep.subr.mxu0 %v4451
      %4598 = vmatpush1.msra.mxu0 %v4450
      %4599 = vmatprep.subr.mxu0 %v4443
      %4600 = vmatpush1.msra.mxu0 %v4442
      %4601 = vmatprep.subr.mxu0 %v4435
      %4602 = vmatpush1.msra.mxu0 %v4434
      %4603 = vmatprep.subr.mxu0 %v4427
      %4604 = vmatpush1.msra.mxu0 %v4426
      %4605 = vmatprep.subr.mxu0 %v4419
      %4606 = vmatpush1.msra.mxu0 %v4418
      %4607 = vmatprep.subr.mxu0 0.0
      %4608 = vmatpush2.msra.mxu0 0.0
      %4609 = vmatprep.subr.mxu0 0.0
      %4610 = vmatpush2.msra.mxu0 0.0
      %4611 = vmatprep.subr.mxu0 0.0
      %4612 = vmatpush2.msra.mxu0 0.0
      %4613 = vmatprep.subr.mxu0 0.0
      %4614 = vmatpush2.msra.mxu0 0.0
      %4615 = vmatprep.subr.mxu0 0.0
      %4616 = vmatpush2.msra.mxu0 0.0
      %4617 = vmatprep.subr.mxu0 0.0
      %4618 = vmatpush2.msra.mxu0 0.0
      %4619 = vmatprep.subr.mxu0 0.0
      %4620 = vmatpush2.msra.mxu0 0.0
      %4621 = vmatprep.subr.mxu0 0.0
      %4622 = vmatpush2.msra.mxu0 0.0
      %4623 = vmatprep.subr.mxu0 0.0
      %4624 = vmatpush2.msra.mxu0 0.0
      %4625 = vmatprep.subr.mxu0 0.0
      %4626 = vmatpush2.msra.mxu0 0.0
      %4627 = vmatprep.subr.mxu0 0.0
      %4628 = vmatpush2.msra.mxu0 0.0
      %4629 = vmatprep.subr.mxu0 0.0
      %4630 = vmatpush2.msra.mxu0 0.0
      %4631 = vmatprep.subr.mxu0 0.0
      %4632 = vmatpush2.msra.mxu0 0.0
      %4633 = vmatprep.subr.mxu0 0.0
      %4634 = vmatpush2.msra.mxu0 0.0
      %4635 = vmatprep.subr.mxu0 %v4555
      %4636 = vmatpush2.msra.mxu0 %v4554
      %4637 = vmatprep.subr.mxu0 %v4547
      %4638 = vmatpush2.msra.mxu0 %v4546
      %4639 = vmatprep.mubr.f32.mxu0 %v4564
      %4640 = vmatmul.mubr.f32.gmra.mxu0 %v4410
      %v4641 = vpop.f32.mrf.mxu0
      %v4642 = vadd.f32 0.0, %v4641
      %v4643 = vpop.f32.mrf.mxu0
      %v4644 = vadd.f32 0.0, %v4643
      %4645 = vmatprep.mubr.f32.mxu0 %v4567
      %4646 = vmatmul.mubr.f32.gmra.mxu0 %v4412
      %v4647 = vpop.f32.mrf.mxu0
      %v4648 = vadd.f32 0.0, %v4647
      %v4649 = vpop.f32.mrf.mxu0
      %v4650 = vadd.f32 0.0, %v4649
      %4651 = vmatprep.mubr.f32.mxu0 %v4570
      %4652 = vmatmul.mubr.f32.gmra.mxu0 %v4414
      %v4653 = vpop.f32.mrf.mxu0
      %v4654 = vadd.f32 0.0, %v4653
      %v4655 = vpop.f32.mrf.mxu0
      %v4656 = vadd.f32 0.0, %v4655
      %4657 = vmatprep.mubr.f32.mxu0 %v4573
      %4658 = vmatmul.mubr.f32.gmra.mxu0 %v4416
      %v4659 = vpop.f32.mrf.mxu0
      %v4660 = vadd.f32 0.0, %v4659
      %v4661 = vpop.f32.mrf.mxu0
      %v4662 = vadd.f32 0.0, %v4661
      %4663 = vdwg.mxu0
      %4664 = vmatprep.subr.mxu0 %v4541
      %4665 = vmatpush1.msra.mxu0 %v4540
      %4666 = vmatprep.subr.mxu0 %v4533
      %4667 = vmatpush1.msra.mxu0 %v4532
      %4668 = vmatprep.subr.mxu0 %v4525
      %4669 = vmatpush1.msra.mxu0 %v4524
      %4670 = vmatprep.subr.mxu0 %v4517
      %4671 = vmatpush1.msra.mxu0 %v4516
      %4672 = vmatprep.subr.mxu0 %v4509
      %4673 = vmatpush1.msra.mxu0 %v4508
      %4674 = vmatprep.subr.mxu0 %v4501
      %4675 = vmatpush1.msra.mxu0 %v4500
      %4676 = vmatprep.subr.mxu0 %v4493
      %4677 = vmatpush1.msra.mxu0 %v4492
      %4678 = vmatprep.subr.mxu0 %v4485
      %4679 = vmatpush1.msra.mxu0 %v4484
      %4680 = vmatprep.subr.mxu0 %v4477
      %4681 = vmatpush1.msra.mxu0 %v4476
      %4682 = vmatprep.subr.mxu0 %v4469
      %4683 = vmatpush1.msra.mxu0 %v4468
      %4684 = vmatprep.subr.mxu0 %v4461
      %4685 = vmatpush1.msra.mxu0 %v4460
      %4686 = vmatprep.subr.mxu0 %v4453
      %4687 = vmatpush1.msra.mxu0 %v4452
      %4688 = vmatprep.subr.mxu0 %v4445
      %4689 = vmatpush1.msra.mxu0 %v4444
      %4690 = vmatprep.subr.mxu0 %v4437
      %4691 = vmatpush1.msra.mxu0 %v4436
      %4692 = vmatprep.subr.mxu0 %v4429
      %4693 = vmatpush1.msra.mxu0 %v4428
      %4694 = vmatprep.subr.mxu0 %v4421
      %4695 = vmatpush1.msra.mxu0 %v4420
      %4696 = vmatprep.subr.mxu0 0.0
      %4697 = vmatpush2.msra.mxu0 0.0
      %4698 = vmatprep.subr.mxu0 0.0
      %4699 = vmatpush2.msra.mxu0 0.0
      %4700 = vmatprep.subr.mxu0 0.0
      %4701 = vmatpush2.msra.mxu0 0.0
      %4702 = vmatprep.subr.mxu0 0.0
      %4703 = vmatpush2.msra.mxu0 0.0
      %4704 = vmatprep.subr.mxu0 0.0
      %4705 = vmatpush2.msra.mxu0 0.0
      %4706 = vmatprep.subr.mxu0 0.0
      %4707 = vmatpush2.msra.mxu0 0.0
      %4708 = vmatprep.subr.mxu0 0.0
      %4709 = vmatpush2.msra.mxu0 0.0
      %4710 = vmatprep.subr.mxu0 0.0
      %4711 = vmatpush2.msra.mxu0 0.0
      %4712 = vmatprep.subr.mxu0 0.0
      %4713 = vmatpush2.msra.mxu0 0.0
      %4714 = vmatprep.subr.mxu0 0.0
      %4715 = vmatpush2.msra.mxu0 0.0
      %4716 = vmatprep.subr.mxu0 0.0
      %4717 = vmatpush2.msra.mxu0 0.0
      %4718 = vmatprep.subr.mxu0 0.0
      %4719 = vmatpush2.msra.mxu0 0.0
      %4720 = vmatprep.subr.mxu0 0.0
      %4721 = vmatpush2.msra.mxu0 0.0
      %4722 = vmatprep.subr.mxu0 0.0
      %4723 = vmatpush2.msra.mxu0 0.0
      %4724 = vmatprep.subr.mxu0 %v4557
      %4725 = vmatpush2.msra.mxu0 %v4556
      %4726 = vmatprep.subr.mxu0 %v4549
      %4727 = vmatpush2.msra.mxu0 %v4548
      %4728 = vmatprep.mubr.f32.mxu0 %v4564
      %4729 = vmatmul.mubr.f32.gmra.mxu0 %v4410
      %v4730 = vpop.f32.mrf.mxu0
      %v4731 = vadd.f32 0.0, %v4730
      %v4732 = vpop.f32.mrf.mxu0
      %v4733 = vadd.f32 0.0, %v4732
      %4734 = vmatprep.mubr.f32.mxu0 %v4567
      %4735 = vmatmul.mubr.f32.gmra.mxu0 %v4412
      %v4736 = vpop.f32.mrf.mxu0
      %v4737 = vadd.f32 0.0, %v4736
      %v4738 = vpop.f32.mrf.mxu0
      %v4739 = vadd.f32 0.0, %v4738
      %4740 = vmatprep.mubr.f32.mxu0 %v4570
      %4741 = vmatmul.mubr.f32.gmra.mxu0 %v4414
      %v4742 = vpop.f32.mrf.mxu0
      %v4743 = vadd.f32 0.0, %v4742
      %v4744 = vpop.f32.mrf.mxu0
      %v4745 = vadd.f32 0.0, %v4744
      %4746 = vmatprep.mubr.f32.mxu0 %v4573
      %4747 = vmatmul.mubr.f32.gmra.mxu0 %v4416
      %v4748 = vpop.f32.mrf.mxu0
      %v4749 = vadd.f32 0.0, %v4748
      %v4750 = vpop.f32.mrf.mxu0
      %v4751 = vadd.f32 0.0, %v4750
      %4752 = vdwg.mxu0
      %4753 = vmatprep.subr.mxu0 %v4543
      %4754 = vmatpush1.msra.mxu0 %v4542
      %4755 = vmatprep.subr.mxu0 %v4535
      %4756 = vmatpush1.msra.mxu0 %v4534
      %4757 = vmatprep.subr.mxu0 %v4527
      %4758 = vmatpush1.msra.mxu0 %v4526
      %4759 = vmatprep.subr.mxu0 %v4519
      %4760 = vmatpush1.msra.mxu0 %v4518
      %4761 = vmatprep.subr.mxu0 %v4511
      %4762 = vmatpush1.msra.mxu0 %v4510
      %4763 = vmatprep.subr.mxu0 %v4503
      %4764 = vmatpush1.msra.mxu0 %v4502
      %4765 = vmatprep.subr.mxu0 %v4495
      %4766 = vmatpush1.msra.mxu0 %v4494
      %4767 = vmatprep.subr.mxu0 %v4487
      %4768 = vmatpush1.msra.mxu0 %v4486
      %4769 = vmatprep.subr.mxu0 %v4479
      %4770 = vmatpush1.msra.mxu0 %v4478
      %4771 = vmatprep.subr.mxu0 %v4471
      %4772 = vmatpush1.msra.mxu0 %v4470
      %4773 = vmatprep.subr.mxu0 %v4463
      %4774 = vmatpush1.msra.mxu0 %v4462
      %4775 = vmatprep.subr.mxu0 %v4455
      %4776 = vmatpush1.msra.mxu0 %v4454
      %4777 = vmatprep.subr.mxu0 %v4447
      %4778 = vmatpush1.msra.mxu0 %v4446
      %4779 = vmatprep.subr.mxu0 %v4439
      %4780 = vmatpush1.msra.mxu0 %v4438
      %4781 = vmatprep.subr.mxu0 %v4431
      %4782 = vmatpush1.msra.mxu0 %v4430
      %4783 = vmatprep.subr.mxu0 %v4423
      %4784 = vmatpush1.msra.mxu0 %v4422
      %4785 = vmatprep.subr.mxu0 0.0
      %4786 = vmatpush2.msra.mxu0 0.0
      %4787 = vmatprep.subr.mxu0 0.0
      %4788 = vmatpush2.msra.mxu0 0.0
      %4789 = vmatprep.subr.mxu0 0.0
      %4790 = vmatpush2.msra.mxu0 0.0
      %4791 = vmatprep.subr.mxu0 0.0
      %4792 = vmatpush2.msra.mxu0 0.0
      %4793 = vmatprep.subr.mxu0 0.0
      %4794 = vmatpush2.msra.mxu0 0.0
      %4795 = vmatprep.subr.mxu0 0.0
      %4796 = vmatpush2.msra.mxu0 0.0
      %4797 = vmatprep.subr.mxu0 0.0
      %4798 = vmatpush2.msra.mxu0 0.0
      %4799 = vmatprep.subr.mxu0 0.0
      %4800 = vmatpush2.msra.mxu0 0.0
      %4801 = vmatprep.subr.mxu0 0.0
      %4802 = vmatpush2.msra.mxu0 0.0
      %4803 = vmatprep.subr.mxu0 0.0
      %4804 = vmatpush2.msra.mxu0 0.0
      %4805 = vmatprep.subr.mxu0 0.0
      %4806 = vmatpush2.msra.mxu0 0.0
      %4807 = vmatprep.subr.mxu0 0.0
      %4808 = vmatpush2.msra.mxu0 0.0
      %4809 = vmatprep.subr.mxu0 0.0
      %4810 = vmatpush2.msra.mxu0 0.0
      %4811 = vmatprep.subr.mxu0 0.0
      %4812 = vmatpush2.msra.mxu0 0.0
      %4813 = vmatprep.subr.mxu0 %v4559
      %4814 = vmatpush2.msra.mxu0 %v4558
      %4815 = vmatprep.subr.mxu0 %v4551
      %4816 = vmatpush2.msra.mxu0 %v4550
      %4817 = vmatprep.mubr.f32.mxu0 %v4564
      %4818 = vmatmul.mubr.f32.gmra.mxu0 %v4410
      %v4819 = vpop.f32.mrf.mxu0
      %v4820 = vadd.f32 0.0, %v4819
      %v4821 = vpop.f32.mrf.mxu0
      %v4822 = vadd.f32 0.0, %v4821
      %4823 = vmatprep.mubr.f32.mxu0 %v4567
      %4824 = vmatmul.mubr.f32.gmra.mxu0 %v4412
      %v4825 = vpop.f32.mrf.mxu0
      %v4826 = vadd.f32 0.0, %v4825
      %v4827 = vpop.f32.mrf.mxu0
      %v4828 = vadd.f32 0.0, %v4827
      %4829 = vmatprep.mubr.f32.mxu0 %v4570
      %4830 = vmatmul.mubr.f32.gmra.mxu0 %v4414
      %v4831 = vpop.f32.mrf.mxu0
      %v4832 = vadd.f32 0.0, %v4831
      %v4833 = vpop.f32.mrf.mxu0
      %v4834 = vadd.f32 0.0, %v4833
      %4835 = vmatprep.mubr.f32.mxu0 %v4573
      %4836 = vmatmul.mubr.f32.gmra.mxu0 %v4416
      %v4837 = vpop.f32.mrf.mxu0
      %v4838 = vadd.f32 0.0, %v4837
      %v4839 = vpop.f32.mrf.mxu0
      %v4840 = vadd.f32 0.0, %v4839
      %4841 = vdwg.mxu0
      %4842 = vmatprep.subr.mxu0 %v4545
      %4843 = vmatpush1.msra.mxu0 %v4544
      %4844 = vmatprep.subr.mxu0 %v4537
      %4845 = vmatpush1.msra.mxu0 %v4536
      %4846 = vmatprep.subr.mxu0 %v4529
      %4847 = vmatpush1.msra.mxu0 %v4528
      %4848 = vmatprep.subr.mxu0 %v4521
      %4849 = vmatpush1.msra.mxu0 %v4520
      %4850 = vmatprep.subr.mxu0 %v4513
      %4851 = vmatpush1.msra.mxu0 %v4512
      %4852 = vmatprep.subr.mxu0 %v4505
      %4853 = vmatpush1.msra.mxu0 %v4504
      %4854 = vmatprep.subr.mxu0 %v4497
      %4855 = vmatpush1.msra.mxu0 %v4496
      %4856 = vmatprep.subr.mxu0 %v4489
      %4857 = vmatpush1.msra.mxu0 %v4488
      %4858 = vmatprep.subr.mxu0 %v4481
      %4859 = vmatpush1.msra.mxu0 %v4480
      %4860 = vmatprep.subr.mxu0 %v4473
      %4861 = vmatpush1.msra.mxu0 %v4472
      %4862 = vmatprep.subr.mxu0 %v4465
      %4863 = vmatpush1.msra.mxu0 %v4464
      %4864 = vmatprep.subr.mxu0 %v4457
      %4865 = vmatpush1.msra.mxu0 %v4456
      %4866 = vmatprep.subr.mxu0 %v4449
      %4867 = vmatpush1.msra.mxu0 %v4448
      %4868 = vmatprep.subr.mxu0 %v4441
      %4869 = vmatpush1.msra.mxu0 %v4440
      %4870 = vmatprep.subr.mxu0 %v4433
      %4871 = vmatpush1.msra.mxu0 %v4432
      %4872 = vmatprep.subr.mxu0 %v4425
      %4873 = vmatpush1.msra.mxu0 %v4424
      %4874 = vmatprep.subr.mxu0 0.0
      %4875 = vmatpush2.msra.mxu0 0.0
      %4876 = vmatprep.subr.mxu0 0.0
      %4877 = vmatpush2.msra.mxu0 0.0
      %4878 = vmatprep.subr.mxu0 0.0
      %4879 = vmatpush2.msra.mxu0 0.0
      %4880 = vmatprep.subr.mxu0 0.0
      %4881 = vmatpush2.msra.mxu0 0.0
      %4882 = vmatprep.subr.mxu0 0.0
      %4883 = vmatpush2.msra.mxu0 0.0
      %4884 = vmatprep.subr.mxu0 0.0
      %4885 = vmatpush2.msra.mxu0 0.0
      %4886 = vmatprep.subr.mxu0 0.0
      %4887 = vmatpush2.msra.mxu0 0.0
      %4888 = vmatprep.subr.mxu0 0.0
      %4889 = vmatpush2.msra.mxu0 0.0
      %4890 = vmatprep.subr.mxu0 0.0
      %4891 = vmatpush2.msra.mxu0 0.0
      %4892 = vmatprep.subr.mxu0 0.0
      %4893 = vmatpush2.msra.mxu0 0.0
      %4894 = vmatprep.subr.mxu0 0.0
      %4895 = vmatpush2.msra.mxu0 0.0
      %4896 = vmatprep.subr.mxu0 0.0
      %4897 = vmatpush2.msra.mxu0 0.0
      %4898 = vmatprep.subr.mxu0 0.0
      %4899 = vmatpush2.msra.mxu0 0.0
      %4900 = vmatprep.subr.mxu0 0.0
      %4901 = vmatpush2.msra.mxu0 0.0
      %4902 = vmatprep.subr.mxu0 %v4561
      %4903 = vmatpush2.msra.mxu0 %v4560
      %4904 = vmatprep.subr.mxu0 %v4553
      %4905 = vmatpush2.msra.mxu0 %v4552
      %4906 = vmatprep.mubr.f32.mxu0 %v4564
      %4907 = vmatmul.mubr.f32.gmra.mxu0 %v4410
      %v4908 = vpop.f32.mrf.mxu0
      %v4909 = vadd.f32 0.0, %v4908
      %v4910 = vpop.f32.mrf.mxu0
      %v4911 = vadd.f32 0.0, %v4910
      %4912 = vmatprep.mubr.f32.mxu0 %v4567
      %4913 = vmatmul.mubr.f32.gmra.mxu0 %v4412
      %v4914 = vpop.f32.mrf.mxu0
      %v4915 = vadd.f32 0.0, %v4914
      %v4916 = vpop.f32.mrf.mxu0
      %v4917 = vadd.f32 0.0, %v4916
      %4918 = vmatprep.mubr.f32.mxu0 %v4570
      %4919 = vmatmul.mubr.f32.gmra.mxu0 %v4414
      %v4920 = vpop.f32.mrf.mxu0
      %v4921 = vadd.f32 0.0, %v4920
      %v4922 = vpop.f32.mrf.mxu0
      %v4923 = vadd.f32 0.0, %v4922
      %4924 = vmatprep.mubr.f32.mxu0 %v4573
      %4925 = vmatmul.mubr.f32.gmra.mxu0 %v4416
      %v4926 = vpop.f32.mrf.mxu0
      %v4927 = vadd.f32 0.0, %v4926
      %v4928 = vpop.f32.mrf.mxu0
      %v4929 = vadd.f32 0.0, %v4928
      %4930 = vdwg.mxu0
      %4963 = vrot.lane.b32.xlu0 %v4642, 126
      %v4964 = vpop.permute.xlu0 %4963
      %4965 = vrot.lane.b32.xlu0 %v4644, 126
      %v4966 = vpop.permute.xlu0 %4965
      %4967 = vrot.lane.b32.xlu0 %v4731, 126
      %v4968 = vpop.permute.xlu0 %4967
      %4969 = vrot.lane.b32.xlu0 %v4733, 126
      %v4970 = vpop.permute.xlu0 %4969
      %4971 = vrot.lane.b32.xlu0 %v4820, 126
      %v4972 = vpop.permute.xlu0 %4971
      %4973 = vrot.lane.b32.xlu0 %v4822, 126
      %v4974 = vpop.permute.xlu0 %4973
      %4975 = vrot.lane.b32.xlu0 %v4909, 126
      %v4976 = vpop.permute.xlu0 %4975
      %4977 = vrot.lane.b32.xlu0 %v4911, 126
      %v4978 = vpop.permute.xlu0 %4977
      %4979 = vrot.lane.b32.xlu0 %v4648, 126
      %v4980 = vpop.permute.xlu0 %4979
      %4981 = vrot.lane.b32.xlu0 %v4650, 126
      %v4982 = vpop.permute.xlu0 %4981
      %4983 = vrot.lane.b32.xlu0 %v4737, 126
      %v4984 = vpop.permute.xlu0 %4983
      %4985 = vrot.lane.b32.xlu0 %v4739, 126
      %v4986 = vpop.permute.xlu0 %4985
      %4987 = vrot.lane.b32.xlu0 %v4826, 126
      %v4988 = vpop.permute.xlu0 %4987
      %4989 = vrot.lane.b32.xlu0 %v4828, 126
      %v4990 = vpop.permute.xlu0 %4989
      %4991 = vrot.lane.b32.xlu0 %v4915, 126
      %v4992 = vpop.permute.xlu0 %4991
      %4993 = vrot.lane.b32.xlu0 %v4917, 126
      %v4994 = vpop.permute.xlu0 %4993
      %4995 = vrot.lane.b32.xlu0 %v4654, 126
      %v4996 = vpop.permute.xlu0 %4995
      %4997 = vrot.lane.b32.xlu0 %v4656, 126
      %v4998 = vpop.permute.xlu0 %4997
      %4999 = vrot.lane.b32.xlu0 %v4743, 126
      %v5000 = vpop.permute.xlu0 %4999
      %5001 = vrot.lane.b32.xlu0 %v4745, 126
      %v5002 = vpop.permute.xlu0 %5001
      %5003 = vrot.lane.b32.xlu0 %v4832, 126
      %v5004 = vpop.permute.xlu0 %5003
      %5005 = vrot.lane.b32.xlu0 %v4834, 126
      %v5006 = vpop.permute.xlu0 %5005
      %5007 = vrot.lane.b32.xlu0 %v4921, 126
      %v5008 = vpop.permute.xlu0 %5007
      %5009 = vrot.lane.b32.xlu0 %v4923, 126
      %v5010 = vpop.permute.xlu0 %5009
      %5011 = vrot.lane.b32.xlu0 %v4660, 126
      %v5012 = vpop.permute.xlu0 %5011
      %5013 = vrot.lane.b32.xlu0 %v4662, 126
      %v5014 = vpop.permute.xlu0 %5013
      %5015 = vrot.lane.b32.xlu0 %v4749, 126
      %v5016 = vpop.permute.xlu0 %5015
      %5017 = vrot.lane.b32.xlu0 %v4751, 126
      %v5018 = vpop.permute.xlu0 %5017
      %5019 = vrot.lane.b32.xlu0 %v4838, 126
      %v5020 = vpop.permute.xlu0 %5019
      %5021 = vrot.lane.b32.xlu0 %v4840, 126
      %v5022 = vpop.permute.xlu0 %5021
      %5023 = vrot.lane.b32.xlu0 %v4927, 126
      %v5024 = vpop.permute.xlu0 %5023
      %5025 = vrot.lane.b32.xlu0 %v4929, 126
      %v5026 = vpop.permute.xlu0 %5025
      %v5027 = vsel %vm448, %v4964, %v4966
      %v5028 = vsel %vm448, %v4966, %v4968
      %v5029 = vsel %vm448, %v4968, %v4970
      %v5030 = vsel %vm448, %v4970, %v4972
      %v5031 = vsel %vm448, %v4972, %v4974
      %v5032 = vsel %vm448, %v4974, %v4976
      %v5033 = vsel %vm448, %v4976, %v4978
      %v5034 = vsel %vm448, %v4980, %v4982
      %v5035 = vsel %vm448, %v4982, %v4984
      %v5036 = vsel %vm448, %v4984, %v4986
      %v5037 = vsel %vm448, %v4986, %v4988
      %v5038 = vsel %vm448, %v4988, %v4990
      %v5039 = vsel %vm448, %v4990, %v4992
      %v5040 = vsel %vm448, %v4992, %v4994
      %v5041 = vsel %vm448, %v4996, %v4998
      %v5042 = vsel %vm448, %v4998, %v5000
      %v5043 = vsel %vm448, %v5000, %v5002
      %v5044 = vsel %vm448, %v5002, %v5004
      %v5045 = vsel %vm448, %v5004, %v5006
      %v5046 = vsel %vm448, %v5006, %v5008
      %v5047 = vsel %vm448, %v5008, %v5010
      %v5048 = vsel %vm448, %v5012, %v5014
      %v5049 = vsel %vm448, %v5014, %v5016
      %v5050 = vsel %vm448, %v5016, %v5018
      %v5051 = vsel %vm448, %v5018, %v5020
      %v5052 = vsel %vm448, %v5020, %v5022
      %v5053 = vsel %vm448, %v5022, %v5024
      %v5054 = vsel %vm448, %v5024, %v5026
      %v5091 = vsel %vm448, %v4978, %v4964
      %v5092 = vsel %vm448, %v4994, %v4980
      %v5093 = vsel %vm448, %v5010, %v4996
      %v5094 = vsel %vm448, %v5026, %v5012
      %v5095 = vmax.f32 %v4642, %v5027
      %v5096 = vmax.f32 %v4644, %v5028
      %v5097 = vmax.f32 %v4731, %v5029
      %v5098 = vmax.f32 %v4733, %v5030
      %v5099 = vmax.f32 %v4820, %v5031
      %v5100 = vmax.f32 %v4822, %v5032
      %v5101 = vmax.f32 %v4909, %v5033
      %v5102 = vmax.f32 %v4911, %v5091
      %v5103 = vmax.f32 %v4648, %v5034
      %v5104 = vmax.f32 %v4650, %v5035
      %v5105 = vmax.f32 %v4737, %v5036
      %v5106 = vmax.f32 %v4739, %v5037
      %v5107 = vmax.f32 %v4826, %v5038
      %v5108 = vmax.f32 %v4828, %v5039
      %v5109 = vmax.f32 %v4915, %v5040
      %v5110 = vmax.f32 %v4917, %v5092
      %v5111 = vmax.f32 %v4654, %v5041
      %v5112 = vmax.f32 %v4656, %v5042
      %v5113 = vmax.f32 %v4743, %v5043
      %v5114 = vmax.f32 %v4745, %v5044
      %v5115 = vmax.f32 %v4832, %v5045
      %v5116 = vmax.f32 %v4834, %v5046
      %v5117 = vmax.f32 %v4921, %v5047
      %v5118 = vmax.f32 %v4923, %v5093
      %v5119 = vmax.f32 %v4660, %v5048
      %v5120 = vmax.f32 %v4662, %v5049
      %v5121 = vmax.f32 %v4749, %v5050
      %v5122 = vmax.f32 %v4751, %v5051
      %v5123 = vmax.f32 %v4838, %v5052
      %v5124 = vmax.f32 %v4840, %v5053
      %v5125 = vmax.f32 %v4927, %v5054
      %v5126 = vmax.f32 %v4929, %v5094
      %5159 = vrot.lane.b32.xlu0 %v5095, 64
      %v5160 = vpop.permute.xlu0 %5159
      %5161 = vrot.lane.b32.xlu0 %v5096, 64
      %v5162 = vpop.permute.xlu0 %5161
      %5163 = vrot.lane.b32.xlu0 %v5097, 64
      %v5164 = vpop.permute.xlu0 %5163
      %5165 = vrot.lane.b32.xlu0 %v5098, 64
      %v5166 = vpop.permute.xlu0 %5165
      %5167 = vrot.lane.b32.xlu0 %v5099, 64
      %v5168 = vpop.permute.xlu0 %5167
      %5169 = vrot.lane.b32.xlu0 %v5100, 64
      %v5170 = vpop.permute.xlu0 %5169
      %5171 = vrot.lane.b32.xlu0 %v5101, 64
      %v5172 = vpop.permute.xlu0 %5171
      %5173 = vrot.lane.b32.xlu0 %v5102, 64
      %v5174 = vpop.permute.xlu0 %5173
      %5175 = vrot.lane.b32.xlu0 %v5103, 64
      %v5176 = vpop.permute.xlu0 %5175
      %5177 = vrot.lane.b32.xlu0 %v5104, 64
      %v5178 = vpop.permute.xlu0 %5177
      %5179 = vrot.lane.b32.xlu0 %v5105, 64
      %v5180 = vpop.permute.xlu0 %5179
      %5181 = vrot.lane.b32.xlu0 %v5106, 64
      %v5182 = vpop.permute.xlu0 %5181
      %5183 = vrot.lane.b32.xlu0 %v5107, 64
      %v5184 = vpop.permute.xlu0 %5183
      %5185 = vrot.lane.b32.xlu0 %v5108, 64
      %v5186 = vpop.permute.xlu0 %5185
      %5187 = vrot.lane.b32.xlu0 %v5109, 64
      %v5188 = vpop.permute.xlu0 %5187
      %5189 = vrot.lane.b32.xlu0 %v5110, 64
      %v5190 = vpop.permute.xlu0 %5189
      %5191 = vrot.lane.b32.xlu0 %v5111, 64
      %v5192 = vpop.permute.xlu0 %5191
      %5193 = vrot.lane.b32.xlu0 %v5112, 64
      %v5194 = vpop.permute.xlu0 %5193
      %5195 = vrot.lane.b32.xlu0 %v5113, 64
      %v5196 = vpop.permute.xlu0 %5195
      %5197 = vrot.lane.b32.xlu0 %v5114, 64
      %v5198 = vpop.permute.xlu0 %5197
      %5199 = vrot.lane.b32.xlu0 %v5115, 64
      %v5200 = vpop.permute.xlu0 %5199
      %5201 = vrot.lane.b32.xlu0 %v5116, 64
      %v5202 = vpop.permute.xlu0 %5201
      %5203 = vrot.lane.b32.xlu0 %v5117, 64
      %v5204 = vpop.permute.xlu0 %5203
      %5205 = vrot.lane.b32.xlu0 %v5118, 64
      %v5206 = vpop.permute.xlu0 %5205
      %5207 = vrot.lane.b32.xlu0 %v5119, 64
      %v5208 = vpop.permute.xlu0 %5207
      %5209 = vrot.lane.b32.xlu0 %v5120, 64
      %v5210 = vpop.permute.xlu0 %5209
      %5211 = vrot.lane.b32.xlu0 %v5121, 64
      %v5212 = vpop.permute.xlu0 %5211
      %5213 = vrot.lane.b32.xlu0 %v5122, 64
      %v5214 = vpop.permute.xlu0 %5213
      %5215 = vrot.lane.b32.xlu0 %v5123, 64
      %v5216 = vpop.permute.xlu0 %5215
      %5217 = vrot.lane.b32.xlu0 %v5124, 64
      %v5218 = vpop.permute.xlu0 %5217
      %5219 = vrot.lane.b32.xlu0 %v5125, 64
      %v5220 = vpop.permute.xlu0 %5219
      %5221 = vrot.lane.b32.xlu0 %v5126, 64
      %v5222 = vpop.permute.xlu0 %5221
      %v5223 = vsel %vm792, %v5160, %v5162
      %v5224 = vsel %vm792, %v5162, %v5164
      %v5225 = vsel %vm792, %v5164, %v5166
      %v5226 = vsel %vm792, %v5166, %v5168
      %v5227 = vsel %vm792, %v5168, %v5170
      %v5228 = vsel %vm792, %v5170, %v5172
      %v5229 = vsel %vm792, %v5172, %v5174
      %v5230 = vsel %vm792, %v5176, %v5178
      %v5231 = vsel %vm792, %v5178, %v5180
      %v5232 = vsel %vm792, %v5180, %v5182
      %v5233 = vsel %vm792, %v5182, %v5184
      %v5234 = vsel %vm792, %v5184, %v5186
      %v5235 = vsel %vm792, %v5186, %v5188
      %v5236 = vsel %vm792, %v5188, %v5190
      %v5237 = vsel %vm792, %v5192, %v5194
      %v5238 = vsel %vm792, %v5194, %v5196
      %v5239 = vsel %vm792, %v5196, %v5198
      %v5240 = vsel %vm792, %v5198, %v5200
      %v5241 = vsel %vm792, %v5200, %v5202
      %v5242 = vsel %vm792, %v5202, %v5204
      %v5243 = vsel %vm792, %v5204, %v5206
      %v5244 = vsel %vm792, %v5208, %v5210
      %v5245 = vsel %vm792, %v5210, %v5212
      %v5246 = vsel %vm792, %v5212, %v5214
      %v5247 = vsel %vm792, %v5214, %v5216
      %v5248 = vsel %vm792, %v5216, %v5218
      %v5249 = vsel %vm792, %v5218, %v5220
      %v5250 = vsel %vm792, %v5220, %v5222
      %v5287 = vsel %vm792, %v5174, %v5160
      %v5288 = vsel %vm792, %v5190, %v5176
      %v5289 = vsel %vm792, %v5206, %v5192
      %v5290 = vsel %vm792, %v5222, %v5208
      %v5291 = vmax.f32 %v5095, %v5223
      %v5292 = vmax.f32 %v5096, %v5224
      %v5293 = vmax.f32 %v5097, %v5225
      %v5294 = vmax.f32 %v5098, %v5226
      %v5295 = vmax.f32 %v5099, %v5227
      %v5296 = vmax.f32 %v5100, %v5228
      %v5297 = vmax.f32 %v5101, %v5229
      %v5298 = vmax.f32 %v5102, %v5287
      %v5299 = vmax.f32 %v5103, %v5230
      %v5300 = vmax.f32 %v5104, %v5231
      %v5301 = vmax.f32 %v5105, %v5232
      %v5302 = vmax.f32 %v5106, %v5233
      %v5303 = vmax.f32 %v5107, %v5234
      %v5304 = vmax.f32 %v5108, %v5235
      %v5305 = vmax.f32 %v5109, %v5236
      %v5306 = vmax.f32 %v5110, %v5288
      %v5307 = vmax.f32 %v5111, %v5237
      %v5308 = vmax.f32 %v5112, %v5238
      %v5309 = vmax.f32 %v5113, %v5239
      %v5310 = vmax.f32 %v5114, %v5240
      %v5311 = vmax.f32 %v5115, %v5241
      %v5312 = vmax.f32 %v5116, %v5242
      %v5313 = vmax.f32 %v5117, %v5243
      %v5314 = vmax.f32 %v5118, %v5289
      %v5315 = vmax.f32 %v5119, %v5244
      %v5316 = vmax.f32 %v5120, %v5245
      %v5317 = vmax.f32 %v5121, %v5246
      %v5318 = vmax.f32 %v5122, %v5247
      %v5319 = vmax.f32 %v5123, %v5248
      %v5320 = vmax.f32 %v5124, %v5249
      %v5321 = vmax.f32 %v5125, %v5250
      %v5322 = vmax.f32 %v5126, %v5290
      %v5323 = vld [vmem:[%s5] sm:$0xff]
      %v5324 = vld [vmem:[%s5 + $0x8] sm:$0xff]
      %v5325 = vld [vmem:[%s5 + $0x10] sm:$0xff]
      %v5326 = vld [vmem:[%s5 + $0x18] sm:$0xff]
      %5328 = vset.pattern.permute.xlu0 0
      %5329 = vperm.xlu0 %5328, %v5323
      %v5330 = vpop.permute.xlu0 %5329
      %5333 = vset.pattern.permute.xlu0 0
      %5334 = vperm.xlu0 %5333, %v5324
      %v5335 = vpop.permute.xlu0 %5334
      %5338 = vset.pattern.permute.xlu0 0
      %5339 = vperm.xlu0 %5338, %v5325
      %v5340 = vpop.permute.xlu0 %5339
      %5343 = vset.pattern.permute.xlu0 0
      %5344 = vperm.xlu0 %5343, %v5326
      %v5345 = vpop.permute.xlu0 %5344
      %v5347 = vadd.f32 %v5291, %v5330
      %v5348 = vadd.f32 %v5292, %v5330
      %v5349 = vadd.f32 %v5293, %v5330
      %v5350 = vadd.f32 %v5294, %v5330
      %v5351 = vadd.f32 %v5295, %v5330
      %v5352 = vadd.f32 %v5296, %v5330
      %v5353 = vadd.f32 %v5297, %v5330
      %v5354 = vadd.f32 %v5298, %v5330
      %v5355 = vadd.f32 %v5299, %v5335
      %v5356 = vadd.f32 %v5300, %v5335
      %v5357 = vadd.f32 %v5301, %v5335
      %v5358 = vadd.f32 %v5302, %v5335
      %v5359 = vadd.f32 %v5303, %v5335
      %v5360 = vadd.f32 %v5304, %v5335
      %v5361 = vadd.f32 %v5305, %v5335
      %v5362 = vadd.f32 %v5306, %v5335
      %v5363 = vadd.f32 %v5307, %v5340
      %v5364 = vadd.f32 %v5308, %v5340
      %v5365 = vadd.f32 %v5309, %v5340
      %v5366 = vadd.f32 %v5310, %v5340
      %v5367 = vadd.f32 %v5311, %v5340
      %v5368 = vadd.f32 %v5312, %v5340
      %v5369 = vadd.f32 %v5313, %v5340
      %v5370 = vadd.f32 %v5314, %v5340
      %v5371 = vadd.f32 %v5315, %v5345
      %v5372 = vadd.f32 %v5316, %v5345
      %v5373 = vadd.f32 %v5317, %v5345
      %v5374 = vadd.f32 %v5318, %v5345
      %v5375 = vadd.f32 %v5319, %v5345
      %v5376 = vadd.f32 %v5320, %v5345
      %v5377 = vadd.f32 %v5321, %v5345
      %v5378 = vadd.f32 %v5322, %v5345
      %v5379 = vmax.f32 %v5347, 0.0
      %v5380 = vmax.f32 %v5348, 0.0
      %v5381 = vmax.f32 %v5349, 0.0
      %v5382 = vmax.f32 %v5350, 0.0
      %v5383 = vmax.f32 %v5351, 0.0
      %v5384 = vmax.f32 %v5352, 0.0
      %v5385 = vmax.f32 %v5353, 0.0
      %v5386 = vmax.f32 %v5354, 0.0
      %v5387 = vmax.f32 %v5355, 0.0
      %v5388 = vmax.f32 %v5356, 0.0
      %v5389 = vmax.f32 %v5357, 0.0
      %v5390 = vmax.f32 %v5358, 0.0
      %v5391 = vmax.f32 %v5359, 0.0
      %v5392 = vmax.f32 %v5360, 0.0
      %v5393 = vmax.f32 %v5361, 0.0
      %v5394 = vmax.f32 %v5362, 0.0
      %v5395 = vmax.f32 %v5363, 0.0
      %v5396 = vmax.f32 %v5364, 0.0
      %v5397 = vmax.f32 %v5365, 0.0
      %v5398 = vmax.f32 %v5366, 0.0
      %v5399 = vmax.f32 %v5367, 0.0
      %v5400 = vmax.f32 %v5368, 0.0
      %v5401 = vmax.f32 %v5369, 0.0
      %v5402 = vmax.f32 %v5370, 0.0
      %v5403 = vmax.f32 %v5371, 0.0
      %v5404 = vmax.f32 %v5372, 0.0
      %v5405 = vmax.f32 %v5373, 0.0
      %v5406 = vmax.f32 %v5374, 0.0
      %v5407 = vmax.f32 %v5375, 0.0
      %v5408 = vmax.f32 %v5376, 0.0
      %v5409 = vmax.f32 %v5377, 0.0
      %v5410 = vmax.f32 %v5378, 0.0
      %v5411 = vld [vmem:[%s7] sm:$0xff]
      %v5412 = vld [vmem:[%s7 + $0x8] sm:$0xff]
      %v5413 = vld [vmem:[%s7 + $0x10] sm:$0xff]
      %v5414 = vld [vmem:[%s7 + $0x18] sm:$0xff]
      %v5415 = vld [vmem:[%s7 + $0x20] sm:$0xff]
      %v5416 = vld [vmem:[%s7 + $0x28] sm:$0xff]
      %v5417 = vld [vmem:[%s7 + $0x30] sm:$0xff]
      %v5418 = vld [vmem:[%s7 + $0x38] sm:$0xff]
      %v5419 = vld [vmem:[%s7 + $0x40] sm:$0xff]
      %v5420 = vld [vmem:[%s7 + $0x48] sm:$0xff]
      %v5421 = vld [vmem:[%s7 + $0x50] sm:$0xff]
      %v5422 = vld [vmem:[%s7 + $0x58] sm:$0xff]
      %v5423 = vld [vmem:[%s7 + $0x60] sm:$0xff]
      %v5424 = vld [vmem:[%s7 + $0x68] sm:$0xff]
      %v5425 = vld [vmem:[%s7 + $0x70] sm:$0xff]
      %v5426 = vld [vmem:[%s7 + $0x78] sm:$0xff]
      %v5427 = vld [vmem:[%s7 + $0x80] sm:$0xff]
      %v5428 = vld [vmem:[%s7 + $0x88] sm:$0xff]
      %v5429 = vld [vmem:[%s7 + $0x90] sm:$0xff]
      %v5430 = vld [vmem:[%s7 + $0x98] sm:$0xff]
      %v5431 = vld [vmem:[%s7 + $0xa0] sm:$0xff]
      %v5432 = vld [vmem:[%s7 + $0xa8] sm:$0xff]
      %v5433 = vld [vmem:[%s7 + $0xb0] sm:$0xff]
      %v5434 = vld [vmem:[%s7 + $0xb8] sm:$0xff]
      %v5435 = vld [vmem:[%s7 + $0xc0] sm:$0xff]
      %v5436 = vld [vmem:[%s7 + $0xc8] sm:$0xff]
      %v5437 = vld [vmem:[%s7 + $0xd0] sm:$0xff]
      %v5438 = vld [vmem:[%s7 + $0xd8] sm:$0xff]
      %v5439 = vld [vmem:[%s7 + $0xe0] sm:$0xff]
      %v5440 = vld [vmem:[%s7 + $0xe8] sm:$0xff]
      %v5441 = vld [vmem:[%s7 + $0xf0] sm:$0xff]
      %v5442 = vld [vmem:[%s7 + $0xf8] sm:$0xff]
      %v5443 = vld [vmem:[%s7 + $0x100] sm:$0xff]
      %v5444 = vld [vmem:[%s7 + $0x108] sm:$0xff]
      %v5445 = vld [vmem:[%s7 + $0x110] sm:$0xff]
      %v5446 = vld [vmem:[%s7 + $0x118] sm:$0xff]
      %v5447 = vld [vmem:[%s7 + $0x120] sm:$0xff]
      %v5448 = vld [vmem:[%s7 + $0x128] sm:$0xff]
      %v5449 = vld [vmem:[%s7 + $0x130] sm:$0xff]
      %v5450 = vld [vmem:[%s7 + $0x138] sm:$0xff]
      %v5451 = vld [vmem:[%s7 + $0x140] sm:$0xff]
      %v5452 = vld [vmem:[%s7 + $0x148] sm:$0xff]
      %v5453 = vld [vmem:[%s7 + $0x150] sm:$0xff]
      %v5454 = vld [vmem:[%s7 + $0x158] sm:$0xff]
      %v5455 = vld [vmem:[%s7 + $0x160] sm:$0xff]
      %v5456 = vld [vmem:[%s7 + $0x168] sm:$0xff]
      %v5457 = vld [vmem:[%s7 + $0x170] sm:$0xff]
      %v5458 = vld [vmem:[%s7 + $0x178] sm:$0xff]
      %v5459 = vld [vmem:[%s7 + $0x180] sm:$0xff]
      %v5460 = vld [vmem:[%s7 + $0x188] sm:$0xff]
      %v5461 = vld [vmem:[%s7 + $0x190] sm:$0xff]
      %v5462 = vld [vmem:[%s7 + $0x198] sm:$0xff]
      %v5463 = vld [vmem:[%s7 + $0x1a0] sm:$0xff]
      %v5464 = vld [vmem:[%s7 + $0x1a8] sm:$0xff]
      %v5465 = vld [vmem:[%s7 + $0x1b0] sm:$0xff]
      %v5466 = vld [vmem:[%s7 + $0x1b8] sm:$0xff]
      %v5467 = vld [vmem:[%s7 + $0x1c0] sm:$0xff]
      %v5468 = vld [vmem:[%s7 + $0x1c8] sm:$0xff]
      %v5469 = vld [vmem:[%s7 + $0x1d0] sm:$0xff]
      %v5470 = vld [vmem:[%s7 + $0x1d8] sm:$0xff]
      %v5471 = vld [vmem:[%s7 + $0x1e0] sm:$0xff]
      %v5472 = vld [vmem:[%s7 + $0x1e8] sm:$0xff]
      %v5473 = vld [vmem:[%s7 + $0x1f0] sm:$0xff]
      %v5474 = vld [vmem:[%s7 + $0x1f8] sm:$0xff]
      %5475 = vmatprep.subr.mxu0 0.0
      %5476 = vmatpush1.xpose.msra.mxu0 0.0
      %5477 = vmatprep.subr.mxu0 0.0
      %5478 = vmatpush1.xpose.msra.mxu0 0.0
      %5479 = vmatprep.subr.mxu0 0.0
      %5480 = vmatpush1.xpose.msra.mxu0 0.0
      %5481 = vmatprep.subr.mxu0 0.0
      %5482 = vmatpush1.xpose.msra.mxu0 0.0
      %5483 = vmatprep.subr.mxu0 0.0
      %5484 = vmatpush1.xpose.msra.mxu0 0.0
      %5485 = vmatprep.subr.mxu0 0.0
      %5486 = vmatpush1.xpose.msra.mxu0 0.0
      %5487 = vmatprep.subr.mxu0 0.0
      %5488 = vmatpush1.xpose.msra.mxu0 0.0
      %5489 = vmatprep.subr.mxu0 0.0
      %5490 = vmatpush1.xpose.msra.mxu0 0.0
      %5491 = vmatprep.subr.mxu0 %v5468
      %5492 = vmatpush1.xpose.msra.mxu0 %v5467
      %5493 = vmatprep.subr.mxu0 %v5460
      %5494 = vmatpush1.xpose.msra.mxu0 %v5459
      %5495 = vmatprep.subr.mxu0 %v5452
      %5496 = vmatpush1.xpose.msra.mxu0 %v5451
      %5497 = vmatprep.subr.mxu0 %v5444
      %5498 = vmatpush1.xpose.msra.mxu0 %v5443
      %5499 = vmatprep.subr.mxu0 %v5436
      %5500 = vmatpush1.xpose.msra.mxu0 %v5435
      %5501 = vmatprep.subr.mxu0 %v5428
      %5502 = vmatpush1.xpose.msra.mxu0 %v5427
      %5503 = vmatprep.subr.mxu0 %v5420
      %5504 = vmatpush1.xpose.msra.mxu0 %v5419
      %5505 = vmatprep.subr.mxu0 %v5412
      %5506 = vmatpush1.xpose.msra.mxu0 %v5411
      %5507 = vmatprep.subr.mxu0 0.0
      %5508 = vmatpush2.xpose.msra.mxu0 0.0
      %5509 = vmatprep.subr.mxu0 0.0
      %5510 = vmatpush2.xpose.msra.mxu0 0.0
      %5511 = vmatprep.subr.mxu0 0.0
      %5512 = vmatpush2.xpose.msra.mxu0 0.0
      %5513 = vmatprep.subr.mxu0 0.0
      %5514 = vmatpush2.xpose.msra.mxu0 0.0
      %5515 = vmatprep.subr.mxu0 0.0
      %5516 = vmatpush2.xpose.msra.mxu0 0.0
      %5517 = vmatprep.subr.mxu0 0.0
      %5518 = vmatpush2.xpose.msra.mxu0 0.0
      %5519 = vmatprep.subr.mxu0 0.0
      %5520 = vmatpush2.xpose.msra.mxu0 0.0
      %5521 = vmatprep.subr.mxu0 0.0
      %5522 = vmatpush2.xpose.msra.mxu0 0.0
      %5523 = vmatprep.subr.mxu0 0.0
      %5524 = vmatpush2.xpose.msra.mxu0 0.0
      %5525 = vmatprep.subr.mxu0 0.0
      %5526 = vmatpush2.xpose.msra.mxu0 0.0
      %5527 = vmatprep.subr.mxu0 0.0
      %5528 = vmatpush2.xpose.msra.mxu0 0.0
      %5529 = vmatprep.subr.mxu0 0.0
      %5530 = vmatpush2.xpose.msra.mxu0 0.0
      %5531 = vmatprep.subr.mxu0 0.0
      %5532 = vmatpush2.xpose.msra.mxu0 0.0
      %5533 = vmatprep.subr.mxu0 0.0
      %5534 = vmatpush2.xpose.msra.mxu0 0.0
      %5535 = vmatprep.subr.mxu0 0.0
      %5536 = vmatpush2.xpose.msra.mxu0 0.0
      %5537 = vmatprep.subr.mxu0 0.0
      %5538 = vmatpush2.xpose.msra.mxu0 0.0
      %5539 = vmatprep.mubr.f32.mxu0 %v5380
      %5540 = vmatmul.mubr.f32.gmra.mxu0 %v5379
      %v5541 = vpop.f32.mrf.mxu0
      %v5542 = vadd.f32 0.0, %v5541
      %v5543 = vpop.f32.mrf.mxu0
      %5544 = vmatprep.mubr.f32.mxu0 %v5388
      %5545 = vmatmul.mubr.f32.gmra.mxu0 %v5387
      %v5546 = vpop.f32.mrf.mxu0
      %v5547 = vadd.f32 0.0, %v5546
      %v5548 = vpop.f32.mrf.mxu0
      %5549 = vmatprep.mubr.f32.mxu0 %v5396
      %5550 = vmatmul.mubr.f32.gmra.mxu0 %v5395
      %v5551 = vpop.f32.mrf.mxu0
      %v5552 = vadd.f32 0.0, %v5551
      %v5553 = vpop.f32.mrf.mxu0
      %5554 = vmatprep.mubr.f32.mxu0 %v5404
      %5555 = vmatmul.mubr.f32.gmra.mxu0 %v5403
      %v5556 = vpop.f32.mrf.mxu0
      %v5557 = vadd.f32 0.0, %v5556
      %v5558 = vpop.f32.mrf.mxu0
      %5559 = vdwg.mxu0
      %5560 = vmatprep.subr.mxu0 0.0
      %5561 = vmatpush1.xpose.msra.mxu0 0.0
      %5562 = vmatprep.subr.mxu0 0.0
      %5563 = vmatpush1.xpose.msra.mxu0 0.0
      %5564 = vmatprep.subr.mxu0 0.0
      %5565 = vmatpush1.xpose.msra.mxu0 0.0
      %5566 = vmatprep.subr.mxu0 0.0
      %5567 = vmatpush1.xpose.msra.mxu0 0.0
      %5568 = vmatprep.subr.mxu0 0.0
      %5569 = vmatpush1.xpose.msra.mxu0 0.0
      %5570 = vmatprep.subr.mxu0 0.0
      %5571 = vmatpush1.xpose.msra.mxu0 0.0
      %5572 = vmatprep.subr.mxu0 0.0
      %5573 = vmatpush1.xpose.msra.mxu0 0.0
      %5574 = vmatprep.subr.mxu0 0.0
      %5575 = vmatpush1.xpose.msra.mxu0 0.0
      %5576 = vmatprep.subr.mxu0 %v5470
      %5577 = vmatpush1.xpose.msra.mxu0 %v5469
      %5578 = vmatprep.subr.mxu0 %v5462
      %5579 = vmatpush1.xpose.msra.mxu0 %v5461
      %5580 = vmatprep.subr.mxu0 %v5454
      %5581 = vmatpush1.xpose.msra.mxu0 %v5453
      %5582 = vmatprep.subr.mxu0 %v5446
      %5583 = vmatpush1.xpose.msra.mxu0 %v5445
      %5584 = vmatprep.subr.mxu0 %v5438
      %5585 = vmatpush1.xpose.msra.mxu0 %v5437
      %5586 = vmatprep.subr.mxu0 %v5430
      %5587 = vmatpush1.xpose.msra.mxu0 %v5429
      %5588 = vmatprep.subr.mxu0 %v5422
      %5589 = vmatpush1.xpose.msra.mxu0 %v5421
      %5590 = vmatprep.subr.mxu0 %v5414
      %5591 = vmatpush1.xpose.msra.mxu0 %v5413
      %5592 = vmatprep.subr.mxu0 0.0
      %5593 = vmatpush2.xpose.msra.mxu0 0.0
      %5594 = vmatprep.subr.mxu0 0.0
      %5595 = vmatpush2.xpose.msra.mxu0 0.0
      %5596 = vmatprep.subr.mxu0 0.0
      %5597 = vmatpush2.xpose.msra.mxu0 0.0
      %5598 = vmatprep.subr.mxu0 0.0
      %5599 = vmatpush2.xpose.msra.mxu0 0.0
      %5600 = vmatprep.subr.mxu0 0.0
      %5601 = vmatpush2.xpose.msra.mxu0 0.0
      %5602 = vmatprep.subr.mxu0 0.0
      %5603 = vmatpush2.xpose.msra.mxu0 0.0
      %5604 = vmatprep.subr.mxu0 0.0
      %5605 = vmatpush2.xpose.msra.mxu0 0.0
      %5606 = vmatprep.subr.mxu0 0.0
      %5607 = vmatpush2.xpose.msra.mxu0 0.0
      %5608 = vmatprep.subr.mxu0 0.0
      %5609 = vmatpush2.xpose.msra.mxu0 0.0
      %5610 = vmatprep.subr.mxu0 0.0
      %5611 = vmatpush2.xpose.msra.mxu0 0.0
      %5612 = vmatprep.subr.mxu0 0.0
      %5613 = vmatpush2.xpose.msra.mxu0 0.0
      %5614 = vmatprep.subr.mxu0 0.0
      %5615 = vmatpush2.xpose.msra.mxu0 0.0
      %5616 = vmatprep.subr.mxu0 0.0
      %5617 = vmatpush2.xpose.msra.mxu0 0.0
      %5618 = vmatprep.subr.mxu0 0.0
      %5619 = vmatpush2.xpose.msra.mxu0 0.0
      %5620 = vmatprep.subr.mxu0 0.0
      %5621 = vmatpush2.xpose.msra.mxu0 0.0
      %5622 = vmatprep.subr.mxu0 0.0
      %5623 = vmatpush2.xpose.msra.mxu0 0.0
      %5624 = vmatprep.mubr.f32.mxu0 %v5382
      %5625 = vmatmul.mubr.f32.gmra.mxu0 %v5381
      %v5626 = vpop.f32.mrf.mxu0
      %v5627 = vadd.f32 %v5542, %v5626
      %v5628 = vpop.f32.mrf.mxu0
      %5629 = vmatprep.mubr.f32.mxu0 %v5390
      %5630 = vmatmul.mubr.f32.gmra.mxu0 %v5389
      %v5631 = vpop.f32.mrf.mxu0
      %v5632 = vadd.f32 %v5547, %v5631
      %v5633 = vpop.f32.mrf.mxu0
      %5634 = vmatprep.mubr.f32.mxu0 %v5398
      %5635 = vmatmul.mubr.f32.gmra.mxu0 %v5397
      %v5636 = vpop.f32.mrf.mxu0
      %v5637 = vadd.f32 %v5552, %v5636
      %v5638 = vpop.f32.mrf.mxu0
      %5639 = vmatprep.mubr.f32.mxu0 %v5406
      %5640 = vmatmul.mubr.f32.gmra.mxu0 %v5405
      %v5641 = vpop.f32.mrf.mxu0
      %v5642 = vadd.f32 %v5557, %v5641
      %v5643 = vpop.f32.mrf.mxu0
      %5644 = vdwg.mxu0
      %5645 = vmatprep.subr.mxu0 0.0
      %5646 = vmatpush1.xpose.msra.mxu0 0.0
      %5647 = vmatprep.subr.mxu0 0.0
      %5648 = vmatpush1.xpose.msra.mxu0 0.0
      %5649 = vmatprep.subr.mxu0 0.0
      %5650 = vmatpush1.xpose.msra.mxu0 0.0
      %5651 = vmatprep.subr.mxu0 0.0
      %5652 = vmatpush1.xpose.msra.mxu0 0.0
      %5653 = vmatprep.subr.mxu0 0.0
      %5654 = vmatpush1.xpose.msra.mxu0 0.0
      %5655 = vmatprep.subr.mxu0 0.0
      %5656 = vmatpush1.xpose.msra.mxu0 0.0
      %5657 = vmatprep.subr.mxu0 0.0
      %5658 = vmatpush1.xpose.msra.mxu0 0.0
      %5659 = vmatprep.subr.mxu0 0.0
      %5660 = vmatpush1.xpose.msra.mxu0 0.0
      %5661 = vmatprep.subr.mxu0 %v5472
      %5662 = vmatpush1.xpose.msra.mxu0 %v5471
      %5663 = vmatprep.subr.mxu0 %v5464
      %5664 = vmatpush1.xpose.msra.mxu0 %v5463
      %5665 = vmatprep.subr.mxu0 %v5456
      %5666 = vmatpush1.xpose.msra.mxu0 %v5455
      %5667 = vmatprep.subr.mxu0 %v5448
      %5668 = vmatpush1.xpose.msra.mxu0 %v5447
      %5669 = vmatprep.subr.mxu0 %v5440
      %5670 = vmatpush1.xpose.msra.mxu0 %v5439
      %5671 = vmatprep.subr.mxu0 %v5432
      %5672 = vmatpush1.xpose.msra.mxu0 %v5431
      %5673 = vmatprep.subr.mxu0 %v5424
      %5674 = vmatpush1.xpose.msra.mxu0 %v5423
      %5675 = vmatprep.subr.mxu0 %v5416
      %5676 = vmatpush1.xpose.msra.mxu0 %v5415
      %5677 = vmatprep.subr.mxu0 0.0
      %5678 = vmatpush2.xpose.msra.mxu0 0.0
      %5679 = vmatprep.subr.mxu0 0.0
      %5680 = vmatpush2.xpose.msra.mxu0 0.0
      %5681 = vmatprep.subr.mxu0 0.0
      %5682 = vmatpush2.xpose.msra.mxu0 0.0
      %5683 = vmatprep.subr.mxu0 0.0
      %5684 = vmatpush2.xpose.msra.mxu0 0.0
      %5685 = vmatprep.subr.mxu0 0.0
      %5686 = vmatpush2.xpose.msra.mxu0 0.0
      %5687 = vmatprep.subr.mxu0 0.0
      %5688 = vmatpush2.xpose.msra.mxu0 0.0
      %5689 = vmatprep.subr.mxu0 0.0
      %5690 = vmatpush2.xpose.msra.mxu0 0.0
      %5691 = vmatprep.subr.mxu0 0.0
      %5692 = vmatpush2.xpose.msra.mxu0 0.0
      %5693 = vmatprep.subr.mxu0 0.0
      %5694 = vmatpush2.xpose.msra.mxu0 0.0
      %5695 = vmatprep.subr.mxu0 0.0
      %5696 = vmatpush2.xpose.msra.mxu0 0.0
      %5697 = vmatprep.subr.mxu0 0.0
      %5698 = vmatpush2.xpose.msra.mxu0 0.0
      %5699 = vmatprep.subr.mxu0 0.0
      %5700 = vmatpush2.xpose.msra.mxu0 0.0
      %5701 = vmatprep.subr.mxu0 0.0
      %5702 = vmatpush2.xpose.msra.mxu0 0.0
      %5703 = vmatprep.subr.mxu0 0.0
      %5704 = vmatpush2.xpose.msra.mxu0 0.0
      %5705 = vmatprep.subr.mxu0 0.0
      %5706 = vmatpush2.xpose.msra.mxu0 0.0
      %5707 = vmatprep.subr.mxu0 0.0
      %5708 = vmatpush2.xpose.msra.mxu0 0.0
      %5709 = vmatprep.mubr.f32.mxu0 %v5384
      %5710 = vmatmul.mubr.f32.gmra.mxu0 %v5383
      %v5711 = vpop.f32.mrf.mxu0
      %v5712 = vadd.f32 %v5627, %v5711
      %v5713 = vpop.f32.mrf.mxu0
      %5714 = vmatprep.mubr.f32.mxu0 %v5392
      %5715 = vmatmul.mubr.f32.gmra.mxu0 %v5391
      %v5716 = vpop.f32.mrf.mxu0
      %v5717 = vadd.f32 %v5632, %v5716
      %v5718 = vpop.f32.mrf.mxu0
      %5719 = vmatprep.mubr.f32.mxu0 %v5400
      %5720 = vmatmul.mubr.f32.gmra.mxu0 %v5399
      %v5721 = vpop.f32.mrf.mxu0
      %v5722 = vadd.f32 %v5637, %v5721
      %v5723 = vpop.f32.mrf.mxu0
      %5724 = vmatprep.mubr.f32.mxu0 %v5408
      %5725 = vmatmul.mubr.f32.gmra.mxu0 %v5407
      %v5726 = vpop.f32.mrf.mxu0
      %v5727 = vadd.f32 %v5642, %v5726
      %v5728 = vpop.f32.mrf.mxu0
      %5729 = vdwg.mxu0
      %5730 = vmatprep.subr.mxu0 0.0
      %5731 = vmatpush1.xpose.msra.mxu0 0.0
      %5732 = vmatprep.subr.mxu0 0.0
      %5733 = vmatpush1.xpose.msra.mxu0 0.0
      %5734 = vmatprep.subr.mxu0 0.0
      %5735 = vmatpush1.xpose.msra.mxu0 0.0
      %5736 = vmatprep.subr.mxu0 0.0
      %5737 = vmatpush1.xpose.msra.mxu0 0.0
      %5738 = vmatprep.subr.mxu0 0.0
      %5739 = vmatpush1.xpose.msra.mxu0 0.0
      %5740 = vmatprep.subr.mxu0 0.0
      %5741 = vmatpush1.xpose.msra.mxu0 0.0
      %5742 = vmatprep.subr.mxu0 0.0
      %5743 = vmatpush1.xpose.msra.mxu0 0.0
      %5744 = vmatprep.subr.mxu0 0.0
      %5745 = vmatpush1.xpose.msra.mxu0 0.0
      %5746 = vmatprep.subr.mxu0 %v5474
      %5747 = vmatpush1.xpose.msra.mxu0 %v5473
      %5748 = vmatprep.subr.mxu0 %v5466
      %5749 = vmatpush1.xpose.msra.mxu0 %v5465
      %5750 = vmatprep.subr.mxu0 %v5458
      %5751 = vmatpush1.xpose.msra.mxu0 %v5457
      %5752 = vmatprep.subr.mxu0 %v5450
      %5753 = vmatpush1.xpose.msra.mxu0 %v5449
      %5754 = vmatprep.subr.mxu0 %v5442
      %5755 = vmatpush1.xpose.msra.mxu0 %v5441
      %5756 = vmatprep.subr.mxu0 %v5434
      %5757 = vmatpush1.xpose.msra.mxu0 %v5433
      %5758 = vmatprep.subr.mxu0 %v5426
      %5759 = vmatpush1.xpose.msra.mxu0 %v5425
      %5760 = vmatprep.subr.mxu0 %v5418
      %5761 = vmatpush1.xpose.msra.mxu0 %v5417
      %5762 = vmatprep.subr.mxu0 0.0
      %5763 = vmatpush2.xpose.msra.mxu0 0.0
      %5764 = vmatprep.subr.mxu0 0.0
      %5765 = vmatpush2.xpose.msra.mxu0 0.0
      %5766 = vmatprep.subr.mxu0 0.0
      %5767 = vmatpush2.xpose.msra.mxu0 0.0
      %5768 = vmatprep.subr.mxu0 0.0
      %5769 = vmatpush2.xpose.msra.mxu0 0.0
      %5770 = vmatprep.subr.mxu0 0.0
      %5771 = vmatpush2.xpose.msra.mxu0 0.0
      %5772 = vmatprep.subr.mxu0 0.0
      %5773 = vmatpush2.xpose.msra.mxu0 0.0
      %5774 = vmatprep.subr.mxu0 0.0
      %5775 = vmatpush2.xpose.msra.mxu0 0.0
      %5776 = vmatprep.subr.mxu0 0.0
      %5777 = vmatpush2.xpose.msra.mxu0 0.0
      %5778 = vmatprep.subr.mxu0 0.0
      %5779 = vmatpush2.xpose.msra.mxu0 0.0
      %5780 = vmatprep.subr.mxu0 0.0
      %5781 = vmatpush2.xpose.msra.mxu0 0.0
      %5782 = vmatprep.subr.mxu0 0.0
      %5783 = vmatpush2.xpose.msra.mxu0 0.0
      %5784 = vmatprep.subr.mxu0 0.0
      %5785 = vmatpush2.xpose.msra.mxu0 0.0
      %5786 = vmatprep.subr.mxu0 0.0
      %5787 = vmatpush2.xpose.msra.mxu0 0.0
      %5788 = vmatprep.subr.mxu0 0.0
      %5789 = vmatpush2.xpose.msra.mxu0 0.0
      %5790 = vmatprep.subr.mxu0 0.0
      %5791 = vmatpush2.xpose.msra.mxu0 0.0
      %5792 = vmatprep.subr.mxu0 0.0
      %5793 = vmatpush2.xpose.msra.mxu0 0.0
      %5794 = vmatprep.mubr.f32.mxu0 %v5386
      %5795 = vmatmul.mubr.f32.gmra.mxu0 %v5385
      %v5796 = vpop.f32.mrf.mxu0
      %v5797 = vadd.f32 %v5712, %v5796
      %v5798 = vpop.f32.mrf.mxu0
      %5799 = vmatprep.mubr.f32.mxu0 %v5394
      %5800 = vmatmul.mubr.f32.gmra.mxu0 %v5393
      %v5801 = vpop.f32.mrf.mxu0
      %v5802 = vadd.f32 %v5717, %v5801
      %v5803 = vpop.f32.mrf.mxu0
      %5804 = vmatprep.mubr.f32.mxu0 %v5402
      %5805 = vmatmul.mubr.f32.gmra.mxu0 %v5401
      %v5806 = vpop.f32.mrf.mxu0
      %v5807 = vadd.f32 %v5722, %v5806
      %v5808 = vpop.f32.mrf.mxu0
      %5809 = vmatprep.mubr.f32.mxu0 %v5410
      %5810 = vmatmul.mubr.f32.gmra.mxu0 %v5409
      %v5811 = vpop.f32.mrf.mxu0
      %v5812 = vadd.f32 %v5727, %v5811
      %v5813 = vpop.f32.mrf.mxu0
      %5814 = vdwg.mxu0
      %v5815 = vld [vmem:[%s8] sm:$0xff]
      %v5816 = vld [vmem:[%s8 + $0x8] sm:$0xff]
      %v5817 = vld [vmem:[%s8 + $0x10] sm:$0xff]
      %v5818 = vld [vmem:[%s8 + $0x18] sm:$0xff]
      %v5819 = vld [vmem:[%s8 + $0x20] sm:$0xff]
      %v5820 = vld [vmem:[%s8 + $0x28] sm:$0xff]
      %v5821 = vld [vmem:[%s8 + $0x30] sm:$0xff]
      %v5822 = vld [vmem:[%s8 + $0x38] sm:$0xff]
      %v5823 = vld [vmem:[%s8 + $0x40] sm:$0xff]
      %v5824 = vld [vmem:[%s8 + $0x48] sm:$0xff]
      %v5825 = vld [vmem:[%s8 + $0x50] sm:$0xff]
      %v5826 = vld [vmem:[%s8 + $0x58] sm:$0xff]
      %v5827 = vld [vmem:[%s8 + $0x60] sm:$0xff]
      %v5828 = vld [vmem:[%s8 + $0x68] sm:$0xff]
      %v5829 = vld [vmem:[%s8 + $0x70] sm:$0xff]
      %v5830 = vld [vmem:[%s8 + $0x78] sm:$0xff]
      %v5831 = vld [vmem:[%s8 + $0x80] sm:$0xff]
      %v5832 = vld [vmem:[%s8 + $0x88] sm:$0xff]
      %v5833 = vld [vmem:[%s8 + $0x90] sm:$0xff]
      %v5834 = vld [vmem:[%s8 + $0x98] sm:$0xff]
      %v5835 = vld [vmem:[%s8 + $0xa0] sm:$0xff]
      %v5836 = vld [vmem:[%s8 + $0xa8] sm:$0xff]
      %v5837 = vld [vmem:[%s8 + $0xb0] sm:$0xff]
      %v5838 = vld [vmem:[%s8 + $0xb8] sm:$0xff]
      %v5839 = vld [vmem:[%s8 + $0xc0] sm:$0xff]
      %v5840 = vld [vmem:[%s8 + $0xc8] sm:$0xff]
      %v5841 = vld [vmem:[%s8 + $0xd0] sm:$0xff]
      %v5842 = vld [vmem:[%s8 + $0xd8] sm:$0xff]
      %v5843 = vld [vmem:[%s8 + $0xe0] sm:$0xff]
      %v5844 = vld [vmem:[%s8 + $0xe8] sm:$0xff]
      %v5845 = vld [vmem:[%s8 + $0xf0] sm:$0xff]
      %v5846 = vld [vmem:[%s8 + $0xf8] sm:$0xff]
      %v5847 = vld [vmem:[%s8 + $0x100] sm:$0xff]
      %v5848 = vld [vmem:[%s8 + $0x108] sm:$0xff]
      %v5849 = vld [vmem:[%s8 + $0x110] sm:$0xff]
      %v5850 = vld [vmem:[%s8 + $0x118] sm:$0xff]
      %v5851 = vld [vmem:[%s8 + $0x120] sm:$0xff]
      %v5852 = vld [vmem:[%s8 + $0x128] sm:$0xff]
      %v5853 = vld [vmem:[%s8 + $0x130] sm:$0xff]
      %v5854 = vld [vmem:[%s8 + $0x138] sm:$0xff]
      %v5855 = vmul.f32 %v5815, %v5797
      %v5856 = vmul.f32 %v5816, %v5802
      %v5857 = vmul.f32 %v5817, %v5807
      %v5858 = vmul.f32 %v5818, %v5812
      %v5859 = vmul.f32 %v5819, %v5797
      %v5860 = vmul.f32 %v5820, %v5802
      %v5861 = vmul.f32 %v5821, %v5807
      %v5862 = vmul.f32 %v5822, %v5812
      %v5863 = vmul.f32 %v5823, %v5797
      %v5864 = vmul.f32 %v5824, %v5802
      %v5865 = vmul.f32 %v5825, %v5807
      %v5866 = vmul.f32 %v5826, %v5812
      %v5867 = vmul.f32 %v5827, %v5797
      %v5868 = vmul.f32 %v5828, %v5802
      %v5869 = vmul.f32 %v5829, %v5807
      %v5870 = vmul.f32 %v5830, %v5812
      %v5871 = vmul.f32 %v5831, %v5797
      %v5872 = vmul.f32 %v5832, %v5802
      %v5873 = vmul.f32 %v5833, %v5807
      %v5874 = vmul.f32 %v5834, %v5812
      %v5875 = vmul.f32 %v5835, %v5797
      %v5876 = vmul.f32 %v5836, %v5802
      %v5877 = vmul.f32 %v5837, %v5807
      %v5878 = vmul.f32 %v5838, %v5812
      %v5879 = vmul.f32 %v5839, %v5797
      %v5880 = vmul.f32 %v5840, %v5802
      %v5881 = vmul.f32 %v5841, %v5807
      %v5882 = vmul.f32 %v5842, %v5812
      %v5883 = vmul.f32 %v5843, %v5797
      %v5884 = vmul.f32 %v5844, %v5802
      %v5885 = vmul.f32 %v5845, %v5807
      %v5886 = vmul.f32 %v5846, %v5812
      %v5887 = vmul.f32 %v5847, %v5797
      %v5888 = vmul.f32 %v5848, %v5802
      %v5889 = vmul.f32 %v5849, %v5807
      %v5890 = vmul.f32 %v5850, %v5812
      %v5891 = vmul.f32 %v5851, %v5797
      %v5892 = vmul.f32 %v5852, %v5802
      %v5893 = vmul.f32 %v5853, %v5807
      %v5894 = vmul.f32 %v5854, %v5812
      %v5895 = vsel %vm792, %v5855, 0.0
      %5896 = vadd.xlane.f32.xlu0 %v5895
      %v5897 = vpop.xlane.xlu0 %5896
      %v5898 = vsel %vm792, %v5856, 0.0
      %5899 = vadd.xlane.f32.xlu0 %v5898
      %v5900 = vpop.xlane.xlu0 %5899
      %v5901 = vsel %vm792, %v5857, 0.0
      %5902 = vadd.xlane.f32.xlu0 %v5901
      %v5903 = vpop.xlane.xlu0 %5902
      %v5904 = vsel %vm792, %v5858, 0.0
      %5905 = vadd.xlane.f32.xlu0 %v5904
      %v5906 = vpop.xlane.xlu0 %5905
      %v5907 = vsel %vm792, %v5859, 0.0
      %5908 = vadd.xlane.f32.xlu0 %v5907
      %v5909 = vpop.xlane.xlu0 %5908
      %v5910 = vsel %vm792, %v5860, 0.0
      %5911 = vadd.xlane.f32.xlu0 %v5910
      %v5912 = vpop.xlane.xlu0 %5911
      %v5913 = vsel %vm792, %v5861, 0.0
      %5914 = vadd.xlane.f32.xlu0 %v5913
      %v5915 = vpop.xlane.xlu0 %5914
      %v5916 = vsel %vm792, %v5862, 0.0
      %5917 = vadd.xlane.f32.xlu0 %v5916
      %v5918 = vpop.xlane.xlu0 %5917
      %v5919 = vsel %vm792, %v5863, 0.0
      %5920 = vadd.xlane.f32.xlu0 %v5919
      %v5921 = vpop.xlane.xlu0 %5920
      %v5922 = vsel %vm792, %v5864, 0.0
      %5923 = vadd.xlane.f32.xlu0 %v5922
      %v5924 = vpop.xlane.xlu0 %5923
      %v5925 = vsel %vm792, %v5865, 0.0
      %5926 = vadd.xlane.f32.xlu0 %v5925
      %v5927 = vpop.xlane.xlu0 %5926
      %v5928 = vsel %vm792, %v5866, 0.0
      %5929 = vadd.xlane.f32.xlu0 %v5928
      %v5930 = vpop.xlane.xlu0 %5929
      %v5931 = vsel %vm792, %v5867, 0.0
      %5932 = vadd.xlane.f32.xlu0 %v5931
      %v5933 = vpop.xlane.xlu0 %5932
      %v5934 = vsel %vm792, %v5868, 0.0
      %5935 = vadd.xlane.f32.xlu0 %v5934
      %v5936 = vpop.xlane.xlu0 %5935
      %v5937 = vsel %vm792, %v5869, 0.0
      %5938 = vadd.xlane.f32.xlu0 %v5937
      %v5939 = vpop.xlane.xlu0 %5938
      %v5940 = vsel %vm792, %v5870, 0.0
      %5941 = vadd.xlane.f32.xlu0 %v5940
      %v5942 = vpop.xlane.xlu0 %5941
      %v5943 = vsel %vm792, %v5871, 0.0
      %5944 = vadd.xlane.f32.xlu0 %v5943
      %v5945 = vpop.xlane.xlu0 %5944
      %v5946 = vsel %vm792, %v5872, 0.0
      %5947 = vadd.xlane.f32.xlu0 %v5946
      %v5948 = vpop.xlane.xlu0 %5947
      %v5949 = vsel %vm792, %v5873, 0.0
      %5950 = vadd.xlane.f32.xlu0 %v5949
      %v5951 = vpop.xlane.xlu0 %5950
      %v5952 = vsel %vm792, %v5874, 0.0
      %5953 = vadd.xlane.f32.xlu0 %v5952
      %v5954 = vpop.xlane.xlu0 %5953
      %v5955 = vsel %vm792, %v5875, 0.0
      %5956 = vadd.xlane.f32.xlu0 %v5955
      %v5957 = vpop.xlane.xlu0 %5956
      %v5958 = vsel %vm792, %v5876, 0.0
      %5959 = vadd.xlane.f32.xlu0 %v5958
      %v5960 = vpop.xlane.xlu0 %5959
      %v5961 = vsel %vm792, %v5877, 0.0
      %5962 = vadd.xlane.f32.xlu0 %v5961
      %v5963 = vpop.xlane.xlu0 %5962
      %v5964 = vsel %vm792, %v5878, 0.0
      %5965 = vadd.xlane.f32.xlu0 %v5964
      %v5966 = vpop.xlane.xlu0 %5965
      %v5967 = vsel %vm792, %v5879, 0.0
      %5968 = vadd.xlane.f32.xlu0 %v5967
      %v5969 = vpop.xlane.xlu0 %5968
      %v5970 = vsel %vm792, %v5880, 0.0
      %5971 = vadd.xlane.f32.xlu0 %v5970
      %v5972 = vpop.xlane.xlu0 %5971
      %v5973 = vsel %vm792, %v5881, 0.0
      %5974 = vadd.xlane.f32.xlu0 %v5973
      %v5975 = vpop.xlane.xlu0 %5974
      %v5976 = vsel %vm792, %v5882, 0.0
      %5977 = vadd.xlane.f32.xlu0 %v5976
      %v5978 = vpop.xlane.xlu0 %5977
      %v5979 = vsel %vm792, %v5883, 0.0
      %5980 = vadd.xlane.f32.xlu0 %v5979
      %v5981 = vpop.xlane.xlu0 %5980
      %v5982 = vsel %vm792, %v5884, 0.0
      %5983 = vadd.xlane.f32.xlu0 %v5982
      %v5984 = vpop.xlane.xlu0 %5983
      %v5985 = vsel %vm792, %v5885, 0.0
      %5986 = vadd.xlane.f32.xlu0 %v5985
      %v5987 = vpop.xlane.xlu0 %5986
      %v5988 = vsel %vm792, %v5886, 0.0
      %5989 = vadd.xlane.f32.xlu0 %v5988
      %v5990 = vpop.xlane.xlu0 %5989
      %v5991 = vsel %vm792, %v5887, 0.0
      %5992 = vadd.xlane.f32.xlu0 %v5991
      %v5993 = vpop.xlane.xlu0 %5992
      %v5994 = vsel %vm792, %v5888, 0.0
      %5995 = vadd.xlane.f32.xlu0 %v5994
      %v5996 = vpop.xlane.xlu0 %5995
      %v5997 = vsel %vm792, %v5889, 0.0
      %5998 = vadd.xlane.f32.xlu0 %v5997
      %v5999 = vpop.xlane.xlu0 %5998
      %v6000 = vsel %vm792, %v5890, 0.0
      %6001 = vadd.xlane.f32.xlu0 %v6000
      %v6002 = vpop.xlane.xlu0 %6001
      %v6003 = vsel %vm792, %v5891, 0.0
      %6004 = vadd.xlane.f32.xlu0 %v6003
      %v6005 = vpop.xlane.xlu0 %6004
      %v6006 = vsel %vm792, %v5892, 0.0
      %6007 = vadd.xlane.f32.xlu0 %v6006
      %v6008 = vpop.xlane.xlu0 %6007
      %v6009 = vsel %vm792, %v5893, 0.0
      %6010 = vadd.xlane.f32.xlu0 %v6009
      %v6011 = vpop.xlane.xlu0 %6010
      %v6012 = vsel %vm792, %v5894, 0.0
      %6013 = vadd.xlane.f32.xlu0 %v6012
      %v6014 = vpop.xlane.xlu0 %6013
      %v6055 = vlaneseq
      %v6056 = vand.u32 %v6055, 127
      %v6057 = vlaneseq
      %v6058 = vshrl.u32 %v6057, 7
      %v6059 = vsub.s32 %v6056, %v6058
      %v6060 = vrot.slane %v5897, %v6059
      %v6061 = vadd.s32 %v6056, 4294967288
      %v6062 = vlaneseq
      %v6063 = vshrl.u32 %v6062, 7
      %v6064 = vsub.s32 %v6061, %v6063
      %v6065 = vrot.slane %v5900, %v6064
      %vm6066 = vcmask 130112
      %v6067 = vsel %vm6066, %v6065, %v6060
      %v6068 = vadd.s32 %v6056, 4294967280
      %v6069 = vlaneseq
      %v6070 = vshrl.u32 %v6069, 7
      %v6071 = vsub.s32 %v6068, %v6070
      %v6072 = vrot.slane %v5903, %v6071
      %vm6073 = vcmask 195712
      %v6074 = vsel %vm6073, %v6072, %v6067
      %v6075 = vadd.s32 %v6056, 4294967272
      %v6076 = vlaneseq
      %v6077 = vshrl.u32 %v6076, 7
      %v6078 = vsub.s32 %v6075, %v6077
      %v6079 = vrot.slane %v5906, %v6078
      %vm6080 = vcmask 261312
      %v6081 = vsel %vm6080, %v6079, %v6074
      %v6082 = vlaneseq
      %v6083 = vshrl.u32 %v6082, 7
      %v6084 = vsub.s32 %v6056, %v6083
      %v6085 = vrot.slane %v5909, %v6084
      %v6086 = vlaneseq
      %v6087 = vshrl.u32 %v6086, 7
      %v6088 = vsub.s32 %v6061, %v6087
      %v6089 = vrot.slane %v5912, %v6088
      %v6090 = vsel %vm6066, %v6089, %v6085
      %v6091 = vlaneseq
      %v6092 = vshrl.u32 %v6091, 7
      %v6093 = vsub.s32 %v6068, %v6092
      %v6094 = vrot.slane %v5915, %v6093
      %v6095 = vsel %vm6073, %v6094, %v6090
      %v6096 = vlaneseq
      %v6097 = vshrl.u32 %v6096, 7
      %v6098 = vsub.s32 %v6075, %v6097
      %v6099 = vrot.slane %v5918, %v6098
      %v6100 = vsel %vm6080, %v6099, %v6095
      %v6101 = vlaneseq
      %v6102 = vshrl.u32 %v6101, 7
      %v6103 = vsub.s32 %v6056, %v6102
      %v6104 = vrot.slane %v5921, %v6103
      %v6105 = vlaneseq
      %v6106 = vshrl.u32 %v6105, 7
      %v6107 = vsub.s32 %v6061, %v6106
      %v6108 = vrot.slane %v5924, %v6107
      %v6109 = vsel %vm6066, %v6108, %v6104
      %v6110 = vlaneseq
      %v6111 = vshrl.u32 %v6110, 7
      %v6112 = vsub.s32 %v6068, %v6111
      %v6113 = vrot.slane %v5927, %v6112
      %v6114 = vsel %vm6073, %v6113, %v6109
      %v6115 = vlaneseq
      %v6116 = vshrl.u32 %v6115, 7
      %v6117 = vsub.s32 %v6075, %v6116
      %v6118 = vrot.slane %v5930, %v6117
      %v6119 = vsel %vm6080, %v6118, %v6114
      %v6120 = vlaneseq
      %v6121 = vshrl.u32 %v6120, 7
      %v6122 = vsub.s32 %v6056, %v6121
      %v6123 = vrot.slane %v5933, %v6122
      %v6124 = vlaneseq
      %v6125 = vshrl.u32 %v6124, 7
      %v6126 = vsub.s32 %v6061, %v6125
      %v6127 = vrot.slane %v5936, %v6126
      %v6128 = vsel %vm6066, %v6127, %v6123
      %v6129 = vlaneseq
      %v6130 = vshrl.u32 %v6129, 7
      %v6131 = vsub.s32 %v6068, %v6130
      %v6132 = vrot.slane %v5939, %v6131
      %v6133 = vsel %vm6073, %v6132, %v6128
      %v6134 = vlaneseq
      %v6135 = vshrl.u32 %v6134, 7
      %v6136 = vsub.s32 %v6075, %v6135
      %v6137 = vrot.slane %v5942, %v6136
      %v6138 = vsel %vm6080, %v6137, %v6133
      %v6139 = vlaneseq
      %v6140 = vshrl.u32 %v6139, 7
      %v6141 = vsub.s32 %v6056, %v6140
      %v6142 = vrot.slane %v5945, %v6141
      %v6143 = vlaneseq
      %v6144 = vshrl.u32 %v6143, 7
      %v6145 = vsub.s32 %v6061, %v6144
      %v6146 = vrot.slane %v5948, %v6145
      %v6147 = vsel %vm6066, %v6146, %v6142
      %v6148 = vlaneseq
      %v6149 = vshrl.u32 %v6148, 7
      %v6150 = vsub.s32 %v6068, %v6149
      %v6151 = vrot.slane %v5951, %v6150
      %v6152 = vsel %vm6073, %v6151, %v6147
      %v6153 = vlaneseq
      %v6154 = vshrl.u32 %v6153, 7
      %v6155 = vsub.s32 %v6075, %v6154
      %v6156 = vrot.slane %v5954, %v6155
      %v6157 = vsel %vm6080, %v6156, %v6152
      %v6158 = vlaneseq
      %v6159 = vshrl.u32 %v6158, 7
      %v6160 = vsub.s32 %v6056, %v6159
      %v6161 = vrot.slane %v5957, %v6160
      %v6162 = vlaneseq
      %v6163 = vshrl.u32 %v6162, 7
      %v6164 = vsub.s32 %v6061, %v6163
      %v6165 = vrot.slane %v5960, %v6164
      %v6166 = vsel %vm6066, %v6165, %v6161
      %v6167 = vlaneseq
      %v6168 = vshrl.u32 %v6167, 7
      %v6169 = vsub.s32 %v6068, %v6168
      %v6170 = vrot.slane %v5963, %v6169
      %v6171 = vsel %vm6073, %v6170, %v6166
      %v6172 = vlaneseq
      %v6173 = vshrl.u32 %v6172, 7
      %v6174 = vsub.s32 %v6075, %v6173
      %v6175 = vrot.slane %v5966, %v6174
      %v6176 = vsel %vm6080, %v6175, %v6171
      %v6177 = vlaneseq
      %v6178 = vshrl.u32 %v6177, 7
      %v6179 = vsub.s32 %v6056, %v6178
      %v6180 = vrot.slane %v5969, %v6179
      %v6181 = vlaneseq
      %v6182 = vshrl.u32 %v6181, 7
      %v6183 = vsub.s32 %v6061, %v6182
      %v6184 = vrot.slane %v5972, %v6183
      %v6185 = vsel %vm6066, %v6184, %v6180
      %v6186 = vlaneseq
      %v6187 = vshrl.u32 %v6186, 7
      %v6188 = vsub.s32 %v6068, %v6187
      %v6189 = vrot.slane %v5975, %v6188
      %v6190 = vsel %vm6073, %v6189, %v6185
      %v6191 = vlaneseq
      %v6192 = vshrl.u32 %v6191, 7
      %v6193 = vsub.s32 %v6075, %v6192
      %v6194 = vrot.slane %v5978, %v6193
      %v6195 = vsel %vm6080, %v6194, %v6190
      %v6196 = vlaneseq
      %v6197 = vshrl.u32 %v6196, 7
      %v6198 = vsub.s32 %v6056, %v6197
      %v6199 = vrot.slane %v5981, %v6198
      %v6200 = vlaneseq
      %v6201 = vshrl.u32 %v6200, 7
      %v6202 = vsub.s32 %v6061, %v6201
      %v6203 = vrot.slane %v5984, %v6202
      %v6204 = vsel %vm6066, %v6203, %v6199
      %v6205 = vlaneseq
      %v6206 = vshrl.u32 %v6205, 7
      %v6207 = vsub.s32 %v6068, %v6206
      %v6208 = vrot.slane %v5987, %v6207
      %v6209 = vsel %vm6073, %v6208, %v6204
      %v6210 = vlaneseq
      %v6211 = vshrl.u32 %v6210, 7
      %v6212 = vsub.s32 %v6075, %v6211
      %v6213 = vrot.slane %v5990, %v6212
      %v6214 = vsel %vm6080, %v6213, %v6209
      %v6215 = vlaneseq
      %v6216 = vshrl.u32 %v6215, 7
      %v6217 = vsub.s32 %v6056, %v6216
      %v6218 = vrot.slane %v5993, %v6217
      %v6219 = vlaneseq
      %v6220 = vshrl.u32 %v6219, 7
      %v6221 = vsub.s32 %v6061, %v6220
      %v6222 = vrot.slane %v5996, %v6221
      %v6223 = vsel %vm6066, %v6222, %v6218
      %v6224 = vlaneseq
      %v6225 = vshrl.u32 %v6224, 7
      %v6226 = vsub.s32 %v6068, %v6225
      %v6227 = vrot.slane %v5999, %v6226
      %v6228 = vsel %vm6073, %v6227, %v6223
      %v6229 = vlaneseq
      %v6230 = vshrl.u32 %v6229, 7
      %v6231 = vsub.s32 %v6075, %v6230
      %v6232 = vrot.slane %v6002, %v6231
      %v6233 = vsel %vm6080, %v6232, %v6228
      %v6234 = vlaneseq
      %v6235 = vshrl.u32 %v6234, 7
      %v6236 = vsub.s32 %v6056, %v6235
      %v6237 = vrot.slane %v6005, %v6236
      %v6238 = vlaneseq
      %v6239 = vshrl.u32 %v6238, 7
      %v6240 = vsub.s32 %v6061, %v6239
      %v6241 = vrot.slane %v6008, %v6240
      %v6242 = vsel %vm6066, %v6241, %v6237
      %v6243 = vlaneseq
      %v6244 = vshrl.u32 %v6243, 7
      %v6245 = vsub.s32 %v6068, %v6244
      %v6246 = vrot.slane %v6011, %v6245
      %v6247 = vsel %vm6073, %v6246, %v6242
      %v6248 = vlaneseq
      %v6249 = vshrl.u32 %v6248, 7
      %v6250 = vsub.s32 %v6075, %v6249
      %v6251 = vrot.slane %v6014, %v6250
      %v6252 = vsel %vm6080, %v6251, %v6247
      %vm6253 = vcmask 1041409
      %v6254 = vsel %vm6253, %v6100, %v6081
      %vm6255 = vcmask 1042434
      %v6256 = vsel %vm6255, %v6119, %v6254
      %vm6257 = vcmask 1043459
      %v6258 = vsel %vm6257, %v6138, %v6256
      %vm6259 = vcmask 1044484
      %v6260 = vsel %vm6259, %v6157, %v6258
      %vm6261 = vcmask 1045509
      %v6262 = vsel %vm6261, %v6176, %v6260
      %vm6263 = vcmask 1046534
      %v6264 = vsel %vm6263, %v6195, %v6262
      %vm6265 = vcmask 1047559
      %v6266 = vsel %vm6265, %v6214, %v6264
      %v6267 = vsel %vm6253, %v6252, %v6233
      %v6270 = vsel %vm1007, %v6266, 0.0
      %6271 = vadd.xlane.f32.xlu0 %v6270
      %v6272 = vpop.xlane.xlu0 %6271
      %vm6273 = vcmask 254976
      %v6274 = vsel %vm6273, %v6267, 0.0
      %6275 = vadd.xlane.f32.xlu0 %v6274
      %v6276 = vpop.xlane.xlu0 %6275
      %v6277 = vld [vmem:[%s9] sm:$0xff]
      %v6278 = vld [vmem:[%s9 + $0x8] sm:$0x3]
      %v6279 = vadd.f32 %v6272, %v6277
      %v6280 = vadd.f32 %v6276, %v6278
      %vm6281 = vcmask 7168
      %6282 = vst.msk [vmem:[%s359] sm:$0xff] %vm6281, %v6279
      %vm6283 = vcmask 1024
      %6284 = vst.msk [vmem:[%s359 + $0x8] sm:$0x3] %vm6283, %v6280
      %p6285 = scmp.lt.s32.totalorder %s21, 1
      %s6286 = scalar_select %p6285, %s21, 1
      %s6287 = smul.addr %s6286, 2
      %s6288 = smul.addr %s6287, 8
      %s6289 = scalar_lea.vmem %s10, %s6288
      // Predicated region
      $region61: #{classifier_2_forward.1} parent=59 // pred_check
        %p6290 = pneg %p254
      $region62: #{classifier_2_forward.1} parent=59 // pred_check_branch
        %6292 = sbr.rel (%p6290) target = $region64
      $region63: #{classifier_2_forward.1} parent=59 // pred_region
        _
      $region64: #{classifier_2_forward.1} parent=59 // pred_fallthru
        _
    $region60: #{classifier_2_forward.1} parent=5 // pred_fallthru
      _
    %p6293 = scmp.le.s32.totalorder 2, %s16
    // Predicated region
    $region65: #{classifier_2_forward.1} parent=5 // pred_check
      %p6294 = pneg %p6293
    $region66: #{classifier_2_forward.1} parent=5 // pred_check_branch
      %6296 = sbr.rel (%p6294) target = $region68
    $region67: #{classifier_2_forward.1} parent=5 // pred_region
      %s6297 = ssub.s32 %s16, 2
      // Predicated region
      $region69: #{classifier_2_forward.1} parent=67 // pred_check
        %p6298 = pneg %p260
      $region70: #{classifier_2_forward.1} parent=67 // pred_check_branch
        %6300 = sbr.rel (%p6298) target = $region72
      $region71: #{classifier_2_forward.1} parent=67 // pred_region
        %p6301 = scmp.lt.s32.totalorder %s22, 1
        %s6302 = scalar_select %p6301, %s22, 1
        %s6303 = smul.addr %s6302, 2
        %s6304 = smul.addr %s6303, 8
        %s6305 = scalar_lea.vmem %s10, %s6304
      $region72: #{classifier_2_forward.1} parent=67 // pred_fallthru
        _
    $region68: #{classifier_2_forward.1} parent=5 // pred_fallthru
      _
  $region6: #{classifier_2_forward.1} parent=0 // loop_footer
    %s20 = sadd.s32 1, %s16
  $region7: #{classifier_2_forward.1} parent=0 // loop_footer_branch
    %15 = sbr.rel target = $region3
  $region8: #{classifier_2_forward.1} parent=0 // loop_exit
    _

</llo_original>
